<compile_context>
chip_gen: v5e
topology: v5e:2x2
jax: 0.10.0
libtpu: 0.0.40
codegen_flags: <defaults>
</compile_context>

<pallas_src>
import functools
import math

import jax
import jax.numpy as jnp
from jax import lax
from jax.experimental import pallas as pl
from jax.experimental.pallas import tpu as pltpu


def _round_up(x, m):
    return (x + m - 1) // m * m


# ----------------------------------------------------------------------
# Fused kernel: 3x3 conv (9 accumulated matmuls over a halo'd row tile)
#               -> ReLU -> fused (center | params) head -> sigmoid / 1.1**x
# Input tile DMA is manually double-buffered across grid iterations.
# ----------------------------------------------------------------------
def romp_fused_kernel(x_hbm, w1_ref, b1_ref, wh_ref, bh_ref,
                      out_ref, xbuf, sem, *, tile_n, wp, halo):
    # x_hbm : (total_rows, Cin) flattened padded NHWC input, left in HBM
    # w1_ref: (9, Cin, Cf)   conv weights, one (Cin, Cf) matrix per 3x3 tap
    # b1_ref: (1, Cf)        conv bias
    # wh_ref: (Cf, 1+P)      fused head weight  (col 0 = center, 1.. = params)
    # bh_ref: (1, 1+P)       fused head bias
    # out_ref: (tile_n, 1+P) combined output block
    # xbuf  : (2*(tile_n+halo), Cin) VMEM scratch, two halo'd tile slots
    # sem   : (2,) DMA semaphores, one per slot

    i = pl.program_id(0)
    nt = pl.num_programs(0)
    chunk = tile_n + halo
    slot = i % 2

    def tile_copy(tidx, s):
        start = pl.multiple_of(tidx * tile_n, tile_n)
        base = pl.multiple_of(s * chunk, 8)
        return pltpu.make_async_copy(
            x_hbm.at[pl.ds(start, chunk)],
            xbuf.at[pl.ds(base, chunk)],
            sem.at[s])

    # Prime the pipeline on the very first step.
    @pl.when(i == 0)
    def _():
        tile_copy(i, slot).start()

    # Prefetch the NEXT tile into the other slot before blocking on this one,
    # so the HBM read overlaps this step's compute.
    @pl.when(i + 1 < nt)
    def _():
        tile_copy(i + 1, 1 - slot).start()

    tile_copy(i, slot).wait()
    base = pl.multiple_of(slot * chunk, 8)

    cf = w1_ref.shape[2]
    acc = jnp.zeros((tile_n, cf), jnp.float32)
    # 3x3 conv, padding=1, stride=1: output row m (top-left anchored in the
    # padded flat layout) needs input rows m + dy*Wp + dx.
    for k in range(9):
        dy, dx = divmod(k, 3)
        o = dy * wp + dx                                     # static offset
        xo = xbuf[pl.ds(base + o, tile_n), :]                # (tile_n, Cin)
        acc = acc + jnp.dot(xo, w1_ref[k],
                            preferred_element_type=jnp.float32)
    feat = jnp.maximum(acc + b1_ref[...], 0.0)

    # Fused heads: one matmul, one lane-combined output block.
    p = jnp.dot(feat, wh_ref[...],
                preferred_element_type=jnp.float32) + bh_ref[...]
    center_col = jax.nn.sigmoid(p[:, 0:1])                   # center heat-map
    scale_col = jnp.exp(math.log(1.1) * p[:, 1:2])           # 1.1 ** params[:, 0]
    col = lax.broadcasted_iota(jnp.int32, p.shape, 1)
    out_ref[...] = jnp.where(col == 0, center_col,
                             jnp.where(col == 1, scale_col, p))


def romp_maps(x_nchw, w1, b1, wh, bh, *, tile_n=512):
    """x_nchw (B, Cin, H, W) f32 -> center (B, H, W), params (B, H, W, P)."""
    B, Cin, H, W = x_nchw.shape
    n_taps, _, Cf = w1.shape
    assert n_taps == 9 and tile_n % 8 == 0
    CH = wh.shape[1]                       # 1 (center) + P (SMPL params)
    Hp, Wp = H + 2, W + 2

    # NCHW -> NHWC, spatial pad by 1 (3x3 conv), flatten rows.  This is the
    # only input pass in XLA land (no 9x im2col materialization).
    x = jnp.transpose(x_nchw, (0, 2, 3, 1)).astype(jnp.float32)
    xp = jnp.pad(x, ((0, 0), (1, 1), (1, 1), (0, 0)))
    x_flat = xp.reshape(B * Hp * Wp, Cin)

    n_rows = B * Hp * Wp
    halo = _round_up(2 * Wp + 2, 8)        # forward halo of the 3x3 window
    num_tiles = pl.cdiv(n_rows, tile_n)
    total_rows = num_tiles * tile_n + halo
    x_flat = jnp.pad(x_flat, ((0, total_rows - n_rows), (0, 0)))  # zero guard

    kernel = functools.partial(romp_fused_kernel,
                               tile_n=tile_n, wp=Wp, halo=halo)
    const2 = lambda i: (0, 0)

    out_flat = pl.pallas_call(
        kernel,
        out_shape=jax.ShapeDtypeStruct((num_tiles * tile_n, CH), jnp.float32),
        grid_spec=pltpu.PrefetchScalarGridSpec(
            num_scalar_prefetch=0,
            grid=(num_tiles,),
            in_specs=[
                pl.BlockSpec(memory_space=pl.ANY),      # raw HBM; manual halo DMA
                pl.BlockSpec((9, Cin, Cf), lambda i: (0, 0, 0)),
                pl.BlockSpec((1, Cf), const2),
                pl.BlockSpec((Cf, CH), const2),
                pl.BlockSpec((1, CH), const2),
            ],
            out_specs=pl.BlockSpec((tile_n, CH), lambda i: (i, 0)),
            scratch_shapes=[
                pltpu.VMEM((2 * (tile_n + halo), Cin), jnp.float32),
                pltpu.SemaphoreType.DMA((2,)),
            ],
        ),
        # Cross-iteration double-buffer state => reduction-style sequential axis.
        compiler_params=pltpu.CompilerParams(
            dimension_semantics=("arbitrary",)),
    )(x_flat, w1, b1, wh, bh)

    # Crop the valid (top-left anchored) conv positions and split the heads.
    maps = out_flat[:n_rows].reshape(B, Hp, Wp, CH)[:, :H, :W, :]
    center = maps[..., 0]                  # (B, H, W)
    params = maps[..., 1:]                 # (B, H, W, P); channel 0 = 1.1**x
    return center, params


# ----------------------------------------------------------------------
# convert_cam_to_3d_trans: [tx/s, ty/s, 1/s] * 2  (plain jnp, tiny tensor)
# ----------------------------------------------------------------------
def convert_cam_to_3d_trans(cam, weight=2.0):
    s = jnp.maximum(cam[..., 0], 1e-6)     # s = 1.1**x > 0; guard underflow
    inv_s = 1.0 / s
    return jnp.stack([cam[..., 1] * inv_s, cam[..., 2] * inv_s, inv_s],
                     axis=-1) * weight


# ----------------------------------------------------------------------
# Full (synthetic) ROMP single-image forward
# ----------------------------------------------------------------------
def romp_forward(x_nchw, weights, *, center_thresh=0.25, max_people=4):
    center, params = romp_maps(x_nchw, *weights)

    # CenterMap parsing: 3x3 max-pool NMS (plateau-inclusive) + threshold +
    # fixed top-k gathering.
    # TODO(synk): the reference produces variable-length detection lists;
    # that data-dependent shape has no clean Pallas equivalent, so a fixed
    # top-k is done in plain JAX glue.
    pooled = lax.reduce_window(center, -jnp.inf, lax.max,
                               (1, 3, 3), (1, 1, 1), "SAME")
    keep = (center >= pooled) & (center > center_thresh)
    scores = jnp.where(keep, center, -1e9)

    B, H, W = center.shape
    P = params.shape[-1]
    topv, topi = lax.top_k(scores.reshape(B, H * W), max_people)
    sel = jnp.take_along_axis(params.reshape(B, H * W, P),
                              topi[..., None], axis=1)      # (B, K, P)

    cam = sel[..., :3]                                       # [scale, tx, ty]
    cam_trans = convert_cam_to_3d_trans(cam)                 # (B, K, 3)

    return {
        "center_maps": center,             # (B, H, W)
        "params_maps": params,             # (B, H, W, P), ch 0 already 1.1**x
        "center_confs": topv,              # (B, K)
        "cam": cam,                        # (B, K, 3)
        "cam_trans": cam_trans,            # (B, K, 3)
        "smpl_params": sel[..., 3:],       # (B, K, P-3)
    }


# ----------------------------------------------------------------------
# Deterministic parameter construction + demo
# ----------------------------------------------------------------------
def make_weights(key, cin=4, cf=32, p=8):
    k1, k2 = jax.random.split(key)
    w1 = jax.random.normal(k1, (9, cin, cf), jnp.float32) / jnp.sqrt(9.0 * cin)
    b1 = jnp.zeros((1, cf), jnp.float32)
    # Fused head weight: column 0 = center logit, columns 1..p = SMPL params.
    wh = jax.random.normal(k2, (cf, 1 + p), jnp.float32) / jnp.sqrt(float(cf))
    bh = jnp.zeros((1, 1 + p), jnp.float32)
    return (w1, b1, wh, bh)


if __name__ == "__main__":
    key = jax.random.PRNGKey(0)
    kx, kw = jax.random.split(key)

    B, C, H, W = 2, 4, 16, 16              # NCHW, like the PyTorch module input
    x = jax.random.normal(kx, (B, C, H, W), jnp.float32)
    weights = make_weights(kw, cin=C, cf=32, p=8)

    fwd = jax.jit(functools.partial(romp_forward,
                                    center_thresh=0.25, max_people=4))
    out = fwd(x, weights)
    jax.block_until_ready(out)

    assert out["center_maps"].shape == (B, H, W)
    assert out["params_maps"].shape == (B, H, W, 8)
    assert out["cam_trans"].shape == (B, 4, 3)
    print("KERNEL_OK")
</pallas_src>

<mosaic_0001>
module attributes {stable_mosaic.version = 11 : i64} {
  func.func @romp_fused_kernel(%arg0: i32, %arg1: memref<1064x4xf32, #tpu.memory_space<any>>, %arg2: memref<9x4x32xf32, #tpu.memory_space<vmem>>, %arg3: memref<1x32xf32, #tpu.memory_space<vmem>>, %arg4: memref<32x9xf32, #tpu.memory_space<vmem>>, %arg5: memref<1x9xf32, #tpu.memory_space<vmem>>, %arg6: memref<512x9xf32, #tpu.memory_space<vmem>>, %arg7: memref<1104x4xf32, #tpu.memory_space<vmem>>, %arg8: memref<2x!tpu.dma_semaphore, #tpu.memory_space<semaphore_mem>>) attributes {dimension_semantics = [#tpu.dimension_semantics<arbitrary>], iteration_bounds = array<i64: 2>, scalar_prefetch = 0 : i64, scratch_operands = 2 : i64, tpu.core_type = #tpu.core_type<tc>, window_params = [{}, {pipeline_mode = #tpu.pipeline_mode<synchronous>, transform_indices = @transform_1, window_bounds = array<i64: 9, 4, 32>}, {pipeline_mode = #tpu.pipeline_mode<synchronous>, transform_indices = @transform_2, window_bounds = array<i64: 1, 32>}, {pipeline_mode = #tpu.pipeline_mode<synchronous>, transform_indices = @transform_3, window_bounds = array<i64: 32, 9>}, {pipeline_mode = #tpu.pipeline_mode<synchronous>, transform_indices = @transform_4, window_bounds = array<i64: 1, 9>}, {transform_indices = @transform_5, window_bounds = array<i64: 512, 9>}]} {
    %c2_i32 = arith.constant 2 : i32
    %c0_i32 = arith.constant 0 : i32
    %0 = arith.cmpi eq, %c2_i32, %c0_i32 : i32
    %c1_i32 = arith.constant 1 : i32
    %1 = arith.select %0, %c1_i32, %c2_i32 : i32
    %2 = arith.remsi %arg0, %1 : i32
    %c0_i32_0 = arith.constant 0 : i32
    %3 = arith.cmpi ne, %2, %c0_i32_0 : i32
    %c0_i32_1 = arith.constant 0 : i32
    %4 = arith.cmpi slt, %2, %c0_i32_1 : i32
    %c0_i32_2 = arith.constant 0 : i32
    %5 = arith.cmpi slt, %1, %c0_i32_2 : i32
    %6 = arith.xori %4, %5 : i1
    %7 = arith.andi %6, %3 : i1
    %8 = arith.addi %2, %1 : i32
    %9 = arith.select %7, %8, %2 : i32
    %c0_i32_3 = arith.constant 0 : i32
    %10 = arith.cmpi eq, %arg0, %c0_i32_3 : i32
    %11 = arith.extui %10 : i1 to i32
    %c0_i32_4 = arith.constant 0 : i32
    %12 = arith.cmpi ne, %11, %c0_i32_4 : i32
    scf.if %12 {
      %c512_i32_64 = arith.constant 512 : i32
      %123 = arith.muli %arg0, %c512_i32_64 : i32
      %124 = tpu.assume_multiple %123, 512 : i32
      %c552_i32_65 = arith.constant 552 : i32
      %125 = arith.muli %9, %c552_i32_65 : i32
      %126 = tpu.assume_multiple %125, 8 : i32
      %c0_i32_66 = arith.constant 0 : i32
      %127 = tpu.memref_slice %arg1[%124, %c0_i32_66] : memref<1064x4xf32, #tpu.memory_space<any>> -> memref<552x4xf32, #tpu.memory_space<any>>
      %c0_i32_67 = arith.constant 0 : i32
      %128 = tpu.memref_slice %arg7[%126, %c0_i32_67] : memref<1104x4xf32, #tpu.memory_space<vmem>> -> memref<552x4xf32, #tpu.memory_space<vmem>>
      %129 = tpu.memref_slice %arg8[%9] : memref<2x!tpu.dma_semaphore, #tpu.memory_space<semaphore_mem>> -> memref<1x!tpu.dma_semaphore, #tpu.memory_space<semaphore_mem>>
      %130 = tpu.memref_squeeze %129 : memref<1x!tpu.dma_semaphore, #tpu.memory_space<semaphore_mem>> -> memref<!tpu.dma_semaphore, #tpu.memory_space<semaphore_mem>>
      tpu.enqueue_dma source(%127 : memref<552x4xf32, #tpu.memory_space<any>>) target(%128 : memref<552x4xf32, #tpu.memory_space<vmem>>) target_semaphore(%130 : memref<!tpu.dma_semaphore, #tpu.memory_space<semaphore_mem>>)
    } else {
    }
    %c1_i32_5 = arith.constant 1 : i32
    %13 = arith.addi %arg0, %c1_i32_5 : i32
    %c2_i32_6 = arith.constant 2 : i32
    %14 = arith.cmpi slt, %13, %c2_i32_6 : i32
    %15 = arith.extui %14 : i1 to i32
    %c0_i32_7 = arith.constant 0 : i32
    %16 = arith.cmpi ne, %15, %c0_i32_7 : i32
    scf.if %16 {
      %c1_i32_64 = arith.constant 1 : i32
      %123 = arith.addi %arg0, %c1_i32_64 : i32
      %c1_i32_65 = arith.constant 1 : i32
      %124 = arith.subi %c1_i32_65, %9 : i32
      %c512_i32_66 = arith.constant 512 : i32
      %125 = arith.muli %123, %c512_i32_66 : i32
      %126 = tpu.assume_multiple %125, 512 : i32
      %c552_i32_67 = arith.constant 552 : i32
      %127 = arith.muli %124, %c552_i32_67 : i32
      %128 = tpu.assume_multiple %127, 8 : i32
      %c0_i32_68 = arith.constant 0 : i32
      %129 = tpu.memref_slice %arg1[%126, %c0_i32_68] : memref<1064x4xf32, #tpu.memory_space<any>> -> memref<552x4xf32, #tpu.memory_space<any>>
      %c0_i32_69 = arith.constant 0 : i32
      %130 = tpu.memref_slice %arg7[%128, %c0_i32_69] : memref<1104x4xf32, #tpu.memory_space<vmem>> -> memref<552x4xf32, #tpu.memory_space<vmem>>
      %131 = tpu.memref_slice %arg8[%124] : memref<2x!tpu.dma_semaphore, #tpu.memory_space<semaphore_mem>> -> memref<1x!tpu.dma_semaphore, #tpu.memory_space<semaphore_mem>>
      %132 = tpu.memref_squeeze %131 : memref<1x!tpu.dma_semaphore, #tpu.memory_space<semaphore_mem>> -> memref<!tpu.dma_semaphore, #tpu.memory_space<semaphore_mem>>
      tpu.enqueue_dma source(%129 : memref<552x4xf32, #tpu.memory_space<any>>) target(%130 : memref<552x4xf32, #tpu.memory_space<vmem>>) target_semaphore(%132 : memref<!tpu.dma_semaphore, #tpu.memory_space<semaphore_mem>>)
    } else {
    }
    %c512_i32 = arith.constant 512 : i32
    %17 = arith.muli %arg0, %c512_i32 : i32
    %18 = tpu.assume_multiple %17, 512 : i32
    %c552_i32 = arith.constant 552 : i32
    %19 = arith.muli %9, %c552_i32 : i32
    %20 = tpu.assume_multiple %19, 8 : i32
    %c0_i32_8 = arith.constant 0 : i32
    %21 = tpu.memref_slice %arg1[%18, %c0_i32_8] : memref<1064x4xf32, #tpu.memory_space<any>> -> memref<552x4xf32, #tpu.memory_space<any>>
    %c0_i32_9 = arith.constant 0 : i32
    %22 = tpu.memref_slice %arg7[%20, %c0_i32_9] : memref<1104x4xf32, #tpu.memory_space<vmem>> -> memref<552x4xf32, #tpu.memory_space<vmem>>
    %23 = tpu.memref_slice %arg8[%9] : memref<2x!tpu.dma_semaphore, #tpu.memory_space<semaphore_mem>> -> memref<1x!tpu.dma_semaphore, #tpu.memory_space<semaphore_mem>>
    %24 = tpu.memref_squeeze %23 : memref<1x!tpu.dma_semaphore, #tpu.memory_space<semaphore_mem>> -> memref<!tpu.dma_semaphore, #tpu.memory_space<semaphore_mem>>
    tpu.wait_dma2 semaphore(%24 : memref<!tpu.dma_semaphore, #tpu.memory_space<semaphore_mem>>) src(%21 : memref<552x4xf32, #tpu.memory_space<any>>) dst(%22 : memref<552x4xf32, #tpu.memory_space<vmem>>)
    %c552_i32_10 = arith.constant 552 : i32
    %25 = arith.muli %9, %c552_i32_10 : i32
    %26 = tpu.assume_multiple %25, 8 : i32
    %cst = arith.constant 0.000000e+00 : f32
    %27 = vector.broadcast %cst : f32 to vector<512x32xf32>
    %c0_i32_11 = arith.constant 0 : i32
    %28 = arith.addi %26, %c0_i32_11 : i32
    %29 = arith.index_cast %28 : i32 to index
    %c0 = arith.constant 0 : index
    %30 = vector.load %arg7[%29, %c0] : memref<1104x4xf32, #tpu.memory_space<vmem>>, vector<512x4xf32>
    %c0_12 = arith.constant 0 : index
    %c0_13 = arith.constant 0 : index
    %c0_14 = arith.constant 0 : index
    %31 = vector.load %arg2[%c0_12, %c0_13, %c0_14] : memref<9x4x32xf32, #tpu.memory_space<vmem>>, vector<1x4x32xf32>
    %32 = vector.shape_cast %31 : vector<1x4x32xf32> to vector<4x32xf32>
    %cst_15 = arith.constant dense<0.000000e+00> : vector<512x32xf32>
    %33 = tpu.matmul %30, %32, %cst_15 {dimension_numbers = #tpu.dot_dimension_numbers<[1], [0], [0], [1], [0, 0, 1, 1], [], []>} : vector<512x4xf32>, vector<4x32xf32>, vector<512x32xf32> -> vector<512x32xf32>
    %34 = arith.addf %27, %33 : vector<512x32xf32>
    %c1_i32_16 = arith.constant 1 : i32
    %35 = arith.addi %26, %c1_i32_16 : i32
    %36 = arith.index_cast %35 : i32 to index
    %c0_17 = arith.constant 0 : index
    %37 = vector.load %arg7[%36, %c0_17] : memref<1104x4xf32, #tpu.memory_space<vmem>>, vector<512x4xf32>
    %c1 = arith.constant 1 : index
    %c0_18 = arith.constant 0 : index
    %c0_19 = arith.constant 0 : index
    %38 = vector.load %arg2[%c1, %c0_18, %c0_19] : memref<9x4x32xf32, #tpu.memory_space<vmem>>, vector<1x4x32xf32>
    %39 = vector.shape_cast %38 : vector<1x4x32xf32> to vector<4x32xf32>
    %cst_20 = arith.constant dense<0.000000e+00> : vector<512x32xf32>
    %40 = tpu.matmul %37, %39, %cst_20 {dimension_numbers = #tpu.dot_dimension_numbers<[1], [0], [0], [1], [0, 0, 1, 1], [], []>} : vector<512x4xf32>, vector<4x32xf32>, vector<512x32xf32> -> vector<512x32xf32>
    %41 = arith.addf %34, %40 : vector<512x32xf32>
    %c2_i32_21 = arith.constant 2 : i32
    %42 = arith.addi %26, %c2_i32_21 : i32
    %43 = arith.index_cast %42 : i32 to index
    %c0_22 = arith.constant 0 : index
    %44 = vector.load %arg7[%43, %c0_22] : memref<1104x4xf32, #tpu.memory_space<vmem>>, vector<512x4xf32>
    %c2 = arith.constant 2 : index
    %c0_23 = arith.constant 0 : index
    %c0_24 = arith.constant 0 : index
    %45 = vector.load %arg2[%c2, %c0_23, %c0_24] : memref<9x4x32xf32, #tpu.memory_space<vmem>>, vector<1x4x32xf32>
    %46 = vector.shape_cast %45 : vector<1x4x32xf32> to vector<4x32xf32>
    %cst_25 = arith.constant dense<0.000000e+00> : vector<512x32xf32>
    %47 = tpu.matmul %44, %46, %cst_25 {dimension_numbers = #tpu.dot_dimension_numbers<[1], [0], [0], [1], [0, 0, 1, 1], [], []>} : vector<512x4xf32>, vector<4x32xf32>, vector<512x32xf32> -> vector<512x32xf32>
    %48 = arith.addf %41, %47 : vector<512x32xf32>
    %c18_i32 = arith.constant 18 : i32
    %49 = arith.addi %26, %c18_i32 : i32
    %50 = arith.index_cast %49 : i32 to index
    %c0_26 = arith.constant 0 : index
    %51 = vector.load %arg7[%50, %c0_26] : memref<1104x4xf32, #tpu.memory_space<vmem>>, vector<512x4xf32>
    %c3 = arith.constant 3 : index
    %c0_27 = arith.constant 0 : index
    %c0_28 = arith.constant 0 : index
    %52 = vector.load %arg2[%c3, %c0_27, %c0_28] : memref<9x4x32xf32, #tpu.memory_space<vmem>>, vector<1x4x32xf32>
    %53 = vector.shape_cast %52 : vector<1x4x32xf32> to vector<4x32xf32>
    %cst_29 = arith.constant dense<0.000000e+00> : vector<512x32xf32>
    %54 = tpu.matmul %51, %53, %cst_29 {dimension_numbers = #tpu.dot_dimension_numbers<[1], [0], [0], [1], [0, 0, 1, 1], [], []>} : vector<512x4xf32>, vector<4x32xf32>, vector<512x32xf32> -> vector<512x32xf32>
    %55 = arith.addf %48, %54 : vector<512x32xf32>
    %c19_i32 = arith.constant 19 : i32
    %56 = arith.addi %26, %c19_i32 : i32
    %57 = arith.index_cast %56 : i32 to index
    %c0_30 = arith.constant 0 : index
    %58 = vector.load %arg7[%57, %c0_30] : memref<1104x4xf32, #tpu.memory_space<vmem>>, vector<512x4xf32>
    %c4 = arith.constant 4 : index
    %c0_31 = arith.constant 0 : index
    %c0_32 = arith.constant 0 : index
    %59 = vector.load %arg2[%c4, %c0_31, %c0_32] : memref<9x4x32xf32, #tpu.memory_space<vmem>>, vector<1x4x32xf32>
    %60 = vector.shape_cast %59 : vector<1x4x32xf32> to vector<4x32xf32>
    %cst_33 = arith.constant dense<0.000000e+00> : vector<512x32xf32>
    %61 = tpu.matmul %58, %60, %cst_33 {dimension_numbers = #tpu.dot_dimension_numbers<[1], [0], [0], [1], [0, 0, 1, 1], [], []>} : vector<512x4xf32>, vector<4x32xf32>, vector<512x32xf32> -> vector<512x32xf32>
    %62 = arith.addf %55, %61 : vector<512x32xf32>
    %c20_i32 = arith.constant 20 : i32
    %63 = arith.addi %26, %c20_i32 : i32
    %64 = arith.index_cast %63 : i32 to index
    %c0_34 = arith.constant 0 : index
    %65 = vector.load %arg7[%64, %c0_34] : memref<1104x4xf32, #tpu.memory_space<vmem>>, vector<512x4xf32>
    %c5 = arith.constant 5 : index
    %c0_35 = arith.constant 0 : index
    %c0_36 = arith.constant 0 : index
    %66 = vector.load %arg2[%c5, %c0_35, %c0_36] : memref<9x4x32xf32, #tpu.memory_space<vmem>>, vector<1x4x32xf32>
    %67 = vector.shape_cast %66 : vector<1x4x32xf32> to vector<4x32xf32>
    %cst_37 = arith.constant dense<0.000000e+00> : vector<512x32xf32>
    %68 = tpu.matmul %65, %67, %cst_37 {dimension_numbers = #tpu.dot_dimension_numbers<[1], [0], [0], [1], [0, 0, 1, 1], [], []>} : vector<512x4xf32>, vector<4x32xf32>, vector<512x32xf32> -> vector<512x32xf32>
    %69 = arith.addf %62, %68 : vector<512x32xf32>
    %c36_i32 = arith.constant 36 : i32
    %70 = arith.addi %26, %c36_i32 : i32
    %71 = arith.index_cast %70 : i32 to index
    %c0_38 = arith.constant 0 : index
    %72 = vector.load %arg7[%71, %c0_38] : memref<1104x4xf32, #tpu.memory_space<vmem>>, vector<512x4xf32>
    %c6 = arith.constant 6 : index
    %c0_39 = arith.constant 0 : index
    %c0_40 = arith.constant 0 : index
    %73 = vector.load %arg2[%c6, %c0_39, %c0_40] : memref<9x4x32xf32, #tpu.memory_space<vmem>>, vector<1x4x32xf32>
    %74 = vector.shape_cast %73 : vector<1x4x32xf32> to vector<4x32xf32>
    %cst_41 = arith.constant dense<0.000000e+00> : vector<512x32xf32>
    %75 = tpu.matmul %72, %74, %cst_41 {dimension_numbers = #tpu.dot_dimension_numbers<[1], [0], [0], [1], [0, 0, 1, 1], [], []>} : vector<512x4xf32>, vector<4x32xf32>, vector<512x32xf32> -> vector<512x32xf32>
    %76 = arith.addf %69, %75 : vector<512x32xf32>
    %c37_i32 = arith.constant 37 : i32
    %77 = arith.addi %26, %c37_i32 : i32
    %78 = arith.index_cast %77 : i32 to index
    %c0_42 = arith.constant 0 : index
    %79 = vector.load %arg7[%78, %c0_42] : memref<1104x4xf32, #tpu.memory_space<vmem>>, vector<512x4xf32>
    %c7 = arith.constant 7 : index
    %c0_43 = arith.constant 0 : index
    %c0_44 = arith.constant 0 : index
    %80 = vector.load %arg2[%c7, %c0_43, %c0_44] : memref<9x4x32xf32, #tpu.memory_space<vmem>>, vector<1x4x32xf32>
    %81 = vector.shape_cast %80 : vector<1x4x32xf32> to vector<4x32xf32>
    %cst_45 = arith.constant dense<0.000000e+00> : vector<512x32xf32>
    %82 = tpu.matmul %79, %81, %cst_45 {dimension_numbers = #tpu.dot_dimension_numbers<[1], [0], [0], [1], [0, 0, 1, 1], [], []>} : vector<512x4xf32>, vector<4x32xf32>, vector<512x32xf32> -> vector<512x32xf32>
    %83 = arith.addf %76, %82 : vector<512x32xf32>
    %c38_i32 = arith.constant 38 : i32
    %84 = arith.addi %26, %c38_i32 : i32
    %85 = arith.index_cast %84 : i32 to index
    %c0_46 = arith.constant 0 : index
    %86 = vector.load %arg7[%85, %c0_46] : memref<1104x4xf32, #tpu.memory_space<vmem>>, vector<512x4xf32>
    %c8 = arith.constant 8 : index
    %c0_47 = arith.constant 0 : index
    %c0_48 = arith.constant 0 : index
    %87 = vector.load %arg2[%c8, %c0_47, %c0_48] : memref<9x4x32xf32, #tpu.memory_space<vmem>>, vector<1x4x32xf32>
    %88 = vector.shape_cast %87 : vector<1x4x32xf32> to vector<4x32xf32>
    %cst_49 = arith.constant dense<0.000000e+00> : vector<512x32xf32>
    %89 = tpu.matmul %86, %88, %cst_49 {dimension_numbers = #tpu.dot_dimension_numbers<[1], [0], [0], [1], [0, 0, 1, 1], [], []>} : vector<512x4xf32>, vector<4x32xf32>, vector<512x32xf32> -> vector<512x32xf32>
    %90 = arith.addf %83, %89 : vector<512x32xf32>
    %c0_50 = arith.constant 0 : index
    %c0_51 = arith.constant 0 : index
    %91 = vector.load %arg3[%c0_50, %c0_51] : memref<1x32xf32, #tpu.memory_space<vmem>>, vector<1x32xf32>
    %92 = vector.broadcast %91 : vector<1x32xf32> to vector<512x32xf32>
    %93 = arith.addf %90, %92 : vector<512x32xf32>
    %cst_52 = arith.constant 0.000000e+00 : f32
    %94 = vector.broadcast %cst_52 : f32 to vector<512x32xf32>
    %95 = arith.maximumf %93, %94 : vector<512x32xf32>
    %c0_53 = arith.constant 0 : index
    %c0_54 = arith.constant 0 : index
    %96 = vector.load %arg4[%c0_53, %c0_54] : memref<32x9xf32, #tpu.memory_space<vmem>>, vector<32x9xf32>
    %cst_55 = arith.constant dense<0.000000e+00> : vector<512x9xf32>
    %97 = tpu.matmul %95, %96, %cst_55 {dimension_numbers = #tpu.dot_dimension_numbers<[1], [0], [0], [1], [0, 0, 1, 1], [], []>} : vector<512x32xf32>, vector<32x9xf32>, vector<512x9xf32> -> vector<512x9xf32>
    %c0_56 = arith.constant 0 : index
    %c0_57 = arith.constant 0 : index
    %98 = vector.load %arg5[%c0_56, %c0_57] : memref<1x9xf32, #tpu.memory_space<vmem>>, vector<1x9xf32>
    %99 = vector.broadcast %98 : vector<1x9xf32> to vector<512x9xf32>
    %100 = arith.addf %97, %99 : vector<512x9xf32>
    %101 = vector.extract_strided_slice %100 {offsets = [0, 0], sizes = [512, 1], strides = [1, 1]} : vector<512x9xf32> to vector<512x1xf32>
    %102 = arith.negf %101 : vector<512x1xf32>
    %103 = math.exp %102 : vector<512x1xf32>
    %cst_58 = arith.constant 1.000000e+00 : f32
    %104 = vector.broadcast %cst_58 : f32 to vector<512x1xf32>
    %105 = arith.addf %104, %103 : vector<512x1xf32>
    %106 = arith.divf %104, %105 : vector<512x1xf32>
    %107 = vector.extract_strided_slice %100 {offsets = [0, 1], sizes = [512, 1], strides = [1, 1]} : vector<512x9xf32> to vector<512x1xf32>
    %cst_59 = arith.constant 0.0953101813 : f32
    %108 = vector.broadcast %cst_59 : f32 to vector<512x1xf32>
    %109 = arith.mulf %108, %107 : vector<512x1xf32>
    %110 = math.exp %109 : vector<512x1xf32>
    %111 = tpu.iota {dimensions = array<i32: 1>} : vector<512x9xi32>
    %c0_i32_60 = arith.constant 0 : i32
    %112 = vector.broadcast %c0_i32_60 : i32 to vector<512x9xi32>
    %113 = arith.cmpi eq, %111, %112 : vector<512x9xi32>
    %c1_i32_61 = arith.constant 1 : i32
    %114 = vector.broadcast %c1_i32_61 : i32 to vector<512x9xi32>
    %115 = arith.cmpi eq, %111, %114 : vector<512x9xi32>
    %116 = vector.shape_cast %110 : vector<512x1xf32> to vector<512x1xf32>
    %117 = vector.broadcast %116 : vector<512x1xf32> to vector<512x9xf32>
    %118 = arith.select %115, %117, %100 : vector<512x9xi1>, vector<512x9xf32>
    %119 = vector.shape_cast %106 : vector<512x1xf32> to vector<512x1xf32>
    %120 = vector.broadcast %119 : vector<512x1xf32> to vector<512x9xf32>
    %121 = arith.select %113, %120, %118 : vector<512x9xi1>, vector<512x9xf32>
    %c0_62 = arith.constant 0 : index
    %c0_63 = arith.constant 0 : index
    %122 = vector.load %arg6[%c0_62, %c0_63] : memref<512x9xf32, #tpu.memory_space<vmem>>, vector<512x9xf32>
    tpu.vector_store %arg6[%c0_62, %c0_63], %121 {strides = array<i32>} : memref<512x9xf32, #tpu.memory_space<vmem>>, vector<512x9xf32>,
    return
  }
  func.func @transform_1(%arg0: i32) -> (i32, i32, i32) {
    %c0_i32 = arith.constant 0 : i32
    %c0_i32_0 = arith.constant 0 : i32
    %c0_i32_1 = arith.constant 0 : i32
    %c0_i32_2 = arith.constant 0 : i32
    return %c0_i32, %c0_i32_0, %c0_i32_1 : i32, i32, i32
  }
  func.func @transform_2(%arg0: i32) -> (i32, i32) {
    %c0_i32 = arith.constant 0 : i32
    %c0_i32_0 = arith.constant 0 : i32
    %c0_i32_1 = arith.constant 0 : i32
    return %c0_i32, %c0_i32_0 : i32, i32
  }
  func.func @transform_3(%arg0: i32) -> (i32, i32) {
    %c0_i32 = arith.constant 0 : i32
    %c0_i32_0 = arith.constant 0 : i32
    %c0_i32_1 = arith.constant 0 : i32
    return %c0_i32, %c0_i32_0 : i32, i32
  }
  func.func @transform_4(%arg0: i32) -> (i32, i32) {
    %c0_i32 = arith.constant 0 : i32
    %c0_i32_0 = arith.constant 0 : i32
    %c0_i32_1 = arith.constant 0 : i32
    return %c0_i32, %c0_i32_0 : i32, i32
  }
  func.func @transform_5(%arg0: i32) -> (i32, i32) {
    %c0_i32 = arith.constant 0 : i32
    %c0_i32_0 = arith.constant 0 : i32
    return %arg0, %c0_i32 : i32, i32
  }
}

</mosaic_0001>

<llo_original>
// kernel: romp_forward.1
$region0: #{romp_forward.1}
  #allocation0 [shape = 'u32[]', space=smem, size = 0x4, offset = 0x4, fixed_abs, tag = 'smem constant byte address 0x4 - core index']
  #allocation1 [shape = 'u32[72,128]{1,0:T(1,128)}', space=vmem, size = 0x9000, scoped, tag = 'internal scratch']
  #allocation2 [shape = 'f32[1104,4]{1,0:T(8,128)}', space=vmem, size = 0x8a000, scoped, tag = 'scratch operand']
  #allocation3 [shape = 's32[2]{0}', space=sflag, size = 0x8, scoped, tag = 'scratch operand']
  #allocation4 [shape = 's32[]', space=sflag, size = 0x4, offset = 0, fixed_abs, tag = 'sflag constant byte address 0x0 - dummy sync flag']
  #allocation5 [shape = 's32[]', space=sflag, size = 0x4, offset = 0, fixed_abs, tag = 'sflag constant byte address 0x0 - dummy sync flag']
  %s0 = inlined_call_operand.vmem [shape: f32[1064,4], index: 0, kind: input, shape index: {}]
  %s1 = inlined_call_operand.vmem [shape: f32[9,4,32], index: 1, kind: input, shape index: {}]
  %s2 = inlined_call_operand.vmem [shape: f32[1,32], index: 2, kind: input, shape index: {}]
  %s3 = inlined_call_operand.vmem [shape: f32[32,9], index: 3, kind: input, shape index: {}]
  %s4 = inlined_call_operand.vmem [shape: f32[1,9], index: 4, kind: input, shape index: {}]
  %s5 = inlined_call_operand.vmem [shape: f32[1024,9], index: 5, kind: output, shape index: {}]
  %s6 = sld [smem:[#allocation0]]
  $region95: #{romp_forward.1} parent=0
    _
  %s8 = ssub.s32 1, %s6
  %s9 = scalar_select 0, %s8, %s6
  loop: start=0, step=1, limit=4
  $region2: #{romp_forward.1} parent=0 // loop_pre_header
    _
  $region3: #{romp_forward.1} parent=0 // loop_header
    %s11 = sphi 0, %s15
    %p12 = scmp.ge.s32.totalorder %s11, 4
    %s19 = sphi 0, %s19
    %s21 = sphi 0, %s19
    %s22 = sphi 0, %s21
    %s36 = sphi 0, %s22
    %s40 = sphi 0, %s40
    %s42 = sphi 0, %s40
    %s43 = sphi 0, %s42
    %s57 = sphi 0, %s43
    %s61 = sphi 0, %s61
    %s63 = sphi 0, %s61
    %s64 = sphi 0, %s63
    %s78 = sphi 0, %s64
    %s82 = sphi 0, %s82
    %s84 = sphi 0, %s82
    %s85 = sphi 0, %s84
    %s99 = sphi 0, %s85
    %s105 = sphi 0, %s107
    %s108 = sphi 0, %s105
    %s109 = sphi 0, %s108
    %s125 = sphi 0, %s109
  $region4: #{romp_forward.1} parent=0 // loop_header_branch
    %14 = sbr.rel (%p12) target = $region8
  $region5: #{romp_forward.1} parent=0 // loop_body
    %s16 = ssub.s32 %s11, 1
    %s17 = ssub.s32 %s11, 2
    %s18 = sadd.s32 %s11, 1
    %s20 = sadd.s32 %s19, 1
    %p23 = scmp.eq.s32.totalorder %s11, 1
    %p24 = scmp.ne.s32.totalorder %s19, %s21
    %p25 = scmp.eq.s32.totalorder %s11, 0
    %p26 = por %p24, %p25
    %p27 = scmp.ne.s32.totalorder %s19, %s21
    %p28 = scmp.eq.s32.totalorder %s16, 1
    %p29 = por %p27, %p28
    %p30 = scmp.ne.s32.totalorder %s21, %s22
    %p31 = scmp.eq.s32.totalorder %s16, 0
    %p32 = por %p30, %p31
    %p33 = scmp.ne.s32.totalorder %s21, %s22
    %p34 = scmp.eq.s32.totalorder %s17, 1
    %p35 = por %p33, %p34
    %p37 = scmp.ne.s32.totalorder %s22, %s36
    %p38 = scmp.eq.s32.totalorder %s17, 0
    %p39 = por %p37, %p38
    %s41 = sadd.s32 %s40, 1
    %p44 = scmp.eq.s32.totalorder %s11, 1
    %p45 = scmp.ne.s32.totalorder %s40, %s42
    %p46 = scmp.eq.s32.totalorder %s11, 0
    %p47 = por %p45, %p46
    %p48 = scmp.ne.s32.totalorder %s40, %s42
    %p49 = scmp.eq.s32.totalorder %s16, 1
    %p50 = por %p48, %p49
    %p51 = scmp.ne.s32.totalorder %s42, %s43
    %p52 = scmp.eq.s32.totalorder %s16, 0
    %p53 = por %p51, %p52
    %p54 = scmp.ne.s32.totalorder %s42, %s43
    %p55 = scmp.eq.s32.totalorder %s17, 1
    %p56 = por %p54, %p55
    %p58 = scmp.ne.s32.totalorder %s43, %s57
    %p59 = scmp.eq.s32.totalorder %s17, 0
    %p60 = por %p58, %p59
    %s62 = sadd.s32 %s61, 1
    %p65 = scmp.eq.s32.totalorder %s11, 1
    %p66 = scmp.ne.s32.totalorder %s61, %s63
    %p67 = scmp.eq.s32.totalorder %s11, 0
    %p68 = por %p66, %p67
    %p69 = scmp.ne.s32.totalorder %s61, %s63
    %p70 = scmp.eq.s32.totalorder %s16, 1
    %p71 = por %p69, %p70
    %p72 = scmp.ne.s32.totalorder %s63, %s64
    %p73 = scmp.eq.s32.totalorder %s16, 0
    %p74 = por %p72, %p73
    %p75 = scmp.ne.s32.totalorder %s63, %s64
    %p76 = scmp.eq.s32.totalorder %s17, 1
    %p77 = por %p75, %p76
    %p79 = scmp.ne.s32.totalorder %s64, %s78
    %p80 = scmp.eq.s32.totalorder %s17, 0
    %p81 = por %p79, %p80
    %s83 = sadd.s32 %s82, 1
    %p86 = scmp.eq.s32.totalorder %s11, 1
    %p87 = scmp.ne.s32.totalorder %s82, %s84
    %p88 = scmp.eq.s32.totalorder %s11, 0
    %p89 = por %p87, %p88
    %p90 = scmp.ne.s32.totalorder %s82, %s84
    %p91 = scmp.eq.s32.totalorder %s16, 1
    %p92 = por %p90, %p91
    %p93 = scmp.ne.s32.totalorder %s84, %s85
    %p94 = scmp.eq.s32.totalorder %s16, 0
    %p95 = por %p93, %p94
    %p96 = scmp.ne.s32.totalorder %s84, %s85
    %p97 = scmp.eq.s32.totalorder %s17, 1
    %p98 = por %p96, %p97
    %p100 = scmp.ne.s32.totalorder %s85, %s99
    %p101 = scmp.eq.s32.totalorder %s17, 0
    %p102 = por %p100, %p101
    %s103 = ssub.s32 %s11, %s18
    %p104 = scmp.eq.s32.totalorder %s103, 0
    %s106 = sadd.s32 %s105, 1
    %s107 = scalar_select %p104, %s105, %s106
    %p110 = pneg %p104
    %p111 = scmp.eq.s32.totalorder %s11, 1
    %p112 = por %p110, %p111
    %p113 = scmp.ne.s32.totalorder %s105, %s108
    %p114 = scmp.eq.s32.totalorder %s11, 0
    %p115 = por %p113, %p114
    %p116 = scmp.ne.s32.totalorder %s105, %s108
    %p117 = scmp.eq.s32.totalorder %s16, 1
    %p118 = por %p116, %p117
    %p119 = scmp.ne.s32.totalorder %s108, %s109
    %p120 = scmp.eq.s32.totalorder %s16, 0
    %p121 = por %p119, %p120
    %p122 = scmp.ne.s32.totalorder %s108, %s109
    %p123 = scmp.eq.s32.totalorder %s17, 1
    %p124 = por %p122, %p123
    %p126 = scmp.ne.s32.totalorder %s109, %s125
    %p127 = scmp.eq.s32.totalorder %s17, 0
    %p128 = por %p126, %p127
    %p129 = scmp.le.s32.totalorder 1, %s11
    %p130 = scmp.lt.s32.totalorder %s11, 3
    %p131 = pnand %p129, %p130
    %p132 = pneg %p131
    // Predicated region
    $region9: #{romp_forward.1} parent=5 // pred_check
      _
    $region10: #{romp_forward.1} parent=5 // pred_check_branch
      %134 = sbr.rel (%p131) target = $region12
    $region11: #{romp_forward.1} parent=5 // pred_region
      %s135 = ssub.s32 %s11, 1
      // Predicated region
      $region13: #{romp_forward.1} parent=11 // pred_check
        %p136 = pneg %p32
      $region14: #{romp_forward.1} parent=11 // pred_check_branch
        %138 = sbr.rel (%p136) target = $region16
      $region15: #{romp_forward.1} parent=11 // pred_region
        _
      $region16: #{romp_forward.1} parent=11 // pred_fallthru
        _
      // Predicated region
      $region17: #{romp_forward.1} parent=11 // pred_check
        %p139 = pneg %p53
      $region18: #{romp_forward.1} parent=11 // pred_check_branch
        %141 = sbr.rel (%p139) target = $region20
      $region19: #{romp_forward.1} parent=11 // pred_region
        _
      $region20: #{romp_forward.1} parent=11 // pred_fallthru
        _
      // Predicated region
      $region21: #{romp_forward.1} parent=11 // pred_check
        %p142 = pneg %p74
      $region22: #{romp_forward.1} parent=11 // pred_check_branch
        %144 = sbr.rel (%p142) target = $region24
      $region23: #{romp_forward.1} parent=11 // pred_region
        _
      $region24: #{romp_forward.1} parent=11 // pred_fallthru
        _
      // Predicated region
      $region25: #{romp_forward.1} parent=11 // pred_check
        %p145 = pneg %p95
      $region26: #{romp_forward.1} parent=11 // pred_check_branch
        %147 = sbr.rel (%p145) target = $region28
      $region27: #{romp_forward.1} parent=11 // pred_region
        _
      $region28: #{romp_forward.1} parent=11 // pred_fallthru
        _
    $region12: #{romp_forward.1} parent=5 // pred_fallthru
      _
    %p148 = scmp.lt.s32.totalorder %s11, 2
    // Predicated region
    $region29: #{romp_forward.1} parent=5 // pred_check
      %p149 = pneg %p148
    $region30: #{romp_forward.1} parent=5 // pred_check_branch
      %151 = sbr.rel (%p149) target = $region32
    $region31: #{romp_forward.1} parent=5 // pred_region
      _
    $region32: #{romp_forward.1} parent=5 // pred_fallthru
      _
    %p152 = scmp.le.s32.totalorder 1, %s11
    %p153 = scmp.lt.s32.totalorder %s11, 3
    %p154 = pnand %p152, %p153
    %p155 = pneg %p154
    // Predicated region
    $region33: #{romp_forward.1} parent=5 // pred_check
      _
    $region34: #{romp_forward.1} parent=5 // pred_check_branch
      %157 = sbr.rel (%p154) target = $region36
    $region35: #{romp_forward.1} parent=5 // pred_region
      %s158 = ssub.s32 %s11, 1
      %p159 = pneg %p32
      %p160 = pneg %p29
      %p161 = pneg %p53
      %p162 = pneg %p50
      %p163 = pneg %p74
      %p164 = pneg %p71
      %p165 = pneg %p95
      %p166 = pneg %p92
      %p167 = pneg %p121
      %p168 = pneg %p118
      %s169 = smul.u32 64, %s16
      %p170 = scmp.lt.s32.totalorder %s169, 127
      %s171 = scalar_select %p170, %s169, 127
      %s172 = smul.addr %s171, 8
      %s173 = scalar_lea.vmem %s5, %s172
      %s174 = smul.u32 64, %s16
      %p175 = scmp.lt.s32.totalorder %s174, 127
      %s176 = scalar_select %p175, %s174, 127
      %s177 = smul.addr %s176, 8
      %s178 = scalar_lea.vmem %s5, %s177
      %s179 = smul.u32 64, %s16
      %p180 = scmp.lt.s32.totalorder %s16, 0
      %s181 = ssub.s32 0, %s16
      %s182 = scalar_select %p180, %s181, %s16
      %s183 = sand.u32 %s182, 1
      %s184 = ssub.s32 0, %s183
      %s185 = scalar_select %p180, %s184, %s183
      %p186 = scmp.ne.s32.totalorder %s185, 0
      %p187 = scmp.lt.s32.totalorder %s185, 0
      %p188 = pnand %p187, %p186
      %p189 = pneg %p188
      %s190 = sadd.s32 %s185, 2
      %s191 = scalar_select %p189, %s190, %s185
      %p192 = scmp.eq.s32.totalorder %s16, 0
      // Predicated region
      $region37: #{romp_forward.1} parent=35 // pred_check
        %p193 = pneg %p192
      $region38: #{romp_forward.1} parent=35 // pred_check_branch
        %195 = sbr.rel (%p193) target = $region40
      $region39: #{romp_forward.1} parent=35 // pred_region
        %s196 = smul.u32 %s16, 512
        %s197 = smul.u32 %s191, 552
        %s198 = scalar_lea.vmem %s0, %s196
        %s199 = scalar_lea.vmem [#allocation2], %s197
        %s200 = scalar_lea.sflag [#allocation3], %s191
        // Predicated region
        $region41: #{romp_forward.1} parent=39 // pred_check
          _
        $region42: #{romp_forward.1} parent=39 // pred_check_branch
          %202 = sbr.rel (0) target = $region44
        $region43: #{romp_forward.1} parent=39 // pred_region
          loop: start=0, step=1, limit=1
          $region45: #{romp_forward.1} parent=43 // loop_pre_header
            _
          $region46: #{romp_forward.1} parent=43 // loop_header
            %s204 = sphi 0, %s208
            %p205 = scmp.ge.s32.totalorder %s204, 1
            %s209 = sphi %s198, %s198
            %s210 = sphi %s199, %s199
          $region47: #{romp_forward.1} parent=43 // loop_header_branch
            %207 = sbr.rel (%p205) target = $region51
          $region48: #{romp_forward.1} parent=43 // loop_body
            %v211 = vld [vmem:[%s209] sm:$0xff]
            %212 = vst [vmem:[%s210] sm:$0xff] %v211
            %v213 = vld [vmem:[%s209 + $0x8] sm:$0xff]
            %214 = vst [vmem:[%s210 + $0x8] sm:$0xff] %v213
            %v215 = vld [vmem:[%s209 + $0x10] sm:$0xff]
            %216 = vst [vmem:[%s210 + $0x10] sm:$0xff] %v215
            %v217 = vld [vmem:[%s209 + $0x18] sm:$0xff]
            %218 = vst [vmem:[%s210 + $0x18] sm:$0xff] %v217
            %v219 = vld [vmem:[%s209 + $0x20] sm:$0xff]
            %220 = vst [vmem:[%s210 + $0x20] sm:$0xff] %v219
            %v221 = vld [vmem:[%s209 + $0x28] sm:$0xff]
            %222 = vst [vmem:[%s210 + $0x28] sm:$0xff] %v221
            %v223 = vld [vmem:[%s209 + $0x30] sm:$0xff]
            %224 = vst [vmem:[%s210 + $0x30] sm:$0xff] %v223
            %v225 = vld [vmem:[%s209 + $0x38] sm:$0xff]
            %226 = vst [vmem:[%s210 + $0x38] sm:$0xff] %v225
            %v227 = vld [vmem:[%s209 + $0x40] sm:$0xff]
            %228 = vst [vmem:[%s210 + $0x40] sm:$0xff] %v227
            %v229 = vld [vmem:[%s209 + $0x48] sm:$0xff]
            %230 = vst [vmem:[%s210 + $0x48] sm:$0xff] %v229
            %v231 = vld [vmem:[%s209 + $0x50] sm:$0xff]
            %232 = vst [vmem:[%s210 + $0x50] sm:$0xff] %v231
            %v233 = vld [vmem:[%s209 + $0x58] sm:$0xff]
            %234 = vst [vmem:[%s210 + $0x58] sm:$0xff] %v233
            %v235 = vld [vmem:[%s209 + $0x60] sm:$0xff]
            %236 = vst [vmem:[%s210 + $0x60] sm:$0xff] %v235
            %v237 = vld [vmem:[%s209 + $0x68] sm:$0xff]
            %238 = vst [vmem:[%s210 + $0x68] sm:$0xff] %v237
            %v239 = vld [vmem:[%s209 + $0x70] sm:$0xff]
            %240 = vst [vmem:[%s210 + $0x70] sm:$0xff] %v239
            %v241 = vld [vmem:[%s209 + $0x78] sm:$0xff]
            %242 = vst [vmem:[%s210 + $0x78] sm:$0xff] %v241
            %v243 = vld [vmem:[%s209 + $0x80] sm:$0xff]
            %244 = vst [vmem:[%s210 + $0x80] sm:$0xff] %v243
            %v245 = vld [vmem:[%s209 + $0x88] sm:$0xff]
            %246 = vst [vmem:[%s210 + $0x88] sm:$0xff] %v245
            %v247 = vld [vmem:[%s209 + $0x90] sm:$0xff]
            %248 = vst [vmem:[%s210 + $0x90] sm:$0xff] %v247
            %v249 = vld [vmem:[%s209 + $0x98] sm:$0xff]
            %250 = vst [vmem:[%s210 + $0x98] sm:$0xff] %v249
            %v251 = vld [vmem:[%s209 + $0xa0] sm:$0xff]
            %252 = vst [vmem:[%s210 + $0xa0] sm:$0xff] %v251
            %v253 = vld [vmem:[%s209 + $0xa8] sm:$0xff]
            %254 = vst [vmem:[%s210 + $0xa8] sm:$0xff] %v253
            %v255 = vld [vmem:[%s209 + $0xb0] sm:$0xff]
            %256 = vst [vmem:[%s210 + $0xb0] sm:$0xff] %v255
            %v257 = vld [vmem:[%s209 + $0xb8] sm:$0xff]
            %258 = vst [vmem:[%s210 + $0xb8] sm:$0xff] %v257
            %v259 = vld [vmem:[%s209 + $0xc0] sm:$0xff]
            %260 = vst [vmem:[%s210 + $0xc0] sm:$0xff] %v259
            %v261 = vld [vmem:[%s209 + $0xc8] sm:$0xff]
            %262 = vst [vmem:[%s210 + $0xc8] sm:$0xff] %v261
            %v263 = vld [vmem:[%s209 + $0xd0] sm:$0xff]
            %264 = vst [vmem:[%s210 + $0xd0] sm:$0xff] %v263
            %v265 = vld [vmem:[%s209 + $0xd8] sm:$0xff]
            %266 = vst [vmem:[%s210 + $0xd8] sm:$0xff] %v265
            %v267 = vld [vmem:[%s209 + $0xe0] sm:$0xff]
            %268 = vst [vmem:[%s210 + $0xe0] sm:$0xff] %v267
            %v269 = vld [vmem:[%s209 + $0xe8] sm:$0xff]
            %270 = vst [vmem:[%s210 + $0xe8] sm:$0xff] %v269
            %v271 = vld [vmem:[%s209 + $0xf0] sm:$0xff]
            %272 = vst [vmem:[%s210 + $0xf0] sm:$0xff] %v271
            %v273 = vld [vmem:[%s209 + $0xf8] sm:$0xff]
            %274 = vst [vmem:[%s210 + $0xf8] sm:$0xff] %v273
            %v275 = vld [vmem:[%s209 + $0x100] sm:$0xff]
            %276 = vst [vmem:[%s210 + $0x100] sm:$0xff] %v275
            %v277 = vld [vmem:[%s209 + $0x108] sm:$0xff]
            %278 = vst [vmem:[%s210 + $0x108] sm:$0xff] %v277
            %v279 = vld [vmem:[%s209 + $0x110] sm:$0xff]
            %280 = vst [vmem:[%s210 + $0x110] sm:$0xff] %v279
            %v281 = vld [vmem:[%s209 + $0x118] sm:$0xff]
            %282 = vst [vmem:[%s210 + $0x118] sm:$0xff] %v281
            %v283 = vld [vmem:[%s209 + $0x120] sm:$0xff]
            %284 = vst [vmem:[%s210 + $0x120] sm:$0xff] %v283
            %v285 = vld [vmem:[%s209 + $0x128] sm:$0xff]
            %286 = vst [vmem:[%s210 + $0x128] sm:$0xff] %v285
            %v287 = vld [vmem:[%s209 + $0x130] sm:$0xff]
            %288 = vst [vmem:[%s210 + $0x130] sm:$0xff] %v287
            %v289 = vld [vmem:[%s209 + $0x138] sm:$0xff]
            %290 = vst [vmem:[%s210 + $0x138] sm:$0xff] %v289
            %v291 = vld [vmem:[%s209 + $0x140] sm:$0xff]
            %292 = vst [vmem:[%s210 + $0x140] sm:$0xff] %v291
            %v293 = vld [vmem:[%s209 + $0x148] sm:$0xff]
            %294 = vst [vmem:[%s210 + $0x148] sm:$0xff] %v293
            %v295 = vld [vmem:[%s209 + $0x150] sm:$0xff]
            %296 = vst [vmem:[%s210 + $0x150] sm:$0xff] %v295
            %v297 = vld [vmem:[%s209 + $0x158] sm:$0xff]
            %298 = vst [vmem:[%s210 + $0x158] sm:$0xff] %v297
            %v299 = vld [vmem:[%s209 + $0x160] sm:$0xff]
            %300 = vst [vmem:[%s210 + $0x160] sm:$0xff] %v299
            %v301 = vld [vmem:[%s209 + $0x168] sm:$0xff]
            %302 = vst [vmem:[%s210 + $0x168] sm:$0xff] %v301
            %v303 = vld [vmem:[%s209 + $0x170] sm:$0xff]
            %304 = vst [vmem:[%s210 + $0x170] sm:$0xff] %v303
            %v305 = vld [vmem:[%s209 + $0x178] sm:$0xff]
            %306 = vst [vmem:[%s210 + $0x178] sm:$0xff] %v305
            %v307 = vld [vmem:[%s209 + $0x180] sm:$0xff]
            %308 = vst [vmem:[%s210 + $0x180] sm:$0xff] %v307
            %v309 = vld [vmem:[%s209 + $0x188] sm:$0xff]
            %310 = vst [vmem:[%s210 + $0x188] sm:$0xff] %v309
            %v311 = vld [vmem:[%s209 + $0x190] sm:$0xff]
            %312 = vst [vmem:[%s210 + $0x190] sm:$0xff] %v311
            %v313 = vld [vmem:[%s209 + $0x198] sm:$0xff]
            %314 = vst [vmem:[%s210 + $0x198] sm:$0xff] %v313
            %v315 = vld [vmem:[%s209 + $0x1a0] sm:$0xff]
            %316 = vst [vmem:[%s210 + $0x1a0] sm:$0xff] %v315
            %v317 = vld [vmem:[%s209 + $0x1a8] sm:$0xff]
            %318 = vst [vmem:[%s210 + $0x1a8] sm:$0xff] %v317
            %v319 = vld [vmem:[%s209 + $0x1b0] sm:$0xff]
            %320 = vst [vmem:[%s210 + $0x1b0] sm:$0xff] %v319
            %v321 = vld [vmem:[%s209 + $0x1b8] sm:$0xff]
            %322 = vst [vmem:[%s210 + $0x1b8] sm:$0xff] %v321
            %v323 = vld [vmem:[%s209 + $0x1c0] sm:$0xff]
            %324 = vst [vmem:[%s210 + $0x1c0] sm:$0xff] %v323
            %v325 = vld [vmem:[%s209 + $0x1c8] sm:$0xff]
            %326 = vst [vmem:[%s210 + $0x1c8] sm:$0xff] %v325
            %v327 = vld [vmem:[%s209 + $0x1d0] sm:$0xff]
            %328 = vst [vmem:[%s210 + $0x1d0] sm:$0xff] %v327
            %v329 = vld [vmem:[%s209 + $0x1d8] sm:$0xff]
            %330 = vst [vmem:[%s210 + $0x1d8] sm:$0xff] %v329
            %v331 = vld [vmem:[%s209 + $0x1e0] sm:$0xff]
            %332 = vst [vmem:[%s210 + $0x1e0] sm:$0xff] %v331
            %v333 = vld [vmem:[%s209 + $0x1e8] sm:$0xff]
            %334 = vst [vmem:[%s210 + $0x1e8] sm:$0xff] %v333
            %v335 = vld [vmem:[%s209 + $0x1f0] sm:$0xff]
            %336 = vst [vmem:[%s210 + $0x1f0] sm:$0xff] %v335
            %v337 = vld [vmem:[%s209 + $0x1f8] sm:$0xff]
            %338 = vst [vmem:[%s210 + $0x1f8] sm:$0xff] %v337
            %v339 = vld [vmem:[%s209 + $0x200] sm:$0xff]
            %340 = vst [vmem:[%s210 + $0x200] sm:$0xff] %v339
            %v341 = vld [vmem:[%s209 + $0x208] sm:$0xff]
            %342 = vst [vmem:[%s210 + $0x208] sm:$0xff] %v341
            %v343 = vld [vmem:[%s209 + $0x210] sm:$0xff]
            %344 = vst [vmem:[%s210 + $0x210] sm:$0xff] %v343
            %v345 = vld [vmem:[%s209 + $0x218] sm:$0xff]
            %346 = vst [vmem:[%s210 + $0x218] sm:$0xff] %v345
            %v347 = vld [vmem:[%s209 + $0x220] sm:$0xff]
            %348 = vst [vmem:[%s210 + $0x220] sm:$0xff] %v347
          $region49: #{romp_forward.1} parent=43 // loop_footer
            %s208 = sadd.s32 1, %s204
          $region50: #{romp_forward.1} parent=43 // loop_footer_branch
            %203 = sbr.rel target = $region46
          $region51: #{romp_forward.1} parent=43 // loop_exit
            _
        $region44: #{romp_forward.1} parent=39 // pred_fallthru
          _
        // Predicated region
        $region52: #{romp_forward.1} parent=39 // pred_check
          _
        $region53: #{romp_forward.1} parent=39 // pred_check_branch
          %350 = sbr.rel target = $region55
        $region54: #{romp_forward.1} parent=39 // pred_region
          _
        $region55: #{romp_forward.1} parent=39 // pred_fallthru
          _
        // Predicated region
        $region56: #{romp_forward.1} parent=39 // pred_check
          _
        $region57: #{romp_forward.1} parent=39 // pred_check_branch
          %353 = sbr.rel (0) target = $region59
        $region58: #{romp_forward.1} parent=39 // pred_region
          %354 = vsyncadd %s200, 8832
        $region59: #{romp_forward.1} parent=39 // pred_fallthru
          _
      $region40: #{romp_forward.1} parent=35 // pred_fallthru
        _
      %s355 = sadd.s32 %s16, 1
      %p356 = scmp.lt.s32.totalorder %s355, 2
      // Predicated region
      $region60: #{romp_forward.1} parent=35 // pred_check
        %p357 = pneg %p356
      $region61: #{romp_forward.1} parent=35 // pred_check_branch
        %359 = sbr.rel (%p357) target = $region63
      $region62: #{romp_forward.1} parent=35 // pred_region
        %s360 = ssub.s32 1, %s191
        %s361 = smul.u32 %s355, 512
        %s362 = smul.u32 %s360, 552
        %s363 = scalar_lea.vmem %s0, %s361
        %s364 = scalar_lea.vmem [#allocation2], %s362
        %s365 = scalar_lea.sflag [#allocation3], %s360
        // Predicated region
        $region64: #{romp_forward.1} parent=62 // pred_check
          _
        $region65: #{romp_forward.1} parent=62 // pred_check_branch
          %367 = sbr.rel (0) target = $region67
        $region66: #{romp_forward.1} parent=62 // pred_region
          loop: start=0, step=1, limit=1
          $region68: #{romp_forward.1} parent=66 // loop_pre_header
            _
          $region69: #{romp_forward.1} parent=66 // loop_header
            %s369 = sphi 0, %s373
            %p370 = scmp.ge.s32.totalorder %s369, 1
            %s374 = sphi %s363, %s363
            %s375 = sphi %s364, %s364
          $region70: #{romp_forward.1} parent=66 // loop_header_branch
            %372 = sbr.rel (%p370) target = $region74
          $region71: #{romp_forward.1} parent=66 // loop_body
            %v376 = vld [vmem:[%s374] sm:$0xff]
            %377 = vst [vmem:[%s375] sm:$0xff] %v376
            %v378 = vld [vmem:[%s374 + $0x8] sm:$0xff]
            %379 = vst [vmem:[%s375 + $0x8] sm:$0xff] %v378
            %v380 = vld [vmem:[%s374 + $0x10] sm:$0xff]
            %381 = vst [vmem:[%s375 + $0x10] sm:$0xff] %v380
            %v382 = vld [vmem:[%s374 + $0x18] sm:$0xff]
            %383 = vst [vmem:[%s375 + $0x18] sm:$0xff] %v382
            %v384 = vld [vmem:[%s374 + $0x20] sm:$0xff]
            %385 = vst [vmem:[%s375 + $0x20] sm:$0xff] %v384
            %v386 = vld [vmem:[%s374 + $0x28] sm:$0xff]
            %387 = vst [vmem:[%s375 + $0x28] sm:$0xff] %v386
            %v388 = vld [vmem:[%s374 + $0x30] sm:$0xff]
            %389 = vst [vmem:[%s375 + $0x30] sm:$0xff] %v388
            %v390 = vld [vmem:[%s374 + $0x38] sm:$0xff]
            %391 = vst [vmem:[%s375 + $0x38] sm:$0xff] %v390
            %v392 = vld [vmem:[%s374 + $0x40] sm:$0xff]
            %393 = vst [vmem:[%s375 + $0x40] sm:$0xff] %v392
            %v394 = vld [vmem:[%s374 + $0x48] sm:$0xff]
            %395 = vst [vmem:[%s375 + $0x48] sm:$0xff] %v394
            %v396 = vld [vmem:[%s374 + $0x50] sm:$0xff]
            %397 = vst [vmem:[%s375 + $0x50] sm:$0xff] %v396
            %v398 = vld [vmem:[%s374 + $0x58] sm:$0xff]
            %399 = vst [vmem:[%s375 + $0x58] sm:$0xff] %v398
            %v400 = vld [vmem:[%s374 + $0x60] sm:$0xff]
            %401 = vst [vmem:[%s375 + $0x60] sm:$0xff] %v400
            %v402 = vld [vmem:[%s374 + $0x68] sm:$0xff]
            %403 = vst [vmem:[%s375 + $0x68] sm:$0xff] %v402
            %v404 = vld [vmem:[%s374 + $0x70] sm:$0xff]
            %405 = vst [vmem:[%s375 + $0x70] sm:$0xff] %v404
            %v406 = vld [vmem:[%s374 + $0x78] sm:$0xff]
            %407 = vst [vmem:[%s375 + $0x78] sm:$0xff] %v406
            %v408 = vld [vmem:[%s374 + $0x80] sm:$0xff]
            %409 = vst [vmem:[%s375 + $0x80] sm:$0xff] %v408
            %v410 = vld [vmem:[%s374 + $0x88] sm:$0xff]
            %411 = vst [vmem:[%s375 + $0x88] sm:$0xff] %v410
            %v412 = vld [vmem:[%s374 + $0x90] sm:$0xff]
            %413 = vst [vmem:[%s375 + $0x90] sm:$0xff] %v412
            %v414 = vld [vmem:[%s374 + $0x98] sm:$0xff]
            %415 = vst [vmem:[%s375 + $0x98] sm:$0xff] %v414
            %v416 = vld [vmem:[%s374 + $0xa0] sm:$0xff]
            %417 = vst [vmem:[%s375 + $0xa0] sm:$0xff] %v416
            %v418 = vld [vmem:[%s374 + $0xa8] sm:$0xff]
            %419 = vst [vmem:[%s375 + $0xa8] sm:$0xff] %v418
            %v420 = vld [vmem:[%s374 + $0xb0] sm:$0xff]
            %421 = vst [vmem:[%s375 + $0xb0] sm:$0xff] %v420
            %v422 = vld [vmem:[%s374 + $0xb8] sm:$0xff]
            %423 = vst [vmem:[%s375 + $0xb8] sm:$0xff] %v422
            %v424 = vld [vmem:[%s374 + $0xc0] sm:$0xff]
            %425 = vst [vmem:[%s375 + $0xc0] sm:$0xff] %v424
            %v426 = vld [vmem:[%s374 + $0xc8] sm:$0xff]
            %427 = vst [vmem:[%s375 + $0xc8] sm:$0xff] %v426
            %v428 = vld [vmem:[%s374 + $0xd0] sm:$0xff]
            %429 = vst [vmem:[%s375 + $0xd0] sm:$0xff] %v428
            %v430 = vld [vmem:[%s374 + $0xd8] sm:$0xff]
            %431 = vst [vmem:[%s375 + $0xd8] sm:$0xff] %v430
            %v432 = vld [vmem:[%s374 + $0xe0] sm:$0xff]
            %433 = vst [vmem:[%s375 + $0xe0] sm:$0xff] %v432
            %v434 = vld [vmem:[%s374 + $0xe8] sm:$0xff]
            %435 = vst [vmem:[%s375 + $0xe8] sm:$0xff] %v434
            %v436 = vld [vmem:[%s374 + $0xf0] sm:$0xff]
            %437 = vst [vmem:[%s375 + $0xf0] sm:$0xff] %v436
            %v438 = vld [vmem:[%s374 + $0xf8] sm:$0xff]
            %439 = vst [vmem:[%s375 + $0xf8] sm:$0xff] %v438
            %v440 = vld [vmem:[%s374 + $0x100] sm:$0xff]
            %441 = vst [vmem:[%s375 + $0x100] sm:$0xff] %v440
            %v442 = vld [vmem:[%s374 + $0x108] sm:$0xff]
            %443 = vst [vmem:[%s375 + $0x108] sm:$0xff] %v442
            %v444 = vld [vmem:[%s374 + $0x110] sm:$0xff]
            %445 = vst [vmem:[%s375 + $0x110] sm:$0xff] %v444
            %v446 = vld [vmem:[%s374 + $0x118] sm:$0xff]
            %447 = vst [vmem:[%s375 + $0x118] sm:$0xff] %v446
            %v448 = vld [vmem:[%s374 + $0x120] sm:$0xff]
            %449 = vst [vmem:[%s375 + $0x120] sm:$0xff] %v448
            %v450 = vld [vmem:[%s374 + $0x128] sm:$0xff]
            %451 = vst [vmem:[%s375 + $0x128] sm:$0xff] %v450
            %v452 = vld [vmem:[%s374 + $0x130] sm:$0xff]
            %453 = vst [vmem:[%s375 + $0x130] sm:$0xff] %v452
            %v454 = vld [vmem:[%s374 + $0x138] sm:$0xff]
            %455 = vst [vmem:[%s375 + $0x138] sm:$0xff] %v454
            %v456 = vld [vmem:[%s374 + $0x140] sm:$0xff]
            %457 = vst [vmem:[%s375 + $0x140] sm:$0xff] %v456
            %v458 = vld [vmem:[%s374 + $0x148] sm:$0xff]
            %459 = vst [vmem:[%s375 + $0x148] sm:$0xff] %v458
            %v460 = vld [vmem:[%s374 + $0x150] sm:$0xff]
            %461 = vst [vmem:[%s375 + $0x150] sm:$0xff] %v460
            %v462 = vld [vmem:[%s374 + $0x158] sm:$0xff]
            %463 = vst [vmem:[%s375 + $0x158] sm:$0xff] %v462
            %v464 = vld [vmem:[%s374 + $0x160] sm:$0xff]
            %465 = vst [vmem:[%s375 + $0x160] sm:$0xff] %v464
            %v466 = vld [vmem:[%s374 + $0x168] sm:$0xff]
            %467 = vst [vmem:[%s375 + $0x168] sm:$0xff] %v466
            %v468 = vld [vmem:[%s374 + $0x170] sm:$0xff]
            %469 = vst [vmem:[%s375 + $0x170] sm:$0xff] %v468
            %v470 = vld [vmem:[%s374 + $0x178] sm:$0xff]
            %471 = vst [vmem:[%s375 + $0x178] sm:$0xff] %v470
            %v472 = vld [vmem:[%s374 + $0x180] sm:$0xff]
            %473 = vst [vmem:[%s375 + $0x180] sm:$0xff] %v472
            %v474 = vld [vmem:[%s374 + $0x188] sm:$0xff]
            %475 = vst [vmem:[%s375 + $0x188] sm:$0xff] %v474
            %v476 = vld [vmem:[%s374 + $0x190] sm:$0xff]
            %477 = vst [vmem:[%s375 + $0x190] sm:$0xff] %v476
            %v478 = vld [vmem:[%s374 + $0x198] sm:$0xff]
            %479 = vst [vmem:[%s375 + $0x198] sm:$0xff] %v478
            %v480 = vld [vmem:[%s374 + $0x1a0] sm:$0xff]
            %481 = vst [vmem:[%s375 + $0x1a0] sm:$0xff] %v480
            %v482 = vld [vmem:[%s374 + $0x1a8] sm:$0xff]
            %483 = vst [vmem:[%s375 + $0x1a8] sm:$0xff] %v482
            %v484 = vld [vmem:[%s374 + $0x1b0] sm:$0xff]
            %485 = vst [vmem:[%s375 + $0x1b0] sm:$0xff] %v484
            %v486 = vld [vmem:[%s374 + $0x1b8] sm:$0xff]
            %487 = vst [vmem:[%s375 + $0x1b8] sm:$0xff] %v486
            %v488 = vld [vmem:[%s374 + $0x1c0] sm:$0xff]
            %489 = vst [vmem:[%s375 + $0x1c0] sm:$0xff] %v488
            %v490 = vld [vmem:[%s374 + $0x1c8] sm:$0xff]
            %491 = vst [vmem:[%s375 + $0x1c8] sm:$0xff] %v490
            %v492 = vld [vmem:[%s374 + $0x1d0] sm:$0xff]
            %493 = vst [vmem:[%s375 + $0x1d0] sm:$0xff] %v492
            %v494 = vld [vmem:[%s374 + $0x1d8] sm:$0xff]
            %495 = vst [vmem:[%s375 + $0x1d8] sm:$0xff] %v494
            %v496 = vld [vmem:[%s374 + $0x1e0] sm:$0xff]
            %497 = vst [vmem:[%s375 + $0x1e0] sm:$0xff] %v496
            %v498 = vld [vmem:[%s374 + $0x1e8] sm:$0xff]
            %499 = vst [vmem:[%s375 + $0x1e8] sm:$0xff] %v498
            %v500 = vld [vmem:[%s374 + $0x1f0] sm:$0xff]
            %501 = vst [vmem:[%s375 + $0x1f0] sm:$0xff] %v500
            %v502 = vld [vmem:[%s374 + $0x1f8] sm:$0xff]
            %503 = vst [vmem:[%s375 + $0x1f8] sm:$0xff] %v502
            %v504 = vld [vmem:[%s374 + $0x200] sm:$0xff]
            %505 = vst [vmem:[%s375 + $0x200] sm:$0xff] %v504
            %v506 = vld [vmem:[%s374 + $0x208] sm:$0xff]
            %507 = vst [vmem:[%s375 + $0x208] sm:$0xff] %v506
            %v508 = vld [vmem:[%s374 + $0x210] sm:$0xff]
            %509 = vst [vmem:[%s375 + $0x210] sm:$0xff] %v508
            %v510 = vld [vmem:[%s374 + $0x218] sm:$0xff]
            %511 = vst [vmem:[%s375 + $0x218] sm:$0xff] %v510
            %v512 = vld [vmem:[%s374 + $0x220] sm:$0xff]
            %513 = vst [vmem:[%s375 + $0x220] sm:$0xff] %v512
          $region72: #{romp_forward.1} parent=66 // loop_footer
            %s373 = sadd.s32 1, %s369
          $region73: #{romp_forward.1} parent=66 // loop_footer_branch
            %368 = sbr.rel target = $region69
          $region74: #{romp_forward.1} parent=66 // loop_exit
            _
        $region67: #{romp_forward.1} parent=62 // pred_fallthru
          _
        // Predicated region
        $region75: #{romp_forward.1} parent=62 // pred_check
          _
        $region76: #{romp_forward.1} parent=62 // pred_check_branch
          %515 = sbr.rel target = $region78
        $region77: #{romp_forward.1} parent=62 // pred_region
          _
        $region78: #{romp_forward.1} parent=62 // pred_fallthru
          _
        // Predicated region
        $region79: #{romp_forward.1} parent=62 // pred_check
          _
        $region80: #{romp_forward.1} parent=62 // pred_check_branch
          %518 = sbr.rel (0) target = $region82
        $region81: #{romp_forward.1} parent=62 // pred_region
          %519 = vsyncadd %s365, 8832
        $region82: #{romp_forward.1} parent=62 // pred_fallthru
          _
      $region63: #{romp_forward.1} parent=35 // pred_fallthru
        _
      %s520 = smul.u32 %s16, 512
      %s521 = smul.u32 %s191, 552
      %s522 = scalar_lea.sflag [#allocation3], %s191
      %s523 = smul.u32 552, 1
      %s524 = sshll.u32 %s523, 4
      %525 = dma.done %s522, %s524
      %s526 = scalar_lea.vmem [#allocation2], %s521
      %v527 = vld [vmem:[%s526] sm:$0xff]
      %v528 = vld [vmem:[%s526 + $0x8] sm:$0xff]
      %v529 = vld [vmem:[%s526 + $0x10] sm:$0xff]
      %v530 = vld [vmem:[%s526 + $0x18] sm:$0xff]
      %v531 = vld [vmem:[%s526 + $0x20] sm:$0xff]
      %v532 = vld [vmem:[%s526 + $0x28] sm:$0xff]
      %v533 = vld [vmem:[%s526 + $0x30] sm:$0xff]
      %v534 = vld [vmem:[%s526 + $0x38] sm:$0xff]
      %v535 = vld [vmem:[%s526 + $0x40] sm:$0xff]
      %v536 = vld [vmem:[%s526 + $0x48] sm:$0xff]
      %v537 = vld [vmem:[%s526 + $0x50] sm:$0xff]
      %v538 = vld [vmem:[%s526 + $0x58] sm:$0xff]
      %v539 = vld [vmem:[%s526 + $0x60] sm:$0xff]
      %v540 = vld [vmem:[%s526 + $0x68] sm:$0xff]
      %v541 = vld [vmem:[%s526 + $0x70] sm:$0xff]
      %v542 = vld [vmem:[%s526 + $0x78] sm:$0xff]
      %v543 = vld [vmem:[%s526 + $0x80] sm:$0xff]
      %v544 = vld [vmem:[%s526 + $0x88] sm:$0xff]
      %v545 = vld [vmem:[%s526 + $0x90] sm:$0xff]
      %v546 = vld [vmem:[%s526 + $0x98] sm:$0xff]
      %v547 = vld [vmem:[%s526 + $0xa0] sm:$0xff]
      %v548 = vld [vmem:[%s526 + $0xa8] sm:$0xff]
      %v549 = vld [vmem:[%s526 + $0xb0] sm:$0xff]
      %v550 = vld [vmem:[%s526 + $0xb8] sm:$0xff]
      %v551 = vld [vmem:[%s526 + $0xc0] sm:$0xff]
      %v552 = vld [vmem:[%s526 + $0xc8] sm:$0xff]
      %v553 = vld [vmem:[%s526 + $0xd0] sm:$0xff]
      %v554 = vld [vmem:[%s526 + $0xd8] sm:$0xff]
      %v555 = vld [vmem:[%s526 + $0xe0] sm:$0xff]
      %v556 = vld [vmem:[%s526 + $0xe8] sm:$0xff]
      %v557 = vld [vmem:[%s526 + $0xf0] sm:$0xff]
      %v558 = vld [vmem:[%s526 + $0xf8] sm:$0xff]
      %v559 = vld [vmem:[%s526 + $0x100] sm:$0xff]
      %v560 = vld [vmem:[%s526 + $0x108] sm:$0xff]
      %v561 = vld [vmem:[%s526 + $0x110] sm:$0xff]
      %v562 = vld [vmem:[%s526 + $0x118] sm:$0xff]
      %v563 = vld [vmem:[%s526 + $0x120] sm:$0xff]
      %v564 = vld [vmem:[%s526 + $0x128] sm:$0xff]
      %v565 = vld [vmem:[%s526 + $0x130] sm:$0xff]
      %v566 = vld [vmem:[%s526 + $0x138] sm:$0xff]
      %v567 = vld [vmem:[%s526 + $0x140] sm:$0xff]
      %v568 = vld [vmem:[%s526 + $0x148] sm:$0xff]
      %v569 = vld [vmem:[%s526 + $0x150] sm:$0xff]
      %v570 = vld [vmem:[%s526 + $0x158] sm:$0xff]
      %v571 = vld [vmem:[%s526 + $0x160] sm:$0xff]
      %v572 = vld [vmem:[%s526 + $0x168] sm:$0xff]
      %v573 = vld [vmem:[%s526 + $0x170] sm:$0xff]
      %v574 = vld [vmem:[%s526 + $0x178] sm:$0xff]
      %v575 = vld [vmem:[%s526 + $0x180] sm:$0xff]
      %v576 = vld [vmem:[%s526 + $0x188] sm:$0xff]
      %v577 = vld [vmem:[%s526 + $0x190] sm:$0xff]
      %v578 = vld [vmem:[%s526 + $0x198] sm:$0xff]
      %v579 = vld [vmem:[%s526 + $0x1a0] sm:$0xff]
      %v580 = vld [vmem:[%s526 + $0x1a8] sm:$0xff]
      %v581 = vld [vmem:[%s526 + $0x1b0] sm:$0xff]
      %v582 = vld [vmem:[%s526 + $0x1b8] sm:$0xff]
      %v583 = vld [vmem:[%s526 + $0x1c0] sm:$0xff]
      %v584 = vld [vmem:[%s526 + $0x1c8] sm:$0xff]
      %v585 = vld [vmem:[%s526 + $0x1d0] sm:$0xff]
      %v586 = vld [vmem:[%s526 + $0x1d8] sm:$0xff]
      %v587 = vld [vmem:[%s526 + $0x1e0] sm:$0xff]
      %v588 = vld [vmem:[%s526 + $0x1e8] sm:$0xff]
      %v589 = vld [vmem:[%s526 + $0x1f0] sm:$0xff]
      %v590 = vld [vmem:[%s526 + $0x1f8] sm:$0xff]
      %v591 = vld [vmem:[%s1] sm:$0xf]
      %s592 = sadd.s32 %s521, 1
      %s593 = scalar_lea.vmem [#allocation2], %s592
      %v594 = vld [vmem:[%s593] sm:$0xff]
      %v595 = vld [vmem:[%s593 + $0x8] sm:$0xff]
      %v596 = vld [vmem:[%s593 + $0x10] sm:$0xff]
      %v597 = vld [vmem:[%s593 + $0x18] sm:$0xff]
      %v598 = vld [vmem:[%s593 + $0x20] sm:$0xff]
      %v599 = vld [vmem:[%s593 + $0x28] sm:$0xff]
      %v600 = vld [vmem:[%s593 + $0x30] sm:$0xff]
      %v601 = vld [vmem:[%s593 + $0x38] sm:$0xff]
      %v602 = vld [vmem:[%s593 + $0x40] sm:$0xff]
      %v603 = vld [vmem:[%s593 + $0x48] sm:$0xff]
      %v604 = vld [vmem:[%s593 + $0x50] sm:$0xff]
      %v605 = vld [vmem:[%s593 + $0x58] sm:$0xff]
      %v606 = vld [vmem:[%s593 + $0x60] sm:$0xff]
      %v607 = vld [vmem:[%s593 + $0x68] sm:$0xff]
      %v608 = vld [vmem:[%s593 + $0x70] sm:$0xff]
      %v609 = vld [vmem:[%s593 + $0x78] sm:$0xff]
      %v610 = vld [vmem:[%s593 + $0x80] sm:$0xff]
      %v611 = vld [vmem:[%s593 + $0x88] sm:$0xff]
      %v612 = vld [vmem:[%s593 + $0x90] sm:$0xff]
      %v613 = vld [vmem:[%s593 + $0x98] sm:$0xff]
      %v614 = vld [vmem:[%s593 + $0xa0] sm:$0xff]
      %v615 = vld [vmem:[%s593 + $0xa8] sm:$0xff]
      %v616 = vld [vmem:[%s593 + $0xb0] sm:$0xff]
      %v617 = vld [vmem:[%s593 + $0xb8] sm:$0xff]
      %v618 = vld [vmem:[%s593 + $0xc0] sm:$0xff]
      %v619 = vld [vmem:[%s593 + $0xc8] sm:$0xff]
      %v620 = vld [vmem:[%s593 + $0xd0] sm:$0xff]
      %v621 = vld [vmem:[%s593 + $0xd8] sm:$0xff]
      %v622 = vld [vmem:[%s593 + $0xe0] sm:$0xff]
      %v623 = vld [vmem:[%s593 + $0xe8] sm:$0xff]
      %v624 = vld [vmem:[%s593 + $0xf0] sm:$0xff]
      %v625 = vld [vmem:[%s593 + $0xf8] sm:$0xff]
      %v626 = vld [vmem:[%s593 + $0x100] sm:$0xff]
      %v627 = vld [vmem:[%s593 + $0x108] sm:$0xff]
      %v628 = vld [vmem:[%s593 + $0x110] sm:$0xff]
      %v629 = vld [vmem:[%s593 + $0x118] sm:$0xff]
      %v630 = vld [vmem:[%s593 + $0x120] sm:$0xff]
      %v631 = vld [vmem:[%s593 + $0x128] sm:$0xff]
      %v632 = vld [vmem:[%s593 + $0x130] sm:$0xff]
      %v633 = vld [vmem:[%s593 + $0x138] sm:$0xff]
      %v634 = vld [vmem:[%s593 + $0x140] sm:$0xff]
      %v635 = vld [vmem:[%s593 + $0x148] sm:$0xff]
      %v636 = vld [vmem:[%s593 + $0x150] sm:$0xff]
      %v637 = vld [vmem:[%s593 + $0x158] sm:$0xff]
      %v638 = vld [vmem:[%s593 + $0x160] sm:$0xff]
      %v639 = vld [vmem:[%s593 + $0x168] sm:$0xff]
      %v640 = vld [vmem:[%s593 + $0x170] sm:$0xff]
      %v641 = vld [vmem:[%s593 + $0x178] sm:$0xff]
      %v642 = vld [vmem:[%s593 + $0x180] sm:$0xff]
      %v643 = vld [vmem:[%s593 + $0x188] sm:$0xff]
      %v644 = vld [vmem:[%s593 + $0x190] sm:$0xff]
      %v645 = vld [vmem:[%s593 + $0x198] sm:$0xff]
      %v646 = vld [vmem:[%s593 + $0x1a0] sm:$0xff]
      %v647 = vld [vmem:[%s593 + $0x1a8] sm:$0xff]
      %v648 = vld [vmem:[%s593 + $0x1b0] sm:$0xff]
      %v649 = vld [vmem:[%s593 + $0x1b8] sm:$0xff]
      %v650 = vld [vmem:[%s593 + $0x1c0] sm:$0xff]
      %v651 = vld [vmem:[%s593 + $0x1c8] sm:$0xff]
      %v652 = vld [vmem:[%s593 + $0x1d0] sm:$0xff]
      %v653 = vld [vmem:[%s593 + $0x1d8] sm:$0xff]
      %v654 = vld [vmem:[%s593 + $0x1e0] sm:$0xff]
      %v655 = vld [vmem:[%s593 + $0x1e8] sm:$0xff]
      %v656 = vld [vmem:[%s593 + $0x1f0] sm:$0xff]
      %v657 = vld [vmem:[%s593 + $0x1f8] sm:$0xff]
      %s658 = scalar_lea.vmem %s1, 4
      %v659 = vld [vmem:[%s658] sm:$0xf]
      %vm660 = vcmask 31744
      %v662 = vsel %vm660, %v594, 0
      %v665 = vsel %vm660, %v595, 0
      %v668 = vsel %vm660, %v596, 0
      %v671 = vsel %vm660, %v597, 0
      %v674 = vsel %vm660, %v598, 0
      %v677 = vsel %vm660, %v599, 0
      %v680 = vsel %vm660, %v600, 0
      %v683 = vsel %vm660, %v601, 0
      %v686 = vsel %vm660, %v602, 0
      %v689 = vsel %vm660, %v603, 0
      %v692 = vsel %vm660, %v604, 0
      %v695 = vsel %vm660, %v605, 0
      %v698 = vsel %vm660, %v606, 0
      %v701 = vsel %vm660, %v607, 0
      %v704 = vsel %vm660, %v608, 0
      %v707 = vsel %vm660, %v609, 0
      %v710 = vsel %vm660, %v610, 0
      %v713 = vsel %vm660, %v611, 0
      %v716 = vsel %vm660, %v612, 0
      %v719 = vsel %vm660, %v613, 0
      %v722 = vsel %vm660, %v614, 0
      %v725 = vsel %vm660, %v615, 0
      %v728 = vsel %vm660, %v616, 0
      %v731 = vsel %vm660, %v617, 0
      %v734 = vsel %vm660, %v618, 0
      %v737 = vsel %vm660, %v619, 0
      %v740 = vsel %vm660, %v620, 0
      %v743 = vsel %vm660, %v621, 0
      %v746 = vsel %vm660, %v622, 0
      %v749 = vsel %vm660, %v623, 0
      %v752 = vsel %vm660, %v624, 0
      %v755 = vsel %vm660, %v625, 0
      %v758 = vsel %vm660, %v626, 0
      %v761 = vsel %vm660, %v627, 0
      %v764 = vsel %vm660, %v628, 0
      %v767 = vsel %vm660, %v629, 0
      %v770 = vsel %vm660, %v630, 0
      %v773 = vsel %vm660, %v631, 0
      %v776 = vsel %vm660, %v632, 0
      %v779 = vsel %vm660, %v633, 0
      %v782 = vsel %vm660, %v634, 0
      %v785 = vsel %vm660, %v635, 0
      %v788 = vsel %vm660, %v636, 0
      %v791 = vsel %vm660, %v637, 0
      %v794 = vsel %vm660, %v638, 0
      %v797 = vsel %vm660, %v639, 0
      %v800 = vsel %vm660, %v640, 0
      %v803 = vsel %vm660, %v641, 0
      %v806 = vsel %vm660, %v642, 0
      %v809 = vsel %vm660, %v643, 0
      %v812 = vsel %vm660, %v644, 0
      %v815 = vsel %vm660, %v645, 0
      %v818 = vsel %vm660, %v646, 0
      %v821 = vsel %vm660, %v647, 0
      %v824 = vsel %vm660, %v648, 0
      %v827 = vsel %vm660, %v649, 0
      %v830 = vsel %vm660, %v650, 0
      %v833 = vsel %vm660, %v651, 0
      %v836 = vsel %vm660, %v652, 0
      %v839 = vsel %vm660, %v653, 0
      %v842 = vsel %vm660, %v654, 0
      %v845 = vsel %vm660, %v655, 0
      %v848 = vsel %vm660, %v656, 0
      %v851 = vsel %vm660, %v657, 0
      %vm853 = vcmask 1043456
      %v855 = vsel %vm853, %v659, 0
      %857 = vmatpush.msra.mxu0 0.0
      %858 = vmatpush.msra.mxu0 0.0
      %859 = vmatpush.msra.mxu0 0.0
      %860 = vmatpush.msra.mxu0 0.0
      %861 = vmatpush.msra.mxu0 0.0
      %862 = vmatpush.msra.mxu0 0.0
      %863 = vmatpush.msra.mxu0 0.0
      %864 = vmatpush.msra.mxu0 0.0
      %865 = vmatpush.msra.mxu0 0.0
      %866 = vmatpush.msra.mxu0 0.0
      %867 = vmatpush.msra.mxu0 0.0
      %868 = vmatpush.msra.mxu0 0.0
      %869 = vmatpush.msra.mxu0 0.0
      %870 = vmatpush.msra.mxu0 0.0
      %871 = vmatpush.msra.mxu0 0.0
      %872 = vmatpush.msra.mxu0 %v855
      %873 = vmatmul.f32.gmra.mxu0 %v662
      %v874 = vpop.f32.mrf.mxu0
      %v875 = vadd.f32 0.0, %v874
      %876 = vmatmul.f32.gmra.mxu0 %v665
      %v877 = vpop.f32.mrf.mxu0
      %v878 = vadd.f32 0.0, %v877
      %879 = vmatmul.f32.gmra.mxu0 %v668
      %v880 = vpop.f32.mrf.mxu0
      %v881 = vadd.f32 0.0, %v880
      %882 = vmatmul.f32.gmra.mxu0 %v671
      %v883 = vpop.f32.mrf.mxu0
      %v884 = vadd.f32 0.0, %v883
      %885 = vmatmul.f32.gmra.mxu0 %v674
      %v886 = vpop.f32.mrf.mxu0
      %v887 = vadd.f32 0.0, %v886
      %888 = vmatmul.f32.gmra.mxu0 %v677
      %v889 = vpop.f32.mrf.mxu0
      %v890 = vadd.f32 0.0, %v889
      %891 = vmatmul.f32.gmra.mxu0 %v680
      %v892 = vpop.f32.mrf.mxu0
      %v893 = vadd.f32 0.0, %v892
      %894 = vmatmul.f32.gmra.mxu0 %v683
      %v895 = vpop.f32.mrf.mxu0
      %v896 = vadd.f32 0.0, %v895
      %897 = vmatmul.f32.gmra.mxu0 %v686
      %v898 = vpop.f32.mrf.mxu0
      %v899 = vadd.f32 0.0, %v898
      %900 = vmatmul.f32.gmra.mxu0 %v689
      %v901 = vpop.f32.mrf.mxu0
      %v902 = vadd.f32 0.0, %v901
      %903 = vmatmul.f32.gmra.mxu0 %v692
      %v904 = vpop.f32.mrf.mxu0
      %v905 = vadd.f32 0.0, %v904
      %906 = vmatmul.f32.gmra.mxu0 %v695
      %v907 = vpop.f32.mrf.mxu0
      %v908 = vadd.f32 0.0, %v907
      %909 = vmatmul.f32.gmra.mxu0 %v698
      %v910 = vpop.f32.mrf.mxu0
      %v911 = vadd.f32 0.0, %v910
      %912 = vmatmul.f32.gmra.mxu0 %v701
      %v913 = vpop.f32.mrf.mxu0
      %v914 = vadd.f32 0.0, %v913
      %915 = vmatmul.f32.gmra.mxu0 %v704
      %v916 = vpop.f32.mrf.mxu0
      %v917 = vadd.f32 0.0, %v916
      %918 = vmatmul.f32.gmra.mxu0 %v707
      %v919 = vpop.f32.mrf.mxu0
      %v920 = vadd.f32 0.0, %v919
      %921 = vmatmul.f32.gmra.mxu0 %v710
      %v922 = vpop.f32.mrf.mxu0
      %v923 = vadd.f32 0.0, %v922
      %924 = vmatmul.f32.gmra.mxu0 %v713
      %v925 = vpop.f32.mrf.mxu0
      %v926 = vadd.f32 0.0, %v925
      %927 = vmatmul.f32.gmra.mxu0 %v716
      %v928 = vpop.f32.mrf.mxu0
      %v929 = vadd.f32 0.0, %v928
      %930 = vmatmul.f32.gmra.mxu0 %v719
      %v931 = vpop.f32.mrf.mxu0
      %v932 = vadd.f32 0.0, %v931
      %933 = vmatmul.f32.gmra.mxu0 %v722
      %v934 = vpop.f32.mrf.mxu0
      %v935 = vadd.f32 0.0, %v934
      %936 = vmatmul.f32.gmra.mxu0 %v725
      %v937 = vpop.f32.mrf.mxu0
      %v938 = vadd.f32 0.0, %v937
      %939 = vmatmul.f32.gmra.mxu0 %v728
      %v940 = vpop.f32.mrf.mxu0
      %v941 = vadd.f32 0.0, %v940
      %942 = vmatmul.f32.gmra.mxu0 %v731
      %v943 = vpop.f32.mrf.mxu0
      %v944 = vadd.f32 0.0, %v943
      %945 = vmatmul.f32.gmra.mxu0 %v734
      %v946 = vpop.f32.mrf.mxu0
      %v947 = vadd.f32 0.0, %v946
      %948 = vmatmul.f32.gmra.mxu0 %v737
      %v949 = vpop.f32.mrf.mxu0
      %v950 = vadd.f32 0.0, %v949
      %951 = vmatmul.f32.gmra.mxu0 %v740
      %v952 = vpop.f32.mrf.mxu0
      %v953 = vadd.f32 0.0, %v952
      %954 = vmatmul.f32.gmra.mxu0 %v743
      %v955 = vpop.f32.mrf.mxu0
      %v956 = vadd.f32 0.0, %v955
      %957 = vmatmul.f32.gmra.mxu0 %v746
      %v958 = vpop.f32.mrf.mxu0
      %v959 = vadd.f32 0.0, %v958
      %960 = vmatmul.f32.gmra.mxu0 %v749
      %v961 = vpop.f32.mrf.mxu0
      %v962 = vadd.f32 0.0, %v961
      %963 = vmatmul.f32.gmra.mxu0 %v752
      %v964 = vpop.f32.mrf.mxu0
      %v965 = vadd.f32 0.0, %v964
      %966 = vmatmul.f32.gmra.mxu0 %v755
      %v967 = vpop.f32.mrf.mxu0
      %v968 = vadd.f32 0.0, %v967
      %969 = vmatmul.f32.gmra.mxu0 %v758
      %v970 = vpop.f32.mrf.mxu0
      %v971 = vadd.f32 0.0, %v970
      %972 = vmatmul.f32.gmra.mxu0 %v761
      %v973 = vpop.f32.mrf.mxu0
      %v974 = vadd.f32 0.0, %v973
      %975 = vmatmul.f32.gmra.mxu0 %v764
      %v976 = vpop.f32.mrf.mxu0
      %v977 = vadd.f32 0.0, %v976
      %978 = vmatmul.f32.gmra.mxu0 %v767
      %v979 = vpop.f32.mrf.mxu0
      %v980 = vadd.f32 0.0, %v979
      %981 = vmatmul.f32.gmra.mxu0 %v770
      %v982 = vpop.f32.mrf.mxu0
      %v983 = vadd.f32 0.0, %v982
      %984 = vmatmul.f32.gmra.mxu0 %v773
      %v985 = vpop.f32.mrf.mxu0
      %v986 = vadd.f32 0.0, %v985
      %987 = vmatmul.f32.gmra.mxu0 %v776
      %v988 = vpop.f32.mrf.mxu0
      %v989 = vadd.f32 0.0, %v988
      %990 = vmatmul.f32.gmra.mxu0 %v779
      %v991 = vpop.f32.mrf.mxu0
      %v992 = vadd.f32 0.0, %v991
      %993 = vmatmul.f32.gmra.mxu0 %v782
      %v994 = vpop.f32.mrf.mxu0
      %v995 = vadd.f32 0.0, %v994
      %996 = vmatmul.f32.gmra.mxu0 %v785
      %v997 = vpop.f32.mrf.mxu0
      %v998 = vadd.f32 0.0, %v997
      %999 = vmatmul.f32.gmra.mxu0 %v788
      %v1000 = vpop.f32.mrf.mxu0
      %v1001 = vadd.f32 0.0, %v1000
      %1002 = vmatmul.f32.gmra.mxu0 %v791
      %v1003 = vpop.f32.mrf.mxu0
      %v1004 = vadd.f32 0.0, %v1003
      %1005 = vmatmul.f32.gmra.mxu0 %v794
      %v1006 = vpop.f32.mrf.mxu0
      %v1007 = vadd.f32 0.0, %v1006
      %1008 = vmatmul.f32.gmra.mxu0 %v797
      %v1009 = vpop.f32.mrf.mxu0
      %v1010 = vadd.f32 0.0, %v1009
      %1011 = vmatmul.f32.gmra.mxu0 %v800
      %v1012 = vpop.f32.mrf.mxu0
      %v1013 = vadd.f32 0.0, %v1012
      %1014 = vmatmul.f32.gmra.mxu0 %v803
      %v1015 = vpop.f32.mrf.mxu0
      %v1016 = vadd.f32 0.0, %v1015
      %1017 = vmatmul.f32.gmra.mxu0 %v806
      %v1018 = vpop.f32.mrf.mxu0
      %v1019 = vadd.f32 0.0, %v1018
      %1020 = vmatmul.f32.gmra.mxu0 %v809
      %v1021 = vpop.f32.mrf.mxu0
      %v1022 = vadd.f32 0.0, %v1021
      %1023 = vmatmul.f32.gmra.mxu0 %v812
      %v1024 = vpop.f32.mrf.mxu0
      %v1025 = vadd.f32 0.0, %v1024
      %1026 = vmatmul.f32.gmra.mxu0 %v815
      %v1027 = vpop.f32.mrf.mxu0
      %v1028 = vadd.f32 0.0, %v1027
      %1029 = vmatmul.f32.gmra.mxu0 %v818
      %v1030 = vpop.f32.mrf.mxu0
      %v1031 = vadd.f32 0.0, %v1030
      %1032 = vmatmul.f32.gmra.mxu0 %v821
      %v1033 = vpop.f32.mrf.mxu0
      %v1034 = vadd.f32 0.0, %v1033
      %1035 = vmatmul.f32.gmra.mxu0 %v824
      %v1036 = vpop.f32.mrf.mxu0
      %v1037 = vadd.f32 0.0, %v1036
      %1038 = vmatmul.f32.gmra.mxu0 %v827
      %v1039 = vpop.f32.mrf.mxu0
      %v1040 = vadd.f32 0.0, %v1039
      %1041 = vmatmul.f32.gmra.mxu0 %v830
      %v1042 = vpop.f32.mrf.mxu0
      %v1043 = vadd.f32 0.0, %v1042
      %1044 = vmatmul.f32.gmra.mxu0 %v833
      %v1045 = vpop.f32.mrf.mxu0
      %v1046 = vadd.f32 0.0, %v1045
      %1047 = vmatmul.f32.gmra.mxu0 %v836
      %v1048 = vpop.f32.mrf.mxu0
      %v1049 = vadd.f32 0.0, %v1048
      %1050 = vmatmul.f32.gmra.mxu0 %v839
      %v1051 = vpop.f32.mrf.mxu0
      %v1052 = vadd.f32 0.0, %v1051
      %1053 = vmatmul.f32.gmra.mxu0 %v842
      %v1054 = vpop.f32.mrf.mxu0
      %v1055 = vadd.f32 0.0, %v1054
      %1056 = vmatmul.f32.gmra.mxu0 %v845
      %v1057 = vpop.f32.mrf.mxu0
      %v1058 = vadd.f32 0.0, %v1057
      %1059 = vmatmul.f32.gmra.mxu0 %v848
      %v1060 = vpop.f32.mrf.mxu0
      %v1061 = vadd.f32 0.0, %v1060
      %1062 = vmatmul.f32.gmra.mxu0 %v851
      %v1063 = vpop.f32.mrf.mxu0
      %v1064 = vadd.f32 0.0, %v1063
      %1065 = vdwg.mxu0
      %v1067 = vsel %vm660, %v527, 0
      %v1070 = vsel %vm660, %v528, 0
      %v1073 = vsel %vm660, %v529, 0
      %v1076 = vsel %vm660, %v530, 0
      %v1079 = vsel %vm660, %v531, 0
      %v1082 = vsel %vm660, %v532, 0
      %v1085 = vsel %vm660, %v533, 0
      %v1088 = vsel %vm660, %v534, 0
      %v1091 = vsel %vm660, %v535, 0
      %v1094 = vsel %vm660, %v536, 0
      %v1097 = vsel %vm660, %v537, 0
      %v1100 = vsel %vm660, %v538, 0
      %v1103 = vsel %vm660, %v539, 0
      %v1106 = vsel %vm660, %v540, 0
      %v1109 = vsel %vm660, %v541, 0
      %v1112 = vsel %vm660, %v542, 0
      %v1115 = vsel %vm660, %v543, 0
      %v1118 = vsel %vm660, %v544, 0
      %v1121 = vsel %vm660, %v545, 0
      %v1124 = vsel %vm660, %v546, 0
      %v1127 = vsel %vm660, %v547, 0
      %v1130 = vsel %vm660, %v548, 0
      %v1133 = vsel %vm660, %v549, 0
      %v1136 = vsel %vm660, %v550, 0
      %v1139 = vsel %vm660, %v551, 0
      %v1142 = vsel %vm660, %v552, 0
      %v1145 = vsel %vm660, %v553, 0
      %v1148 = vsel %vm660, %v554, 0
      %v1151 = vsel %vm660, %v555, 0
      %v1154 = vsel %vm660, %v556, 0
      %v1157 = vsel %vm660, %v557, 0
      %v1160 = vsel %vm660, %v558, 0
      %v1163 = vsel %vm660, %v559, 0
      %v1166 = vsel %vm660, %v560, 0
      %v1169 = vsel %vm660, %v561, 0
      %v1172 = vsel %vm660, %v562, 0
      %v1175 = vsel %vm660, %v563, 0
      %v1178 = vsel %vm660, %v564, 0
      %v1181 = vsel %vm660, %v565, 0
      %v1184 = vsel %vm660, %v566, 0
      %v1187 = vsel %vm660, %v567, 0
      %v1190 = vsel %vm660, %v568, 0
      %v1193 = vsel %vm660, %v569, 0
      %v1196 = vsel %vm660, %v570, 0
      %v1199 = vsel %vm660, %v571, 0
      %v1202 = vsel %vm660, %v572, 0
      %v1205 = vsel %vm660, %v573, 0
      %v1208 = vsel %vm660, %v574, 0
      %v1211 = vsel %vm660, %v575, 0
      %v1214 = vsel %vm660, %v576, 0
      %v1217 = vsel %vm660, %v577, 0
      %v1220 = vsel %vm660, %v578, 0
      %v1223 = vsel %vm660, %v579, 0
      %v1226 = vsel %vm660, %v580, 0
      %v1229 = vsel %vm660, %v581, 0
      %v1232 = vsel %vm660, %v582, 0
      %v1235 = vsel %vm660, %v583, 0
      %v1238 = vsel %vm660, %v584, 0
      %v1241 = vsel %vm660, %v585, 0
      %v1244 = vsel %vm660, %v586, 0
      %v1247 = vsel %vm660, %v587, 0
      %v1250 = vsel %vm660, %v588, 0
      %v1253 = vsel %vm660, %v589, 0
      %v1256 = vsel %vm660, %v590, 0
      %v1259 = vsel %vm853, %v591, 0
      %1261 = vmatpush.msra.mxu0 0.0
      %1262 = vmatpush.msra.mxu0 0.0
      %1263 = vmatpush.msra.mxu0 0.0
      %1264 = vmatpush.msra.mxu0 0.0
      %1265 = vmatpush.msra.mxu0 0.0
      %1266 = vmatpush.msra.mxu0 0.0
      %1267 = vmatpush.msra.mxu0 0.0
      %1268 = vmatpush.msra.mxu0 0.0
      %1269 = vmatpush.msra.mxu0 0.0
      %1270 = vmatpush.msra.mxu0 0.0
      %1271 = vmatpush.msra.mxu0 0.0
      %1272 = vmatpush.msra.mxu0 0.0
      %1273 = vmatpush.msra.mxu0 0.0
      %1274 = vmatpush.msra.mxu0 0.0
      %1275 = vmatpush.msra.mxu0 0.0
      %1276 = vmatpush.msra.mxu0 %v1259
      %1277 = vmatmul.f32.gmra.mxu0 %v1067
      %v1278 = vpop.f32.mrf.mxu0
      %v1279 = vadd.f32 %v875, %v1278
      %1280 = vmatmul.f32.gmra.mxu0 %v1070
      %v1281 = vpop.f32.mrf.mxu0
      %v1282 = vadd.f32 %v878, %v1281
      %1283 = vmatmul.f32.gmra.mxu0 %v1073
      %v1284 = vpop.f32.mrf.mxu0
      %v1285 = vadd.f32 %v881, %v1284
      %1286 = vmatmul.f32.gmra.mxu0 %v1076
      %v1287 = vpop.f32.mrf.mxu0
      %v1288 = vadd.f32 %v884, %v1287
      %1289 = vmatmul.f32.gmra.mxu0 %v1079
      %v1290 = vpop.f32.mrf.mxu0
      %v1291 = vadd.f32 %v887, %v1290
      %1292 = vmatmul.f32.gmra.mxu0 %v1082
      %v1293 = vpop.f32.mrf.mxu0
      %v1294 = vadd.f32 %v890, %v1293
      %1295 = vmatmul.f32.gmra.mxu0 %v1085
      %v1296 = vpop.f32.mrf.mxu0
      %v1297 = vadd.f32 %v893, %v1296
      %1298 = vmatmul.f32.gmra.mxu0 %v1088
      %v1299 = vpop.f32.mrf.mxu0
      %v1300 = vadd.f32 %v896, %v1299
      %1301 = vmatmul.f32.gmra.mxu0 %v1091
      %v1302 = vpop.f32.mrf.mxu0
      %v1303 = vadd.f32 %v899, %v1302
      %1304 = vmatmul.f32.gmra.mxu0 %v1094
      %v1305 = vpop.f32.mrf.mxu0
      %v1306 = vadd.f32 %v902, %v1305
      %1307 = vmatmul.f32.gmra.mxu0 %v1097
      %v1308 = vpop.f32.mrf.mxu0
      %v1309 = vadd.f32 %v905, %v1308
      %1310 = vmatmul.f32.gmra.mxu0 %v1100
      %v1311 = vpop.f32.mrf.mxu0
      %v1312 = vadd.f32 %v908, %v1311
      %1313 = vmatmul.f32.gmra.mxu0 %v1103
      %v1314 = vpop.f32.mrf.mxu0
      %v1315 = vadd.f32 %v911, %v1314
      %1316 = vmatmul.f32.gmra.mxu0 %v1106
      %v1317 = vpop.f32.mrf.mxu0
      %v1318 = vadd.f32 %v914, %v1317
      %1319 = vmatmul.f32.gmra.mxu0 %v1109
      %v1320 = vpop.f32.mrf.mxu0
      %v1321 = vadd.f32 %v917, %v1320
      %1322 = vmatmul.f32.gmra.mxu0 %v1112
      %v1323 = vpop.f32.mrf.mxu0
      %v1324 = vadd.f32 %v920, %v1323
      %1325 = vmatmul.f32.gmra.mxu0 %v1115
      %v1326 = vpop.f32.mrf.mxu0
      %v1327 = vadd.f32 %v923, %v1326
      %1328 = vmatmul.f32.gmra.mxu0 %v1118
      %v1329 = vpop.f32.mrf.mxu0
      %v1330 = vadd.f32 %v926, %v1329
      %1331 = vmatmul.f32.gmra.mxu0 %v1121
      %v1332 = vpop.f32.mrf.mxu0
      %v1333 = vadd.f32 %v929, %v1332
      %1334 = vmatmul.f32.gmra.mxu0 %v1124
      %v1335 = vpop.f32.mrf.mxu0
      %v1336 = vadd.f32 %v932, %v1335
      %1337 = vmatmul.f32.gmra.mxu0 %v1127
      %v1338 = vpop.f32.mrf.mxu0
      %v1339 = vadd.f32 %v935, %v1338
      %1340 = vmatmul.f32.gmra.mxu0 %v1130
      %v1341 = vpop.f32.mrf.mxu0
      %v1342 = vadd.f32 %v938, %v1341
      %1343 = vmatmul.f32.gmra.mxu0 %v1133
      %v1344 = vpop.f32.mrf.mxu0
      %v1345 = vadd.f32 %v941, %v1344
      %1346 = vmatmul.f32.gmra.mxu0 %v1136
      %v1347 = vpop.f32.mrf.mxu0
      %v1348 = vadd.f32 %v944, %v1347
      %1349 = vmatmul.f32.gmra.mxu0 %v1139
      %v1350 = vpop.f32.mrf.mxu0
      %v1351 = vadd.f32 %v947, %v1350
      %1352 = vmatmul.f32.gmra.mxu0 %v1142
      %v1353 = vpop.f32.mrf.mxu0
      %v1354 = vadd.f32 %v950, %v1353
      %1355 = vmatmul.f32.gmra.mxu0 %v1145
      %v1356 = vpop.f32.mrf.mxu0
      %v1357 = vadd.f32 %v953, %v1356
      %1358 = vmatmul.f32.gmra.mxu0 %v1148
      %v1359 = vpop.f32.mrf.mxu0
      %v1360 = vadd.f32 %v956, %v1359
      %1361 = vmatmul.f32.gmra.mxu0 %v1151
      %v1362 = vpop.f32.mrf.mxu0
      %v1363 = vadd.f32 %v959, %v1362
      %1364 = vmatmul.f32.gmra.mxu0 %v1154
      %v1365 = vpop.f32.mrf.mxu0
      %v1366 = vadd.f32 %v962, %v1365
      %1367 = vmatmul.f32.gmra.mxu0 %v1157
      %v1368 = vpop.f32.mrf.mxu0
      %v1369 = vadd.f32 %v965, %v1368
      %1370 = vmatmul.f32.gmra.mxu0 %v1160
      %v1371 = vpop.f32.mrf.mxu0
      %v1372 = vadd.f32 %v968, %v1371
      %1373 = vmatmul.f32.gmra.mxu0 %v1163
      %v1374 = vpop.f32.mrf.mxu0
      %v1375 = vadd.f32 %v971, %v1374
      %1376 = vmatmul.f32.gmra.mxu0 %v1166
      %v1377 = vpop.f32.mrf.mxu0
      %v1378 = vadd.f32 %v974, %v1377
      %1379 = vmatmul.f32.gmra.mxu0 %v1169
      %v1380 = vpop.f32.mrf.mxu0
      %v1381 = vadd.f32 %v977, %v1380
      %1382 = vmatmul.f32.gmra.mxu0 %v1172
      %v1383 = vpop.f32.mrf.mxu0
      %v1384 = vadd.f32 %v980, %v1383
      %1385 = vmatmul.f32.gmra.mxu0 %v1175
      %v1386 = vpop.f32.mrf.mxu0
      %v1387 = vadd.f32 %v983, %v1386
      %1388 = vmatmul.f32.gmra.mxu0 %v1178
      %v1389 = vpop.f32.mrf.mxu0
      %v1390 = vadd.f32 %v986, %v1389
      %1391 = vmatmul.f32.gmra.mxu0 %v1181
      %v1392 = vpop.f32.mrf.mxu0
      %v1393 = vadd.f32 %v989, %v1392
      %1394 = vmatmul.f32.gmra.mxu0 %v1184
      %v1395 = vpop.f32.mrf.mxu0
      %v1396 = vadd.f32 %v992, %v1395
      %1397 = vmatmul.f32.gmra.mxu0 %v1187
      %v1398 = vpop.f32.mrf.mxu0
      %v1399 = vadd.f32 %v995, %v1398
      %1400 = vmatmul.f32.gmra.mxu0 %v1190
      %v1401 = vpop.f32.mrf.mxu0
      %v1402 = vadd.f32 %v998, %v1401
      %1403 = vmatmul.f32.gmra.mxu0 %v1193
      %v1404 = vpop.f32.mrf.mxu0
      %v1405 = vadd.f32 %v1001, %v1404
      %1406 = vmatmul.f32.gmra.mxu0 %v1196
      %v1407 = vpop.f32.mrf.mxu0
      %v1408 = vadd.f32 %v1004, %v1407
      %1409 = vmatmul.f32.gmra.mxu0 %v1199
      %v1410 = vpop.f32.mrf.mxu0
      %v1411 = vadd.f32 %v1007, %v1410
      %1412 = vmatmul.f32.gmra.mxu0 %v1202
      %v1413 = vpop.f32.mrf.mxu0
      %v1414 = vadd.f32 %v1010, %v1413
      %1415 = vmatmul.f32.gmra.mxu0 %v1205
      %v1416 = vpop.f32.mrf.mxu0
      %v1417 = vadd.f32 %v1013, %v1416
      %1418 = vmatmul.f32.gmra.mxu0 %v1208
      %v1419 = vpop.f32.mrf.mxu0
      %v1420 = vadd.f32 %v1016, %v1419
      %1421 = vmatmul.f32.gmra.mxu0 %v1211
      %v1422 = vpop.f32.mrf.mxu0
      %v1423 = vadd.f32 %v1019, %v1422
      %1424 = vmatmul.f32.gmra.mxu0 %v1214
      %v1425 = vpop.f32.mrf.mxu0
      %v1426 = vadd.f32 %v1022, %v1425
      %1427 = vmatmul.f32.gmra.mxu0 %v1217
      %v1428 = vpop.f32.mrf.mxu0
      %v1429 = vadd.f32 %v1025, %v1428
      %1430 = vmatmul.f32.gmra.mxu0 %v1220
      %v1431 = vpop.f32.mrf.mxu0
      %v1432 = vadd.f32 %v1028, %v1431
      %1433 = vmatmul.f32.gmra.mxu0 %v1223
      %v1434 = vpop.f32.mrf.mxu0
      %v1435 = vadd.f32 %v1031, %v1434
      %1436 = vmatmul.f32.gmra.mxu0 %v1226
      %v1437 = vpop.f32.mrf.mxu0
      %v1438 = vadd.f32 %v1034, %v1437
      %1439 = vmatmul.f32.gmra.mxu0 %v1229
      %v1440 = vpop.f32.mrf.mxu0
      %v1441 = vadd.f32 %v1037, %v1440
      %1442 = vmatmul.f32.gmra.mxu0 %v1232
      %v1443 = vpop.f32.mrf.mxu0
      %v1444 = vadd.f32 %v1040, %v1443
      %1445 = vmatmul.f32.gmra.mxu0 %v1235
      %v1446 = vpop.f32.mrf.mxu0
      %v1447 = vadd.f32 %v1043, %v1446
      %1448 = vmatmul.f32.gmra.mxu0 %v1238
      %v1449 = vpop.f32.mrf.mxu0
      %v1450 = vadd.f32 %v1046, %v1449
      %1451 = vmatmul.f32.gmra.mxu0 %v1241
      %v1452 = vpop.f32.mrf.mxu0
      %v1453 = vadd.f32 %v1049, %v1452
      %1454 = vmatmul.f32.gmra.mxu0 %v1244
      %v1455 = vpop.f32.mrf.mxu0
      %v1456 = vadd.f32 %v1052, %v1455
      %1457 = vmatmul.f32.gmra.mxu0 %v1247
      %v1458 = vpop.f32.mrf.mxu0
      %v1459 = vadd.f32 %v1055, %v1458
      %1460 = vmatmul.f32.gmra.mxu0 %v1250
      %v1461 = vpop.f32.mrf.mxu0
      %v1462 = vadd.f32 %v1058, %v1461
      %1463 = vmatmul.f32.gmra.mxu0 %v1253
      %v1464 = vpop.f32.mrf.mxu0
      %v1465 = vadd.f32 %v1061, %v1464
      %1466 = vmatmul.f32.gmra.mxu0 %v1256
      %v1467 = vpop.f32.mrf.mxu0
      %v1468 = vadd.f32 %v1064, %v1467
      %1469 = vdwg.mxu0
      %s1470 = sadd.s32 %s521, 2
      %s1471 = scalar_lea.vmem [#allocation2], %s1470
      %v1472 = vld [vmem:[%s1471] sm:$0xff]
      %v1473 = vld [vmem:[%s1471 + $0x8] sm:$0xff]
      %v1474 = vld [vmem:[%s1471 + $0x10] sm:$0xff]
      %v1475 = vld [vmem:[%s1471 + $0x18] sm:$0xff]
      %v1476 = vld [vmem:[%s1471 + $0x20] sm:$0xff]
      %v1477 = vld [vmem:[%s1471 + $0x28] sm:$0xff]
      %v1478 = vld [vmem:[%s1471 + $0x30] sm:$0xff]
      %v1479 = vld [vmem:[%s1471 + $0x38] sm:$0xff]
      %v1480 = vld [vmem:[%s1471 + $0x40] sm:$0xff]
      %v1481 = vld [vmem:[%s1471 + $0x48] sm:$0xff]
      %v1482 = vld [vmem:[%s1471 + $0x50] sm:$0xff]
      %v1483 = vld [vmem:[%s1471 + $0x58] sm:$0xff]
      %v1484 = vld [vmem:[%s1471 + $0x60] sm:$0xff]
      %v1485 = vld [vmem:[%s1471 + $0x68] sm:$0xff]
      %v1486 = vld [vmem:[%s1471 + $0x70] sm:$0xff]
      %v1487 = vld [vmem:[%s1471 + $0x78] sm:$0xff]
      %v1488 = vld [vmem:[%s1471 + $0x80] sm:$0xff]
      %v1489 = vld [vmem:[%s1471 + $0x88] sm:$0xff]
      %v1490 = vld [vmem:[%s1471 + $0x90] sm:$0xff]
      %v1491 = vld [vmem:[%s1471 + $0x98] sm:$0xff]
      %v1492 = vld [vmem:[%s1471 + $0xa0] sm:$0xff]
      %v1493 = vld [vmem:[%s1471 + $0xa8] sm:$0xff]
      %v1494 = vld [vmem:[%s1471 + $0xb0] sm:$0xff]
      %v1495 = vld [vmem:[%s1471 + $0xb8] sm:$0xff]
      %v1496 = vld [vmem:[%s1471 + $0xc0] sm:$0xff]
      %v1497 = vld [vmem:[%s1471 + $0xc8] sm:$0xff]
      %v1498 = vld [vmem:[%s1471 + $0xd0] sm:$0xff]
      %v1499 = vld [vmem:[%s1471 + $0xd8] sm:$0xff]
      %v1500 = vld [vmem:[%s1471 + $0xe0] sm:$0xff]
      %v1501 = vld [vmem:[%s1471 + $0xe8] sm:$0xff]
      %v1502 = vld [vmem:[%s1471 + $0xf0] sm:$0xff]
      %v1503 = vld [vmem:[%s1471 + $0xf8] sm:$0xff]
      %v1504 = vld [vmem:[%s1471 + $0x100] sm:$0xff]
      %v1505 = vld [vmem:[%s1471 + $0x108] sm:$0xff]
      %v1506 = vld [vmem:[%s1471 + $0x110] sm:$0xff]
      %v1507 = vld [vmem:[%s1471 + $0x118] sm:$0xff]
      %v1508 = vld [vmem:[%s1471 + $0x120] sm:$0xff]
      %v1509 = vld [vmem:[%s1471 + $0x128] sm:$0xff]
      %v1510 = vld [vmem:[%s1471 + $0x130] sm:$0xff]
      %v1511 = vld [vmem:[%s1471 + $0x138] sm:$0xff]
      %v1512 = vld [vmem:[%s1471 + $0x140] sm:$0xff]
      %v1513 = vld [vmem:[%s1471 + $0x148] sm:$0xff]
      %v1514 = vld [vmem:[%s1471 + $0x150] sm:$0xff]
      %v1515 = vld [vmem:[%s1471 + $0x158] sm:$0xff]
      %v1516 = vld [vmem:[%s1471 + $0x160] sm:$0xff]
      %v1517 = vld [vmem:[%s1471 + $0x168] sm:$0xff]
      %v1518 = vld [vmem:[%s1471 + $0x170] sm:$0xff]
      %v1519 = vld [vmem:[%s1471 + $0x178] sm:$0xff]
      %v1520 = vld [vmem:[%s1471 + $0x180] sm:$0xff]
      %v1521 = vld [vmem:[%s1471 + $0x188] sm:$0xff]
      %v1522 = vld [vmem:[%s1471 + $0x190] sm:$0xff]
      %v1523 = vld [vmem:[%s1471 + $0x198] sm:$0xff]
      %v1524 = vld [vmem:[%s1471 + $0x1a0] sm:$0xff]
      %v1525 = vld [vmem:[%s1471 + $0x1a8] sm:$0xff]
      %v1526 = vld [vmem:[%s1471 + $0x1b0] sm:$0xff]
      %v1527 = vld [vmem:[%s1471 + $0x1b8] sm:$0xff]
      %v1528 = vld [vmem:[%s1471 + $0x1c0] sm:$0xff]
      %v1529 = vld [vmem:[%s1471 + $0x1c8] sm:$0xff]
      %v1530 = vld [vmem:[%s1471 + $0x1d0] sm:$0xff]
      %v1531 = vld [vmem:[%s1471 + $0x1d8] sm:$0xff]
      %v1532 = vld [vmem:[%s1471 + $0x1e0] sm:$0xff]
      %v1533 = vld [vmem:[%s1471 + $0x1e8] sm:$0xff]
      %v1534 = vld [vmem:[%s1471 + $0x1f0] sm:$0xff]
      %v1535 = vld [vmem:[%s1471 + $0x1f8] sm:$0xff]
      %s1536 = scalar_lea.vmem %s1, 8
      %v1537 = vld [vmem:[%s1536] sm:$0xf]
      %v1539 = vsel %vm660, %v1472, 0
      %v1542 = vsel %vm660, %v1473, 0
      %v1545 = vsel %vm660, %v1474, 0
      %v1548 = vsel %vm660, %v1475, 0
      %v1551 = vsel %vm660, %v1476, 0
      %v1554 = vsel %vm660, %v1477, 0
      %v1557 = vsel %vm660, %v1478, 0
      %v1560 = vsel %vm660, %v1479, 0
      %v1563 = vsel %vm660, %v1480, 0
      %v1566 = vsel %vm660, %v1481, 0
      %v1569 = vsel %vm660, %v1482, 0
      %v1572 = vsel %vm660, %v1483, 0
      %v1575 = vsel %vm660, %v1484, 0
      %v1578 = vsel %vm660, %v1485, 0
      %v1581 = vsel %vm660, %v1486, 0
      %v1584 = vsel %vm660, %v1487, 0
      %v1587 = vsel %vm660, %v1488, 0
      %v1590 = vsel %vm660, %v1489, 0
      %v1593 = vsel %vm660, %v1490, 0
      %v1596 = vsel %vm660, %v1491, 0
      %v1599 = vsel %vm660, %v1492, 0
      %v1602 = vsel %vm660, %v1493, 0
      %v1605 = vsel %vm660, %v1494, 0
      %v1608 = vsel %vm660, %v1495, 0
      %v1611 = vsel %vm660, %v1496, 0
      %v1614 = vsel %vm660, %v1497, 0
      %v1617 = vsel %vm660, %v1498, 0
      %v1620 = vsel %vm660, %v1499, 0
      %v1623 = vsel %vm660, %v1500, 0
      %v1626 = vsel %vm660, %v1501, 0
      %v1629 = vsel %vm660, %v1502, 0
      %v1632 = vsel %vm660, %v1503, 0
      %v1635 = vsel %vm660, %v1504, 0
      %v1638 = vsel %vm660, %v1505, 0
      %v1641 = vsel %vm660, %v1506, 0
      %v1644 = vsel %vm660, %v1507, 0
      %v1647 = vsel %vm660, %v1508, 0
      %v1650 = vsel %vm660, %v1509, 0
      %v1653 = vsel %vm660, %v1510, 0
      %v1656 = vsel %vm660, %v1511, 0
      %v1659 = vsel %vm660, %v1512, 0
      %v1662 = vsel %vm660, %v1513, 0
      %v1665 = vsel %vm660, %v1514, 0
      %v1668 = vsel %vm660, %v1515, 0
      %v1671 = vsel %vm660, %v1516, 0
      %v1674 = vsel %vm660, %v1517, 0
      %v1677 = vsel %vm660, %v1518, 0
      %v1680 = vsel %vm660, %v1519, 0
      %v1683 = vsel %vm660, %v1520, 0
      %v1686 = vsel %vm660, %v1521, 0
      %v1689 = vsel %vm660, %v1522, 0
      %v1692 = vsel %vm660, %v1523, 0
      %v1695 = vsel %vm660, %v1524, 0
      %v1698 = vsel %vm660, %v1525, 0
      %v1701 = vsel %vm660, %v1526, 0
      %v1704 = vsel %vm660, %v1527, 0
      %v1707 = vsel %vm660, %v1528, 0
      %v1710 = vsel %vm660, %v1529, 0
      %v1713 = vsel %vm660, %v1530, 0
      %v1716 = vsel %vm660, %v1531, 0
      %v1719 = vsel %vm660, %v1532, 0
      %v1722 = vsel %vm660, %v1533, 0
      %v1725 = vsel %vm660, %v1534, 0
      %v1728 = vsel %vm660, %v1535, 0
      %v1731 = vsel %vm853, %v1537, 0
      %1733 = vmatpush.msra.mxu0 0.0
      %1734 = vmatpush.msra.mxu0 0.0
      %1735 = vmatpush.msra.mxu0 0.0
      %1736 = vmatpush.msra.mxu0 0.0
      %1737 = vmatpush.msra.mxu0 0.0
      %1738 = vmatpush.msra.mxu0 0.0
      %1739 = vmatpush.msra.mxu0 0.0
      %1740 = vmatpush.msra.mxu0 0.0
      %1741 = vmatpush.msra.mxu0 0.0
      %1742 = vmatpush.msra.mxu0 0.0
      %1743 = vmatpush.msra.mxu0 0.0
      %1744 = vmatpush.msra.mxu0 0.0
      %1745 = vmatpush.msra.mxu0 0.0
      %1746 = vmatpush.msra.mxu0 0.0
      %1747 = vmatpush.msra.mxu0 0.0
      %1748 = vmatpush.msra.mxu0 %v1731
      %1749 = vmatmul.f32.gmra.mxu0 %v1539
      %v1750 = vpop.f32.mrf.mxu0
      %v1751 = vadd.f32 0.0, %v1750
      %1752 = vmatmul.f32.gmra.mxu0 %v1542
      %v1753 = vpop.f32.mrf.mxu0
      %v1754 = vadd.f32 0.0, %v1753
      %1755 = vmatmul.f32.gmra.mxu0 %v1545
      %v1756 = vpop.f32.mrf.mxu0
      %v1757 = vadd.f32 0.0, %v1756
      %1758 = vmatmul.f32.gmra.mxu0 %v1548
      %v1759 = vpop.f32.mrf.mxu0
      %v1760 = vadd.f32 0.0, %v1759
      %1761 = vmatmul.f32.gmra.mxu0 %v1551
      %v1762 = vpop.f32.mrf.mxu0
      %v1763 = vadd.f32 0.0, %v1762
      %1764 = vmatmul.f32.gmra.mxu0 %v1554
      %v1765 = vpop.f32.mrf.mxu0
      %v1766 = vadd.f32 0.0, %v1765
      %1767 = vmatmul.f32.gmra.mxu0 %v1557
      %v1768 = vpop.f32.mrf.mxu0
      %v1769 = vadd.f32 0.0, %v1768
      %1770 = vmatmul.f32.gmra.mxu0 %v1560
      %v1771 = vpop.f32.mrf.mxu0
      %v1772 = vadd.f32 0.0, %v1771
      %1773 = vmatmul.f32.gmra.mxu0 %v1563
      %v1774 = vpop.f32.mrf.mxu0
      %v1775 = vadd.f32 0.0, %v1774
      %1776 = vmatmul.f32.gmra.mxu0 %v1566
      %v1777 = vpop.f32.mrf.mxu0
      %v1778 = vadd.f32 0.0, %v1777
      %1779 = vmatmul.f32.gmra.mxu0 %v1569
      %v1780 = vpop.f32.mrf.mxu0
      %v1781 = vadd.f32 0.0, %v1780
      %1782 = vmatmul.f32.gmra.mxu0 %v1572
      %v1783 = vpop.f32.mrf.mxu0
      %v1784 = vadd.f32 0.0, %v1783
      %1785 = vmatmul.f32.gmra.mxu0 %v1575
      %v1786 = vpop.f32.mrf.mxu0
      %v1787 = vadd.f32 0.0, %v1786
      %1788 = vmatmul.f32.gmra.mxu0 %v1578
      %v1789 = vpop.f32.mrf.mxu0
      %v1790 = vadd.f32 0.0, %v1789
      %1791 = vmatmul.f32.gmra.mxu0 %v1581
      %v1792 = vpop.f32.mrf.mxu0
      %v1793 = vadd.f32 0.0, %v1792
      %1794 = vmatmul.f32.gmra.mxu0 %v1584
      %v1795 = vpop.f32.mrf.mxu0
      %v1796 = vadd.f32 0.0, %v1795
      %1797 = vmatmul.f32.gmra.mxu0 %v1587
      %v1798 = vpop.f32.mrf.mxu0
      %v1799 = vadd.f32 0.0, %v1798
      %1800 = vmatmul.f32.gmra.mxu0 %v1590
      %v1801 = vpop.f32.mrf.mxu0
      %v1802 = vadd.f32 0.0, %v1801
      %1803 = vmatmul.f32.gmra.mxu0 %v1593
      %v1804 = vpop.f32.mrf.mxu0
      %v1805 = vadd.f32 0.0, %v1804
      %1806 = vmatmul.f32.gmra.mxu0 %v1596
      %v1807 = vpop.f32.mrf.mxu0
      %v1808 = vadd.f32 0.0, %v1807
      %1809 = vmatmul.f32.gmra.mxu0 %v1599
      %v1810 = vpop.f32.mrf.mxu0
      %v1811 = vadd.f32 0.0, %v1810
      %1812 = vmatmul.f32.gmra.mxu0 %v1602
      %v1813 = vpop.f32.mrf.mxu0
      %v1814 = vadd.f32 0.0, %v1813
      %1815 = vmatmul.f32.gmra.mxu0 %v1605
      %v1816 = vpop.f32.mrf.mxu0
      %v1817 = vadd.f32 0.0, %v1816
      %1818 = vmatmul.f32.gmra.mxu0 %v1608
      %v1819 = vpop.f32.mrf.mxu0
      %v1820 = vadd.f32 0.0, %v1819
      %1821 = vmatmul.f32.gmra.mxu0 %v1611
      %v1822 = vpop.f32.mrf.mxu0
      %v1823 = vadd.f32 0.0, %v1822
      %1824 = vmatmul.f32.gmra.mxu0 %v1614
      %v1825 = vpop.f32.mrf.mxu0
      %v1826 = vadd.f32 0.0, %v1825
      %1827 = vmatmul.f32.gmra.mxu0 %v1617
      %v1828 = vpop.f32.mrf.mxu0
      %v1829 = vadd.f32 0.0, %v1828
      %1830 = vmatmul.f32.gmra.mxu0 %v1620
      %v1831 = vpop.f32.mrf.mxu0
      %v1832 = vadd.f32 0.0, %v1831
      %1833 = vmatmul.f32.gmra.mxu0 %v1623
      %v1834 = vpop.f32.mrf.mxu0
      %v1835 = vadd.f32 0.0, %v1834
      %1836 = vmatmul.f32.gmra.mxu0 %v1626
      %v1837 = vpop.f32.mrf.mxu0
      %v1838 = vadd.f32 0.0, %v1837
      %1839 = vmatmul.f32.gmra.mxu0 %v1629
      %v1840 = vpop.f32.mrf.mxu0
      %v1841 = vadd.f32 0.0, %v1840
      %1842 = vmatmul.f32.gmra.mxu0 %v1632
      %v1843 = vpop.f32.mrf.mxu0
      %v1844 = vadd.f32 0.0, %v1843
      %1845 = vmatmul.f32.gmra.mxu0 %v1635
      %v1846 = vpop.f32.mrf.mxu0
      %v1847 = vadd.f32 0.0, %v1846
      %1848 = vmatmul.f32.gmra.mxu0 %v1638
      %v1849 = vpop.f32.mrf.mxu0
      %v1850 = vadd.f32 0.0, %v1849
      %1851 = vmatmul.f32.gmra.mxu0 %v1641
      %v1852 = vpop.f32.mrf.mxu0
      %v1853 = vadd.f32 0.0, %v1852
      %1854 = vmatmul.f32.gmra.mxu0 %v1644
      %v1855 = vpop.f32.mrf.mxu0
      %v1856 = vadd.f32 0.0, %v1855
      %1857 = vmatmul.f32.gmra.mxu0 %v1647
      %v1858 = vpop.f32.mrf.mxu0
      %v1859 = vadd.f32 0.0, %v1858
      %1860 = vmatmul.f32.gmra.mxu0 %v1650
      %v1861 = vpop.f32.mrf.mxu0
      %v1862 = vadd.f32 0.0, %v1861
      %1863 = vmatmul.f32.gmra.mxu0 %v1653
      %v1864 = vpop.f32.mrf.mxu0
      %v1865 = vadd.f32 0.0, %v1864
      %1866 = vmatmul.f32.gmra.mxu0 %v1656
      %v1867 = vpop.f32.mrf.mxu0
      %v1868 = vadd.f32 0.0, %v1867
      %1869 = vmatmul.f32.gmra.mxu0 %v1659
      %v1870 = vpop.f32.mrf.mxu0
      %v1871 = vadd.f32 0.0, %v1870
      %1872 = vmatmul.f32.gmra.mxu0 %v1662
      %v1873 = vpop.f32.mrf.mxu0
      %v1874 = vadd.f32 0.0, %v1873
      %1875 = vmatmul.f32.gmra.mxu0 %v1665
      %v1876 = vpop.f32.mrf.mxu0
      %v1877 = vadd.f32 0.0, %v1876
      %1878 = vmatmul.f32.gmra.mxu0 %v1668
      %v1879 = vpop.f32.mrf.mxu0
      %v1880 = vadd.f32 0.0, %v1879
      %1881 = vmatmul.f32.gmra.mxu0 %v1671
      %v1882 = vpop.f32.mrf.mxu0
      %v1883 = vadd.f32 0.0, %v1882
      %1884 = vmatmul.f32.gmra.mxu0 %v1674
      %v1885 = vpop.f32.mrf.mxu0
      %v1886 = vadd.f32 0.0, %v1885
      %1887 = vmatmul.f32.gmra.mxu0 %v1677
      %v1888 = vpop.f32.mrf.mxu0
      %v1889 = vadd.f32 0.0, %v1888
      %1890 = vmatmul.f32.gmra.mxu0 %v1680
      %v1891 = vpop.f32.mrf.mxu0
      %v1892 = vadd.f32 0.0, %v1891
      %1893 = vmatmul.f32.gmra.mxu0 %v1683
      %v1894 = vpop.f32.mrf.mxu0
      %v1895 = vadd.f32 0.0, %v1894
      %1896 = vmatmul.f32.gmra.mxu0 %v1686
      %v1897 = vpop.f32.mrf.mxu0
      %v1898 = vadd.f32 0.0, %v1897
      %1899 = vmatmul.f32.gmra.mxu0 %v1689
      %v1900 = vpop.f32.mrf.mxu0
      %v1901 = vadd.f32 0.0, %v1900
      %1902 = vmatmul.f32.gmra.mxu0 %v1692
      %v1903 = vpop.f32.mrf.mxu0
      %v1904 = vadd.f32 0.0, %v1903
      %1905 = vmatmul.f32.gmra.mxu0 %v1695
      %v1906 = vpop.f32.mrf.mxu0
      %v1907 = vadd.f32 0.0, %v1906
      %1908 = vmatmul.f32.gmra.mxu0 %v1698
      %v1909 = vpop.f32.mrf.mxu0
      %v1910 = vadd.f32 0.0, %v1909
      %1911 = vmatmul.f32.gmra.mxu0 %v1701
      %v1912 = vpop.f32.mrf.mxu0
      %v1913 = vadd.f32 0.0, %v1912
      %1914 = vmatmul.f32.gmra.mxu0 %v1704
      %v1915 = vpop.f32.mrf.mxu0
      %v1916 = vadd.f32 0.0, %v1915
      %1917 = vmatmul.f32.gmra.mxu0 %v1707
      %v1918 = vpop.f32.mrf.mxu0
      %v1919 = vadd.f32 0.0, %v1918
      %1920 = vmatmul.f32.gmra.mxu0 %v1710
      %v1921 = vpop.f32.mrf.mxu0
      %v1922 = vadd.f32 0.0, %v1921
      %1923 = vmatmul.f32.gmra.mxu0 %v1713
      %v1924 = vpop.f32.mrf.mxu0
      %v1925 = vadd.f32 0.0, %v1924
      %1926 = vmatmul.f32.gmra.mxu0 %v1716
      %v1927 = vpop.f32.mrf.mxu0
      %v1928 = vadd.f32 0.0, %v1927
      %1929 = vmatmul.f32.gmra.mxu0 %v1719
      %v1930 = vpop.f32.mrf.mxu0
      %v1931 = vadd.f32 0.0, %v1930
      %1932 = vmatmul.f32.gmra.mxu0 %v1722
      %v1933 = vpop.f32.mrf.mxu0
      %v1934 = vadd.f32 0.0, %v1933
      %1935 = vmatmul.f32.gmra.mxu0 %v1725
      %v1936 = vpop.f32.mrf.mxu0
      %v1937 = vadd.f32 0.0, %v1936
      %1938 = vmatmul.f32.gmra.mxu0 %v1728
      %v1939 = vpop.f32.mrf.mxu0
      %v1940 = vadd.f32 0.0, %v1939
      %1941 = vdwg.mxu0
      %v1942 = vadd.f32 %v1279, %v1751
      %v1943 = vadd.f32 %v1282, %v1754
      %v1944 = vadd.f32 %v1285, %v1757
      %v1945 = vadd.f32 %v1288, %v1760
      %v1946 = vadd.f32 %v1291, %v1763
      %v1947 = vadd.f32 %v1294, %v1766
      %v1948 = vadd.f32 %v1297, %v1769
      %v1949 = vadd.f32 %v1300, %v1772
      %v1950 = vadd.f32 %v1303, %v1775
      %v1951 = vadd.f32 %v1306, %v1778
      %v1952 = vadd.f32 %v1309, %v1781
      %v1953 = vadd.f32 %v1312, %v1784
      %v1954 = vadd.f32 %v1315, %v1787
      %v1955 = vadd.f32 %v1318, %v1790
      %v1956 = vadd.f32 %v1321, %v1793
      %v1957 = vadd.f32 %v1324, %v1796
      %v1958 = vadd.f32 %v1327, %v1799
      %v1959 = vadd.f32 %v1330, %v1802
      %v1960 = vadd.f32 %v1333, %v1805
      %v1961 = vadd.f32 %v1336, %v1808
      %v1962 = vadd.f32 %v1339, %v1811
      %v1963 = vadd.f32 %v1342, %v1814
      %v1964 = vadd.f32 %v1345, %v1817
      %v1965 = vadd.f32 %v1348, %v1820
      %v1966 = vadd.f32 %v1351, %v1823
      %v1967 = vadd.f32 %v1354, %v1826
      %v1968 = vadd.f32 %v1357, %v1829
      %v1969 = vadd.f32 %v1360, %v1832
      %v1970 = vadd.f32 %v1363, %v1835
      %v1971 = vadd.f32 %v1366, %v1838
      %v1972 = vadd.f32 %v1369, %v1841
      %v1973 = vadd.f32 %v1372, %v1844
      %v1974 = vadd.f32 %v1375, %v1847
      %v1975 = vadd.f32 %v1378, %v1850
      %v1976 = vadd.f32 %v1381, %v1853
      %v1977 = vadd.f32 %v1384, %v1856
      %v1978 = vadd.f32 %v1387, %v1859
      %v1979 = vadd.f32 %v1390, %v1862
      %v1980 = vadd.f32 %v1393, %v1865
      %v1981 = vadd.f32 %v1396, %v1868
      %v1982 = vadd.f32 %v1399, %v1871
      %v1983 = vadd.f32 %v1402, %v1874
      %v1984 = vadd.f32 %v1405, %v1877
      %v1985 = vadd.f32 %v1408, %v1880
      %v1986 = vadd.f32 %v1411, %v1883
      %v1987 = vadd.f32 %v1414, %v1886
      %v1988 = vadd.f32 %v1417, %v1889
      %v1989 = vadd.f32 %v1420, %v1892
      %v1990 = vadd.f32 %v1423, %v1895
      %v1991 = vadd.f32 %v1426, %v1898
      %v1992 = vadd.f32 %v1429, %v1901
      %v1993 = vadd.f32 %v1432, %v1904
      %v1994 = vadd.f32 %v1435, %v1907
      %v1995 = vadd.f32 %v1438, %v1910
      %v1996 = vadd.f32 %v1441, %v1913
      %v1997 = vadd.f32 %v1444, %v1916
      %v1998 = vadd.f32 %v1447, %v1919
      %v1999 = vadd.f32 %v1450, %v1922
      %v2000 = vadd.f32 %v1453, %v1925
      %v2001 = vadd.f32 %v1456, %v1928
      %v2002 = vadd.f32 %v1459, %v1931
      %v2003 = vadd.f32 %v1462, %v1934
      %v2004 = vadd.f32 %v1465, %v1937
      %v2005 = vadd.f32 %v1468, %v1940
      %s2006 = sadd.s32 %s521, 18
      %s2007 = scalar_lea.vmem [#allocation2], %s2006
      %v2008 = vld [vmem:[%s2007] sm:$0xff]
      %v2009 = vld [vmem:[%s2007 + $0x8] sm:$0xff]
      %v2010 = vld [vmem:[%s2007 + $0x10] sm:$0xff]
      %v2011 = vld [vmem:[%s2007 + $0x18] sm:$0xff]
      %v2012 = vld [vmem:[%s2007 + $0x20] sm:$0xff]
      %v2013 = vld [vmem:[%s2007 + $0x28] sm:$0xff]
      %v2014 = vld [vmem:[%s2007 + $0x30] sm:$0xff]
      %v2015 = vld [vmem:[%s2007 + $0x38] sm:$0xff]
      %v2016 = vld [vmem:[%s2007 + $0x40] sm:$0xff]
      %v2017 = vld [vmem:[%s2007 + $0x48] sm:$0xff]
      %v2018 = vld [vmem:[%s2007 + $0x50] sm:$0xff]
      %v2019 = vld [vmem:[%s2007 + $0x58] sm:$0xff]
      %v2020 = vld [vmem:[%s2007 + $0x60] sm:$0xff]
      %v2021 = vld [vmem:[%s2007 + $0x68] sm:$0xff]
      %v2022 = vld [vmem:[%s2007 + $0x70] sm:$0xff]
      %v2023 = vld [vmem:[%s2007 + $0x78] sm:$0xff]
      %v2024 = vld [vmem:[%s2007 + $0x80] sm:$0xff]
      %v2025 = vld [vmem:[%s2007 + $0x88] sm:$0xff]
      %v2026 = vld [vmem:[%s2007 + $0x90] sm:$0xff]
      %v2027 = vld [vmem:[%s2007 + $0x98] sm:$0xff]
      %v2028 = vld [vmem:[%s2007 + $0xa0] sm:$0xff]
      %v2029 = vld [vmem:[%s2007 + $0xa8] sm:$0xff]
      %v2030 = vld [vmem:[%s2007 + $0xb0] sm:$0xff]
      %v2031 = vld [vmem:[%s2007 + $0xb8] sm:$0xff]
      %v2032 = vld [vmem:[%s2007 + $0xc0] sm:$0xff]
      %v2033 = vld [vmem:[%s2007 + $0xc8] sm:$0xff]
      %v2034 = vld [vmem:[%s2007 + $0xd0] sm:$0xff]
      %v2035 = vld [vmem:[%s2007 + $0xd8] sm:$0xff]
      %v2036 = vld [vmem:[%s2007 + $0xe0] sm:$0xff]
      %v2037 = vld [vmem:[%s2007 + $0xe8] sm:$0xff]
      %v2038 = vld [vmem:[%s2007 + $0xf0] sm:$0xff]
      %v2039 = vld [vmem:[%s2007 + $0xf8] sm:$0xff]
      %v2040 = vld [vmem:[%s2007 + $0x100] sm:$0xff]
      %v2041 = vld [vmem:[%s2007 + $0x108] sm:$0xff]
      %v2042 = vld [vmem:[%s2007 + $0x110] sm:$0xff]
      %v2043 = vld [vmem:[%s2007 + $0x118] sm:$0xff]
      %v2044 = vld [vmem:[%s2007 + $0x120] sm:$0xff]
      %v2045 = vld [vmem:[%s2007 + $0x128] sm:$0xff]
      %v2046 = vld [vmem:[%s2007 + $0x130] sm:$0xff]
      %v2047 = vld [vmem:[%s2007 + $0x138] sm:$0xff]
      %v2048 = vld [vmem:[%s2007 + $0x140] sm:$0xff]
      %v2049 = vld [vmem:[%s2007 + $0x148] sm:$0xff]
      %v2050 = vld [vmem:[%s2007 + $0x150] sm:$0xff]
      %v2051 = vld [vmem:[%s2007 + $0x158] sm:$0xff]
      %v2052 = vld [vmem:[%s2007 + $0x160] sm:$0xff]
      %v2053 = vld [vmem:[%s2007 + $0x168] sm:$0xff]
      %v2054 = vld [vmem:[%s2007 + $0x170] sm:$0xff]
      %v2055 = vld [vmem:[%s2007 + $0x178] sm:$0xff]
      %v2056 = vld [vmem:[%s2007 + $0x180] sm:$0xff]
      %v2057 = vld [vmem:[%s2007 + $0x188] sm:$0xff]
      %v2058 = vld [vmem:[%s2007 + $0x190] sm:$0xff]
      %v2059 = vld [vmem:[%s2007 + $0x198] sm:$0xff]
      %v2060 = vld [vmem:[%s2007 + $0x1a0] sm:$0xff]
      %v2061 = vld [vmem:[%s2007 + $0x1a8] sm:$0xff]
      %v2062 = vld [vmem:[%s2007 + $0x1b0] sm:$0xff]
      %v2063 = vld [vmem:[%s2007 + $0x1b8] sm:$0xff]
      %v2064 = vld [vmem:[%s2007 + $0x1c0] sm:$0xff]
      %v2065 = vld [vmem:[%s2007 + $0x1c8] sm:$0xff]
      %v2066 = vld [vmem:[%s2007 + $0x1d0] sm:$0xff]
      %v2067 = vld [vmem:[%s2007 + $0x1d8] sm:$0xff]
      %v2068 = vld [vmem:[%s2007 + $0x1e0] sm:$0xff]
      %v2069 = vld [vmem:[%s2007 + $0x1e8] sm:$0xff]
      %v2070 = vld [vmem:[%s2007 + $0x1f0] sm:$0xff]
      %v2071 = vld [vmem:[%s2007 + $0x1f8] sm:$0xff]
      %s2072 = scalar_lea.vmem %s1, 12
      %v2073 = vld [vmem:[%s2072] sm:$0xf]
      %v2075 = vsel %vm660, %v2008, 0
      %v2078 = vsel %vm660, %v2009, 0
      %v2081 = vsel %vm660, %v2010, 0
      %v2084 = vsel %vm660, %v2011, 0
      %v2087 = vsel %vm660, %v2012, 0
      %v2090 = vsel %vm660, %v2013, 0
      %v2093 = vsel %vm660, %v2014, 0
      %v2096 = vsel %vm660, %v2015, 0
      %v2099 = vsel %vm660, %v2016, 0
      %v2102 = vsel %vm660, %v2017, 0
      %v2105 = vsel %vm660, %v2018, 0
      %v2108 = vsel %vm660, %v2019, 0
      %v2111 = vsel %vm660, %v2020, 0
      %v2114 = vsel %vm660, %v2021, 0
      %v2117 = vsel %vm660, %v2022, 0
      %v2120 = vsel %vm660, %v2023, 0
      %v2123 = vsel %vm660, %v2024, 0
      %v2126 = vsel %vm660, %v2025, 0
      %v2129 = vsel %vm660, %v2026, 0
      %v2132 = vsel %vm660, %v2027, 0
      %v2135 = vsel %vm660, %v2028, 0
      %v2138 = vsel %vm660, %v2029, 0
      %v2141 = vsel %vm660, %v2030, 0
      %v2144 = vsel %vm660, %v2031, 0
      %v2147 = vsel %vm660, %v2032, 0
      %v2150 = vsel %vm660, %v2033, 0
      %v2153 = vsel %vm660, %v2034, 0
      %v2156 = vsel %vm660, %v2035, 0
      %v2159 = vsel %vm660, %v2036, 0
      %v2162 = vsel %vm660, %v2037, 0
      %v2165 = vsel %vm660, %v2038, 0
      %v2168 = vsel %vm660, %v2039, 0
      %v2171 = vsel %vm660, %v2040, 0
      %v2174 = vsel %vm660, %v2041, 0
      %v2177 = vsel %vm660, %v2042, 0
      %v2180 = vsel %vm660, %v2043, 0
      %v2183 = vsel %vm660, %v2044, 0
      %v2186 = vsel %vm660, %v2045, 0
      %v2189 = vsel %vm660, %v2046, 0
      %v2192 = vsel %vm660, %v2047, 0
      %v2195 = vsel %vm660, %v2048, 0
      %v2198 = vsel %vm660, %v2049, 0
      %v2201 = vsel %vm660, %v2050, 0
      %v2204 = vsel %vm660, %v2051, 0
      %v2207 = vsel %vm660, %v2052, 0
      %v2210 = vsel %vm660, %v2053, 0
      %v2213 = vsel %vm660, %v2054, 0
      %v2216 = vsel %vm660, %v2055, 0
      %v2219 = vsel %vm660, %v2056, 0
      %v2222 = vsel %vm660, %v2057, 0
      %v2225 = vsel %vm660, %v2058, 0
      %v2228 = vsel %vm660, %v2059, 0
      %v2231 = vsel %vm660, %v2060, 0
      %v2234 = vsel %vm660, %v2061, 0
      %v2237 = vsel %vm660, %v2062, 0
      %v2240 = vsel %vm660, %v2063, 0
      %v2243 = vsel %vm660, %v2064, 0
      %v2246 = vsel %vm660, %v2065, 0
      %v2249 = vsel %vm660, %v2066, 0
      %v2252 = vsel %vm660, %v2067, 0
      %v2255 = vsel %vm660, %v2068, 0
      %v2258 = vsel %vm660, %v2069, 0
      %v2261 = vsel %vm660, %v2070, 0
      %v2264 = vsel %vm660, %v2071, 0
      %v2267 = vsel %vm853, %v2073, 0
      %2269 = vmatpush.msra.mxu0 0.0
      %2270 = vmatpush.msra.mxu0 0.0
      %2271 = vmatpush.msra.mxu0 0.0
      %2272 = vmatpush.msra.mxu0 0.0
      %2273 = vmatpush.msra.mxu0 0.0
      %2274 = vmatpush.msra.mxu0 0.0
      %2275 = vmatpush.msra.mxu0 0.0
      %2276 = vmatpush.msra.mxu0 0.0
      %2277 = vmatpush.msra.mxu0 0.0
      %2278 = vmatpush.msra.mxu0 0.0
      %2279 = vmatpush.msra.mxu0 0.0
      %2280 = vmatpush.msra.mxu0 0.0
      %2281 = vmatpush.msra.mxu0 0.0
      %2282 = vmatpush.msra.mxu0 0.0
      %2283 = vmatpush.msra.mxu0 0.0
      %2284 = vmatpush.msra.mxu0 %v2267
      %2285 = vmatmul.f32.gmra.mxu0 %v2075
      %v2286 = vpop.f32.mrf.mxu0
      %v2287 = vadd.f32 0.0, %v2286
      %2288 = vmatmul.f32.gmra.mxu0 %v2078
      %v2289 = vpop.f32.mrf.mxu0
      %v2290 = vadd.f32 0.0, %v2289
      %2291 = vmatmul.f32.gmra.mxu0 %v2081
      %v2292 = vpop.f32.mrf.mxu0
      %v2293 = vadd.f32 0.0, %v2292
      %2294 = vmatmul.f32.gmra.mxu0 %v2084
      %v2295 = vpop.f32.mrf.mxu0
      %v2296 = vadd.f32 0.0, %v2295
      %2297 = vmatmul.f32.gmra.mxu0 %v2087
      %v2298 = vpop.f32.mrf.mxu0
      %v2299 = vadd.f32 0.0, %v2298
      %2300 = vmatmul.f32.gmra.mxu0 %v2090
      %v2301 = vpop.f32.mrf.mxu0
      %v2302 = vadd.f32 0.0, %v2301
      %2303 = vmatmul.f32.gmra.mxu0 %v2093
      %v2304 = vpop.f32.mrf.mxu0
      %v2305 = vadd.f32 0.0, %v2304
      %2306 = vmatmul.f32.gmra.mxu0 %v2096
      %v2307 = vpop.f32.mrf.mxu0
      %v2308 = vadd.f32 0.0, %v2307
      %2309 = vmatmul.f32.gmra.mxu0 %v2099
      %v2310 = vpop.f32.mrf.mxu0
      %v2311 = vadd.f32 0.0, %v2310
      %2312 = vmatmul.f32.gmra.mxu0 %v2102
      %v2313 = vpop.f32.mrf.mxu0
      %v2314 = vadd.f32 0.0, %v2313
      %2315 = vmatmul.f32.gmra.mxu0 %v2105
      %v2316 = vpop.f32.mrf.mxu0
      %v2317 = vadd.f32 0.0, %v2316
      %2318 = vmatmul.f32.gmra.mxu0 %v2108
      %v2319 = vpop.f32.mrf.mxu0
      %v2320 = vadd.f32 0.0, %v2319
      %2321 = vmatmul.f32.gmra.mxu0 %v2111
      %v2322 = vpop.f32.mrf.mxu0
      %v2323 = vadd.f32 0.0, %v2322
      %2324 = vmatmul.f32.gmra.mxu0 %v2114
      %v2325 = vpop.f32.mrf.mxu0
      %v2326 = vadd.f32 0.0, %v2325
      %2327 = vmatmul.f32.gmra.mxu0 %v2117
      %v2328 = vpop.f32.mrf.mxu0
      %v2329 = vadd.f32 0.0, %v2328
      %2330 = vmatmul.f32.gmra.mxu0 %v2120
      %v2331 = vpop.f32.mrf.mxu0
      %v2332 = vadd.f32 0.0, %v2331
      %2333 = vmatmul.f32.gmra.mxu0 %v2123
      %v2334 = vpop.f32.mrf.mxu0
      %v2335 = vadd.f32 0.0, %v2334
      %2336 = vmatmul.f32.gmra.mxu0 %v2126
      %v2337 = vpop.f32.mrf.mxu0
      %v2338 = vadd.f32 0.0, %v2337
      %2339 = vmatmul.f32.gmra.mxu0 %v2129
      %v2340 = vpop.f32.mrf.mxu0
      %v2341 = vadd.f32 0.0, %v2340
      %2342 = vmatmul.f32.gmra.mxu0 %v2132
      %v2343 = vpop.f32.mrf.mxu0
      %v2344 = vadd.f32 0.0, %v2343
      %2345 = vmatmul.f32.gmra.mxu0 %v2135
      %v2346 = vpop.f32.mrf.mxu0
      %v2347 = vadd.f32 0.0, %v2346
      %2348 = vmatmul.f32.gmra.mxu0 %v2138
      %v2349 = vpop.f32.mrf.mxu0
      %v2350 = vadd.f32 0.0, %v2349
      %2351 = vmatmul.f32.gmra.mxu0 %v2141
      %v2352 = vpop.f32.mrf.mxu0
      %v2353 = vadd.f32 0.0, %v2352
      %2354 = vmatmul.f32.gmra.mxu0 %v2144
      %v2355 = vpop.f32.mrf.mxu0
      %v2356 = vadd.f32 0.0, %v2355
      %2357 = vmatmul.f32.gmra.mxu0 %v2147
      %v2358 = vpop.f32.mrf.mxu0
      %v2359 = vadd.f32 0.0, %v2358
      %2360 = vmatmul.f32.gmra.mxu0 %v2150
      %v2361 = vpop.f32.mrf.mxu0
      %v2362 = vadd.f32 0.0, %v2361
      %2363 = vmatmul.f32.gmra.mxu0 %v2153
      %v2364 = vpop.f32.mrf.mxu0
      %v2365 = vadd.f32 0.0, %v2364
      %2366 = vmatmul.f32.gmra.mxu0 %v2156
      %v2367 = vpop.f32.mrf.mxu0
      %v2368 = vadd.f32 0.0, %v2367
      %2369 = vmatmul.f32.gmra.mxu0 %v2159
      %v2370 = vpop.f32.mrf.mxu0
      %v2371 = vadd.f32 0.0, %v2370
      %2372 = vmatmul.f32.gmra.mxu0 %v2162
      %v2373 = vpop.f32.mrf.mxu0
      %v2374 = vadd.f32 0.0, %v2373
      %2375 = vmatmul.f32.gmra.mxu0 %v2165
      %v2376 = vpop.f32.mrf.mxu0
      %v2377 = vadd.f32 0.0, %v2376
      %2378 = vmatmul.f32.gmra.mxu0 %v2168
      %v2379 = vpop.f32.mrf.mxu0
      %v2380 = vadd.f32 0.0, %v2379
      %2381 = vmatmul.f32.gmra.mxu0 %v2171
      %v2382 = vpop.f32.mrf.mxu0
      %v2383 = vadd.f32 0.0, %v2382
      %2384 = vmatmul.f32.gmra.mxu0 %v2174
      %v2385 = vpop.f32.mrf.mxu0
      %v2386 = vadd.f32 0.0, %v2385
      %2387 = vmatmul.f32.gmra.mxu0 %v2177
      %v2388 = vpop.f32.mrf.mxu0
      %v2389 = vadd.f32 0.0, %v2388
      %2390 = vmatmul.f32.gmra.mxu0 %v2180
      %v2391 = vpop.f32.mrf.mxu0
      %v2392 = vadd.f32 0.0, %v2391
      %2393 = vmatmul.f32.gmra.mxu0 %v2183
      %v2394 = vpop.f32.mrf.mxu0
      %v2395 = vadd.f32 0.0, %v2394
      %2396 = vmatmul.f32.gmra.mxu0 %v2186
      %v2397 = vpop.f32.mrf.mxu0
      %v2398 = vadd.f32 0.0, %v2397
      %2399 = vmatmul.f32.gmra.mxu0 %v2189
      %v2400 = vpop.f32.mrf.mxu0
      %v2401 = vadd.f32 0.0, %v2400
      %2402 = vmatmul.f32.gmra.mxu0 %v2192
      %v2403 = vpop.f32.mrf.mxu0
      %v2404 = vadd.f32 0.0, %v2403
      %2405 = vmatmul.f32.gmra.mxu0 %v2195
      %v2406 = vpop.f32.mrf.mxu0
      %v2407 = vadd.f32 0.0, %v2406
      %2408 = vmatmul.f32.gmra.mxu0 %v2198
      %v2409 = vpop.f32.mrf.mxu0
      %v2410 = vadd.f32 0.0, %v2409
      %2411 = vmatmul.f32.gmra.mxu0 %v2201
      %v2412 = vpop.f32.mrf.mxu0
      %v2413 = vadd.f32 0.0, %v2412
      %2414 = vmatmul.f32.gmra.mxu0 %v2204
      %v2415 = vpop.f32.mrf.mxu0
      %v2416 = vadd.f32 0.0, %v2415
      %2417 = vmatmul.f32.gmra.mxu0 %v2207
      %v2418 = vpop.f32.mrf.mxu0
      %v2419 = vadd.f32 0.0, %v2418
      %2420 = vmatmul.f32.gmra.mxu0 %v2210
      %v2421 = vpop.f32.mrf.mxu0
      %v2422 = vadd.f32 0.0, %v2421
      %2423 = vmatmul.f32.gmra.mxu0 %v2213
      %v2424 = vpop.f32.mrf.mxu0
      %v2425 = vadd.f32 0.0, %v2424
      %2426 = vmatmul.f32.gmra.mxu0 %v2216
      %v2427 = vpop.f32.mrf.mxu0
      %v2428 = vadd.f32 0.0, %v2427
      %2429 = vmatmul.f32.gmra.mxu0 %v2219
      %v2430 = vpop.f32.mrf.mxu0
      %v2431 = vadd.f32 0.0, %v2430
      %2432 = vmatmul.f32.gmra.mxu0 %v2222
      %v2433 = vpop.f32.mrf.mxu0
      %v2434 = vadd.f32 0.0, %v2433
      %2435 = vmatmul.f32.gmra.mxu0 %v2225
      %v2436 = vpop.f32.mrf.mxu0
      %v2437 = vadd.f32 0.0, %v2436
      %2438 = vmatmul.f32.gmra.mxu0 %v2228
      %v2439 = vpop.f32.mrf.mxu0
      %v2440 = vadd.f32 0.0, %v2439
      %2441 = vmatmul.f32.gmra.mxu0 %v2231
      %v2442 = vpop.f32.mrf.mxu0
      %v2443 = vadd.f32 0.0, %v2442
      %2444 = vmatmul.f32.gmra.mxu0 %v2234
      %v2445 = vpop.f32.mrf.mxu0
      %v2446 = vadd.f32 0.0, %v2445
      %2447 = vmatmul.f32.gmra.mxu0 %v2237
      %v2448 = vpop.f32.mrf.mxu0
      %v2449 = vadd.f32 0.0, %v2448
      %2450 = vmatmul.f32.gmra.mxu0 %v2240
      %v2451 = vpop.f32.mrf.mxu0
      %v2452 = vadd.f32 0.0, %v2451
      %2453 = vmatmul.f32.gmra.mxu0 %v2243
      %v2454 = vpop.f32.mrf.mxu0
      %v2455 = vadd.f32 0.0, %v2454
      %2456 = vmatmul.f32.gmra.mxu0 %v2246
      %v2457 = vpop.f32.mrf.mxu0
      %v2458 = vadd.f32 0.0, %v2457
      %2459 = vmatmul.f32.gmra.mxu0 %v2249
      %v2460 = vpop.f32.mrf.mxu0
      %v2461 = vadd.f32 0.0, %v2460
      %2462 = vmatmul.f32.gmra.mxu0 %v2252
      %v2463 = vpop.f32.mrf.mxu0
      %v2464 = vadd.f32 0.0, %v2463
      %2465 = vmatmul.f32.gmra.mxu0 %v2255
      %v2466 = vpop.f32.mrf.mxu0
      %v2467 = vadd.f32 0.0, %v2466
      %2468 = vmatmul.f32.gmra.mxu0 %v2258
      %v2469 = vpop.f32.mrf.mxu0
      %v2470 = vadd.f32 0.0, %v2469
      %2471 = vmatmul.f32.gmra.mxu0 %v2261
      %v2472 = vpop.f32.mrf.mxu0
      %v2473 = vadd.f32 0.0, %v2472
      %2474 = vmatmul.f32.gmra.mxu0 %v2264
      %v2475 = vpop.f32.mrf.mxu0
      %v2476 = vadd.f32 0.0, %v2475
      %2477 = vdwg.mxu0
      %v2478 = vadd.f32 %v1942, %v2287
      %v2479 = vadd.f32 %v1943, %v2290
      %v2480 = vadd.f32 %v1944, %v2293
      %v2481 = vadd.f32 %v1945, %v2296
      %v2482 = vadd.f32 %v1946, %v2299
      %v2483 = vadd.f32 %v1947, %v2302
      %v2484 = vadd.f32 %v1948, %v2305
      %v2485 = vadd.f32 %v1949, %v2308
      %v2486 = vadd.f32 %v1950, %v2311
      %v2487 = vadd.f32 %v1951, %v2314
      %v2488 = vadd.f32 %v1952, %v2317
      %v2489 = vadd.f32 %v1953, %v2320
      %v2490 = vadd.f32 %v1954, %v2323
      %v2491 = vadd.f32 %v1955, %v2326
      %v2492 = vadd.f32 %v1956, %v2329
      %v2493 = vadd.f32 %v1957, %v2332
      %v2494 = vadd.f32 %v1958, %v2335
      %v2495 = vadd.f32 %v1959, %v2338
      %v2496 = vadd.f32 %v1960, %v2341
      %v2497 = vadd.f32 %v1961, %v2344
      %v2498 = vadd.f32 %v1962, %v2347
      %v2499 = vadd.f32 %v1963, %v2350
      %v2500 = vadd.f32 %v1964, %v2353
      %v2501 = vadd.f32 %v1965, %v2356
      %v2502 = vadd.f32 %v1966, %v2359
      %v2503 = vadd.f32 %v1967, %v2362
      %v2504 = vadd.f32 %v1968, %v2365
      %v2505 = vadd.f32 %v1969, %v2368
      %v2506 = vadd.f32 %v1970, %v2371
      %v2507 = vadd.f32 %v1971, %v2374
      %v2508 = vadd.f32 %v1972, %v2377
      %v2509 = vadd.f32 %v1973, %v2380
      %v2510 = vadd.f32 %v1974, %v2383
      %v2511 = vadd.f32 %v1975, %v2386
      %v2512 = vadd.f32 %v1976, %v2389
      %v2513 = vadd.f32 %v1977, %v2392
      %v2514 = vadd.f32 %v1978, %v2395
      %v2515 = vadd.f32 %v1979, %v2398
      %v2516 = vadd.f32 %v1980, %v2401
      %v2517 = vadd.f32 %v1981, %v2404
      %v2518 = vadd.f32 %v1982, %v2407
      %v2519 = vadd.f32 %v1983, %v2410
      %v2520 = vadd.f32 %v1984, %v2413
      %v2521 = vadd.f32 %v1985, %v2416
      %v2522 = vadd.f32 %v1986, %v2419
      %v2523 = vadd.f32 %v1987, %v2422
      %v2524 = vadd.f32 %v1988, %v2425
      %v2525 = vadd.f32 %v1989, %v2428
      %v2526 = vadd.f32 %v1990, %v2431
      %v2527 = vadd.f32 %v1991, %v2434
      %v2528 = vadd.f32 %v1992, %v2437
      %v2529 = vadd.f32 %v1993, %v2440
      %v2530 = vadd.f32 %v1994, %v2443
      %v2531 = vadd.f32 %v1995, %v2446
      %v2532 = vadd.f32 %v1996, %v2449
      %v2533 = vadd.f32 %v1997, %v2452
      %v2534 = vadd.f32 %v1998, %v2455
      %v2535 = vadd.f32 %v1999, %v2458
      %v2536 = vadd.f32 %v2000, %v2461
      %v2537 = vadd.f32 %v2001, %v2464
      %v2538 = vadd.f32 %v2002, %v2467
      %v2539 = vadd.f32 %v2003, %v2470
      %v2540 = vadd.f32 %v2004, %v2473
      %v2541 = vadd.f32 %v2005, %v2476
      %s2542 = sadd.s32 %s521, 19
      %s2543 = scalar_lea.vmem [#allocation2], %s2542
      %v2544 = vld [vmem:[%s2543] sm:$0xff]
      %v2545 = vld [vmem:[%s2543 + $0x8] sm:$0xff]
      %v2546 = vld [vmem:[%s2543 + $0x10] sm:$0xff]
      %v2547 = vld [vmem:[%s2543 + $0x18] sm:$0xff]
      %v2548 = vld [vmem:[%s2543 + $0x20] sm:$0xff]
      %v2549 = vld [vmem:[%s2543 + $0x28] sm:$0xff]
      %v2550 = vld [vmem:[%s2543 + $0x30] sm:$0xff]
      %v2551 = vld [vmem:[%s2543 + $0x38] sm:$0xff]
      %v2552 = vld [vmem:[%s2543 + $0x40] sm:$0xff]
      %v2553 = vld [vmem:[%s2543 + $0x48] sm:$0xff]
      %v2554 = vld [vmem:[%s2543 + $0x50] sm:$0xff]
      %v2555 = vld [vmem:[%s2543 + $0x58] sm:$0xff]
      %v2556 = vld [vmem:[%s2543 + $0x60] sm:$0xff]
      %v2557 = vld [vmem:[%s2543 + $0x68] sm:$0xff]
      %v2558 = vld [vmem:[%s2543 + $0x70] sm:$0xff]
      %v2559 = vld [vmem:[%s2543 + $0x78] sm:$0xff]
      %v2560 = vld [vmem:[%s2543 + $0x80] sm:$0xff]
      %v2561 = vld [vmem:[%s2543 + $0x88] sm:$0xff]
      %v2562 = vld [vmem:[%s2543 + $0x90] sm:$0xff]
      %v2563 = vld [vmem:[%s2543 + $0x98] sm:$0xff]
      %v2564 = vld [vmem:[%s2543 + $0xa0] sm:$0xff]
      %v2565 = vld [vmem:[%s2543 + $0xa8] sm:$0xff]
      %v2566 = vld [vmem:[%s2543 + $0xb0] sm:$0xff]
      %v2567 = vld [vmem:[%s2543 + $0xb8] sm:$0xff]
      %v2568 = vld [vmem:[%s2543 + $0xc0] sm:$0xff]
      %v2569 = vld [vmem:[%s2543 + $0xc8] sm:$0xff]
      %v2570 = vld [vmem:[%s2543 + $0xd0] sm:$0xff]
      %v2571 = vld [vmem:[%s2543 + $0xd8] sm:$0xff]
      %v2572 = vld [vmem:[%s2543 + $0xe0] sm:$0xff]
      %v2573 = vld [vmem:[%s2543 + $0xe8] sm:$0xff]
      %v2574 = vld [vmem:[%s2543 + $0xf0] sm:$0xff]
      %v2575 = vld [vmem:[%s2543 + $0xf8] sm:$0xff]
      %v2576 = vld [vmem:[%s2543 + $0x100] sm:$0xff]
      %v2577 = vld [vmem:[%s2543 + $0x108] sm:$0xff]
      %v2578 = vld [vmem:[%s2543 + $0x110] sm:$0xff]
      %v2579 = vld [vmem:[%s2543 + $0x118] sm:$0xff]
      %v2580 = vld [vmem:[%s2543 + $0x120] sm:$0xff]
      %v2581 = vld [vmem:[%s2543 + $0x128] sm:$0xff]
      %v2582 = vld [vmem:[%s2543 + $0x130] sm:$0xff]
      %v2583 = vld [vmem:[%s2543 + $0x138] sm:$0xff]
      %v2584 = vld [vmem:[%s2543 + $0x140] sm:$0xff]
      %v2585 = vld [vmem:[%s2543 + $0x148] sm:$0xff]
      %v2586 = vld [vmem:[%s2543 + $0x150] sm:$0xff]
      %v2587 = vld [vmem:[%s2543 + $0x158] sm:$0xff]
      %v2588 = vld [vmem:[%s2543 + $0x160] sm:$0xff]
      %v2589 = vld [vmem:[%s2543 + $0x168] sm:$0xff]
      %v2590 = vld [vmem:[%s2543 + $0x170] sm:$0xff]
      %v2591 = vld [vmem:[%s2543 + $0x178] sm:$0xff]
      %v2592 = vld [vmem:[%s2543 + $0x180] sm:$0xff]
      %v2593 = vld [vmem:[%s2543 + $0x188] sm:$0xff]
      %v2594 = vld [vmem:[%s2543 + $0x190] sm:$0xff]
      %v2595 = vld [vmem:[%s2543 + $0x198] sm:$0xff]
      %v2596 = vld [vmem:[%s2543 + $0x1a0] sm:$0xff]
      %v2597 = vld [vmem:[%s2543 + $0x1a8] sm:$0xff]
      %v2598 = vld [vmem:[%s2543 + $0x1b0] sm:$0xff]
      %v2599 = vld [vmem:[%s2543 + $0x1b8] sm:$0xff]
      %v2600 = vld [vmem:[%s2543 + $0x1c0] sm:$0xff]
      %v2601 = vld [vmem:[%s2543 + $0x1c8] sm:$0xff]
      %v2602 = vld [vmem:[%s2543 + $0x1d0] sm:$0xff]
      %v2603 = vld [vmem:[%s2543 + $0x1d8] sm:$0xff]
      %v2604 = vld [vmem:[%s2543 + $0x1e0] sm:$0xff]
      %v2605 = vld [vmem:[%s2543 + $0x1e8] sm:$0xff]
      %v2606 = vld [vmem:[%s2543 + $0x1f0] sm:$0xff]
      %v2607 = vld [vmem:[%s2543 + $0x1f8] sm:$0xff]
      %s2608 = scalar_lea.vmem %s1, 16
      %v2609 = vld [vmem:[%s2608] sm:$0xf]
      %v2611 = vsel %vm660, %v2544, 0
      %v2614 = vsel %vm660, %v2545, 0
      %v2617 = vsel %vm660, %v2546, 0
      %v2620 = vsel %vm660, %v2547, 0
      %v2623 = vsel %vm660, %v2548, 0
      %v2626 = vsel %vm660, %v2549, 0
      %v2629 = vsel %vm660, %v2550, 0
      %v2632 = vsel %vm660, %v2551, 0
      %v2635 = vsel %vm660, %v2552, 0
      %v2638 = vsel %vm660, %v2553, 0
      %v2641 = vsel %vm660, %v2554, 0
      %v2644 = vsel %vm660, %v2555, 0
      %v2647 = vsel %vm660, %v2556, 0
      %v2650 = vsel %vm660, %v2557, 0
      %v2653 = vsel %vm660, %v2558, 0
      %v2656 = vsel %vm660, %v2559, 0
      %v2659 = vsel %vm660, %v2560, 0
      %v2662 = vsel %vm660, %v2561, 0
      %v2665 = vsel %vm660, %v2562, 0
      %v2668 = vsel %vm660, %v2563, 0
      %v2671 = vsel %vm660, %v2564, 0
      %v2674 = vsel %vm660, %v2565, 0
      %v2677 = vsel %vm660, %v2566, 0
      %v2680 = vsel %vm660, %v2567, 0
      %v2683 = vsel %vm660, %v2568, 0
      %v2686 = vsel %vm660, %v2569, 0
      %v2689 = vsel %vm660, %v2570, 0
      %v2692 = vsel %vm660, %v2571, 0
      %v2695 = vsel %vm660, %v2572, 0
      %v2698 = vsel %vm660, %v2573, 0
      %v2701 = vsel %vm660, %v2574, 0
      %v2704 = vsel %vm660, %v2575, 0
      %v2707 = vsel %vm660, %v2576, 0
      %v2710 = vsel %vm660, %v2577, 0
      %v2713 = vsel %vm660, %v2578, 0
      %v2716 = vsel %vm660, %v2579, 0
      %v2719 = vsel %vm660, %v2580, 0
      %v2722 = vsel %vm660, %v2581, 0
      %v2725 = vsel %vm660, %v2582, 0
      %v2728 = vsel %vm660, %v2583, 0
      %v2731 = vsel %vm660, %v2584, 0
      %v2734 = vsel %vm660, %v2585, 0
      %v2737 = vsel %vm660, %v2586, 0
      %v2740 = vsel %vm660, %v2587, 0
      %v2743 = vsel %vm660, %v2588, 0
      %v2746 = vsel %vm660, %v2589, 0
      %v2749 = vsel %vm660, %v2590, 0
      %v2752 = vsel %vm660, %v2591, 0
      %v2755 = vsel %vm660, %v2592, 0
      %v2758 = vsel %vm660, %v2593, 0
      %v2761 = vsel %vm660, %v2594, 0
      %v2764 = vsel %vm660, %v2595, 0
      %v2767 = vsel %vm660, %v2596, 0
      %v2770 = vsel %vm660, %v2597, 0
      %v2773 = vsel %vm660, %v2598, 0
      %v2776 = vsel %vm660, %v2599, 0
      %v2779 = vsel %vm660, %v2600, 0
      %v2782 = vsel %vm660, %v2601, 0
      %v2785 = vsel %vm660, %v2602, 0
      %v2788 = vsel %vm660, %v2603, 0
      %v2791 = vsel %vm660, %v2604, 0
      %v2794 = vsel %vm660, %v2605, 0
      %v2797 = vsel %vm660, %v2606, 0
      %v2800 = vsel %vm660, %v2607, 0
      %v2803 = vsel %vm853, %v2609, 0
      %2805 = vmatpush.msra.mxu0 0.0
      %2806 = vmatpush.msra.mxu0 0.0
      %2807 = vmatpush.msra.mxu0 0.0
      %2808 = vmatpush.msra.mxu0 0.0
      %2809 = vmatpush.msra.mxu0 0.0
      %2810 = vmatpush.msra.mxu0 0.0
      %2811 = vmatpush.msra.mxu0 0.0
      %2812 = vmatpush.msra.mxu0 0.0
      %2813 = vmatpush.msra.mxu0 0.0
      %2814 = vmatpush.msra.mxu0 0.0
      %2815 = vmatpush.msra.mxu0 0.0
      %2816 = vmatpush.msra.mxu0 0.0
      %2817 = vmatpush.msra.mxu0 0.0
      %2818 = vmatpush.msra.mxu0 0.0
      %2819 = vmatpush.msra.mxu0 0.0
      %2820 = vmatpush.msra.mxu0 %v2803
      %2821 = vmatmul.f32.gmra.mxu0 %v2611
      %v2822 = vpop.f32.mrf.mxu0
      %v2823 = vadd.f32 0.0, %v2822
      %2824 = vmatmul.f32.gmra.mxu0 %v2614
      %v2825 = vpop.f32.mrf.mxu0
      %v2826 = vadd.f32 0.0, %v2825
      %2827 = vmatmul.f32.gmra.mxu0 %v2617
      %v2828 = vpop.f32.mrf.mxu0
      %v2829 = vadd.f32 0.0, %v2828
      %2830 = vmatmul.f32.gmra.mxu0 %v2620
      %v2831 = vpop.f32.mrf.mxu0
      %v2832 = vadd.f32 0.0, %v2831
      %2833 = vmatmul.f32.gmra.mxu0 %v2623
      %v2834 = vpop.f32.mrf.mxu0
      %v2835 = vadd.f32 0.0, %v2834
      %2836 = vmatmul.f32.gmra.mxu0 %v2626
      %v2837 = vpop.f32.mrf.mxu0
      %v2838 = vadd.f32 0.0, %v2837
      %2839 = vmatmul.f32.gmra.mxu0 %v2629
      %v2840 = vpop.f32.mrf.mxu0
      %v2841 = vadd.f32 0.0, %v2840
      %2842 = vmatmul.f32.gmra.mxu0 %v2632
      %v2843 = vpop.f32.mrf.mxu0
      %v2844 = vadd.f32 0.0, %v2843
      %2845 = vmatmul.f32.gmra.mxu0 %v2635
      %v2846 = vpop.f32.mrf.mxu0
      %v2847 = vadd.f32 0.0, %v2846
      %2848 = vmatmul.f32.gmra.mxu0 %v2638
      %v2849 = vpop.f32.mrf.mxu0
      %v2850 = vadd.f32 0.0, %v2849
      %2851 = vmatmul.f32.gmra.mxu0 %v2641
      %v2852 = vpop.f32.mrf.mxu0
      %v2853 = vadd.f32 0.0, %v2852
      %2854 = vmatmul.f32.gmra.mxu0 %v2644
      %v2855 = vpop.f32.mrf.mxu0
      %v2856 = vadd.f32 0.0, %v2855
      %2857 = vmatmul.f32.gmra.mxu0 %v2647
      %v2858 = vpop.f32.mrf.mxu0
      %v2859 = vadd.f32 0.0, %v2858
      %2860 = vmatmul.f32.gmra.mxu0 %v2650
      %v2861 = vpop.f32.mrf.mxu0
      %v2862 = vadd.f32 0.0, %v2861
      %2863 = vmatmul.f32.gmra.mxu0 %v2653
      %v2864 = vpop.f32.mrf.mxu0
      %v2865 = vadd.f32 0.0, %v2864
      %2866 = vmatmul.f32.gmra.mxu0 %v2656
      %v2867 = vpop.f32.mrf.mxu0
      %v2868 = vadd.f32 0.0, %v2867
      %2869 = vmatmul.f32.gmra.mxu0 %v2659
      %v2870 = vpop.f32.mrf.mxu0
      %v2871 = vadd.f32 0.0, %v2870
      %2872 = vmatmul.f32.gmra.mxu0 %v2662
      %v2873 = vpop.f32.mrf.mxu0
      %v2874 = vadd.f32 0.0, %v2873
      %2875 = vmatmul.f32.gmra.mxu0 %v2665
      %v2876 = vpop.f32.mrf.mxu0
      %v2877 = vadd.f32 0.0, %v2876
      %2878 = vmatmul.f32.gmra.mxu0 %v2668
      %v2879 = vpop.f32.mrf.mxu0
      %v2880 = vadd.f32 0.0, %v2879
      %2881 = vmatmul.f32.gmra.mxu0 %v2671
      %v2882 = vpop.f32.mrf.mxu0
      %v2883 = vadd.f32 0.0, %v2882
      %2884 = vmatmul.f32.gmra.mxu0 %v2674
      %v2885 = vpop.f32.mrf.mxu0
      %v2886 = vadd.f32 0.0, %v2885
      %2887 = vmatmul.f32.gmra.mxu0 %v2677
      %v2888 = vpop.f32.mrf.mxu0
      %v2889 = vadd.f32 0.0, %v2888
      %2890 = vmatmul.f32.gmra.mxu0 %v2680
      %v2891 = vpop.f32.mrf.mxu0
      %v2892 = vadd.f32 0.0, %v2891
      %2893 = vmatmul.f32.gmra.mxu0 %v2683
      %v2894 = vpop.f32.mrf.mxu0
      %v2895 = vadd.f32 0.0, %v2894
      %2896 = vmatmul.f32.gmra.mxu0 %v2686
      %v2897 = vpop.f32.mrf.mxu0
      %v2898 = vadd.f32 0.0, %v2897
      %2899 = vmatmul.f32.gmra.mxu0 %v2689
      %v2900 = vpop.f32.mrf.mxu0
      %v2901 = vadd.f32 0.0, %v2900
      %2902 = vmatmul.f32.gmra.mxu0 %v2692
      %v2903 = vpop.f32.mrf.mxu0
      %v2904 = vadd.f32 0.0, %v2903
      %2905 = vmatmul.f32.gmra.mxu0 %v2695
      %v2906 = vpop.f32.mrf.mxu0
      %v2907 = vadd.f32 0.0, %v2906
      %2908 = vmatmul.f32.gmra.mxu0 %v2698
      %v2909 = vpop.f32.mrf.mxu0
      %v2910 = vadd.f32 0.0, %v2909
      %2911 = vmatmul.f32.gmra.mxu0 %v2701
      %v2912 = vpop.f32.mrf.mxu0
      %v2913 = vadd.f32 0.0, %v2912
      %2914 = vmatmul.f32.gmra.mxu0 %v2704
      %v2915 = vpop.f32.mrf.mxu0
      %v2916 = vadd.f32 0.0, %v2915
      %2917 = vmatmul.f32.gmra.mxu0 %v2707
      %v2918 = vpop.f32.mrf.mxu0
      %v2919 = vadd.f32 0.0, %v2918
      %2920 = vmatmul.f32.gmra.mxu0 %v2710
      %v2921 = vpop.f32.mrf.mxu0
      %v2922 = vadd.f32 0.0, %v2921
      %2923 = vmatmul.f32.gmra.mxu0 %v2713
      %v2924 = vpop.f32.mrf.mxu0
      %v2925 = vadd.f32 0.0, %v2924
      %2926 = vmatmul.f32.gmra.mxu0 %v2716
      %v2927 = vpop.f32.mrf.mxu0
      %v2928 = vadd.f32 0.0, %v2927
      %2929 = vmatmul.f32.gmra.mxu0 %v2719
      %v2930 = vpop.f32.mrf.mxu0
      %v2931 = vadd.f32 0.0, %v2930
      %2932 = vmatmul.f32.gmra.mxu0 %v2722
      %v2933 = vpop.f32.mrf.mxu0
      %v2934 = vadd.f32 0.0, %v2933
      %2935 = vmatmul.f32.gmra.mxu0 %v2725
      %v2936 = vpop.f32.mrf.mxu0
      %v2937 = vadd.f32 0.0, %v2936
      %2938 = vmatmul.f32.gmra.mxu0 %v2728
      %v2939 = vpop.f32.mrf.mxu0
      %v2940 = vadd.f32 0.0, %v2939
      %2941 = vmatmul.f32.gmra.mxu0 %v2731
      %v2942 = vpop.f32.mrf.mxu0
      %v2943 = vadd.f32 0.0, %v2942
      %2944 = vmatmul.f32.gmra.mxu0 %v2734
      %v2945 = vpop.f32.mrf.mxu0
      %v2946 = vadd.f32 0.0, %v2945
      %2947 = vmatmul.f32.gmra.mxu0 %v2737
      %v2948 = vpop.f32.mrf.mxu0
      %v2949 = vadd.f32 0.0, %v2948
      %2950 = vmatmul.f32.gmra.mxu0 %v2740
      %v2951 = vpop.f32.mrf.mxu0
      %v2952 = vadd.f32 0.0, %v2951
      %2953 = vmatmul.f32.gmra.mxu0 %v2743
      %v2954 = vpop.f32.mrf.mxu0
      %v2955 = vadd.f32 0.0, %v2954
      %2956 = vmatmul.f32.gmra.mxu0 %v2746
      %v2957 = vpop.f32.mrf.mxu0
      %v2958 = vadd.f32 0.0, %v2957
      %2959 = vmatmul.f32.gmra.mxu0 %v2749
      %v2960 = vpop.f32.mrf.mxu0
      %v2961 = vadd.f32 0.0, %v2960
      %2962 = vmatmul.f32.gmra.mxu0 %v2752
      %v2963 = vpop.f32.mrf.mxu0
      %v2964 = vadd.f32 0.0, %v2963
      %2965 = vmatmul.f32.gmra.mxu0 %v2755
      %v2966 = vpop.f32.mrf.mxu0
      %v2967 = vadd.f32 0.0, %v2966
      %2968 = vmatmul.f32.gmra.mxu0 %v2758
      %v2969 = vpop.f32.mrf.mxu0
      %v2970 = vadd.f32 0.0, %v2969
      %2971 = vmatmul.f32.gmra.mxu0 %v2761
      %v2972 = vpop.f32.mrf.mxu0
      %v2973 = vadd.f32 0.0, %v2972
      %2974 = vmatmul.f32.gmra.mxu0 %v2764
      %v2975 = vpop.f32.mrf.mxu0
      %v2976 = vadd.f32 0.0, %v2975
      %2977 = vmatmul.f32.gmra.mxu0 %v2767
      %v2978 = vpop.f32.mrf.mxu0
      %v2979 = vadd.f32 0.0, %v2978
      %2980 = vmatmul.f32.gmra.mxu0 %v2770
      %v2981 = vpop.f32.mrf.mxu0
      %v2982 = vadd.f32 0.0, %v2981
      %2983 = vmatmul.f32.gmra.mxu0 %v2773
      %v2984 = vpop.f32.mrf.mxu0
      %v2985 = vadd.f32 0.0, %v2984
      %2986 = vmatmul.f32.gmra.mxu0 %v2776
      %v2987 = vpop.f32.mrf.mxu0
      %v2988 = vadd.f32 0.0, %v2987
      %2989 = vmatmul.f32.gmra.mxu0 %v2779
      %v2990 = vpop.f32.mrf.mxu0
      %v2991 = vadd.f32 0.0, %v2990
      %2992 = vmatmul.f32.gmra.mxu0 %v2782
      %v2993 = vpop.f32.mrf.mxu0
      %v2994 = vadd.f32 0.0, %v2993
      %2995 = vmatmul.f32.gmra.mxu0 %v2785
      %v2996 = vpop.f32.mrf.mxu0
      %v2997 = vadd.f32 0.0, %v2996
      %2998 = vmatmul.f32.gmra.mxu0 %v2788
      %v2999 = vpop.f32.mrf.mxu0
      %v3000 = vadd.f32 0.0, %v2999
      %3001 = vmatmul.f32.gmra.mxu0 %v2791
      %v3002 = vpop.f32.mrf.mxu0
      %v3003 = vadd.f32 0.0, %v3002
      %3004 = vmatmul.f32.gmra.mxu0 %v2794
      %v3005 = vpop.f32.mrf.mxu0
      %v3006 = vadd.f32 0.0, %v3005
      %3007 = vmatmul.f32.gmra.mxu0 %v2797
      %v3008 = vpop.f32.mrf.mxu0
      %v3009 = vadd.f32 0.0, %v3008
      %3010 = vmatmul.f32.gmra.mxu0 %v2800
      %v3011 = vpop.f32.mrf.mxu0
      %v3012 = vadd.f32 0.0, %v3011
      %3013 = vdwg.mxu0
      %v3014 = vadd.f32 %v2478, %v2823
      %v3015 = vadd.f32 %v2479, %v2826
      %v3016 = vadd.f32 %v2480, %v2829
      %v3017 = vadd.f32 %v2481, %v2832
      %v3018 = vadd.f32 %v2482, %v2835
      %v3019 = vadd.f32 %v2483, %v2838
      %v3020 = vadd.f32 %v2484, %v2841
      %v3021 = vadd.f32 %v2485, %v2844
      %v3022 = vadd.f32 %v2486, %v2847
      %v3023 = vadd.f32 %v2487, %v2850
      %v3024 = vadd.f32 %v2488, %v2853
      %v3025 = vadd.f32 %v2489, %v2856
      %v3026 = vadd.f32 %v2490, %v2859
      %v3027 = vadd.f32 %v2491, %v2862
      %v3028 = vadd.f32 %v2492, %v2865
      %v3029 = vadd.f32 %v2493, %v2868
      %v3030 = vadd.f32 %v2494, %v2871
      %v3031 = vadd.f32 %v2495, %v2874
      %v3032 = vadd.f32 %v2496, %v2877
      %v3033 = vadd.f32 %v2497, %v2880
      %v3034 = vadd.f32 %v2498, %v2883
      %v3035 = vadd.f32 %v2499, %v2886
      %v3036 = vadd.f32 %v2500, %v2889
      %v3037 = vadd.f32 %v2501, %v2892
      %v3038 = vadd.f32 %v2502, %v2895
      %v3039 = vadd.f32 %v2503, %v2898
      %v3040 = vadd.f32 %v2504, %v2901
      %v3041 = vadd.f32 %v2505, %v2904
      %v3042 = vadd.f32 %v2506, %v2907
      %v3043 = vadd.f32 %v2507, %v2910
      %v3044 = vadd.f32 %v2508, %v2913
      %v3045 = vadd.f32 %v2509, %v2916
      %v3046 = vadd.f32 %v2510, %v2919
      %v3047 = vadd.f32 %v2511, %v2922
      %v3048 = vadd.f32 %v2512, %v2925
      %v3049 = vadd.f32 %v2513, %v2928
      %v3050 = vadd.f32 %v2514, %v2931
      %v3051 = vadd.f32 %v2515, %v2934
      %v3052 = vadd.f32 %v2516, %v2937
      %v3053 = vadd.f32 %v2517, %v2940
      %v3054 = vadd.f32 %v2518, %v2943
      %v3055 = vadd.f32 %v2519, %v2946
      %v3056 = vadd.f32 %v2520, %v2949
      %v3057 = vadd.f32 %v2521, %v2952
      %v3058 = vadd.f32 %v2522, %v2955
      %v3059 = vadd.f32 %v2523, %v2958
      %v3060 = vadd.f32 %v2524, %v2961
      %v3061 = vadd.f32 %v2525, %v2964
      %v3062 = vadd.f32 %v2526, %v2967
      %v3063 = vadd.f32 %v2527, %v2970
      %v3064 = vadd.f32 %v2528, %v2973
      %v3065 = vadd.f32 %v2529, %v2976
      %v3066 = vadd.f32 %v2530, %v2979
      %v3067 = vadd.f32 %v2531, %v2982
      %v3068 = vadd.f32 %v2532, %v2985
      %v3069 = vadd.f32 %v2533, %v2988
      %v3070 = vadd.f32 %v2534, %v2991
      %v3071 = vadd.f32 %v2535, %v2994
      %v3072 = vadd.f32 %v2536, %v2997
      %v3073 = vadd.f32 %v2537, %v3000
      %v3074 = vadd.f32 %v2538, %v3003
      %v3075 = vadd.f32 %v2539, %v3006
      %v3076 = vadd.f32 %v2540, %v3009
      %v3077 = vadd.f32 %v2541, %v3012
      %s3078 = sadd.s32 %s521, 20
      %s3079 = scalar_lea.vmem [#allocation2], %s3078
      %v3080 = vld [vmem:[%s3079] sm:$0xff]
      %v3081 = vld [vmem:[%s3079 + $0x8] sm:$0xff]
      %v3082 = vld [vmem:[%s3079 + $0x10] sm:$0xff]
      %v3083 = vld [vmem:[%s3079 + $0x18] sm:$0xff]
      %v3084 = vld [vmem:[%s3079 + $0x20] sm:$0xff]
      %v3085 = vld [vmem:[%s3079 + $0x28] sm:$0xff]
      %v3086 = vld [vmem:[%s3079 + $0x30] sm:$0xff]
      %v3087 = vld [vmem:[%s3079 + $0x38] sm:$0xff]
      %v3088 = vld [vmem:[%s3079 + $0x40] sm:$0xff]
      %v3089 = vld [vmem:[%s3079 + $0x48] sm:$0xff]
      %v3090 = vld [vmem:[%s3079 + $0x50] sm:$0xff]
      %v3091 = vld [vmem:[%s3079 + $0x58] sm:$0xff]
      %v3092 = vld [vmem:[%s3079 + $0x60] sm:$0xff]
      %v3093 = vld [vmem:[%s3079 + $0x68] sm:$0xff]
      %v3094 = vld [vmem:[%s3079 + $0x70] sm:$0xff]
      %v3095 = vld [vmem:[%s3079 + $0x78] sm:$0xff]
      %v3096 = vld [vmem:[%s3079 + $0x80] sm:$0xff]
      %v3097 = vld [vmem:[%s3079 + $0x88] sm:$0xff]
      %v3098 = vld [vmem:[%s3079 + $0x90] sm:$0xff]
      %v3099 = vld [vmem:[%s3079 + $0x98] sm:$0xff]
      %v3100 = vld [vmem:[%s3079 + $0xa0] sm:$0xff]
      %v3101 = vld [vmem:[%s3079 + $0xa8] sm:$0xff]
      %v3102 = vld [vmem:[%s3079 + $0xb0] sm:$0xff]
      %v3103 = vld [vmem:[%s3079 + $0xb8] sm:$0xff]
      %v3104 = vld [vmem:[%s3079 + $0xc0] sm:$0xff]
      %v3105 = vld [vmem:[%s3079 + $0xc8] sm:$0xff]
      %v3106 = vld [vmem:[%s3079 + $0xd0] sm:$0xff]
      %v3107 = vld [vmem:[%s3079 + $0xd8] sm:$0xff]
      %v3108 = vld [vmem:[%s3079 + $0xe0] sm:$0xff]
      %v3109 = vld [vmem:[%s3079 + $0xe8] sm:$0xff]
      %v3110 = vld [vmem:[%s3079 + $0xf0] sm:$0xff]
      %v3111 = vld [vmem:[%s3079 + $0xf8] sm:$0xff]
      %v3112 = vld [vmem:[%s3079 + $0x100] sm:$0xff]
      %v3113 = vld [vmem:[%s3079 + $0x108] sm:$0xff]
      %v3114 = vld [vmem:[%s3079 + $0x110] sm:$0xff]
      %v3115 = vld [vmem:[%s3079 + $0x118] sm:$0xff]
      %v3116 = vld [vmem:[%s3079 + $0x120] sm:$0xff]
      %v3117 = vld [vmem:[%s3079 + $0x128] sm:$0xff]
      %v3118 = vld [vmem:[%s3079 + $0x130] sm:$0xff]
      %v3119 = vld [vmem:[%s3079 + $0x138] sm:$0xff]
      %v3120 = vld [vmem:[%s3079 + $0x140] sm:$0xff]
      %v3121 = vld [vmem:[%s3079 + $0x148] sm:$0xff]
      %v3122 = vld [vmem:[%s3079 + $0x150] sm:$0xff]
      %v3123 = vld [vmem:[%s3079 + $0x158] sm:$0xff]
      %v3124 = vld [vmem:[%s3079 + $0x160] sm:$0xff]
      %v3125 = vld [vmem:[%s3079 + $0x168] sm:$0xff]
      %v3126 = vld [vmem:[%s3079 + $0x170] sm:$0xff]
      %v3127 = vld [vmem:[%s3079 + $0x178] sm:$0xff]
      %v3128 = vld [vmem:[%s3079 + $0x180] sm:$0xff]
      %v3129 = vld [vmem:[%s3079 + $0x188] sm:$0xff]
      %v3130 = vld [vmem:[%s3079 + $0x190] sm:$0xff]
      %v3131 = vld [vmem:[%s3079 + $0x198] sm:$0xff]
      %v3132 = vld [vmem:[%s3079 + $0x1a0] sm:$0xff]
      %v3133 = vld [vmem:[%s3079 + $0x1a8] sm:$0xff]
      %v3134 = vld [vmem:[%s3079 + $0x1b0] sm:$0xff]
      %v3135 = vld [vmem:[%s3079 + $0x1b8] sm:$0xff]
      %v3136 = vld [vmem:[%s3079 + $0x1c0] sm:$0xff]
      %v3137 = vld [vmem:[%s3079 + $0x1c8] sm:$0xff]
      %v3138 = vld [vmem:[%s3079 + $0x1d0] sm:$0xff]
      %v3139 = vld [vmem:[%s3079 + $0x1d8] sm:$0xff]
      %v3140 = vld [vmem:[%s3079 + $0x1e0] sm:$0xff]
      %v3141 = vld [vmem:[%s3079 + $0x1e8] sm:$0xff]
      %v3142 = vld [vmem:[%s3079 + $0x1f0] sm:$0xff]
      %v3143 = vld [vmem:[%s3079 + $0x1f8] sm:$0xff]
      %s3144 = scalar_lea.vmem %s1, 20
      %v3145 = vld [vmem:[%s3144] sm:$0xf]
      %v3147 = vsel %vm660, %v3080, 0
      %v3150 = vsel %vm660, %v3081, 0
      %v3153 = vsel %vm660, %v3082, 0
      %v3156 = vsel %vm660, %v3083, 0
      %v3159 = vsel %vm660, %v3084, 0
      %v3162 = vsel %vm660, %v3085, 0
      %v3165 = vsel %vm660, %v3086, 0
      %v3168 = vsel %vm660, %v3087, 0
      %v3171 = vsel %vm660, %v3088, 0
      %v3174 = vsel %vm660, %v3089, 0
      %v3177 = vsel %vm660, %v3090, 0
      %v3180 = vsel %vm660, %v3091, 0
      %v3183 = vsel %vm660, %v3092, 0
      %v3186 = vsel %vm660, %v3093, 0
      %v3189 = vsel %vm660, %v3094, 0
      %v3192 = vsel %vm660, %v3095, 0
      %v3195 = vsel %vm660, %v3096, 0
      %v3198 = vsel %vm660, %v3097, 0
      %v3201 = vsel %vm660, %v3098, 0
      %v3204 = vsel %vm660, %v3099, 0
      %v3207 = vsel %vm660, %v3100, 0
      %v3210 = vsel %vm660, %v3101, 0
      %v3213 = vsel %vm660, %v3102, 0
      %v3216 = vsel %vm660, %v3103, 0
      %v3219 = vsel %vm660, %v3104, 0
      %v3222 = vsel %vm660, %v3105, 0
      %v3225 = vsel %vm660, %v3106, 0
      %v3228 = vsel %vm660, %v3107, 0
      %v3231 = vsel %vm660, %v3108, 0
      %v3234 = vsel %vm660, %v3109, 0
      %v3237 = vsel %vm660, %v3110, 0
      %v3240 = vsel %vm660, %v3111, 0
      %v3243 = vsel %vm660, %v3112, 0
      %v3246 = vsel %vm660, %v3113, 0
      %v3249 = vsel %vm660, %v3114, 0
      %v3252 = vsel %vm660, %v3115, 0
      %v3255 = vsel %vm660, %v3116, 0
      %v3258 = vsel %vm660, %v3117, 0
      %v3261 = vsel %vm660, %v3118, 0
      %v3264 = vsel %vm660, %v3119, 0
      %v3267 = vsel %vm660, %v3120, 0
      %v3270 = vsel %vm660, %v3121, 0
      %v3273 = vsel %vm660, %v3122, 0
      %v3276 = vsel %vm660, %v3123, 0
      %v3279 = vsel %vm660, %v3124, 0
      %v3282 = vsel %vm660, %v3125, 0
      %v3285 = vsel %vm660, %v3126, 0
      %v3288 = vsel %vm660, %v3127, 0
      %v3291 = vsel %vm660, %v3128, 0
      %v3294 = vsel %vm660, %v3129, 0
      %v3297 = vsel %vm660, %v3130, 0
      %v3300 = vsel %vm660, %v3131, 0
      %v3303 = vsel %vm660, %v3132, 0
      %v3306 = vsel %vm660, %v3133, 0
      %v3309 = vsel %vm660, %v3134, 0
      %v3312 = vsel %vm660, %v3135, 0
      %v3315 = vsel %vm660, %v3136, 0
      %v3318 = vsel %vm660, %v3137, 0
      %v3321 = vsel %vm660, %v3138, 0
      %v3324 = vsel %vm660, %v3139, 0
      %v3327 = vsel %vm660, %v3140, 0
      %v3330 = vsel %vm660, %v3141, 0
      %v3333 = vsel %vm660, %v3142, 0
      %v3336 = vsel %vm660, %v3143, 0
      %v3339 = vsel %vm853, %v3145, 0
      %3341 = vmatpush.msra.mxu0 0.0
      %3342 = vmatpush.msra.mxu0 0.0
      %3343 = vmatpush.msra.mxu0 0.0
      %3344 = vmatpush.msra.mxu0 0.0
      %3345 = vmatpush.msra.mxu0 0.0
      %3346 = vmatpush.msra.mxu0 0.0
      %3347 = vmatpush.msra.mxu0 0.0
      %3348 = vmatpush.msra.mxu0 0.0
      %3349 = vmatpush.msra.mxu0 0.0
      %3350 = vmatpush.msra.mxu0 0.0
      %3351 = vmatpush.msra.mxu0 0.0
      %3352 = vmatpush.msra.mxu0 0.0
      %3353 = vmatpush.msra.mxu0 0.0
      %3354 = vmatpush.msra.mxu0 0.0
      %3355 = vmatpush.msra.mxu0 0.0
      %3356 = vmatpush.msra.mxu0 %v3339
      %3357 = vmatmul.f32.gmra.mxu0 %v3147
      %v3358 = vpop.f32.mrf.mxu0
      %v3359 = vadd.f32 0.0, %v3358
      %3360 = vmatmul.f32.gmra.mxu0 %v3150
      %v3361 = vpop.f32.mrf.mxu0
      %v3362 = vadd.f32 0.0, %v3361
      %3363 = vmatmul.f32.gmra.mxu0 %v3153
      %v3364 = vpop.f32.mrf.mxu0
      %v3365 = vadd.f32 0.0, %v3364
      %3366 = vmatmul.f32.gmra.mxu0 %v3156
      %v3367 = vpop.f32.mrf.mxu0
      %v3368 = vadd.f32 0.0, %v3367
      %3369 = vmatmul.f32.gmra.mxu0 %v3159
      %v3370 = vpop.f32.mrf.mxu0
      %v3371 = vadd.f32 0.0, %v3370
      %3372 = vmatmul.f32.gmra.mxu0 %v3162
      %v3373 = vpop.f32.mrf.mxu0
      %v3374 = vadd.f32 0.0, %v3373
      %3375 = vmatmul.f32.gmra.mxu0 %v3165
      %v3376 = vpop.f32.mrf.mxu0
      %v3377 = vadd.f32 0.0, %v3376
      %3378 = vmatmul.f32.gmra.mxu0 %v3168
      %v3379 = vpop.f32.mrf.mxu0
      %v3380 = vadd.f32 0.0, %v3379
      %3381 = vmatmul.f32.gmra.mxu0 %v3171
      %v3382 = vpop.f32.mrf.mxu0
      %v3383 = vadd.f32 0.0, %v3382
      %3384 = vmatmul.f32.gmra.mxu0 %v3174
      %v3385 = vpop.f32.mrf.mxu0
      %v3386 = vadd.f32 0.0, %v3385
      %3387 = vmatmul.f32.gmra.mxu0 %v3177
      %v3388 = vpop.f32.mrf.mxu0
      %v3389 = vadd.f32 0.0, %v3388
      %3390 = vmatmul.f32.gmra.mxu0 %v3180
      %v3391 = vpop.f32.mrf.mxu0
      %v3392 = vadd.f32 0.0, %v3391
      %3393 = vmatmul.f32.gmra.mxu0 %v3183
      %v3394 = vpop.f32.mrf.mxu0
      %v3395 = vadd.f32 0.0, %v3394
      %3396 = vmatmul.f32.gmra.mxu0 %v3186
      %v3397 = vpop.f32.mrf.mxu0
      %v3398 = vadd.f32 0.0, %v3397
      %3399 = vmatmul.f32.gmra.mxu0 %v3189
      %v3400 = vpop.f32.mrf.mxu0
      %v3401 = vadd.f32 0.0, %v3400
      %3402 = vmatmul.f32.gmra.mxu0 %v3192
      %v3403 = vpop.f32.mrf.mxu0
      %v3404 = vadd.f32 0.0, %v3403
      %3405 = vmatmul.f32.gmra.mxu0 %v3195
      %v3406 = vpop.f32.mrf.mxu0
      %v3407 = vadd.f32 0.0, %v3406
      %3408 = vmatmul.f32.gmra.mxu0 %v3198
      %v3409 = vpop.f32.mrf.mxu0
      %v3410 = vadd.f32 0.0, %v3409
      %3411 = vmatmul.f32.gmra.mxu0 %v3201
      %v3412 = vpop.f32.mrf.mxu0
      %v3413 = vadd.f32 0.0, %v3412
      %3414 = vmatmul.f32.gmra.mxu0 %v3204
      %v3415 = vpop.f32.mrf.mxu0
      %v3416 = vadd.f32 0.0, %v3415
      %3417 = vmatmul.f32.gmra.mxu0 %v3207
      %v3418 = vpop.f32.mrf.mxu0
      %v3419 = vadd.f32 0.0, %v3418
      %3420 = vmatmul.f32.gmra.mxu0 %v3210
      %v3421 = vpop.f32.mrf.mxu0
      %v3422 = vadd.f32 0.0, %v3421
      %3423 = vmatmul.f32.gmra.mxu0 %v3213
      %v3424 = vpop.f32.mrf.mxu0
      %v3425 = vadd.f32 0.0, %v3424
      %3426 = vmatmul.f32.gmra.mxu0 %v3216
      %v3427 = vpop.f32.mrf.mxu0
      %v3428 = vadd.f32 0.0, %v3427
      %3429 = vmatmul.f32.gmra.mxu0 %v3219
      %v3430 = vpop.f32.mrf.mxu0
      %v3431 = vadd.f32 0.0, %v3430
      %3432 = vmatmul.f32.gmra.mxu0 %v3222
      %v3433 = vpop.f32.mrf.mxu0
      %v3434 = vadd.f32 0.0, %v3433
      %3435 = vmatmul.f32.gmra.mxu0 %v3225
      %v3436 = vpop.f32.mrf.mxu0
      %v3437 = vadd.f32 0.0, %v3436
      %3438 = vmatmul.f32.gmra.mxu0 %v3228
      %v3439 = vpop.f32.mrf.mxu0
      %v3440 = vadd.f32 0.0, %v3439
      %3441 = vmatmul.f32.gmra.mxu0 %v3231
      %v3442 = vpop.f32.mrf.mxu0
      %v3443 = vadd.f32 0.0, %v3442
      %3444 = vmatmul.f32.gmra.mxu0 %v3234
      %v3445 = vpop.f32.mrf.mxu0
      %v3446 = vadd.f32 0.0, %v3445
      %3447 = vmatmul.f32.gmra.mxu0 %v3237
      %v3448 = vpop.f32.mrf.mxu0
      %v3449 = vadd.f32 0.0, %v3448
      %3450 = vmatmul.f32.gmra.mxu0 %v3240
      %v3451 = vpop.f32.mrf.mxu0
      %v3452 = vadd.f32 0.0, %v3451
      %3453 = vmatmul.f32.gmra.mxu0 %v3243
      %v3454 = vpop.f32.mrf.mxu0
      %v3455 = vadd.f32 0.0, %v3454
      %3456 = vmatmul.f32.gmra.mxu0 %v3246
      %v3457 = vpop.f32.mrf.mxu0
      %v3458 = vadd.f32 0.0, %v3457
      %3459 = vmatmul.f32.gmra.mxu0 %v3249
      %v3460 = vpop.f32.mrf.mxu0
      %v3461 = vadd.f32 0.0, %v3460
      %3462 = vmatmul.f32.gmra.mxu0 %v3252
      %v3463 = vpop.f32.mrf.mxu0
      %v3464 = vadd.f32 0.0, %v3463
      %3465 = vmatmul.f32.gmra.mxu0 %v3255
      %v3466 = vpop.f32.mrf.mxu0
      %v3467 = vadd.f32 0.0, %v3466
      %3468 = vmatmul.f32.gmra.mxu0 %v3258
      %v3469 = vpop.f32.mrf.mxu0
      %v3470 = vadd.f32 0.0, %v3469
      %3471 = vmatmul.f32.gmra.mxu0 %v3261
      %v3472 = vpop.f32.mrf.mxu0
      %v3473 = vadd.f32 0.0, %v3472
      %3474 = vmatmul.f32.gmra.mxu0 %v3264
      %v3475 = vpop.f32.mrf.mxu0
      %v3476 = vadd.f32 0.0, %v3475
      %3477 = vmatmul.f32.gmra.mxu0 %v3267
      %v3478 = vpop.f32.mrf.mxu0
      %v3479 = vadd.f32 0.0, %v3478
      %3480 = vmatmul.f32.gmra.mxu0 %v3270
      %v3481 = vpop.f32.mrf.mxu0
      %v3482 = vadd.f32 0.0, %v3481
      %3483 = vmatmul.f32.gmra.mxu0 %v3273
      %v3484 = vpop.f32.mrf.mxu0
      %v3485 = vadd.f32 0.0, %v3484
      %3486 = vmatmul.f32.gmra.mxu0 %v3276
      %v3487 = vpop.f32.mrf.mxu0
      %v3488 = vadd.f32 0.0, %v3487
      %3489 = vmatmul.f32.gmra.mxu0 %v3279
      %v3490 = vpop.f32.mrf.mxu0
      %v3491 = vadd.f32 0.0, %v3490
      %3492 = vmatmul.f32.gmra.mxu0 %v3282
      %v3493 = vpop.f32.mrf.mxu0
      %v3494 = vadd.f32 0.0, %v3493
      %3495 = vmatmul.f32.gmra.mxu0 %v3285
      %v3496 = vpop.f32.mrf.mxu0
      %v3497 = vadd.f32 0.0, %v3496
      %3498 = vmatmul.f32.gmra.mxu0 %v3288
      %v3499 = vpop.f32.mrf.mxu0
      %v3500 = vadd.f32 0.0, %v3499
      %3501 = vmatmul.f32.gmra.mxu0 %v3291
      %v3502 = vpop.f32.mrf.mxu0
      %v3503 = vadd.f32 0.0, %v3502
      %3504 = vmatmul.f32.gmra.mxu0 %v3294
      %v3505 = vpop.f32.mrf.mxu0
      %v3506 = vadd.f32 0.0, %v3505
      %3507 = vmatmul.f32.gmra.mxu0 %v3297
      %v3508 = vpop.f32.mrf.mxu0
      %v3509 = vadd.f32 0.0, %v3508
      %3510 = vmatmul.f32.gmra.mxu0 %v3300
      %v3511 = vpop.f32.mrf.mxu0
      %v3512 = vadd.f32 0.0, %v3511
      %3513 = vmatmul.f32.gmra.mxu0 %v3303
      %v3514 = vpop.f32.mrf.mxu0
      %v3515 = vadd.f32 0.0, %v3514
      %3516 = vmatmul.f32.gmra.mxu0 %v3306
      %v3517 = vpop.f32.mrf.mxu0
      %v3518 = vadd.f32 0.0, %v3517
      %3519 = vmatmul.f32.gmra.mxu0 %v3309
      %v3520 = vpop.f32.mrf.mxu0
      %v3521 = vadd.f32 0.0, %v3520
      %3522 = vmatmul.f32.gmra.mxu0 %v3312
      %v3523 = vpop.f32.mrf.mxu0
      %v3524 = vadd.f32 0.0, %v3523
      %3525 = vmatmul.f32.gmra.mxu0 %v3315
      %v3526 = vpop.f32.mrf.mxu0
      %v3527 = vadd.f32 0.0, %v3526
      %3528 = vmatmul.f32.gmra.mxu0 %v3318
      %v3529 = vpop.f32.mrf.mxu0
      %v3530 = vadd.f32 0.0, %v3529
      %3531 = vmatmul.f32.gmra.mxu0 %v3321
      %v3532 = vpop.f32.mrf.mxu0
      %v3533 = vadd.f32 0.0, %v3532
      %3534 = vmatmul.f32.gmra.mxu0 %v3324
      %v3535 = vpop.f32.mrf.mxu0
      %v3536 = vadd.f32 0.0, %v3535
      %3537 = vmatmul.f32.gmra.mxu0 %v3327
      %v3538 = vpop.f32.mrf.mxu0
      %v3539 = vadd.f32 0.0, %v3538
      %3540 = vmatmul.f32.gmra.mxu0 %v3330
      %v3541 = vpop.f32.mrf.mxu0
      %v3542 = vadd.f32 0.0, %v3541
      %3543 = vmatmul.f32.gmra.mxu0 %v3333
      %v3544 = vpop.f32.mrf.mxu0
      %v3545 = vadd.f32 0.0, %v3544
      %3546 = vmatmul.f32.gmra.mxu0 %v3336
      %v3547 = vpop.f32.mrf.mxu0
      %v3548 = vadd.f32 0.0, %v3547
      %3549 = vdwg.mxu0
      %v3550 = vadd.f32 %v3014, %v3359
      %v3551 = vadd.f32 %v3015, %v3362
      %v3552 = vadd.f32 %v3016, %v3365
      %v3553 = vadd.f32 %v3017, %v3368
      %v3554 = vadd.f32 %v3018, %v3371
      %v3555 = vadd.f32 %v3019, %v3374
      %v3556 = vadd.f32 %v3020, %v3377
      %v3557 = vadd.f32 %v3021, %v3380
      %v3558 = vadd.f32 %v3022, %v3383
      %v3559 = vadd.f32 %v3023, %v3386
      %v3560 = vadd.f32 %v3024, %v3389
      %v3561 = vadd.f32 %v3025, %v3392
      %v3562 = vadd.f32 %v3026, %v3395
      %v3563 = vadd.f32 %v3027, %v3398
      %v3564 = vadd.f32 %v3028, %v3401
      %v3565 = vadd.f32 %v3029, %v3404
      %v3566 = vadd.f32 %v3030, %v3407
      %v3567 = vadd.f32 %v3031, %v3410
      %v3568 = vadd.f32 %v3032, %v3413
      %v3569 = vadd.f32 %v3033, %v3416
      %v3570 = vadd.f32 %v3034, %v3419
      %v3571 = vadd.f32 %v3035, %v3422
      %v3572 = vadd.f32 %v3036, %v3425
      %v3573 = vadd.f32 %v3037, %v3428
      %v3574 = vadd.f32 %v3038, %v3431
      %v3575 = vadd.f32 %v3039, %v3434
      %v3576 = vadd.f32 %v3040, %v3437
      %v3577 = vadd.f32 %v3041, %v3440
      %v3578 = vadd.f32 %v3042, %v3443
      %v3579 = vadd.f32 %v3043, %v3446
      %v3580 = vadd.f32 %v3044, %v3449
      %v3581 = vadd.f32 %v3045, %v3452
      %v3582 = vadd.f32 %v3046, %v3455
      %v3583 = vadd.f32 %v3047, %v3458
      %v3584 = vadd.f32 %v3048, %v3461
      %v3585 = vadd.f32 %v3049, %v3464
      %v3586 = vadd.f32 %v3050, %v3467
      %v3587 = vadd.f32 %v3051, %v3470
      %v3588 = vadd.f32 %v3052, %v3473
      %v3589 = vadd.f32 %v3053, %v3476
      %v3590 = vadd.f32 %v3054, %v3479
      %v3591 = vadd.f32 %v3055, %v3482
      %v3592 = vadd.f32 %v3056, %v3485
      %v3593 = vadd.f32 %v3057, %v3488
      %v3594 = vadd.f32 %v3058, %v3491
      %v3595 = vadd.f32 %v3059, %v3494
      %v3596 = vadd.f32 %v3060, %v3497
      %v3597 = vadd.f32 %v3061, %v3500
      %v3598 = vadd.f32 %v3062, %v3503
      %v3599 = vadd.f32 %v3063, %v3506
      %v3600 = vadd.f32 %v3064, %v3509
      %v3601 = vadd.f32 %v3065, %v3512
      %v3602 = vadd.f32 %v3066, %v3515
      %v3603 = vadd.f32 %v3067, %v3518
      %v3604 = vadd.f32 %v3068, %v3521
      %v3605 = vadd.f32 %v3069, %v3524
      %v3606 = vadd.f32 %v3070, %v3527
      %v3607 = vadd.f32 %v3071, %v3530
      %v3608 = vadd.f32 %v3072, %v3533
      %v3609 = vadd.f32 %v3073, %v3536
      %v3610 = vadd.f32 %v3074, %v3539
      %v3611 = vadd.f32 %v3075, %v3542
      %v3612 = vadd.f32 %v3076, %v3545
      %v3613 = vadd.f32 %v3077, %v3548
      %s3614 = sadd.s32 %s521, 36
      %s3615 = scalar_lea.vmem [#allocation2], %s3614
      %v3616 = vld [vmem:[%s3615] sm:$0xff]
      %v3617 = vld [vmem:[%s3615 + $0x8] sm:$0xff]
      %v3618 = vld [vmem:[%s3615 + $0x10] sm:$0xff]
      %v3619 = vld [vmem:[%s3615 + $0x18] sm:$0xff]
      %v3620 = vld [vmem:[%s3615 + $0x20] sm:$0xff]
      %v3621 = vld [vmem:[%s3615 + $0x28] sm:$0xff]
      %v3622 = vld [vmem:[%s3615 + $0x30] sm:$0xff]
      %v3623 = vld [vmem:[%s3615 + $0x38] sm:$0xff]
      %v3624 = vld [vmem:[%s3615 + $0x40] sm:$0xff]
      %v3625 = vld [vmem:[%s3615 + $0x48] sm:$0xff]
      %v3626 = vld [vmem:[%s3615 + $0x50] sm:$0xff]
      %v3627 = vld [vmem:[%s3615 + $0x58] sm:$0xff]
      %v3628 = vld [vmem:[%s3615 + $0x60] sm:$0xff]
      %v3629 = vld [vmem:[%s3615 + $0x68] sm:$0xff]
      %v3630 = vld [vmem:[%s3615 + $0x70] sm:$0xff]
      %v3631 = vld [vmem:[%s3615 + $0x78] sm:$0xff]
      %v3632 = vld [vmem:[%s3615 + $0x80] sm:$0xff]
      %v3633 = vld [vmem:[%s3615 + $0x88] sm:$0xff]
      %v3634 = vld [vmem:[%s3615 + $0x90] sm:$0xff]
      %v3635 = vld [vmem:[%s3615 + $0x98] sm:$0xff]
      %v3636 = vld [vmem:[%s3615 + $0xa0] sm:$0xff]
      %v3637 = vld [vmem:[%s3615 + $0xa8] sm:$0xff]
      %v3638 = vld [vmem:[%s3615 + $0xb0] sm:$0xff]
      %v3639 = vld [vmem:[%s3615 + $0xb8] sm:$0xff]
      %v3640 = vld [vmem:[%s3615 + $0xc0] sm:$0xff]
      %v3641 = vld [vmem:[%s3615 + $0xc8] sm:$0xff]
      %v3642 = vld [vmem:[%s3615 + $0xd0] sm:$0xff]
      %v3643 = vld [vmem:[%s3615 + $0xd8] sm:$0xff]
      %v3644 = vld [vmem:[%s3615 + $0xe0] sm:$0xff]
      %v3645 = vld [vmem:[%s3615 + $0xe8] sm:$0xff]
      %v3646 = vld [vmem:[%s3615 + $0xf0] sm:$0xff]
      %v3647 = vld [vmem:[%s3615 + $0xf8] sm:$0xff]
      %v3648 = vld [vmem:[%s3615 + $0x100] sm:$0xff]
      %v3649 = vld [vmem:[%s3615 + $0x108] sm:$0xff]
      %v3650 = vld [vmem:[%s3615 + $0x110] sm:$0xff]
      %v3651 = vld [vmem:[%s3615 + $0x118] sm:$0xff]
      %v3652 = vld [vmem:[%s3615 + $0x120] sm:$0xff]
      %v3653 = vld [vmem:[%s3615 + $0x128] sm:$0xff]
      %v3654 = vld [vmem:[%s3615 + $0x130] sm:$0xff]
      %v3655 = vld [vmem:[%s3615 + $0x138] sm:$0xff]
      %v3656 = vld [vmem:[%s3615 + $0x140] sm:$0xff]
      %v3657 = vld [vmem:[%s3615 + $0x148] sm:$0xff]
      %v3658 = vld [vmem:[%s3615 + $0x150] sm:$0xff]
      %v3659 = vld [vmem:[%s3615 + $0x158] sm:$0xff]
      %v3660 = vld [vmem:[%s3615 + $0x160] sm:$0xff]
      %v3661 = vld [vmem:[%s3615 + $0x168] sm:$0xff]
      %v3662 = vld [vmem:[%s3615 + $0x170] sm:$0xff]
      %v3663 = vld [vmem:[%s3615 + $0x178] sm:$0xff]
      %v3664 = vld [vmem:[%s3615 + $0x180] sm:$0xff]
      %v3665 = vld [vmem:[%s3615 + $0x188] sm:$0xff]
      %v3666 = vld [vmem:[%s3615 + $0x190] sm:$0xff]
      %v3667 = vld [vmem:[%s3615 + $0x198] sm:$0xff]
      %v3668 = vld [vmem:[%s3615 + $0x1a0] sm:$0xff]
      %v3669 = vld [vmem:[%s3615 + $0x1a8] sm:$0xff]
      %v3670 = vld [vmem:[%s3615 + $0x1b0] sm:$0xff]
      %v3671 = vld [vmem:[%s3615 + $0x1b8] sm:$0xff]
      %v3672 = vld [vmem:[%s3615 + $0x1c0] sm:$0xff]
      %v3673 = vld [vmem:[%s3615 + $0x1c8] sm:$0xff]
      %v3674 = vld [vmem:[%s3615 + $0x1d0] sm:$0xff]
      %v3675 = vld [vmem:[%s3615 + $0x1d8] sm:$0xff]
      %v3676 = vld [vmem:[%s3615 + $0x1e0] sm:$0xff]
      %v3677 = vld [vmem:[%s3615 + $0x1e8] sm:$0xff]
      %v3678 = vld [vmem:[%s3615 + $0x1f0] sm:$0xff]
      %v3679 = vld [vmem:[%s3615 + $0x1f8] sm:$0xff]
      %s3680 = scalar_lea.vmem %s1, 24
      %v3681 = vld [vmem:[%s3680] sm:$0xf]
      %v3683 = vsel %vm660, %v3616, 0
      %v3686 = vsel %vm660, %v3617, 0
      %v3689 = vsel %vm660, %v3618, 0
      %v3692 = vsel %vm660, %v3619, 0
      %v3695 = vsel %vm660, %v3620, 0
      %v3698 = vsel %vm660, %v3621, 0
      %v3701 = vsel %vm660, %v3622, 0
      %v3704 = vsel %vm660, %v3623, 0
      %v3707 = vsel %vm660, %v3624, 0
      %v3710 = vsel %vm660, %v3625, 0
      %v3713 = vsel %vm660, %v3626, 0
      %v3716 = vsel %vm660, %v3627, 0
      %v3719 = vsel %vm660, %v3628, 0
      %v3722 = vsel %vm660, %v3629, 0
      %v3725 = vsel %vm660, %v3630, 0
      %v3728 = vsel %vm660, %v3631, 0
      %v3731 = vsel %vm660, %v3632, 0
      %v3734 = vsel %vm660, %v3633, 0
      %v3737 = vsel %vm660, %v3634, 0
      %v3740 = vsel %vm660, %v3635, 0
      %v3743 = vsel %vm660, %v3636, 0
      %v3746 = vsel %vm660, %v3637, 0
      %v3749 = vsel %vm660, %v3638, 0
      %v3752 = vsel %vm660, %v3639, 0
      %v3755 = vsel %vm660, %v3640, 0
      %v3758 = vsel %vm660, %v3641, 0
      %v3761 = vsel %vm660, %v3642, 0
      %v3764 = vsel %vm660, %v3643, 0
      %v3767 = vsel %vm660, %v3644, 0
      %v3770 = vsel %vm660, %v3645, 0
      %v3773 = vsel %vm660, %v3646, 0
      %v3776 = vsel %vm660, %v3647, 0
      %v3779 = vsel %vm660, %v3648, 0
      %v3782 = vsel %vm660, %v3649, 0
      %v3785 = vsel %vm660, %v3650, 0
      %v3788 = vsel %vm660, %v3651, 0
      %v3791 = vsel %vm660, %v3652, 0
      %v3794 = vsel %vm660, %v3653, 0
      %v3797 = vsel %vm660, %v3654, 0
      %v3800 = vsel %vm660, %v3655, 0
      %v3803 = vsel %vm660, %v3656, 0
      %v3806 = vsel %vm660, %v3657, 0
      %v3809 = vsel %vm660, %v3658, 0
      %v3812 = vsel %vm660, %v3659, 0
      %v3815 = vsel %vm660, %v3660, 0
      %v3818 = vsel %vm660, %v3661, 0
      %v3821 = vsel %vm660, %v3662, 0
      %v3824 = vsel %vm660, %v3663, 0
      %v3827 = vsel %vm660, %v3664, 0
      %v3830 = vsel %vm660, %v3665, 0
      %v3833 = vsel %vm660, %v3666, 0
      %v3836 = vsel %vm660, %v3667, 0
      %v3839 = vsel %vm660, %v3668, 0
      %v3842 = vsel %vm660, %v3669, 0
      %v3845 = vsel %vm660, %v3670, 0
      %v3848 = vsel %vm660, %v3671, 0
      %v3851 = vsel %vm660, %v3672, 0
      %v3854 = vsel %vm660, %v3673, 0
      %v3857 = vsel %vm660, %v3674, 0
      %v3860 = vsel %vm660, %v3675, 0
      %v3863 = vsel %vm660, %v3676, 0
      %v3866 = vsel %vm660, %v3677, 0
      %v3869 = vsel %vm660, %v3678, 0
      %v3872 = vsel %vm660, %v3679, 0
      %v3875 = vsel %vm853, %v3681, 0
      %3877 = vmatpush.msra.mxu0 0.0
      %3878 = vmatpush.msra.mxu0 0.0
      %3879 = vmatpush.msra.mxu0 0.0
      %3880 = vmatpush.msra.mxu0 0.0
      %3881 = vmatpush.msra.mxu0 0.0
      %3882 = vmatpush.msra.mxu0 0.0
      %3883 = vmatpush.msra.mxu0 0.0
      %3884 = vmatpush.msra.mxu0 0.0
      %3885 = vmatpush.msra.mxu0 0.0
      %3886 = vmatpush.msra.mxu0 0.0
      %3887 = vmatpush.msra.mxu0 0.0
      %3888 = vmatpush.msra.mxu0 0.0
      %3889 = vmatpush.msra.mxu0 0.0
      %3890 = vmatpush.msra.mxu0 0.0
      %3891 = vmatpush.msra.mxu0 0.0
      %3892 = vmatpush.msra.mxu0 %v3875
      %3893 = vmatmul.f32.gmra.mxu0 %v3683
      %v3894 = vpop.f32.mrf.mxu0
      %v3895 = vadd.f32 0.0, %v3894
      %3896 = vmatmul.f32.gmra.mxu0 %v3686
      %v3897 = vpop.f32.mrf.mxu0
      %v3898 = vadd.f32 0.0, %v3897
      %3899 = vmatmul.f32.gmra.mxu0 %v3689
      %v3900 = vpop.f32.mrf.mxu0
      %v3901 = vadd.f32 0.0, %v3900
      %3902 = vmatmul.f32.gmra.mxu0 %v3692
      %v3903 = vpop.f32.mrf.mxu0
      %v3904 = vadd.f32 0.0, %v3903
      %3905 = vmatmul.f32.gmra.mxu0 %v3695
      %v3906 = vpop.f32.mrf.mxu0
      %v3907 = vadd.f32 0.0, %v3906
      %3908 = vmatmul.f32.gmra.mxu0 %v3698
      %v3909 = vpop.f32.mrf.mxu0
      %v3910 = vadd.f32 0.0, %v3909
      %3911 = vmatmul.f32.gmra.mxu0 %v3701
      %v3912 = vpop.f32.mrf.mxu0
      %v3913 = vadd.f32 0.0, %v3912
      %3914 = vmatmul.f32.gmra.mxu0 %v3704
      %v3915 = vpop.f32.mrf.mxu0
      %v3916 = vadd.f32 0.0, %v3915
      %3917 = vmatmul.f32.gmra.mxu0 %v3707
      %v3918 = vpop.f32.mrf.mxu0
      %v3919 = vadd.f32 0.0, %v3918
      %3920 = vmatmul.f32.gmra.mxu0 %v3710
      %v3921 = vpop.f32.mrf.mxu0
      %v3922 = vadd.f32 0.0, %v3921
      %3923 = vmatmul.f32.gmra.mxu0 %v3713
      %v3924 = vpop.f32.mrf.mxu0
      %v3925 = vadd.f32 0.0, %v3924
      %3926 = vmatmul.f32.gmra.mxu0 %v3716
      %v3927 = vpop.f32.mrf.mxu0
      %v3928 = vadd.f32 0.0, %v3927
      %3929 = vmatmul.f32.gmra.mxu0 %v3719
      %v3930 = vpop.f32.mrf.mxu0
      %v3931 = vadd.f32 0.0, %v3930
      %3932 = vmatmul.f32.gmra.mxu0 %v3722
      %v3933 = vpop.f32.mrf.mxu0
      %v3934 = vadd.f32 0.0, %v3933
      %3935 = vmatmul.f32.gmra.mxu0 %v3725
      %v3936 = vpop.f32.mrf.mxu0
      %v3937 = vadd.f32 0.0, %v3936
      %3938 = vmatmul.f32.gmra.mxu0 %v3728
      %v3939 = vpop.f32.mrf.mxu0
      %v3940 = vadd.f32 0.0, %v3939
      %3941 = vmatmul.f32.gmra.mxu0 %v3731
      %v3942 = vpop.f32.mrf.mxu0
      %v3943 = vadd.f32 0.0, %v3942
      %3944 = vmatmul.f32.gmra.mxu0 %v3734
      %v3945 = vpop.f32.mrf.mxu0
      %v3946 = vadd.f32 0.0, %v3945
      %3947 = vmatmul.f32.gmra.mxu0 %v3737
      %v3948 = vpop.f32.mrf.mxu0
      %v3949 = vadd.f32 0.0, %v3948
      %3950 = vmatmul.f32.gmra.mxu0 %v3740
      %v3951 = vpop.f32.mrf.mxu0
      %v3952 = vadd.f32 0.0, %v3951
      %3953 = vmatmul.f32.gmra.mxu0 %v3743
      %v3954 = vpop.f32.mrf.mxu0
      %v3955 = vadd.f32 0.0, %v3954
      %3956 = vmatmul.f32.gmra.mxu0 %v3746
      %v3957 = vpop.f32.mrf.mxu0
      %v3958 = vadd.f32 0.0, %v3957
      %3959 = vmatmul.f32.gmra.mxu0 %v3749
      %v3960 = vpop.f32.mrf.mxu0
      %v3961 = vadd.f32 0.0, %v3960
      %3962 = vmatmul.f32.gmra.mxu0 %v3752
      %v3963 = vpop.f32.mrf.mxu0
      %v3964 = vadd.f32 0.0, %v3963
      %3965 = vmatmul.f32.gmra.mxu0 %v3755
      %v3966 = vpop.f32.mrf.mxu0
      %v3967 = vadd.f32 0.0, %v3966
      %3968 = vmatmul.f32.gmra.mxu0 %v3758
      %v3969 = vpop.f32.mrf.mxu0
      %v3970 = vadd.f32 0.0, %v3969
      %3971 = vmatmul.f32.gmra.mxu0 %v3761
      %v3972 = vpop.f32.mrf.mxu0
      %v3973 = vadd.f32 0.0, %v3972
      %3974 = vmatmul.f32.gmra.mxu0 %v3764
      %v3975 = vpop.f32.mrf.mxu0
      %v3976 = vadd.f32 0.0, %v3975
      %3977 = vmatmul.f32.gmra.mxu0 %v3767
      %v3978 = vpop.f32.mrf.mxu0
      %v3979 = vadd.f32 0.0, %v3978
      %3980 = vmatmul.f32.gmra.mxu0 %v3770
      %v3981 = vpop.f32.mrf.mxu0
      %v3982 = vadd.f32 0.0, %v3981
      %3983 = vmatmul.f32.gmra.mxu0 %v3773
      %v3984 = vpop.f32.mrf.mxu0
      %v3985 = vadd.f32 0.0, %v3984
      %3986 = vmatmul.f32.gmra.mxu0 %v3776
      %v3987 = vpop.f32.mrf.mxu0
      %v3988 = vadd.f32 0.0, %v3987
      %3989 = vmatmul.f32.gmra.mxu0 %v3779
      %v3990 = vpop.f32.mrf.mxu0
      %v3991 = vadd.f32 0.0, %v3990
      %3992 = vmatmul.f32.gmra.mxu0 %v3782
      %v3993 = vpop.f32.mrf.mxu0
      %v3994 = vadd.f32 0.0, %v3993
      %3995 = vmatmul.f32.gmra.mxu0 %v3785
      %v3996 = vpop.f32.mrf.mxu0
      %v3997 = vadd.f32 0.0, %v3996
      %3998 = vmatmul.f32.gmra.mxu0 %v3788
      %v3999 = vpop.f32.mrf.mxu0
      %v4000 = vadd.f32 0.0, %v3999
      %4001 = vmatmul.f32.gmra.mxu0 %v3791
      %v4002 = vpop.f32.mrf.mxu0
      %v4003 = vadd.f32 0.0, %v4002
      %4004 = vmatmul.f32.gmra.mxu0 %v3794
      %v4005 = vpop.f32.mrf.mxu0
      %v4006 = vadd.f32 0.0, %v4005
      %4007 = vmatmul.f32.gmra.mxu0 %v3797
      %v4008 = vpop.f32.mrf.mxu0
      %v4009 = vadd.f32 0.0, %v4008
      %4010 = vmatmul.f32.gmra.mxu0 %v3800
      %v4011 = vpop.f32.mrf.mxu0
      %v4012 = vadd.f32 0.0, %v4011
      %4013 = vmatmul.f32.gmra.mxu0 %v3803
      %v4014 = vpop.f32.mrf.mxu0
      %v4015 = vadd.f32 0.0, %v4014
      %4016 = vmatmul.f32.gmra.mxu0 %v3806
      %v4017 = vpop.f32.mrf.mxu0
      %v4018 = vadd.f32 0.0, %v4017
      %4019 = vmatmul.f32.gmra.mxu0 %v3809
      %v4020 = vpop.f32.mrf.mxu0
      %v4021 = vadd.f32 0.0, %v4020
      %4022 = vmatmul.f32.gmra.mxu0 %v3812
      %v4023 = vpop.f32.mrf.mxu0
      %v4024 = vadd.f32 0.0, %v4023
      %4025 = vmatmul.f32.gmra.mxu0 %v3815
      %v4026 = vpop.f32.mrf.mxu0
      %v4027 = vadd.f32 0.0, %v4026
      %4028 = vmatmul.f32.gmra.mxu0 %v3818
      %v4029 = vpop.f32.mrf.mxu0
      %v4030 = vadd.f32 0.0, %v4029
      %4031 = vmatmul.f32.gmra.mxu0 %v3821
      %v4032 = vpop.f32.mrf.mxu0
      %v4033 = vadd.f32 0.0, %v4032
      %4034 = vmatmul.f32.gmra.mxu0 %v3824
      %v4035 = vpop.f32.mrf.mxu0
      %v4036 = vadd.f32 0.0, %v4035
      %4037 = vmatmul.f32.gmra.mxu0 %v3827
      %v4038 = vpop.f32.mrf.mxu0
      %v4039 = vadd.f32 0.0, %v4038
      %4040 = vmatmul.f32.gmra.mxu0 %v3830
      %v4041 = vpop.f32.mrf.mxu0
      %v4042 = vadd.f32 0.0, %v4041
      %4043 = vmatmul.f32.gmra.mxu0 %v3833
      %v4044 = vpop.f32.mrf.mxu0
      %v4045 = vadd.f32 0.0, %v4044
      %4046 = vmatmul.f32.gmra.mxu0 %v3836
      %v4047 = vpop.f32.mrf.mxu0
      %v4048 = vadd.f32 0.0, %v4047
      %4049 = vmatmul.f32.gmra.mxu0 %v3839
      %v4050 = vpop.f32.mrf.mxu0
      %v4051 = vadd.f32 0.0, %v4050
      %4052 = vmatmul.f32.gmra.mxu0 %v3842
      %v4053 = vpop.f32.mrf.mxu0
      %v4054 = vadd.f32 0.0, %v4053
      %4055 = vmatmul.f32.gmra.mxu0 %v3845
      %v4056 = vpop.f32.mrf.mxu0
      %v4057 = vadd.f32 0.0, %v4056
      %4058 = vmatmul.f32.gmra.mxu0 %v3848
      %v4059 = vpop.f32.mrf.mxu0
      %v4060 = vadd.f32 0.0, %v4059
      %4061 = vmatmul.f32.gmra.mxu0 %v3851
      %v4062 = vpop.f32.mrf.mxu0
      %v4063 = vadd.f32 0.0, %v4062
      %4064 = vmatmul.f32.gmra.mxu0 %v3854
      %v4065 = vpop.f32.mrf.mxu0
      %v4066 = vadd.f32 0.0, %v4065
      %4067 = vmatmul.f32.gmra.mxu0 %v3857
      %v4068 = vpop.f32.mrf.mxu0
      %v4069 = vadd.f32 0.0, %v4068
      %4070 = vmatmul.f32.gmra.mxu0 %v3860
      %v4071 = vpop.f32.mrf.mxu0
      %v4072 = vadd.f32 0.0, %v4071
      %4073 = vmatmul.f32.gmra.mxu0 %v3863
      %v4074 = vpop.f32.mrf.mxu0
      %v4075 = vadd.f32 0.0, %v4074
      %4076 = vmatmul.f32.gmra.mxu0 %v3866
      %v4077 = vpop.f32.mrf.mxu0
      %v4078 = vadd.f32 0.0, %v4077
      %4079 = vmatmul.f32.gmra.mxu0 %v3869
      %v4080 = vpop.f32.mrf.mxu0
      %v4081 = vadd.f32 0.0, %v4080
      %4082 = vmatmul.f32.gmra.mxu0 %v3872
      %v4083 = vpop.f32.mrf.mxu0
      %v4084 = vadd.f32 0.0, %v4083
      %4085 = vdwg.mxu0
      %v4086 = vadd.f32 %v3550, %v3895
      %v4087 = vadd.f32 %v3551, %v3898
      %v4088 = vadd.f32 %v3552, %v3901
      %v4089 = vadd.f32 %v3553, %v3904
      %v4090 = vadd.f32 %v3554, %v3907
      %v4091 = vadd.f32 %v3555, %v3910
      %v4092 = vadd.f32 %v3556, %v3913
      %v4093 = vadd.f32 %v3557, %v3916
      %v4094 = vadd.f32 %v3558, %v3919
      %v4095 = vadd.f32 %v3559, %v3922
      %v4096 = vadd.f32 %v3560, %v3925
      %v4097 = vadd.f32 %v3561, %v3928
      %v4098 = vadd.f32 %v3562, %v3931
      %v4099 = vadd.f32 %v3563, %v3934
      %v4100 = vadd.f32 %v3564, %v3937
      %v4101 = vadd.f32 %v3565, %v3940
      %v4102 = vadd.f32 %v3566, %v3943
      %v4103 = vadd.f32 %v3567, %v3946
      %v4104 = vadd.f32 %v3568, %v3949
      %v4105 = vadd.f32 %v3569, %v3952
      %v4106 = vadd.f32 %v3570, %v3955
      %v4107 = vadd.f32 %v3571, %v3958
      %v4108 = vadd.f32 %v3572, %v3961
      %v4109 = vadd.f32 %v3573, %v3964
      %v4110 = vadd.f32 %v3574, %v3967
      %v4111 = vadd.f32 %v3575, %v3970
      %v4112 = vadd.f32 %v3576, %v3973
      %v4113 = vadd.f32 %v3577, %v3976
      %v4114 = vadd.f32 %v3578, %v3979
      %v4115 = vadd.f32 %v3579, %v3982
      %v4116 = vadd.f32 %v3580, %v3985
      %v4117 = vadd.f32 %v3581, %v3988
      %v4118 = vadd.f32 %v3582, %v3991
      %v4119 = vadd.f32 %v3583, %v3994
      %v4120 = vadd.f32 %v3584, %v3997
      %v4121 = vadd.f32 %v3585, %v4000
      %v4122 = vadd.f32 %v3586, %v4003
      %v4123 = vadd.f32 %v3587, %v4006
      %v4124 = vadd.f32 %v3588, %v4009
      %v4125 = vadd.f32 %v3589, %v4012
      %v4126 = vadd.f32 %v3590, %v4015
      %v4127 = vadd.f32 %v3591, %v4018
      %v4128 = vadd.f32 %v3592, %v4021
      %v4129 = vadd.f32 %v3593, %v4024
      %v4130 = vadd.f32 %v3594, %v4027
      %v4131 = vadd.f32 %v3595, %v4030
      %v4132 = vadd.f32 %v3596, %v4033
      %v4133 = vadd.f32 %v3597, %v4036
      %v4134 = vadd.f32 %v3598, %v4039
      %v4135 = vadd.f32 %v3599, %v4042
      %v4136 = vadd.f32 %v3600, %v4045
      %v4137 = vadd.f32 %v3601, %v4048
      %v4138 = vadd.f32 %v3602, %v4051
      %v4139 = vadd.f32 %v3603, %v4054
      %v4140 = vadd.f32 %v3604, %v4057
      %v4141 = vadd.f32 %v3605, %v4060
      %v4142 = vadd.f32 %v3606, %v4063
      %v4143 = vadd.f32 %v3607, %v4066
      %v4144 = vadd.f32 %v3608, %v4069
      %v4145 = vadd.f32 %v3609, %v4072
      %v4146 = vadd.f32 %v3610, %v4075
      %v4147 = vadd.f32 %v3611, %v4078
      %v4148 = vadd.f32 %v3612, %v4081
      %v4149 = vadd.f32 %v3613, %v4084
      %s4150 = sadd.s32 %s521, 37
      %s4151 = scalar_lea.vmem [#allocation2], %s4150
      %v4152 = vld [vmem:[%s4151] sm:$0xff]
      %v4153 = vld [vmem:[%s4151 + $0x8] sm:$0xff]
      %v4154 = vld [vmem:[%s4151 + $0x10] sm:$0xff]
      %v4155 = vld [vmem:[%s4151 + $0x18] sm:$0xff]
      %v4156 = vld [vmem:[%s4151 + $0x20] sm:$0xff]
      %v4157 = vld [vmem:[%s4151 + $0x28] sm:$0xff]
      %v4158 = vld [vmem:[%s4151 + $0x30] sm:$0xff]
      %v4159 = vld [vmem:[%s4151 + $0x38] sm:$0xff]
      %v4160 = vld [vmem:[%s4151 + $0x40] sm:$0xff]
      %v4161 = vld [vmem:[%s4151 + $0x48] sm:$0xff]
      %v4162 = vld [vmem:[%s4151 + $0x50] sm:$0xff]
      %v4163 = vld [vmem:[%s4151 + $0x58] sm:$0xff]
      %v4164 = vld [vmem:[%s4151 + $0x60] sm:$0xff]
      %v4165 = vld [vmem:[%s4151 + $0x68] sm:$0xff]
      %v4166 = vld [vmem:[%s4151 + $0x70] sm:$0xff]
      %v4167 = vld [vmem:[%s4151 + $0x78] sm:$0xff]
      %v4168 = vld [vmem:[%s4151 + $0x80] sm:$0xff]
      %v4169 = vld [vmem:[%s4151 + $0x88] sm:$0xff]
      %v4170 = vld [vmem:[%s4151 + $0x90] sm:$0xff]
      %v4171 = vld [vmem:[%s4151 + $0x98] sm:$0xff]
      %v4172 = vld [vmem:[%s4151 + $0xa0] sm:$0xff]
      %v4173 = vld [vmem:[%s4151 + $0xa8] sm:$0xff]
      %v4174 = vld [vmem:[%s4151 + $0xb0] sm:$0xff]
      %v4175 = vld [vmem:[%s4151 + $0xb8] sm:$0xff]
      %v4176 = vld [vmem:[%s4151 + $0xc0] sm:$0xff]
      %v4177 = vld [vmem:[%s4151 + $0xc8] sm:$0xff]
      %v4178 = vld [vmem:[%s4151 + $0xd0] sm:$0xff]
      %v4179 = vld [vmem:[%s4151 + $0xd8] sm:$0xff]
      %v4180 = vld [vmem:[%s4151 + $0xe0] sm:$0xff]
      %v4181 = vld [vmem:[%s4151 + $0xe8] sm:$0xff]
      %v4182 = vld [vmem:[%s4151 + $0xf0] sm:$0xff]
      %v4183 = vld [vmem:[%s4151 + $0xf8] sm:$0xff]
      %v4184 = vld [vmem:[%s4151 + $0x100] sm:$0xff]
      %v4185 = vld [vmem:[%s4151 + $0x108] sm:$0xff]
      %v4186 = vld [vmem:[%s4151 + $0x110] sm:$0xff]
      %v4187 = vld [vmem:[%s4151 + $0x118] sm:$0xff]
      %v4188 = vld [vmem:[%s4151 + $0x120] sm:$0xff]
      %v4189 = vld [vmem:[%s4151 + $0x128] sm:$0xff]
      %v4190 = vld [vmem:[%s4151 + $0x130] sm:$0xff]
      %v4191 = vld [vmem:[%s4151 + $0x138] sm:$0xff]
      %v4192 = vld [vmem:[%s4151 + $0x140] sm:$0xff]
      %v4193 = vld [vmem:[%s4151 + $0x148] sm:$0xff]
      %v4194 = vld [vmem:[%s4151 + $0x150] sm:$0xff]
      %v4195 = vld [vmem:[%s4151 + $0x158] sm:$0xff]
      %v4196 = vld [vmem:[%s4151 + $0x160] sm:$0xff]
      %v4197 = vld [vmem:[%s4151 + $0x168] sm:$0xff]
      %v4198 = vld [vmem:[%s4151 + $0x170] sm:$0xff]
      %v4199 = vld [vmem:[%s4151 + $0x178] sm:$0xff]
      %v4200 = vld [vmem:[%s4151 + $0x180] sm:$0xff]
      %v4201 = vld [vmem:[%s4151 + $0x188] sm:$0xff]
      %v4202 = vld [vmem:[%s4151 + $0x190] sm:$0xff]
      %v4203 = vld [vmem:[%s4151 + $0x198] sm:$0xff]
      %v4204 = vld [vmem:[%s4151 + $0x1a0] sm:$0xff]
      %v4205 = vld [vmem:[%s4151 + $0x1a8] sm:$0xff]
      %v4206 = vld [vmem:[%s4151 + $0x1b0] sm:$0xff]
      %v4207 = vld [vmem:[%s4151 + $0x1b8] sm:$0xff]
      %v4208 = vld [vmem:[%s4151 + $0x1c0] sm:$0xff]
      %v4209 = vld [vmem:[%s4151 + $0x1c8] sm:$0xff]
      %v4210 = vld [vmem:[%s4151 + $0x1d0] sm:$0xff]
      %v4211 = vld [vmem:[%s4151 + $0x1d8] sm:$0xff]
      %v4212 = vld [vmem:[%s4151 + $0x1e0] sm:$0xff]
      %v4213 = vld [vmem:[%s4151 + $0x1e8] sm:$0xff]
      %v4214 = vld [vmem:[%s4151 + $0x1f0] sm:$0xff]
      %v4215 = vld [vmem:[%s4151 + $0x1f8] sm:$0xff]
      %s4216 = scalar_lea.vmem %s1, 28
      %v4217 = vld [vmem:[%s4216] sm:$0xf]
      %v4219 = vsel %vm660, %v4152, 0
      %v4222 = vsel %vm660, %v4153, 0
      %v4225 = vsel %vm660, %v4154, 0
      %v4228 = vsel %vm660, %v4155, 0
      %v4231 = vsel %vm660, %v4156, 0
      %v4234 = vsel %vm660, %v4157, 0
      %v4237 = vsel %vm660, %v4158, 0
      %v4240 = vsel %vm660, %v4159, 0
      %v4243 = vsel %vm660, %v4160, 0
      %v4246 = vsel %vm660, %v4161, 0
      %v4249 = vsel %vm660, %v4162, 0
      %v4252 = vsel %vm660, %v4163, 0
      %v4255 = vsel %vm660, %v4164, 0
      %v4258 = vsel %vm660, %v4165, 0
      %v4261 = vsel %vm660, %v4166, 0
      %v4264 = vsel %vm660, %v4167, 0
      %v4267 = vsel %vm660, %v4168, 0
      %v4270 = vsel %vm660, %v4169, 0
      %v4273 = vsel %vm660, %v4170, 0
      %v4276 = vsel %vm660, %v4171, 0
      %v4279 = vsel %vm660, %v4172, 0
      %v4282 = vsel %vm660, %v4173, 0
      %v4285 = vsel %vm660, %v4174, 0
      %v4288 = vsel %vm660, %v4175, 0
      %v4291 = vsel %vm660, %v4176, 0
      %v4294 = vsel %vm660, %v4177, 0
      %v4297 = vsel %vm660, %v4178, 0
      %v4300 = vsel %vm660, %v4179, 0
      %v4303 = vsel %vm660, %v4180, 0
      %v4306 = vsel %vm660, %v4181, 0
      %v4309 = vsel %vm660, %v4182, 0
      %v4312 = vsel %vm660, %v4183, 0
      %v4315 = vsel %vm660, %v4184, 0
      %v4318 = vsel %vm660, %v4185, 0
      %v4321 = vsel %vm660, %v4186, 0
      %v4324 = vsel %vm660, %v4187, 0
      %v4327 = vsel %vm660, %v4188, 0
      %v4330 = vsel %vm660, %v4189, 0
      %v4333 = vsel %vm660, %v4190, 0
      %v4336 = vsel %vm660, %v4191, 0
      %v4339 = vsel %vm660, %v4192, 0
      %v4342 = vsel %vm660, %v4193, 0
      %v4345 = vsel %vm660, %v4194, 0
      %v4348 = vsel %vm660, %v4195, 0
      %v4351 = vsel %vm660, %v4196, 0
      %v4354 = vsel %vm660, %v4197, 0
      %v4357 = vsel %vm660, %v4198, 0
      %v4360 = vsel %vm660, %v4199, 0
      %v4363 = vsel %vm660, %v4200, 0
      %v4366 = vsel %vm660, %v4201, 0
      %v4369 = vsel %vm660, %v4202, 0
      %v4372 = vsel %vm660, %v4203, 0
      %v4375 = vsel %vm660, %v4204, 0
      %v4378 = vsel %vm660, %v4205, 0
      %v4381 = vsel %vm660, %v4206, 0
      %v4384 = vsel %vm660, %v4207, 0
      %v4387 = vsel %vm660, %v4208, 0
      %v4390 = vsel %vm660, %v4209, 0
      %v4393 = vsel %vm660, %v4210, 0
      %v4396 = vsel %vm660, %v4211, 0
      %v4399 = vsel %vm660, %v4212, 0
      %v4402 = vsel %vm660, %v4213, 0
      %v4405 = vsel %vm660, %v4214, 0
      %v4408 = vsel %vm660, %v4215, 0
      %v4411 = vsel %vm853, %v4217, 0
      %4413 = vmatpush.msra.mxu0 0.0
      %4414 = vmatpush.msra.mxu0 0.0
      %4415 = vmatpush.msra.mxu0 0.0
      %4416 = vmatpush.msra.mxu0 0.0
      %4417 = vmatpush.msra.mxu0 0.0
      %4418 = vmatpush.msra.mxu0 0.0
      %4419 = vmatpush.msra.mxu0 0.0
      %4420 = vmatpush.msra.mxu0 0.0
      %4421 = vmatpush.msra.mxu0 0.0
      %4422 = vmatpush.msra.mxu0 0.0
      %4423 = vmatpush.msra.mxu0 0.0
      %4424 = vmatpush.msra.mxu0 0.0
      %4425 = vmatpush.msra.mxu0 0.0
      %4426 = vmatpush.msra.mxu0 0.0
      %4427 = vmatpush.msra.mxu0 0.0
      %4428 = vmatpush.msra.mxu0 %v4411
      %4429 = vmatmul.f32.gmra.mxu0 %v4219
      %v4430 = vpop.f32.mrf.mxu0
      %v4431 = vadd.f32 0.0, %v4430
      %4432 = vmatmul.f32.gmra.mxu0 %v4222
      %v4433 = vpop.f32.mrf.mxu0
      %v4434 = vadd.f32 0.0, %v4433
      %4435 = vmatmul.f32.gmra.mxu0 %v4225
      %v4436 = vpop.f32.mrf.mxu0
      %v4437 = vadd.f32 0.0, %v4436
      %4438 = vmatmul.f32.gmra.mxu0 %v4228
      %v4439 = vpop.f32.mrf.mxu0
      %v4440 = vadd.f32 0.0, %v4439
      %4441 = vmatmul.f32.gmra.mxu0 %v4231
      %v4442 = vpop.f32.mrf.mxu0
      %v4443 = vadd.f32 0.0, %v4442
      %4444 = vmatmul.f32.gmra.mxu0 %v4234
      %v4445 = vpop.f32.mrf.mxu0
      %v4446 = vadd.f32 0.0, %v4445
      %4447 = vmatmul.f32.gmra.mxu0 %v4237
      %v4448 = vpop.f32.mrf.mxu0
      %v4449 = vadd.f32 0.0, %v4448
      %4450 = vmatmul.f32.gmra.mxu0 %v4240
      %v4451 = vpop.f32.mrf.mxu0
      %v4452 = vadd.f32 0.0, %v4451
      %4453 = vmatmul.f32.gmra.mxu0 %v4243
      %v4454 = vpop.f32.mrf.mxu0
      %v4455 = vadd.f32 0.0, %v4454
      %4456 = vmatmul.f32.gmra.mxu0 %v4246
      %v4457 = vpop.f32.mrf.mxu0
      %v4458 = vadd.f32 0.0, %v4457
      %4459 = vmatmul.f32.gmra.mxu0 %v4249
      %v4460 = vpop.f32.mrf.mxu0
      %v4461 = vadd.f32 0.0, %v4460
      %4462 = vmatmul.f32.gmra.mxu0 %v4252
      %v4463 = vpop.f32.mrf.mxu0
      %v4464 = vadd.f32 0.0, %v4463
      %4465 = vmatmul.f32.gmra.mxu0 %v4255
      %v4466 = vpop.f32.mrf.mxu0
      %v4467 = vadd.f32 0.0, %v4466
      %4468 = vmatmul.f32.gmra.mxu0 %v4258
      %v4469 = vpop.f32.mrf.mxu0
      %v4470 = vadd.f32 0.0, %v4469
      %4471 = vmatmul.f32.gmra.mxu0 %v4261
      %v4472 = vpop.f32.mrf.mxu0
      %v4473 = vadd.f32 0.0, %v4472
      %4474 = vmatmul.f32.gmra.mxu0 %v4264
      %v4475 = vpop.f32.mrf.mxu0
      %v4476 = vadd.f32 0.0, %v4475
      %4477 = vmatmul.f32.gmra.mxu0 %v4267
      %v4478 = vpop.f32.mrf.mxu0
      %v4479 = vadd.f32 0.0, %v4478
      %4480 = vmatmul.f32.gmra.mxu0 %v4270
      %v4481 = vpop.f32.mrf.mxu0
      %v4482 = vadd.f32 0.0, %v4481
      %4483 = vmatmul.f32.gmra.mxu0 %v4273
      %v4484 = vpop.f32.mrf.mxu0
      %v4485 = vadd.f32 0.0, %v4484
      %4486 = vmatmul.f32.gmra.mxu0 %v4276
      %v4487 = vpop.f32.mrf.mxu0
      %v4488 = vadd.f32 0.0, %v4487
      %4489 = vmatmul.f32.gmra.mxu0 %v4279
      %v4490 = vpop.f32.mrf.mxu0
      %v4491 = vadd.f32 0.0, %v4490
      %4492 = vmatmul.f32.gmra.mxu0 %v4282
      %v4493 = vpop.f32.mrf.mxu0
      %v4494 = vadd.f32 0.0, %v4493
      %4495 = vmatmul.f32.gmra.mxu0 %v4285
      %v4496 = vpop.f32.mrf.mxu0
      %v4497 = vadd.f32 0.0, %v4496
      %4498 = vmatmul.f32.gmra.mxu0 %v4288
      %v4499 = vpop.f32.mrf.mxu0
      %v4500 = vadd.f32 0.0, %v4499
      %4501 = vmatmul.f32.gmra.mxu0 %v4291
      %v4502 = vpop.f32.mrf.mxu0
      %v4503 = vadd.f32 0.0, %v4502
      %4504 = vmatmul.f32.gmra.mxu0 %v4294
      %v4505 = vpop.f32.mrf.mxu0
      %v4506 = vadd.f32 0.0, %v4505
      %4507 = vmatmul.f32.gmra.mxu0 %v4297
      %v4508 = vpop.f32.mrf.mxu0
      %v4509 = vadd.f32 0.0, %v4508
      %4510 = vmatmul.f32.gmra.mxu0 %v4300
      %v4511 = vpop.f32.mrf.mxu0
      %v4512 = vadd.f32 0.0, %v4511
      %4513 = vmatmul.f32.gmra.mxu0 %v4303
      %v4514 = vpop.f32.mrf.mxu0
      %v4515 = vadd.f32 0.0, %v4514
      %4516 = vmatmul.f32.gmra.mxu0 %v4306
      %v4517 = vpop.f32.mrf.mxu0
      %v4518 = vadd.f32 0.0, %v4517
      %4519 = vmatmul.f32.gmra.mxu0 %v4309
      %v4520 = vpop.f32.mrf.mxu0
      %v4521 = vadd.f32 0.0, %v4520
      %4522 = vmatmul.f32.gmra.mxu0 %v4312
      %v4523 = vpop.f32.mrf.mxu0
      %v4524 = vadd.f32 0.0, %v4523
      %4525 = vmatmul.f32.gmra.mxu0 %v4315
      %v4526 = vpop.f32.mrf.mxu0
      %v4527 = vadd.f32 0.0, %v4526
      %4528 = vmatmul.f32.gmra.mxu0 %v4318
      %v4529 = vpop.f32.mrf.mxu0
      %v4530 = vadd.f32 0.0, %v4529
      %4531 = vmatmul.f32.gmra.mxu0 %v4321
      %v4532 = vpop.f32.mrf.mxu0
      %v4533 = vadd.f32 0.0, %v4532
      %4534 = vmatmul.f32.gmra.mxu0 %v4324
      %v4535 = vpop.f32.mrf.mxu0
      %v4536 = vadd.f32 0.0, %v4535
      %4537 = vmatmul.f32.gmra.mxu0 %v4327
      %v4538 = vpop.f32.mrf.mxu0
      %v4539 = vadd.f32 0.0, %v4538
      %4540 = vmatmul.f32.gmra.mxu0 %v4330
      %v4541 = vpop.f32.mrf.mxu0
      %v4542 = vadd.f32 0.0, %v4541
      %4543 = vmatmul.f32.gmra.mxu0 %v4333
      %v4544 = vpop.f32.mrf.mxu0
      %v4545 = vadd.f32 0.0, %v4544
      %4546 = vmatmul.f32.gmra.mxu0 %v4336
      %v4547 = vpop.f32.mrf.mxu0
      %v4548 = vadd.f32 0.0, %v4547
      %4549 = vmatmul.f32.gmra.mxu0 %v4339
      %v4550 = vpop.f32.mrf.mxu0
      %v4551 = vadd.f32 0.0, %v4550
      %4552 = vmatmul.f32.gmra.mxu0 %v4342
      %v4553 = vpop.f32.mrf.mxu0
      %v4554 = vadd.f32 0.0, %v4553
      %4555 = vmatmul.f32.gmra.mxu0 %v4345
      %v4556 = vpop.f32.mrf.mxu0
      %v4557 = vadd.f32 0.0, %v4556
      %4558 = vmatmul.f32.gmra.mxu0 %v4348
      %v4559 = vpop.f32.mrf.mxu0
      %v4560 = vadd.f32 0.0, %v4559
      %4561 = vmatmul.f32.gmra.mxu0 %v4351
      %v4562 = vpop.f32.mrf.mxu0
      %v4563 = vadd.f32 0.0, %v4562
      %4564 = vmatmul.f32.gmra.mxu0 %v4354
      %v4565 = vpop.f32.mrf.mxu0
      %v4566 = vadd.f32 0.0, %v4565
      %4567 = vmatmul.f32.gmra.mxu0 %v4357
      %v4568 = vpop.f32.mrf.mxu0
      %v4569 = vadd.f32 0.0, %v4568
      %4570 = vmatmul.f32.gmra.mxu0 %v4360
      %v4571 = vpop.f32.mrf.mxu0
      %v4572 = vadd.f32 0.0, %v4571
      %4573 = vmatmul.f32.gmra.mxu0 %v4363
      %v4574 = vpop.f32.mrf.mxu0
      %v4575 = vadd.f32 0.0, %v4574
      %4576 = vmatmul.f32.gmra.mxu0 %v4366
      %v4577 = vpop.f32.mrf.mxu0
      %v4578 = vadd.f32 0.0, %v4577
      %4579 = vmatmul.f32.gmra.mxu0 %v4369
      %v4580 = vpop.f32.mrf.mxu0
      %v4581 = vadd.f32 0.0, %v4580
      %4582 = vmatmul.f32.gmra.mxu0 %v4372
      %v4583 = vpop.f32.mrf.mxu0
      %v4584 = vadd.f32 0.0, %v4583
      %4585 = vmatmul.f32.gmra.mxu0 %v4375
      %v4586 = vpop.f32.mrf.mxu0
      %v4587 = vadd.f32 0.0, %v4586
      %4588 = vmatmul.f32.gmra.mxu0 %v4378
      %v4589 = vpop.f32.mrf.mxu0
      %v4590 = vadd.f32 0.0, %v4589
      %4591 = vmatmul.f32.gmra.mxu0 %v4381
      %v4592 = vpop.f32.mrf.mxu0
      %v4593 = vadd.f32 0.0, %v4592
      %4594 = vmatmul.f32.gmra.mxu0 %v4384
      %v4595 = vpop.f32.mrf.mxu0
      %v4596 = vadd.f32 0.0, %v4595
      %4597 = vmatmul.f32.gmra.mxu0 %v4387
      %v4598 = vpop.f32.mrf.mxu0
      %v4599 = vadd.f32 0.0, %v4598
      %4600 = vmatmul.f32.gmra.mxu0 %v4390
      %v4601 = vpop.f32.mrf.mxu0
      %v4602 = vadd.f32 0.0, %v4601
      %4603 = vmatmul.f32.gmra.mxu0 %v4393
      %v4604 = vpop.f32.mrf.mxu0
      %v4605 = vadd.f32 0.0, %v4604
      %4606 = vmatmul.f32.gmra.mxu0 %v4396
      %v4607 = vpop.f32.mrf.mxu0
      %v4608 = vadd.f32 0.0, %v4607
      %4609 = vmatmul.f32.gmra.mxu0 %v4399
      %v4610 = vpop.f32.mrf.mxu0
      %v4611 = vadd.f32 0.0, %v4610
      %4612 = vmatmul.f32.gmra.mxu0 %v4402
      %v4613 = vpop.f32.mrf.mxu0
      %v4614 = vadd.f32 0.0, %v4613
      %4615 = vmatmul.f32.gmra.mxu0 %v4405
      %v4616 = vpop.f32.mrf.mxu0
      %v4617 = vadd.f32 0.0, %v4616
      %4618 = vmatmul.f32.gmra.mxu0 %v4408
      %v4619 = vpop.f32.mrf.mxu0
      %v4620 = vadd.f32 0.0, %v4619
      %4621 = vdwg.mxu0
      %v4622 = vadd.f32 %v4086, %v4431
      %v4623 = vadd.f32 %v4087, %v4434
      %v4624 = vadd.f32 %v4088, %v4437
      %v4625 = vadd.f32 %v4089, %v4440
      %v4626 = vadd.f32 %v4090, %v4443
      %v4627 = vadd.f32 %v4091, %v4446
      %v4628 = vadd.f32 %v4092, %v4449
      %v4629 = vadd.f32 %v4093, %v4452
      %v4630 = vadd.f32 %v4094, %v4455
      %v4631 = vadd.f32 %v4095, %v4458
      %v4632 = vadd.f32 %v4096, %v4461
      %v4633 = vadd.f32 %v4097, %v4464
      %v4634 = vadd.f32 %v4098, %v4467
      %v4635 = vadd.f32 %v4099, %v4470
      %v4636 = vadd.f32 %v4100, %v4473
      %v4637 = vadd.f32 %v4101, %v4476
      %v4638 = vadd.f32 %v4102, %v4479
      %v4639 = vadd.f32 %v4103, %v4482
      %v4640 = vadd.f32 %v4104, %v4485
      %v4641 = vadd.f32 %v4105, %v4488
      %v4642 = vadd.f32 %v4106, %v4491
      %v4643 = vadd.f32 %v4107, %v4494
      %v4644 = vadd.f32 %v4108, %v4497
      %v4645 = vadd.f32 %v4109, %v4500
      %v4646 = vadd.f32 %v4110, %v4503
      %v4647 = vadd.f32 %v4111, %v4506
      %v4648 = vadd.f32 %v4112, %v4509
      %v4649 = vadd.f32 %v4113, %v4512
      %v4650 = vadd.f32 %v4114, %v4515
      %v4651 = vadd.f32 %v4115, %v4518
      %v4652 = vadd.f32 %v4116, %v4521
      %v4653 = vadd.f32 %v4117, %v4524
      %v4654 = vadd.f32 %v4118, %v4527
      %v4655 = vadd.f32 %v4119, %v4530
      %v4656 = vadd.f32 %v4120, %v4533
      %v4657 = vadd.f32 %v4121, %v4536
      %v4658 = vadd.f32 %v4122, %v4539
      %v4659 = vadd.f32 %v4123, %v4542
      %v4660 = vadd.f32 %v4124, %v4545
      %v4661 = vadd.f32 %v4125, %v4548
      %v4662 = vadd.f32 %v4126, %v4551
      %v4663 = vadd.f32 %v4127, %v4554
      %v4664 = vadd.f32 %v4128, %v4557
      %v4665 = vadd.f32 %v4129, %v4560
      %v4666 = vadd.f32 %v4130, %v4563
      %v4667 = vadd.f32 %v4131, %v4566
      %v4668 = vadd.f32 %v4132, %v4569
      %v4669 = vadd.f32 %v4133, %v4572
      %v4670 = vadd.f32 %v4134, %v4575
      %v4671 = vadd.f32 %v4135, %v4578
      %v4672 = vadd.f32 %v4136, %v4581
      %v4673 = vadd.f32 %v4137, %v4584
      %v4674 = vadd.f32 %v4138, %v4587
      %v4675 = vadd.f32 %v4139, %v4590
      %v4676 = vadd.f32 %v4140, %v4593
      %v4677 = vadd.f32 %v4141, %v4596
      %v4678 = vadd.f32 %v4142, %v4599
      %v4679 = vadd.f32 %v4143, %v4602
      %v4680 = vadd.f32 %v4144, %v4605
      %v4681 = vadd.f32 %v4145, %v4608
      %v4682 = vadd.f32 %v4146, %v4611
      %v4683 = vadd.f32 %v4147, %v4614
      %v4684 = vadd.f32 %v4148, %v4617
      %v4685 = vadd.f32 %v4149, %v4620
      %s4686 = sadd.s32 %s521, 38
      %s4687 = scalar_lea.vmem [#allocation2], %s4686
      %v4688 = vld [vmem:[%s4687] sm:$0xff]
      %v4689 = vld [vmem:[%s4687 + $0x8] sm:$0xff]
      %v4690 = vld [vmem:[%s4687 + $0x10] sm:$0xff]
      %v4691 = vld [vmem:[%s4687 + $0x18] sm:$0xff]
      %v4692 = vld [vmem:[%s4687 + $0x20] sm:$0xff]
      %v4693 = vld [vmem:[%s4687 + $0x28] sm:$0xff]
      %v4694 = vld [vmem:[%s4687 + $0x30] sm:$0xff]
      %v4695 = vld [vmem:[%s4687 + $0x38] sm:$0xff]
      %v4696 = vld [vmem:[%s4687 + $0x40] sm:$0xff]
      %v4697 = vld [vmem:[%s4687 + $0x48] sm:$0xff]
      %v4698 = vld [vmem:[%s4687 + $0x50] sm:$0xff]
      %v4699 = vld [vmem:[%s4687 + $0x58] sm:$0xff]
      %v4700 = vld [vmem:[%s4687 + $0x60] sm:$0xff]
      %v4701 = vld [vmem:[%s4687 + $0x68] sm:$0xff]
      %v4702 = vld [vmem:[%s4687 + $0x70] sm:$0xff]
      %v4703 = vld [vmem:[%s4687 + $0x78] sm:$0xff]
      %v4704 = vld [vmem:[%s4687 + $0x80] sm:$0xff]
      %v4705 = vld [vmem:[%s4687 + $0x88] sm:$0xff]
      %v4706 = vld [vmem:[%s4687 + $0x90] sm:$0xff]
      %v4707 = vld [vmem:[%s4687 + $0x98] sm:$0xff]
      %v4708 = vld [vmem:[%s4687 + $0xa0] sm:$0xff]
      %v4709 = vld [vmem:[%s4687 + $0xa8] sm:$0xff]
      %v4710 = vld [vmem:[%s4687 + $0xb0] sm:$0xff]
      %v4711 = vld [vmem:[%s4687 + $0xb8] sm:$0xff]
      %v4712 = vld [vmem:[%s4687 + $0xc0] sm:$0xff]
      %v4713 = vld [vmem:[%s4687 + $0xc8] sm:$0xff]
      %v4714 = vld [vmem:[%s4687 + $0xd0] sm:$0xff]
      %v4715 = vld [vmem:[%s4687 + $0xd8] sm:$0xff]
      %v4716 = vld [vmem:[%s4687 + $0xe0] sm:$0xff]
      %v4717 = vld [vmem:[%s4687 + $0xe8] sm:$0xff]
      %v4718 = vld [vmem:[%s4687 + $0xf0] sm:$0xff]
      %v4719 = vld [vmem:[%s4687 + $0xf8] sm:$0xff]
      %v4720 = vld [vmem:[%s4687 + $0x100] sm:$0xff]
      %v4721 = vld [vmem:[%s4687 + $0x108] sm:$0xff]
      %v4722 = vld [vmem:[%s4687 + $0x110] sm:$0xff]
      %v4723 = vld [vmem:[%s4687 + $0x118] sm:$0xff]
      %v4724 = vld [vmem:[%s4687 + $0x120] sm:$0xff]
      %v4725 = vld [vmem:[%s4687 + $0x128] sm:$0xff]
      %v4726 = vld [vmem:[%s4687 + $0x130] sm:$0xff]
      %v4727 = vld [vmem:[%s4687 + $0x138] sm:$0xff]
      %v4728 = vld [vmem:[%s4687 + $0x140] sm:$0xff]
      %v4729 = vld [vmem:[%s4687 + $0x148] sm:$0xff]
      %v4730 = vld [vmem:[%s4687 + $0x150] sm:$0xff]
      %v4731 = vld [vmem:[%s4687 + $0x158] sm:$0xff]
      %v4732 = vld [vmem:[%s4687 + $0x160] sm:$0xff]
      %v4733 = vld [vmem:[%s4687 + $0x168] sm:$0xff]
      %v4734 = vld [vmem:[%s4687 + $0x170] sm:$0xff]
      %v4735 = vld [vmem:[%s4687 + $0x178] sm:$0xff]
      %v4736 = vld [vmem:[%s4687 + $0x180] sm:$0xff]
      %v4737 = vld [vmem:[%s4687 + $0x188] sm:$0xff]
      %v4738 = vld [vmem:[%s4687 + $0x190] sm:$0xff]
      %v4739 = vld [vmem:[%s4687 + $0x198] sm:$0xff]
      %v4740 = vld [vmem:[%s4687 + $0x1a0] sm:$0xff]
      %v4741 = vld [vmem:[%s4687 + $0x1a8] sm:$0xff]
      %v4742 = vld [vmem:[%s4687 + $0x1b0] sm:$0xff]
      %v4743 = vld [vmem:[%s4687 + $0x1b8] sm:$0xff]
      %v4744 = vld [vmem:[%s4687 + $0x1c0] sm:$0xff]
      %v4745 = vld [vmem:[%s4687 + $0x1c8] sm:$0xff]
      %v4746 = vld [vmem:[%s4687 + $0x1d0] sm:$0xff]
      %v4747 = vld [vmem:[%s4687 + $0x1d8] sm:$0xff]
      %v4748 = vld [vmem:[%s4687 + $0x1e0] sm:$0xff]
      %v4749 = vld [vmem:[%s4687 + $0x1e8] sm:$0xff]
      %v4750 = vld [vmem:[%s4687 + $0x1f0] sm:$0xff]
      %v4751 = vld [vmem:[%s4687 + $0x1f8] sm:$0xff]
      %s4752 = scalar_lea.vmem %s1, 32
      %v4753 = vld [vmem:[%s4752] sm:$0xf]
      %v4755 = vsel %vm660, %v4688, 0
      %v4758 = vsel %vm660, %v4689, 0
      %v4761 = vsel %vm660, %v4690, 0
      %v4764 = vsel %vm660, %v4691, 0
      %v4767 = vsel %vm660, %v4692, 0
      %v4770 = vsel %vm660, %v4693, 0
      %v4773 = vsel %vm660, %v4694, 0
      %v4776 = vsel %vm660, %v4695, 0
      %v4779 = vsel %vm660, %v4696, 0
      %v4782 = vsel %vm660, %v4697, 0
      %v4785 = vsel %vm660, %v4698, 0
      %v4788 = vsel %vm660, %v4699, 0
      %v4791 = vsel %vm660, %v4700, 0
      %v4794 = vsel %vm660, %v4701, 0
      %v4797 = vsel %vm660, %v4702, 0
      %v4800 = vsel %vm660, %v4703, 0
      %v4803 = vsel %vm660, %v4704, 0
      %v4806 = vsel %vm660, %v4705, 0
      %v4809 = vsel %vm660, %v4706, 0
      %v4812 = vsel %vm660, %v4707, 0
      %v4815 = vsel %vm660, %v4708, 0
      %v4818 = vsel %vm660, %v4709, 0
      %v4821 = vsel %vm660, %v4710, 0
      %v4824 = vsel %vm660, %v4711, 0
      %v4827 = vsel %vm660, %v4712, 0
      %v4830 = vsel %vm660, %v4713, 0
      %v4833 = vsel %vm660, %v4714, 0
      %v4836 = vsel %vm660, %v4715, 0
      %v4839 = vsel %vm660, %v4716, 0
      %v4842 = vsel %vm660, %v4717, 0
      %v4845 = vsel %vm660, %v4718, 0
      %v4848 = vsel %vm660, %v4719, 0
      %v4851 = vsel %vm660, %v4720, 0
      %v4854 = vsel %vm660, %v4721, 0
      %v4857 = vsel %vm660, %v4722, 0
      %v4860 = vsel %vm660, %v4723, 0
      %v4863 = vsel %vm660, %v4724, 0
      %v4866 = vsel %vm660, %v4725, 0
      %v4869 = vsel %vm660, %v4726, 0
      %v4872 = vsel %vm660, %v4727, 0
      %v4875 = vsel %vm660, %v4728, 0
      %v4878 = vsel %vm660, %v4729, 0
      %v4881 = vsel %vm660, %v4730, 0
      %v4884 = vsel %vm660, %v4731, 0
      %v4887 = vsel %vm660, %v4732, 0
      %v4890 = vsel %vm660, %v4733, 0
      %v4893 = vsel %vm660, %v4734, 0
      %v4896 = vsel %vm660, %v4735, 0
      %v4899 = vsel %vm660, %v4736, 0
      %v4902 = vsel %vm660, %v4737, 0
      %v4905 = vsel %vm660, %v4738, 0
      %v4908 = vsel %vm660, %v4739, 0
      %v4911 = vsel %vm660, %v4740, 0
      %v4914 = vsel %vm660, %v4741, 0
      %v4917 = vsel %vm660, %v4742, 0
      %v4920 = vsel %vm660, %v4743, 0
      %v4923 = vsel %vm660, %v4744, 0
      %v4926 = vsel %vm660, %v4745, 0
      %v4929 = vsel %vm660, %v4746, 0
      %v4932 = vsel %vm660, %v4747, 0
      %v4935 = vsel %vm660, %v4748, 0
      %v4938 = vsel %vm660, %v4749, 0
      %v4941 = vsel %vm660, %v4750, 0
      %v4944 = vsel %vm660, %v4751, 0
      %v4947 = vsel %vm853, %v4753, 0
      %4949 = vmatpush.msra.mxu0 0.0
      %4950 = vmatpush.msra.mxu0 0.0
      %4951 = vmatpush.msra.mxu0 0.0
      %4952 = vmatpush.msra.mxu0 0.0
      %4953 = vmatpush.msra.mxu0 0.0
      %4954 = vmatpush.msra.mxu0 0.0
      %4955 = vmatpush.msra.mxu0 0.0
      %4956 = vmatpush.msra.mxu0 0.0
      %4957 = vmatpush.msra.mxu0 0.0
      %4958 = vmatpush.msra.mxu0 0.0
      %4959 = vmatpush.msra.mxu0 0.0
      %4960 = vmatpush.msra.mxu0 0.0
      %4961 = vmatpush.msra.mxu0 0.0
      %4962 = vmatpush.msra.mxu0 0.0
      %4963 = vmatpush.msra.mxu0 0.0
      %4964 = vmatpush.msra.mxu0 %v4947
      %4965 = vmatmul.f32.gmra.mxu0 %v4755
      %v4966 = vpop.f32.mrf.mxu0
      %v4967 = vadd.f32 0.0, %v4966
      %4968 = vmatmul.f32.gmra.mxu0 %v4758
      %v4969 = vpop.f32.mrf.mxu0
      %v4970 = vadd.f32 0.0, %v4969
      %4971 = vmatmul.f32.gmra.mxu0 %v4761
      %v4972 = vpop.f32.mrf.mxu0
      %v4973 = vadd.f32 0.0, %v4972
      %4974 = vmatmul.f32.gmra.mxu0 %v4764
      %v4975 = vpop.f32.mrf.mxu0
      %v4976 = vadd.f32 0.0, %v4975
      %4977 = vmatmul.f32.gmra.mxu0 %v4767
      %v4978 = vpop.f32.mrf.mxu0
      %v4979 = vadd.f32 0.0, %v4978
      %4980 = vmatmul.f32.gmra.mxu0 %v4770
      %v4981 = vpop.f32.mrf.mxu0
      %v4982 = vadd.f32 0.0, %v4981
      %4983 = vmatmul.f32.gmra.mxu0 %v4773
      %v4984 = vpop.f32.mrf.mxu0
      %v4985 = vadd.f32 0.0, %v4984
      %4986 = vmatmul.f32.gmra.mxu0 %v4776
      %v4987 = vpop.f32.mrf.mxu0
      %v4988 = vadd.f32 0.0, %v4987
      %4989 = vmatmul.f32.gmra.mxu0 %v4779
      %v4990 = vpop.f32.mrf.mxu0
      %v4991 = vadd.f32 0.0, %v4990
      %4992 = vmatmul.f32.gmra.mxu0 %v4782
      %v4993 = vpop.f32.mrf.mxu0
      %v4994 = vadd.f32 0.0, %v4993
      %4995 = vmatmul.f32.gmra.mxu0 %v4785
      %v4996 = vpop.f32.mrf.mxu0
      %v4997 = vadd.f32 0.0, %v4996
      %4998 = vmatmul.f32.gmra.mxu0 %v4788
      %v4999 = vpop.f32.mrf.mxu0
      %v5000 = vadd.f32 0.0, %v4999
      %5001 = vmatmul.f32.gmra.mxu0 %v4791
      %v5002 = vpop.f32.mrf.mxu0
      %v5003 = vadd.f32 0.0, %v5002
      %5004 = vmatmul.f32.gmra.mxu0 %v4794
      %v5005 = vpop.f32.mrf.mxu0
      %v5006 = vadd.f32 0.0, %v5005
      %5007 = vmatmul.f32.gmra.mxu0 %v4797
      %v5008 = vpop.f32.mrf.mxu0
      %v5009 = vadd.f32 0.0, %v5008
      %5010 = vmatmul.f32.gmra.mxu0 %v4800
      %v5011 = vpop.f32.mrf.mxu0
      %v5012 = vadd.f32 0.0, %v5011
      %5013 = vmatmul.f32.gmra.mxu0 %v4803
      %v5014 = vpop.f32.mrf.mxu0
      %v5015 = vadd.f32 0.0, %v5014
      %5016 = vmatmul.f32.gmra.mxu0 %v4806
      %v5017 = vpop.f32.mrf.mxu0
      %v5018 = vadd.f32 0.0, %v5017
      %5019 = vmatmul.f32.gmra.mxu0 %v4809
      %v5020 = vpop.f32.mrf.mxu0
      %v5021 = vadd.f32 0.0, %v5020
      %5022 = vmatmul.f32.gmra.mxu0 %v4812
      %v5023 = vpop.f32.mrf.mxu0
      %v5024 = vadd.f32 0.0, %v5023
      %5025 = vmatmul.f32.gmra.mxu0 %v4815
      %v5026 = vpop.f32.mrf.mxu0
      %v5027 = vadd.f32 0.0, %v5026
      %5028 = vmatmul.f32.gmra.mxu0 %v4818
      %v5029 = vpop.f32.mrf.mxu0
      %v5030 = vadd.f32 0.0, %v5029
      %5031 = vmatmul.f32.gmra.mxu0 %v4821
      %v5032 = vpop.f32.mrf.mxu0
      %v5033 = vadd.f32 0.0, %v5032
      %5034 = vmatmul.f32.gmra.mxu0 %v4824
      %v5035 = vpop.f32.mrf.mxu0
      %v5036 = vadd.f32 0.0, %v5035
      %5037 = vmatmul.f32.gmra.mxu0 %v4827
      %v5038 = vpop.f32.mrf.mxu0
      %v5039 = vadd.f32 0.0, %v5038
      %5040 = vmatmul.f32.gmra.mxu0 %v4830
      %v5041 = vpop.f32.mrf.mxu0
      %v5042 = vadd.f32 0.0, %v5041
      %5043 = vmatmul.f32.gmra.mxu0 %v4833
      %v5044 = vpop.f32.mrf.mxu0
      %v5045 = vadd.f32 0.0, %v5044
      %5046 = vmatmul.f32.gmra.mxu0 %v4836
      %v5047 = vpop.f32.mrf.mxu0
      %v5048 = vadd.f32 0.0, %v5047
      %5049 = vmatmul.f32.gmra.mxu0 %v4839
      %v5050 = vpop.f32.mrf.mxu0
      %v5051 = vadd.f32 0.0, %v5050
      %5052 = vmatmul.f32.gmra.mxu0 %v4842
      %v5053 = vpop.f32.mrf.mxu0
      %v5054 = vadd.f32 0.0, %v5053
      %5055 = vmatmul.f32.gmra.mxu0 %v4845
      %v5056 = vpop.f32.mrf.mxu0
      %v5057 = vadd.f32 0.0, %v5056
      %5058 = vmatmul.f32.gmra.mxu0 %v4848
      %v5059 = vpop.f32.mrf.mxu0
      %v5060 = vadd.f32 0.0, %v5059
      %5061 = vmatmul.f32.gmra.mxu0 %v4851
      %v5062 = vpop.f32.mrf.mxu0
      %v5063 = vadd.f32 0.0, %v5062
      %5064 = vmatmul.f32.gmra.mxu0 %v4854
      %v5065 = vpop.f32.mrf.mxu0
      %v5066 = vadd.f32 0.0, %v5065
      %5067 = vmatmul.f32.gmra.mxu0 %v4857
      %v5068 = vpop.f32.mrf.mxu0
      %v5069 = vadd.f32 0.0, %v5068
      %5070 = vmatmul.f32.gmra.mxu0 %v4860
      %v5071 = vpop.f32.mrf.mxu0
      %v5072 = vadd.f32 0.0, %v5071
      %5073 = vmatmul.f32.gmra.mxu0 %v4863
      %v5074 = vpop.f32.mrf.mxu0
      %v5075 = vadd.f32 0.0, %v5074
      %5076 = vmatmul.f32.gmra.mxu0 %v4866
      %v5077 = vpop.f32.mrf.mxu0
      %v5078 = vadd.f32 0.0, %v5077
      %5079 = vmatmul.f32.gmra.mxu0 %v4869
      %v5080 = vpop.f32.mrf.mxu0
      %v5081 = vadd.f32 0.0, %v5080
      %5082 = vmatmul.f32.gmra.mxu0 %v4872
      %v5083 = vpop.f32.mrf.mxu0
      %v5084 = vadd.f32 0.0, %v5083
      %5085 = vmatmul.f32.gmra.mxu0 %v4875
      %v5086 = vpop.f32.mrf.mxu0
      %v5087 = vadd.f32 0.0, %v5086
      %5088 = vmatmul.f32.gmra.mxu0 %v4878
      %v5089 = vpop.f32.mrf.mxu0
      %v5090 = vadd.f32 0.0, %v5089
      %5091 = vmatmul.f32.gmra.mxu0 %v4881
      %v5092 = vpop.f32.mrf.mxu0
      %v5093 = vadd.f32 0.0, %v5092
      %5094 = vmatmul.f32.gmra.mxu0 %v4884
      %v5095 = vpop.f32.mrf.mxu0
      %v5096 = vadd.f32 0.0, %v5095
      %5097 = vmatmul.f32.gmra.mxu0 %v4887
      %v5098 = vpop.f32.mrf.mxu0
      %v5099 = vadd.f32 0.0, %v5098
      %5100 = vmatmul.f32.gmra.mxu0 %v4890
      %v5101 = vpop.f32.mrf.mxu0
      %v5102 = vadd.f32 0.0, %v5101
      %5103 = vmatmul.f32.gmra.mxu0 %v4893
      %v5104 = vpop.f32.mrf.mxu0
      %v5105 = vadd.f32 0.0, %v5104
      %5106 = vmatmul.f32.gmra.mxu0 %v4896
      %v5107 = vpop.f32.mrf.mxu0
      %v5108 = vadd.f32 0.0, %v5107
      %5109 = vmatmul.f32.gmra.mxu0 %v4899
      %v5110 = vpop.f32.mrf.mxu0
      %v5111 = vadd.f32 0.0, %v5110
      %5112 = vmatmul.f32.gmra.mxu0 %v4902
      %v5113 = vpop.f32.mrf.mxu0
      %v5114 = vadd.f32 0.0, %v5113
      %5115 = vmatmul.f32.gmra.mxu0 %v4905
      %v5116 = vpop.f32.mrf.mxu0
      %v5117 = vadd.f32 0.0, %v5116
      %5118 = vmatmul.f32.gmra.mxu0 %v4908
      %v5119 = vpop.f32.mrf.mxu0
      %v5120 = vadd.f32 0.0, %v5119
      %5121 = vmatmul.f32.gmra.mxu0 %v4911
      %v5122 = vpop.f32.mrf.mxu0
      %v5123 = vadd.f32 0.0, %v5122
      %5124 = vmatmul.f32.gmra.mxu0 %v4914
      %v5125 = vpop.f32.mrf.mxu0
      %v5126 = vadd.f32 0.0, %v5125
      %5127 = vmatmul.f32.gmra.mxu0 %v4917
      %v5128 = vpop.f32.mrf.mxu0
      %v5129 = vadd.f32 0.0, %v5128
      %5130 = vmatmul.f32.gmra.mxu0 %v4920
      %v5131 = vpop.f32.mrf.mxu0
      %v5132 = vadd.f32 0.0, %v5131
      %5133 = vmatmul.f32.gmra.mxu0 %v4923
      %v5134 = vpop.f32.mrf.mxu0
      %v5135 = vadd.f32 0.0, %v5134
      %5136 = vmatmul.f32.gmra.mxu0 %v4926
      %v5137 = vpop.f32.mrf.mxu0
      %v5138 = vadd.f32 0.0, %v5137
      %5139 = vmatmul.f32.gmra.mxu0 %v4929
      %v5140 = vpop.f32.mrf.mxu0
      %v5141 = vadd.f32 0.0, %v5140
      %5142 = vmatmul.f32.gmra.mxu0 %v4932
      %v5143 = vpop.f32.mrf.mxu0
      %v5144 = vadd.f32 0.0, %v5143
      %5145 = vmatmul.f32.gmra.mxu0 %v4935
      %v5146 = vpop.f32.mrf.mxu0
      %v5147 = vadd.f32 0.0, %v5146
      %5148 = vmatmul.f32.gmra.mxu0 %v4938
      %v5149 = vpop.f32.mrf.mxu0
      %v5150 = vadd.f32 0.0, %v5149
      %5151 = vmatmul.f32.gmra.mxu0 %v4941
      %v5152 = vpop.f32.mrf.mxu0
      %v5153 = vadd.f32 0.0, %v5152
      %5154 = vmatmul.f32.gmra.mxu0 %v4944
      %v5155 = vpop.f32.mrf.mxu0
      %v5156 = vadd.f32 0.0, %v5155
      %5157 = vdwg.mxu0
      %v5158 = vadd.f32 %v4622, %v4967
      %v5159 = vadd.f32 %v4623, %v4970
      %v5160 = vadd.f32 %v4624, %v4973
      %v5161 = vadd.f32 %v4625, %v4976
      %v5162 = vadd.f32 %v4626, %v4979
      %v5163 = vadd.f32 %v4627, %v4982
      %v5164 = vadd.f32 %v4628, %v4985
      %v5165 = vadd.f32 %v4629, %v4988
      %v5166 = vadd.f32 %v4630, %v4991
      %v5167 = vadd.f32 %v4631, %v4994
      %v5168 = vadd.f32 %v4632, %v4997
      %v5169 = vadd.f32 %v4633, %v5000
      %v5170 = vadd.f32 %v4634, %v5003
      %v5171 = vadd.f32 %v4635, %v5006
      %v5172 = vadd.f32 %v4636, %v5009
      %v5173 = vadd.f32 %v4637, %v5012
      %v5174 = vadd.f32 %v4638, %v5015
      %v5175 = vadd.f32 %v4639, %v5018
      %v5176 = vadd.f32 %v4640, %v5021
      %v5177 = vadd.f32 %v4641, %v5024
      %v5178 = vadd.f32 %v4642, %v5027
      %v5179 = vadd.f32 %v4643, %v5030
      %v5180 = vadd.f32 %v4644, %v5033
      %v5181 = vadd.f32 %v4645, %v5036
      %v5182 = vadd.f32 %v4646, %v5039
      %v5183 = vadd.f32 %v4647, %v5042
      %v5184 = vadd.f32 %v4648, %v5045
      %v5185 = vadd.f32 %v4649, %v5048
      %v5186 = vadd.f32 %v4650, %v5051
      %v5187 = vadd.f32 %v4651, %v5054
      %v5188 = vadd.f32 %v4652, %v5057
      %v5189 = vadd.f32 %v4653, %v5060
      %v5190 = vadd.f32 %v4654, %v5063
      %v5191 = vadd.f32 %v4655, %v5066
      %v5192 = vadd.f32 %v4656, %v5069
      %v5193 = vadd.f32 %v4657, %v5072
      %v5194 = vadd.f32 %v4658, %v5075
      %v5195 = vadd.f32 %v4659, %v5078
      %v5196 = vadd.f32 %v4660, %v5081
      %v5197 = vadd.f32 %v4661, %v5084
      %v5198 = vadd.f32 %v4662, %v5087
      %v5199 = vadd.f32 %v4663, %v5090
      %v5200 = vadd.f32 %v4664, %v5093
      %v5201 = vadd.f32 %v4665, %v5096
      %v5202 = vadd.f32 %v4666, %v5099
      %v5203 = vadd.f32 %v4667, %v5102
      %v5204 = vadd.f32 %v4668, %v5105
      %v5205 = vadd.f32 %v4669, %v5108
      %v5206 = vadd.f32 %v4670, %v5111
      %v5207 = vadd.f32 %v4671, %v5114
      %v5208 = vadd.f32 %v4672, %v5117
      %v5209 = vadd.f32 %v4673, %v5120
      %v5210 = vadd.f32 %v4674, %v5123
      %v5211 = vadd.f32 %v4675, %v5126
      %v5212 = vadd.f32 %v4676, %v5129
      %v5213 = vadd.f32 %v4677, %v5132
      %v5214 = vadd.f32 %v4678, %v5135
      %v5215 = vadd.f32 %v4679, %v5138
      %v5216 = vadd.f32 %v4680, %v5141
      %v5217 = vadd.f32 %v4681, %v5144
      %v5218 = vadd.f32 %v4682, %v5147
      %v5219 = vadd.f32 %v4683, %v5150
      %v5220 = vadd.f32 %v4684, %v5153
      %v5221 = vadd.f32 %v4685, %v5156
      %v5222 = vld [vmem:[%s2] sm:$0x1]
      %v5224 = vperm.slane %v5222, 0
      %v5226 = vadd.f32 %v5158, %v5224
      %v5227 = vadd.f32 %v5159, %v5224
      %v5228 = vadd.f32 %v5160, %v5224
      %v5229 = vadd.f32 %v5161, %v5224
      %v5230 = vadd.f32 %v5162, %v5224
      %v5231 = vadd.f32 %v5163, %v5224
      %v5232 = vadd.f32 %v5164, %v5224
      %v5233 = vadd.f32 %v5165, %v5224
      %v5234 = vadd.f32 %v5166, %v5224
      %v5235 = vadd.f32 %v5167, %v5224
      %v5236 = vadd.f32 %v5168, %v5224
      %v5237 = vadd.f32 %v5169, %v5224
      %v5238 = vadd.f32 %v5170, %v5224
      %v5239 = vadd.f32 %v5171, %v5224
      %v5240 = vadd.f32 %v5172, %v5224
      %v5241 = vadd.f32 %v5173, %v5224
      %v5242 = vadd.f32 %v5174, %v5224
      %v5243 = vadd.f32 %v5175, %v5224
      %v5244 = vadd.f32 %v5176, %v5224
      %v5245 = vadd.f32 %v5177, %v5224
      %v5246 = vadd.f32 %v5178, %v5224
      %v5247 = vadd.f32 %v5179, %v5224
      %v5248 = vadd.f32 %v5180, %v5224
      %v5249 = vadd.f32 %v5181, %v5224
      %v5250 = vadd.f32 %v5182, %v5224
      %v5251 = vadd.f32 %v5183, %v5224
      %v5252 = vadd.f32 %v5184, %v5224
      %v5253 = vadd.f32 %v5185, %v5224
      %v5254 = vadd.f32 %v5186, %v5224
      %v5255 = vadd.f32 %v5187, %v5224
      %v5256 = vadd.f32 %v5188, %v5224
      %v5257 = vadd.f32 %v5189, %v5224
      %v5258 = vadd.f32 %v5190, %v5224
      %v5259 = vadd.f32 %v5191, %v5224
      %v5260 = vadd.f32 %v5192, %v5224
      %v5261 = vadd.f32 %v5193, %v5224
      %v5262 = vadd.f32 %v5194, %v5224
      %v5263 = vadd.f32 %v5195, %v5224
      %v5264 = vadd.f32 %v5196, %v5224
      %v5265 = vadd.f32 %v5197, %v5224
      %v5266 = vadd.f32 %v5198, %v5224
      %v5267 = vadd.f32 %v5199, %v5224
      %v5268 = vadd.f32 %v5200, %v5224
      %v5269 = vadd.f32 %v5201, %v5224
      %v5270 = vadd.f32 %v5202, %v5224
      %v5271 = vadd.f32 %v5203, %v5224
      %v5272 = vadd.f32 %v5204, %v5224
      %v5273 = vadd.f32 %v5205, %v5224
      %v5274 = vadd.f32 %v5206, %v5224
      %v5275 = vadd.f32 %v5207, %v5224
      %v5276 = vadd.f32 %v5208, %v5224
      %v5277 = vadd.f32 %v5209, %v5224
      %v5278 = vadd.f32 %v5210, %v5224
      %v5279 = vadd.f32 %v5211, %v5224
      %v5280 = vadd.f32 %v5212, %v5224
      %v5281 = vadd.f32 %v5213, %v5224
      %v5282 = vadd.f32 %v5214, %v5224
      %v5283 = vadd.f32 %v5215, %v5224
      %v5284 = vadd.f32 %v5216, %v5224
      %v5285 = vadd.f32 %v5217, %v5224
      %v5286 = vadd.f32 %v5218, %v5224
      %v5287 = vadd.f32 %v5219, %v5224
      %v5288 = vadd.f32 %v5220, %v5224
      %v5289 = vadd.f32 %v5221, %v5224
      %v5290 = vmax.f32 %v5226, 0.0
      %v5291 = vmax.f32 %v5227, 0.0
      %v5292 = vmax.f32 %v5228, 0.0
      %v5293 = vmax.f32 %v5229, 0.0
      %v5294 = vmax.f32 %v5230, 0.0
      %v5295 = vmax.f32 %v5231, 0.0
      %v5296 = vmax.f32 %v5232, 0.0
      %v5297 = vmax.f32 %v5233, 0.0
      %v5298 = vmax.f32 %v5234, 0.0
      %v5299 = vmax.f32 %v5235, 0.0
      %v5300 = vmax.f32 %v5236, 0.0
      %v5301 = vmax.f32 %v5237, 0.0
      %v5302 = vmax.f32 %v5238, 0.0
      %v5303 = vmax.f32 %v5239, 0.0
      %v5304 = vmax.f32 %v5240, 0.0
      %v5305 = vmax.f32 %v5241, 0.0
      %v5306 = vmax.f32 %v5242, 0.0
      %v5307 = vmax.f32 %v5243, 0.0
      %v5308 = vmax.f32 %v5244, 0.0
      %v5309 = vmax.f32 %v5245, 0.0
      %v5310 = vmax.f32 %v5246, 0.0
      %v5311 = vmax.f32 %v5247, 0.0
      %v5312 = vmax.f32 %v5248, 0.0
      %v5313 = vmax.f32 %v5249, 0.0
      %v5314 = vmax.f32 %v5250, 0.0
      %v5315 = vmax.f32 %v5251, 0.0
      %v5316 = vmax.f32 %v5252, 0.0
      %v5317 = vmax.f32 %v5253, 0.0
      %v5318 = vmax.f32 %v5254, 0.0
      %v5319 = vmax.f32 %v5255, 0.0
      %v5320 = vmax.f32 %v5256, 0.0
      %v5321 = vmax.f32 %v5257, 0.0
      %v5322 = vmax.f32 %v5258, 0.0
      %v5323 = vmax.f32 %v5259, 0.0
      %v5324 = vmax.f32 %v5260, 0.0
      %v5325 = vmax.f32 %v5261, 0.0
      %v5326 = vmax.f32 %v5262, 0.0
      %v5327 = vmax.f32 %v5263, 0.0
      %v5328 = vmax.f32 %v5264, 0.0
      %v5329 = vmax.f32 %v5265, 0.0
      %v5330 = vmax.f32 %v5266, 0.0
      %v5331 = vmax.f32 %v5267, 0.0
      %v5332 = vmax.f32 %v5268, 0.0
      %v5333 = vmax.f32 %v5269, 0.0
      %v5334 = vmax.f32 %v5270, 0.0
      %v5335 = vmax.f32 %v5271, 0.0
      %v5336 = vmax.f32 %v5272, 0.0
      %v5337 = vmax.f32 %v5273, 0.0
      %v5338 = vmax.f32 %v5274, 0.0
      %v5339 = vmax.f32 %v5275, 0.0
      %v5340 = vmax.f32 %v5276, 0.0
      %v5341 = vmax.f32 %v5277, 0.0
      %v5342 = vmax.f32 %v5278, 0.0
      %v5343 = vmax.f32 %v5279, 0.0
      %v5344 = vmax.f32 %v5280, 0.0
      %v5345 = vmax.f32 %v5281, 0.0
      %v5346 = vmax.f32 %v5282, 0.0
      %v5347 = vmax.f32 %v5283, 0.0
      %v5348 = vmax.f32 %v5284, 0.0
      %v5349 = vmax.f32 %v5285, 0.0
      %v5350 = vmax.f32 %v5286, 0.0
      %v5351 = vmax.f32 %v5287, 0.0
      %v5352 = vmax.f32 %v5288, 0.0
      %v5353 = vmax.f32 %v5289, 0.0
      %v5354 = vld [vmem:[%s3] sm:$0xff]
      %v5355 = vld [vmem:[%s3 + $0x8] sm:$0xff]
      %v5356 = vld [vmem:[%s3 + $0x10] sm:$0xff]
      %v5357 = vld [vmem:[%s3 + $0x18] sm:$0xff]
      %v5358 = vld [vmem:[%s4] sm:$0x1]
      %v5360 = vperm.slane %v5358, 0
      %vm5362 = vcmask 261120
      %v5364 = vsel %vm5362, %v5290, 0
      %v5367 = vsel %vm5362, %v5291, 0
      %v5370 = vsel %vm5362, %v5292, 0
      %v5373 = vsel %vm5362, %v5293, 0
      %v5376 = vsel %vm5362, %v5294, 0
      %v5379 = vsel %vm5362, %v5295, 0
      %v5382 = vsel %vm5362, %v5296, 0
      %v5385 = vsel %vm5362, %v5297, 0
      %v5388 = vsel %vm5362, %v5298, 0
      %v5391 = vsel %vm5362, %v5299, 0
      %v5394 = vsel %vm5362, %v5300, 0
      %v5397 = vsel %vm5362, %v5301, 0
      %v5400 = vsel %vm5362, %v5302, 0
      %v5403 = vsel %vm5362, %v5303, 0
      %v5406 = vsel %vm5362, %v5304, 0
      %v5409 = vsel %vm5362, %v5305, 0
      %v5412 = vsel %vm5362, %v5306, 0
      %v5415 = vsel %vm5362, %v5307, 0
      %v5418 = vsel %vm5362, %v5308, 0
      %v5421 = vsel %vm5362, %v5309, 0
      %v5424 = vsel %vm5362, %v5310, 0
      %v5427 = vsel %vm5362, %v5311, 0
      %v5430 = vsel %vm5362, %v5312, 0
      %v5433 = vsel %vm5362, %v5313, 0
      %v5436 = vsel %vm5362, %v5314, 0
      %v5439 = vsel %vm5362, %v5315, 0
      %v5442 = vsel %vm5362, %v5316, 0
      %v5445 = vsel %vm5362, %v5317, 0
      %v5448 = vsel %vm5362, %v5318, 0
      %v5451 = vsel %vm5362, %v5319, 0
      %v5454 = vsel %vm5362, %v5320, 0
      %v5457 = vsel %vm5362, %v5321, 0
      %v5460 = vsel %vm5362, %v5322, 0
      %v5463 = vsel %vm5362, %v5323, 0
      %v5466 = vsel %vm5362, %v5324, 0
      %v5469 = vsel %vm5362, %v5325, 0
      %v5472 = vsel %vm5362, %v5326, 0
      %v5475 = vsel %vm5362, %v5327, 0
      %v5478 = vsel %vm5362, %v5328, 0
      %v5481 = vsel %vm5362, %v5329, 0
      %v5484 = vsel %vm5362, %v5330, 0
      %v5487 = vsel %vm5362, %v5331, 0
      %v5490 = vsel %vm5362, %v5332, 0
      %v5493 = vsel %vm5362, %v5333, 0
      %v5496 = vsel %vm5362, %v5334, 0
      %v5499 = vsel %vm5362, %v5335, 0
      %v5502 = vsel %vm5362, %v5336, 0
      %v5505 = vsel %vm5362, %v5337, 0
      %v5508 = vsel %vm5362, %v5338, 0
      %v5511 = vsel %vm5362, %v5339, 0
      %v5514 = vsel %vm5362, %v5340, 0
      %v5517 = vsel %vm5362, %v5341, 0
      %v5520 = vsel %vm5362, %v5342, 0
      %v5523 = vsel %vm5362, %v5343, 0
      %v5526 = vsel %vm5362, %v5344, 0
      %v5529 = vsel %vm5362, %v5345, 0
      %v5532 = vsel %vm5362, %v5346, 0
      %v5535 = vsel %vm5362, %v5347, 0
      %v5538 = vsel %vm5362, %v5348, 0
      %v5541 = vsel %vm5362, %v5349, 0
      %v5544 = vsel %vm5362, %v5350, 0
      %v5547 = vsel %vm5362, %v5351, 0
      %v5550 = vsel %vm5362, %v5352, 0
      %v5553 = vsel %vm5362, %v5353, 0
      %5555 = vmatpush.msra.mxu0 0.0
      %5556 = vmatpush.msra.mxu0 0.0
      %5557 = vmatpush.msra.mxu0 0.0
      %5558 = vmatpush.msra.mxu0 0.0
      %5559 = vmatpush.msra.mxu0 0.0
      %5560 = vmatpush.msra.mxu0 0.0
      %5561 = vmatpush.msra.mxu0 0.0
      %5562 = vmatpush.msra.mxu0 0.0
      %5563 = vmatpush.msra.mxu0 0.0
      %5564 = vmatpush.msra.mxu0 0.0
      %5565 = vmatpush.msra.mxu0 0.0
      %5566 = vmatpush.msra.mxu0 0.0
      %5567 = vmatpush.msra.mxu0 %v5357
      %5568 = vmatpush.msra.mxu0 %v5356
      %5569 = vmatpush.msra.mxu0 %v5355
      %5570 = vmatpush.msra.mxu0 %v5354
      %5571 = vmatmul.f32.gmra.mxu0 %v5364
      %v5572 = vpop.f32.mrf.mxu0
      %v5573 = vadd.f32 %v5360, %v5572
      %5574 = vmatmul.f32.gmra.mxu0 %v5367
      %v5575 = vpop.f32.mrf.mxu0
      %v5576 = vadd.f32 %v5360, %v5575
      %5577 = vmatmul.f32.gmra.mxu0 %v5370
      %v5578 = vpop.f32.mrf.mxu0
      %v5579 = vadd.f32 %v5360, %v5578
      %5580 = vmatmul.f32.gmra.mxu0 %v5373
      %v5581 = vpop.f32.mrf.mxu0
      %v5582 = vadd.f32 %v5360, %v5581
      %5583 = vmatmul.f32.gmra.mxu0 %v5376
      %v5584 = vpop.f32.mrf.mxu0
      %v5585 = vadd.f32 %v5360, %v5584
      %5586 = vmatmul.f32.gmra.mxu0 %v5379
      %v5587 = vpop.f32.mrf.mxu0
      %v5588 = vadd.f32 %v5360, %v5587
      %5589 = vmatmul.f32.gmra.mxu0 %v5382
      %v5590 = vpop.f32.mrf.mxu0
      %v5591 = vadd.f32 %v5360, %v5590
      %5592 = vmatmul.f32.gmra.mxu0 %v5385
      %v5593 = vpop.f32.mrf.mxu0
      %v5594 = vadd.f32 %v5360, %v5593
      %5595 = vmatmul.f32.gmra.mxu0 %v5388
      %v5596 = vpop.f32.mrf.mxu0
      %v5597 = vadd.f32 %v5360, %v5596
      %5598 = vmatmul.f32.gmra.mxu0 %v5391
      %v5599 = vpop.f32.mrf.mxu0
      %v5600 = vadd.f32 %v5360, %v5599
      %5601 = vmatmul.f32.gmra.mxu0 %v5394
      %v5602 = vpop.f32.mrf.mxu0
      %v5603 = vadd.f32 %v5360, %v5602
      %5604 = vmatmul.f32.gmra.mxu0 %v5397
      %v5605 = vpop.f32.mrf.mxu0
      %v5606 = vadd.f32 %v5360, %v5605
      %5607 = vmatmul.f32.gmra.mxu0 %v5400
      %v5608 = vpop.f32.mrf.mxu0
      %v5609 = vadd.f32 %v5360, %v5608
      %5610 = vmatmul.f32.gmra.mxu0 %v5403
      %v5611 = vpop.f32.mrf.mxu0
      %v5612 = vadd.f32 %v5360, %v5611
      %5613 = vmatmul.f32.gmra.mxu0 %v5406
      %v5614 = vpop.f32.mrf.mxu0
      %v5615 = vadd.f32 %v5360, %v5614
      %5616 = vmatmul.f32.gmra.mxu0 %v5409
      %v5617 = vpop.f32.mrf.mxu0
      %v5618 = vadd.f32 %v5360, %v5617
      %5619 = vmatmul.f32.gmra.mxu0 %v5412
      %v5620 = vpop.f32.mrf.mxu0
      %v5621 = vadd.f32 %v5360, %v5620
      %5622 = vmatmul.f32.gmra.mxu0 %v5415
      %v5623 = vpop.f32.mrf.mxu0
      %v5624 = vadd.f32 %v5360, %v5623
      %5625 = vmatmul.f32.gmra.mxu0 %v5418
      %v5626 = vpop.f32.mrf.mxu0
      %v5627 = vadd.f32 %v5360, %v5626
      %5628 = vmatmul.f32.gmra.mxu0 %v5421
      %v5629 = vpop.f32.mrf.mxu0
      %v5630 = vadd.f32 %v5360, %v5629
      %5631 = vmatmul.f32.gmra.mxu0 %v5424
      %v5632 = vpop.f32.mrf.mxu0
      %v5633 = vadd.f32 %v5360, %v5632
      %5634 = vmatmul.f32.gmra.mxu0 %v5427
      %v5635 = vpop.f32.mrf.mxu0
      %v5636 = vadd.f32 %v5360, %v5635
      %5637 = vmatmul.f32.gmra.mxu0 %v5430
      %v5638 = vpop.f32.mrf.mxu0
      %v5639 = vadd.f32 %v5360, %v5638
      %5640 = vmatmul.f32.gmra.mxu0 %v5433
      %v5641 = vpop.f32.mrf.mxu0
      %v5642 = vadd.f32 %v5360, %v5641
      %5643 = vmatmul.f32.gmra.mxu0 %v5436
      %v5644 = vpop.f32.mrf.mxu0
      %v5645 = vadd.f32 %v5360, %v5644
      %5646 = vmatmul.f32.gmra.mxu0 %v5439
      %v5647 = vpop.f32.mrf.mxu0
      %v5648 = vadd.f32 %v5360, %v5647
      %5649 = vmatmul.f32.gmra.mxu0 %v5442
      %v5650 = vpop.f32.mrf.mxu0
      %v5651 = vadd.f32 %v5360, %v5650
      %5652 = vmatmul.f32.gmra.mxu0 %v5445
      %v5653 = vpop.f32.mrf.mxu0
      %v5654 = vadd.f32 %v5360, %v5653
      %5655 = vmatmul.f32.gmra.mxu0 %v5448
      %v5656 = vpop.f32.mrf.mxu0
      %v5657 = vadd.f32 %v5360, %v5656
      %5658 = vmatmul.f32.gmra.mxu0 %v5451
      %v5659 = vpop.f32.mrf.mxu0
      %v5660 = vadd.f32 %v5360, %v5659
      %5661 = vmatmul.f32.gmra.mxu0 %v5454
      %v5662 = vpop.f32.mrf.mxu0
      %v5663 = vadd.f32 %v5360, %v5662
      %5664 = vmatmul.f32.gmra.mxu0 %v5457
      %v5665 = vpop.f32.mrf.mxu0
      %v5666 = vadd.f32 %v5360, %v5665
      %5667 = vmatmul.f32.gmra.mxu0 %v5460
      %v5668 = vpop.f32.mrf.mxu0
      %v5669 = vadd.f32 %v5360, %v5668
      %5670 = vmatmul.f32.gmra.mxu0 %v5463
      %v5671 = vpop.f32.mrf.mxu0
      %v5672 = vadd.f32 %v5360, %v5671
      %5673 = vmatmul.f32.gmra.mxu0 %v5466
      %v5674 = vpop.f32.mrf.mxu0
      %v5675 = vadd.f32 %v5360, %v5674
      %5676 = vmatmul.f32.gmra.mxu0 %v5469
      %v5677 = vpop.f32.mrf.mxu0
      %v5678 = vadd.f32 %v5360, %v5677
      %5679 = vmatmul.f32.gmra.mxu0 %v5472
      %v5680 = vpop.f32.mrf.mxu0
      %v5681 = vadd.f32 %v5360, %v5680
      %5682 = vmatmul.f32.gmra.mxu0 %v5475
      %v5683 = vpop.f32.mrf.mxu0
      %v5684 = vadd.f32 %v5360, %v5683
      %5685 = vmatmul.f32.gmra.mxu0 %v5478
      %v5686 = vpop.f32.mrf.mxu0
      %v5687 = vadd.f32 %v5360, %v5686
      %5688 = vmatmul.f32.gmra.mxu0 %v5481
      %v5689 = vpop.f32.mrf.mxu0
      %v5690 = vadd.f32 %v5360, %v5689
      %5691 = vmatmul.f32.gmra.mxu0 %v5484
      %v5692 = vpop.f32.mrf.mxu0
      %v5693 = vadd.f32 %v5360, %v5692
      %5694 = vmatmul.f32.gmra.mxu0 %v5487
      %v5695 = vpop.f32.mrf.mxu0
      %v5696 = vadd.f32 %v5360, %v5695
      %5697 = vmatmul.f32.gmra.mxu0 %v5490
      %v5698 = vpop.f32.mrf.mxu0
      %v5699 = vadd.f32 %v5360, %v5698
      %5700 = vmatmul.f32.gmra.mxu0 %v5493
      %v5701 = vpop.f32.mrf.mxu0
      %v5702 = vadd.f32 %v5360, %v5701
      %5703 = vmatmul.f32.gmra.mxu0 %v5496
      %v5704 = vpop.f32.mrf.mxu0
      %v5705 = vadd.f32 %v5360, %v5704
      %5706 = vmatmul.f32.gmra.mxu0 %v5499
      %v5707 = vpop.f32.mrf.mxu0
      %v5708 = vadd.f32 %v5360, %v5707
      %5709 = vmatmul.f32.gmra.mxu0 %v5502
      %v5710 = vpop.f32.mrf.mxu0
      %v5711 = vadd.f32 %v5360, %v5710
      %5712 = vmatmul.f32.gmra.mxu0 %v5505
      %v5713 = vpop.f32.mrf.mxu0
      %v5714 = vadd.f32 %v5360, %v5713
      %5715 = vmatmul.f32.gmra.mxu0 %v5508
      %v5716 = vpop.f32.mrf.mxu0
      %v5717 = vadd.f32 %v5360, %v5716
      %5718 = vmatmul.f32.gmra.mxu0 %v5511
      %v5719 = vpop.f32.mrf.mxu0
      %v5720 = vadd.f32 %v5360, %v5719
      %5721 = vmatmul.f32.gmra.mxu0 %v5514
      %v5722 = vpop.f32.mrf.mxu0
      %v5723 = vadd.f32 %v5360, %v5722
      %5724 = vmatmul.f32.gmra.mxu0 %v5517
      %v5725 = vpop.f32.mrf.mxu0
      %v5726 = vadd.f32 %v5360, %v5725
      %5727 = vmatmul.f32.gmra.mxu0 %v5520
      %v5728 = vpop.f32.mrf.mxu0
      %v5729 = vadd.f32 %v5360, %v5728
      %5730 = vmatmul.f32.gmra.mxu0 %v5523
      %v5731 = vpop.f32.mrf.mxu0
      %v5732 = vadd.f32 %v5360, %v5731
      %5733 = vmatmul.f32.gmra.mxu0 %v5526
      %v5734 = vpop.f32.mrf.mxu0
      %v5735 = vadd.f32 %v5360, %v5734
      %5736 = vmatmul.f32.gmra.mxu0 %v5529
      %v5737 = vpop.f32.mrf.mxu0
      %v5738 = vadd.f32 %v5360, %v5737
      %5739 = vmatmul.f32.gmra.mxu0 %v5532
      %v5740 = vpop.f32.mrf.mxu0
      %v5741 = vadd.f32 %v5360, %v5740
      %5742 = vmatmul.f32.gmra.mxu0 %v5535
      %v5743 = vpop.f32.mrf.mxu0
      %v5744 = vadd.f32 %v5360, %v5743
      %5745 = vmatmul.f32.gmra.mxu0 %v5538
      %v5746 = vpop.f32.mrf.mxu0
      %v5747 = vadd.f32 %v5360, %v5746
      %5748 = vmatmul.f32.gmra.mxu0 %v5541
      %v5749 = vpop.f32.mrf.mxu0
      %v5750 = vadd.f32 %v5360, %v5749
      %5751 = vmatmul.f32.gmra.mxu0 %v5544
      %v5752 = vpop.f32.mrf.mxu0
      %v5753 = vadd.f32 %v5360, %v5752
      %5754 = vmatmul.f32.gmra.mxu0 %v5547
      %v5755 = vpop.f32.mrf.mxu0
      %v5756 = vadd.f32 %v5360, %v5755
      %5757 = vmatmul.f32.gmra.mxu0 %v5550
      %v5758 = vpop.f32.mrf.mxu0
      %v5759 = vadd.f32 %v5360, %v5758
      %5760 = vmatmul.f32.gmra.mxu0 %v5553
      %v5761 = vpop.f32.mrf.mxu0
      %v5762 = vadd.f32 %v5360, %v5761
      %5763 = vdwg.mxu0
      %v5764 = vxor.u32 %v5573, 2147483648
      %v5765 = vxor.u32 %v5576, 2147483648
      %v5766 = vxor.u32 %v5579, 2147483648
      %v5767 = vxor.u32 %v5582, 2147483648
      %v5768 = vxor.u32 %v5585, 2147483648
      %v5769 = vxor.u32 %v5588, 2147483648
      %v5770 = vxor.u32 %v5591, 2147483648
      %v5771 = vxor.u32 %v5594, 2147483648
      %v5772 = vxor.u32 %v5597, 2147483648
      %v5773 = vxor.u32 %v5600, 2147483648
      %v5774 = vxor.u32 %v5603, 2147483648
      %v5775 = vxor.u32 %v5606, 2147483648
      %v5776 = vxor.u32 %v5609, 2147483648
      %v5777 = vxor.u32 %v5612, 2147483648
      %v5778 = vxor.u32 %v5615, 2147483648
      %v5779 = vxor.u32 %v5618, 2147483648
      %v5780 = vxor.u32 %v5621, 2147483648
      %v5781 = vxor.u32 %v5624, 2147483648
      %v5782 = vxor.u32 %v5627, 2147483648
      %v5783 = vxor.u32 %v5630, 2147483648
      %v5784 = vxor.u32 %v5633, 2147483648
      %v5785 = vxor.u32 %v5636, 2147483648
      %v5786 = vxor.u32 %v5639, 2147483648
      %v5787 = vxor.u32 %v5642, 2147483648
      %v5788 = vxor.u32 %v5645, 2147483648
      %v5789 = vxor.u32 %v5648, 2147483648
      %v5790 = vxor.u32 %v5651, 2147483648
      %v5791 = vxor.u32 %v5654, 2147483648
      %v5792 = vxor.u32 %v5657, 2147483648
      %v5793 = vxor.u32 %v5660, 2147483648
      %v5794 = vxor.u32 %v5663, 2147483648
      %v5795 = vxor.u32 %v5666, 2147483648
      %v5796 = vxor.u32 %v5669, 2147483648
      %v5797 = vxor.u32 %v5672, 2147483648
      %v5798 = vxor.u32 %v5675, 2147483648
      %v5799 = vxor.u32 %v5678, 2147483648
      %v5800 = vxor.u32 %v5681, 2147483648
      %v5801 = vxor.u32 %v5684, 2147483648
      %v5802 = vxor.u32 %v5687, 2147483648
      %v5803 = vxor.u32 %v5690, 2147483648
      %v5804 = vxor.u32 %v5693, 2147483648
      %v5805 = vxor.u32 %v5696, 2147483648
      %v5806 = vxor.u32 %v5699, 2147483648
      %v5807 = vxor.u32 %v5702, 2147483648
      %v5808 = vxor.u32 %v5705, 2147483648
      %v5809 = vxor.u32 %v5708, 2147483648
      %v5810 = vxor.u32 %v5711, 2147483648
      %v5811 = vxor.u32 %v5714, 2147483648
      %v5812 = vxor.u32 %v5717, 2147483648
      %v5813 = vxor.u32 %v5720, 2147483648
      %v5814 = vxor.u32 %v5723, 2147483648
      %v5815 = vxor.u32 %v5726, 2147483648
      %v5816 = vxor.u32 %v5729, 2147483648
      %v5817 = vxor.u32 %v5732, 2147483648
      %v5818 = vxor.u32 %v5735, 2147483648
      %v5819 = vxor.u32 %v5738, 2147483648
      %v5820 = vxor.u32 %v5741, 2147483648
      %v5821 = vxor.u32 %v5744, 2147483648
      %v5822 = vxor.u32 %v5747, 2147483648
      %v5823 = vxor.u32 %v5750, 2147483648
      %v5824 = vxor.u32 %v5753, 2147483648
      %v5825 = vxor.u32 %v5756, 2147483648
      %v5826 = vxor.u32 %v5759, 2147483648
      %v5827 = vxor.u32 %v5762, 2147483648
      %v5828 = vmul.f32 %v5764, 1.442695
      %v5829 = vpow.pop %v5828
      %v5830 = vmul.f32 %v5765, 1.442695
      %v5831 = vpow.pop %v5830
      %v5832 = vmul.f32 %v5766, 1.442695
      %v5833 = vpow.pop %v5832
      %v5834 = vmul.f32 %v5767, 1.442695
      %v5835 = vpow.pop %v5834
      %v5836 = vmul.f32 %v5768, 1.442695
      %v5837 = vpow.pop %v5836
      %v5838 = vmul.f32 %v5769, 1.442695
      %v5839 = vpow.pop %v5838
      %v5840 = vmul.f32 %v5770, 1.442695
      %v5841 = vpow.pop %v5840
      %v5842 = vmul.f32 %v5771, 1.442695
      %v5843 = vpow.pop %v5842
      %v5844 = vmul.f32 %v5772, 1.442695
      %v5845 = vpow.pop %v5844
      %v5846 = vmul.f32 %v5773, 1.442695
      %v5847 = vpow.pop %v5846
      %v5848 = vmul.f32 %v5774, 1.442695
      %v5849 = vpow.pop %v5848
      %v5850 = vmul.f32 %v5775, 1.442695
      %v5851 = vpow.pop %v5850
      %v5852 = vmul.f32 %v5776, 1.442695
      %v5853 = vpow.pop %v5852
      %v5854 = vmul.f32 %v5777, 1.442695
      %v5855 = vpow.pop %v5854
      %v5856 = vmul.f32 %v5778, 1.442695
      %v5857 = vpow.pop %v5856
      %v5858 = vmul.f32 %v5779, 1.442695
      %v5859 = vpow.pop %v5858
      %v5860 = vmul.f32 %v5780, 1.442695
      %v5861 = vpow.pop %v5860
      %v5862 = vmul.f32 %v5781, 1.442695
      %v5863 = vpow.pop %v5862
      %v5864 = vmul.f32 %v5782, 1.442695
      %v5865 = vpow.pop %v5864
      %v5866 = vmul.f32 %v5783, 1.442695
      %v5867 = vpow.pop %v5866
      %v5868 = vmul.f32 %v5784, 1.442695
      %v5869 = vpow.pop %v5868
      %v5870 = vmul.f32 %v5785, 1.442695
      %v5871 = vpow.pop %v5870
      %v5872 = vmul.f32 %v5786, 1.442695
      %v5873 = vpow.pop %v5872
      %v5874 = vmul.f32 %v5787, 1.442695
      %v5875 = vpow.pop %v5874
      %v5876 = vmul.f32 %v5788, 1.442695
      %v5877 = vpow.pop %v5876
      %v5878 = vmul.f32 %v5789, 1.442695
      %v5879 = vpow.pop %v5878
      %v5880 = vmul.f32 %v5790, 1.442695
      %v5881 = vpow.pop %v5880
      %v5882 = vmul.f32 %v5791, 1.442695
      %v5883 = vpow.pop %v5882
      %v5884 = vmul.f32 %v5792, 1.442695
      %v5885 = vpow.pop %v5884
      %v5886 = vmul.f32 %v5793, 1.442695
      %v5887 = vpow.pop %v5886
      %v5888 = vmul.f32 %v5794, 1.442695
      %v5889 = vpow.pop %v5888
      %v5890 = vmul.f32 %v5795, 1.442695
      %v5891 = vpow.pop %v5890
      %v5892 = vmul.f32 %v5796, 1.442695
      %v5893 = vpow.pop %v5892
      %v5894 = vmul.f32 %v5797, 1.442695
      %v5895 = vpow.pop %v5894
      %v5896 = vmul.f32 %v5798, 1.442695
      %v5897 = vpow.pop %v5896
      %v5898 = vmul.f32 %v5799, 1.442695
      %v5899 = vpow.pop %v5898
      %v5900 = vmul.f32 %v5800, 1.442695
      %v5901 = vpow.pop %v5900
      %v5902 = vmul.f32 %v5801, 1.442695
      %v5903 = vpow.pop %v5902
      %v5904 = vmul.f32 %v5802, 1.442695
      %v5905 = vpow.pop %v5904
      %v5906 = vmul.f32 %v5803, 1.442695
      %v5907 = vpow.pop %v5906
      %v5908 = vmul.f32 %v5804, 1.442695
      %v5909 = vpow.pop %v5908
      %v5910 = vmul.f32 %v5805, 1.442695
      %v5911 = vpow.pop %v5910
      %v5912 = vmul.f32 %v5806, 1.442695
      %v5913 = vpow.pop %v5912
      %v5914 = vmul.f32 %v5807, 1.442695
      %v5915 = vpow.pop %v5914
      %v5916 = vmul.f32 %v5808, 1.442695
      %v5917 = vpow.pop %v5916
      %v5918 = vmul.f32 %v5809, 1.442695
      %v5919 = vpow.pop %v5918
      %v5920 = vmul.f32 %v5810, 1.442695
      %v5921 = vpow.pop %v5920
      %v5922 = vmul.f32 %v5811, 1.442695
      %v5923 = vpow.pop %v5922
      %v5924 = vmul.f32 %v5812, 1.442695
      %v5925 = vpow.pop %v5924
      %v5926 = vmul.f32 %v5813, 1.442695
      %v5927 = vpow.pop %v5926
      %v5928 = vmul.f32 %v5814, 1.442695
      %v5929 = vpow.pop %v5928
      %v5930 = vmul.f32 %v5815, 1.442695
      %v5931 = vpow.pop %v5930
      %v5932 = vmul.f32 %v5816, 1.442695
      %v5933 = vpow.pop %v5932
      %v5934 = vmul.f32 %v5817, 1.442695
      %v5935 = vpow.pop %v5934
      %v5936 = vmul.f32 %v5818, 1.442695
      %v5937 = vpow.pop %v5936
      %v5938 = vmul.f32 %v5819, 1.442695
      %v5939 = vpow.pop %v5938
      %v5940 = vmul.f32 %v5820, 1.442695
      %v5941 = vpow.pop %v5940
      %v5942 = vmul.f32 %v5821, 1.442695
      %v5943 = vpow.pop %v5942
      %v5944 = vmul.f32 %v5822, 1.442695
      %v5945 = vpow.pop %v5944
      %v5946 = vmul.f32 %v5823, 1.442695
      %v5947 = vpow.pop %v5946
      %v5948 = vmul.f32 %v5824, 1.442695
      %v5949 = vpow.pop %v5948
      %v5950 = vmul.f32 %v5825, 1.442695
      %v5951 = vpow.pop %v5950
      %v5952 = vmul.f32 %v5826, 1.442695
      %v5953 = vpow.pop %v5952
      %v5954 = vmul.f32 %v5827, 1.442695
      %v5955 = vpow.pop %v5954
      %v5956 = vadd.f32 %v5829, 1.0
      %v5957 = vadd.f32 %v5831, 1.0
      %v5958 = vadd.f32 %v5833, 1.0
      %v5959 = vadd.f32 %v5835, 1.0
      %v5960 = vadd.f32 %v5837, 1.0
      %v5961 = vadd.f32 %v5839, 1.0
      %v5962 = vadd.f32 %v5841, 1.0
      %v5963 = vadd.f32 %v5843, 1.0
      %v5964 = vadd.f32 %v5845, 1.0
      %v5965 = vadd.f32 %v5847, 1.0
      %v5966 = vadd.f32 %v5849, 1.0
      %v5967 = vadd.f32 %v5851, 1.0
      %v5968 = vadd.f32 %v5853, 1.0
      %v5969 = vadd.f32 %v5855, 1.0
      %v5970 = vadd.f32 %v5857, 1.0
      %v5971 = vadd.f32 %v5859, 1.0
      %v5972 = vadd.f32 %v5861, 1.0
      %v5973 = vadd.f32 %v5863, 1.0
      %v5974 = vadd.f32 %v5865, 1.0
      %v5975 = vadd.f32 %v5867, 1.0
      %v5976 = vadd.f32 %v5869, 1.0
      %v5977 = vadd.f32 %v5871, 1.0
      %v5978 = vadd.f32 %v5873, 1.0
      %v5979 = vadd.f32 %v5875, 1.0
      %v5980 = vadd.f32 %v5877, 1.0
      %v5981 = vadd.f32 %v5879, 1.0
      %v5982 = vadd.f32 %v5881, 1.0
      %v5983 = vadd.f32 %v5883, 1.0
      %v5984 = vadd.f32 %v5885, 1.0
      %v5985 = vadd.f32 %v5887, 1.0
      %v5986 = vadd.f32 %v5889, 1.0
      %v5987 = vadd.f32 %v5891, 1.0
      %v5988 = vadd.f32 %v5893, 1.0
      %v5989 = vadd.f32 %v5895, 1.0
      %v5990 = vadd.f32 %v5897, 1.0
      %v5991 = vadd.f32 %v5899, 1.0
      %v5992 = vadd.f32 %v5901, 1.0
      %v5993 = vadd.f32 %v5903, 1.0
      %v5994 = vadd.f32 %v5905, 1.0
      %v5995 = vadd.f32 %v5907, 1.0
      %v5996 = vadd.f32 %v5909, 1.0
      %v5997 = vadd.f32 %v5911, 1.0
      %v5998 = vadd.f32 %v5913, 1.0
      %v5999 = vadd.f32 %v5915, 1.0
      %v6000 = vadd.f32 %v5917, 1.0
      %v6001 = vadd.f32 %v5919, 1.0
      %v6002 = vadd.f32 %v5921, 1.0
      %v6003 = vadd.f32 %v5923, 1.0
      %v6004 = vadd.f32 %v5925, 1.0
      %v6005 = vadd.f32 %v5927, 1.0
      %v6006 = vadd.f32 %v5929, 1.0
      %v6007 = vadd.f32 %v5931, 1.0
      %v6008 = vadd.f32 %v5933, 1.0
      %v6009 = vadd.f32 %v5935, 1.0
      %v6010 = vadd.f32 %v5937, 1.0
      %v6011 = vadd.f32 %v5939, 1.0
      %v6012 = vadd.f32 %v5941, 1.0
      %v6013 = vadd.f32 %v5943, 1.0
      %v6014 = vadd.f32 %v5945, 1.0
      %v6015 = vadd.f32 %v5947, 1.0
      %v6016 = vadd.f32 %v5949, 1.0
      %v6017 = vadd.f32 %v5951, 1.0
      %v6018 = vadd.f32 %v5953, 1.0
      %v6019 = vadd.f32 %v5955, 1.0
      %v6020 = vrcp.pop %v5956
      %v6021 = vmul.f32 %v5956, %v6020
      %v6022 = vsub.f32 1.0, %v6021
      %v6023 = vmul.f32 %v6020, %v6022
      %v6024 = vadd.f32 %v6020, %v6023
      %vm6025 = vweird.f32 %v5956
      %vm6026 = vweird.f32 %v6020
      %vm6027 = vmor %vm6025, %vm6026
      %v6028 = vsel %vm6027, %v6020, %v6024
      %v6029 = vand.u32 2147483647, %v5956
      %vm6030 = vcmp.eq.f32.partialorder %v6029, 8.507059e+37
      %v6031 = vand.u32 %v5956, 2147483648
      %v6032 = vor.u32 1.1754944e-38, %v6031
      %v6033 = vsel %vm6030, %v6032, %v6028
      %v6034 = vmul.f32 1.0, %v6033
      %v6035 = vrcp.pop %v5957
      %v6036 = vmul.f32 %v5957, %v6035
      %v6037 = vsub.f32 1.0, %v6036
      %v6038 = vmul.f32 %v6035, %v6037
      %v6039 = vadd.f32 %v6035, %v6038
      %vm6040 = vweird.f32 %v5957
      %vm6041 = vweird.f32 %v6035
      %vm6042 = vmor %vm6040, %vm6041
      %v6043 = vsel %vm6042, %v6035, %v6039
      %v6044 = vand.u32 2147483647, %v5957
      %vm6045 = vcmp.eq.f32.partialorder %v6044, 8.507059e+37
      %v6046 = vand.u32 %v5957, 2147483648
      %v6047 = vor.u32 1.1754944e-38, %v6046
      %v6048 = vsel %vm6045, %v6047, %v6043
      %v6049 = vmul.f32 1.0, %v6048
      %v6050 = vrcp.pop %v5958
      %v6051 = vmul.f32 %v5958, %v6050
      %v6052 = vsub.f32 1.0, %v6051
      %v6053 = vmul.f32 %v6050, %v6052
      %v6054 = vadd.f32 %v6050, %v6053
      %vm6055 = vweird.f32 %v5958
      %vm6056 = vweird.f32 %v6050
      %vm6057 = vmor %vm6055, %vm6056
      %v6058 = vsel %vm6057, %v6050, %v6054
      %v6059 = vand.u32 2147483647, %v5958
      %vm6060 = vcmp.eq.f32.partialorder %v6059, 8.507059e+37
      %v6061 = vand.u32 %v5958, 2147483648
      %v6062 = vor.u32 1.1754944e-38, %v6061
      %v6063 = vsel %vm6060, %v6062, %v6058
      %v6064 = vmul.f32 1.0, %v6063
      %v6065 = vrcp.pop %v5959
      %v6066 = vmul.f32 %v5959, %v6065
      %v6067 = vsub.f32 1.0, %v6066
      %v6068 = vmul.f32 %v6065, %v6067
      %v6069 = vadd.f32 %v6065, %v6068
      %vm6070 = vweird.f32 %v5959
      %vm6071 = vweird.f32 %v6065
      %vm6072 = vmor %vm6070, %vm6071
      %v6073 = vsel %vm6072, %v6065, %v6069
      %v6074 = vand.u32 2147483647, %v5959
      %vm6075 = vcmp.eq.f32.partialorder %v6074, 8.507059e+37
      %v6076 = vand.u32 %v5959, 2147483648
      %v6077 = vor.u32 1.1754944e-38, %v6076
      %v6078 = vsel %vm6075, %v6077, %v6073
      %v6079 = vmul.f32 1.0, %v6078
      %v6080 = vrcp.pop %v5960
      %v6081 = vmul.f32 %v5960, %v6080
      %v6082 = vsub.f32 1.0, %v6081
      %v6083 = vmul.f32 %v6080, %v6082
      %v6084 = vadd.f32 %v6080, %v6083
      %vm6085 = vweird.f32 %v5960
      %vm6086 = vweird.f32 %v6080
      %vm6087 = vmor %vm6085, %vm6086
      %v6088 = vsel %vm6087, %v6080, %v6084
      %v6089 = vand.u32 2147483647, %v5960
      %vm6090 = vcmp.eq.f32.partialorder %v6089, 8.507059e+37
      %v6091 = vand.u32 %v5960, 2147483648
      %v6092 = vor.u32 1.1754944e-38, %v6091
      %v6093 = vsel %vm6090, %v6092, %v6088
      %v6094 = vmul.f32 1.0, %v6093
      %v6095 = vrcp.pop %v5961
      %v6096 = vmul.f32 %v5961, %v6095
      %v6097 = vsub.f32 1.0, %v6096
      %v6098 = vmul.f32 %v6095, %v6097
      %v6099 = vadd.f32 %v6095, %v6098
      %vm6100 = vweird.f32 %v5961
      %vm6101 = vweird.f32 %v6095
      %vm6102 = vmor %vm6100, %vm6101
      %v6103 = vsel %vm6102, %v6095, %v6099
      %v6104 = vand.u32 2147483647, %v5961
      %vm6105 = vcmp.eq.f32.partialorder %v6104, 8.507059e+37
      %v6106 = vand.u32 %v5961, 2147483648
      %v6107 = vor.u32 1.1754944e-38, %v6106
      %v6108 = vsel %vm6105, %v6107, %v6103
      %v6109 = vmul.f32 1.0, %v6108
      %v6110 = vrcp.pop %v5962
      %v6111 = vmul.f32 %v5962, %v6110
      %v6112 = vsub.f32 1.0, %v6111
      %v6113 = vmul.f32 %v6110, %v6112
      %v6114 = vadd.f32 %v6110, %v6113
      %vm6115 = vweird.f32 %v5962
      %vm6116 = vweird.f32 %v6110
      %vm6117 = vmor %vm6115, %vm6116
      %v6118 = vsel %vm6117, %v6110, %v6114
      %v6119 = vand.u32 2147483647, %v5962
      %vm6120 = vcmp.eq.f32.partialorder %v6119, 8.507059e+37
      %v6121 = vand.u32 %v5962, 2147483648
      %v6122 = vor.u32 1.1754944e-38, %v6121
      %v6123 = vsel %vm6120, %v6122, %v6118
      %v6124 = vmul.f32 1.0, %v6123
      %v6125 = vrcp.pop %v5963
      %v6126 = vmul.f32 %v5963, %v6125
      %v6127 = vsub.f32 1.0, %v6126
      %v6128 = vmul.f32 %v6125, %v6127
      %v6129 = vadd.f32 %v6125, %v6128
      %vm6130 = vweird.f32 %v5963
      %vm6131 = vweird.f32 %v6125
      %vm6132 = vmor %vm6130, %vm6131
      %v6133 = vsel %vm6132, %v6125, %v6129
      %v6134 = vand.u32 2147483647, %v5963
      %vm6135 = vcmp.eq.f32.partialorder %v6134, 8.507059e+37
      %v6136 = vand.u32 %v5963, 2147483648
      %v6137 = vor.u32 1.1754944e-38, %v6136
      %v6138 = vsel %vm6135, %v6137, %v6133
      %v6139 = vmul.f32 1.0, %v6138
      %v6140 = vrcp.pop %v5964
      %v6141 = vmul.f32 %v5964, %v6140
      %v6142 = vsub.f32 1.0, %v6141
      %v6143 = vmul.f32 %v6140, %v6142
      %v6144 = vadd.f32 %v6140, %v6143
      %vm6145 = vweird.f32 %v5964
      %vm6146 = vweird.f32 %v6140
      %vm6147 = vmor %vm6145, %vm6146
      %v6148 = vsel %vm6147, %v6140, %v6144
      %v6149 = vand.u32 2147483647, %v5964
      %vm6150 = vcmp.eq.f32.partialorder %v6149, 8.507059e+37
      %v6151 = vand.u32 %v5964, 2147483648
      %v6152 = vor.u32 1.1754944e-38, %v6151
      %v6153 = vsel %vm6150, %v6152, %v6148
      %v6154 = vmul.f32 1.0, %v6153
      %v6155 = vrcp.pop %v5965
      %v6156 = vmul.f32 %v5965, %v6155
      %v6157 = vsub.f32 1.0, %v6156
      %v6158 = vmul.f32 %v6155, %v6157
      %v6159 = vadd.f32 %v6155, %v6158
      %vm6160 = vweird.f32 %v5965
      %vm6161 = vweird.f32 %v6155
      %vm6162 = vmor %vm6160, %vm6161
      %v6163 = vsel %vm6162, %v6155, %v6159
      %v6164 = vand.u32 2147483647, %v5965
      %vm6165 = vcmp.eq.f32.partialorder %v6164, 8.507059e+37
      %v6166 = vand.u32 %v5965, 2147483648
      %v6167 = vor.u32 1.1754944e-38, %v6166
      %v6168 = vsel %vm6165, %v6167, %v6163
      %v6169 = vmul.f32 1.0, %v6168
      %v6170 = vrcp.pop %v5966
      %v6171 = vmul.f32 %v5966, %v6170
      %v6172 = vsub.f32 1.0, %v6171
      %v6173 = vmul.f32 %v6170, %v6172
      %v6174 = vadd.f32 %v6170, %v6173
      %vm6175 = vweird.f32 %v5966
      %vm6176 = vweird.f32 %v6170
      %vm6177 = vmor %vm6175, %vm6176
      %v6178 = vsel %vm6177, %v6170, %v6174
      %v6179 = vand.u32 2147483647, %v5966
      %vm6180 = vcmp.eq.f32.partialorder %v6179, 8.507059e+37
      %v6181 = vand.u32 %v5966, 2147483648
      %v6182 = vor.u32 1.1754944e-38, %v6181
      %v6183 = vsel %vm6180, %v6182, %v6178
      %v6184 = vmul.f32 1.0, %v6183
      %v6185 = vrcp.pop %v5967
      %v6186 = vmul.f32 %v5967, %v6185
      %v6187 = vsub.f32 1.0, %v6186
      %v6188 = vmul.f32 %v6185, %v6187
      %v6189 = vadd.f32 %v6185, %v6188
      %vm6190 = vweird.f32 %v5967
      %vm6191 = vweird.f32 %v6185
      %vm6192 = vmor %vm6190, %vm6191
      %v6193 = vsel %vm6192, %v6185, %v6189
      %v6194 = vand.u32 2147483647, %v5967
      %vm6195 = vcmp.eq.f32.partialorder %v6194, 8.507059e+37
      %v6196 = vand.u32 %v5967, 2147483648
      %v6197 = vor.u32 1.1754944e-38, %v6196
      %v6198 = vsel %vm6195, %v6197, %v6193
      %v6199 = vmul.f32 1.0, %v6198
      %v6200 = vrcp.pop %v5968
      %v6201 = vmul.f32 %v5968, %v6200
      %v6202 = vsub.f32 1.0, %v6201
      %v6203 = vmul.f32 %v6200, %v6202
      %v6204 = vadd.f32 %v6200, %v6203
      %vm6205 = vweird.f32 %v5968
      %vm6206 = vweird.f32 %v6200
      %vm6207 = vmor %vm6205, %vm6206
      %v6208 = vsel %vm6207, %v6200, %v6204
      %v6209 = vand.u32 2147483647, %v5968
      %vm6210 = vcmp.eq.f32.partialorder %v6209, 8.507059e+37
      %v6211 = vand.u32 %v5968, 2147483648
      %v6212 = vor.u32 1.1754944e-38, %v6211
      %v6213 = vsel %vm6210, %v6212, %v6208
      %v6214 = vmul.f32 1.0, %v6213
      %v6215 = vrcp.pop %v5969
      %v6216 = vmul.f32 %v5969, %v6215
      %v6217 = vsub.f32 1.0, %v6216
      %v6218 = vmul.f32 %v6215, %v6217
      %v6219 = vadd.f32 %v6215, %v6218
      %vm6220 = vweird.f32 %v5969
      %vm6221 = vweird.f32 %v6215
      %vm6222 = vmor %vm6220, %vm6221
      %v6223 = vsel %vm6222, %v6215, %v6219
      %v6224 = vand.u32 2147483647, %v5969
      %vm6225 = vcmp.eq.f32.partialorder %v6224, 8.507059e+37
      %v6226 = vand.u32 %v5969, 2147483648
      %v6227 = vor.u32 1.1754944e-38, %v6226
      %v6228 = vsel %vm6225, %v6227, %v6223
      %v6229 = vmul.f32 1.0, %v6228
      %v6230 = vrcp.pop %v5970
      %v6231 = vmul.f32 %v5970, %v6230
      %v6232 = vsub.f32 1.0, %v6231
      %v6233 = vmul.f32 %v6230, %v6232
      %v6234 = vadd.f32 %v6230, %v6233
      %vm6235 = vweird.f32 %v5970
      %vm6236 = vweird.f32 %v6230
      %vm6237 = vmor %vm6235, %vm6236
      %v6238 = vsel %vm6237, %v6230, %v6234
      %v6239 = vand.u32 2147483647, %v5970
      %vm6240 = vcmp.eq.f32.partialorder %v6239, 8.507059e+37
      %v6241 = vand.u32 %v5970, 2147483648
      %v6242 = vor.u32 1.1754944e-38, %v6241
      %v6243 = vsel %vm6240, %v6242, %v6238
      %v6244 = vmul.f32 1.0, %v6243
      %v6245 = vrcp.pop %v5971
      %v6246 = vmul.f32 %v5971, %v6245
      %v6247 = vsub.f32 1.0, %v6246
      %v6248 = vmul.f32 %v6245, %v6247
      %v6249 = vadd.f32 %v6245, %v6248
      %vm6250 = vweird.f32 %v5971
      %vm6251 = vweird.f32 %v6245
      %vm6252 = vmor %vm6250, %vm6251
      %v6253 = vsel %vm6252, %v6245, %v6249
      %v6254 = vand.u32 2147483647, %v5971
      %vm6255 = vcmp.eq.f32.partialorder %v6254, 8.507059e+37
      %v6256 = vand.u32 %v5971, 2147483648
      %v6257 = vor.u32 1.1754944e-38, %v6256
      %v6258 = vsel %vm6255, %v6257, %v6253
      %v6259 = vmul.f32 1.0, %v6258
      %v6260 = vrcp.pop %v5972
      %v6261 = vmul.f32 %v5972, %v6260
      %v6262 = vsub.f32 1.0, %v6261
      %v6263 = vmul.f32 %v6260, %v6262
      %v6264 = vadd.f32 %v6260, %v6263
      %vm6265 = vweird.f32 %v5972
      %vm6266 = vweird.f32 %v6260
      %vm6267 = vmor %vm6265, %vm6266
      %v6268 = vsel %vm6267, %v6260, %v6264
      %v6269 = vand.u32 2147483647, %v5972
      %vm6270 = vcmp.eq.f32.partialorder %v6269, 8.507059e+37
      %v6271 = vand.u32 %v5972, 2147483648
      %v6272 = vor.u32 1.1754944e-38, %v6271
      %v6273 = vsel %vm6270, %v6272, %v6268
      %v6274 = vmul.f32 1.0, %v6273
      %v6275 = vrcp.pop %v5973
      %v6276 = vmul.f32 %v5973, %v6275
      %v6277 = vsub.f32 1.0, %v6276
      %v6278 = vmul.f32 %v6275, %v6277
      %v6279 = vadd.f32 %v6275, %v6278
      %vm6280 = vweird.f32 %v5973
      %vm6281 = vweird.f32 %v6275
      %vm6282 = vmor %vm6280, %vm6281
      %v6283 = vsel %vm6282, %v6275, %v6279
      %v6284 = vand.u32 2147483647, %v5973
      %vm6285 = vcmp.eq.f32.partialorder %v6284, 8.507059e+37
      %v6286 = vand.u32 %v5973, 2147483648
      %v6287 = vor.u32 1.1754944e-38, %v6286
      %v6288 = vsel %vm6285, %v6287, %v6283
      %v6289 = vmul.f32 1.0, %v6288
      %v6290 = vrcp.pop %v5974
      %v6291 = vmul.f32 %v5974, %v6290
      %v6292 = vsub.f32 1.0, %v6291
      %v6293 = vmul.f32 %v6290, %v6292
      %v6294 = vadd.f32 %v6290, %v6293
      %vm6295 = vweird.f32 %v5974
      %vm6296 = vweird.f32 %v6290
      %vm6297 = vmor %vm6295, %vm6296
      %v6298 = vsel %vm6297, %v6290, %v6294
      %v6299 = vand.u32 2147483647, %v5974
      %vm6300 = vcmp.eq.f32.partialorder %v6299, 8.507059e+37
      %v6301 = vand.u32 %v5974, 2147483648
      %v6302 = vor.u32 1.1754944e-38, %v6301
      %v6303 = vsel %vm6300, %v6302, %v6298
      %v6304 = vmul.f32 1.0, %v6303
      %v6305 = vrcp.pop %v5975
      %v6306 = vmul.f32 %v5975, %v6305
      %v6307 = vsub.f32 1.0, %v6306
      %v6308 = vmul.f32 %v6305, %v6307
      %v6309 = vadd.f32 %v6305, %v6308
      %vm6310 = vweird.f32 %v5975
      %vm6311 = vweird.f32 %v6305
      %vm6312 = vmor %vm6310, %vm6311
      %v6313 = vsel %vm6312, %v6305, %v6309
      %v6314 = vand.u32 2147483647, %v5975
      %vm6315 = vcmp.eq.f32.partialorder %v6314, 8.507059e+37
      %v6316 = vand.u32 %v5975, 2147483648
      %v6317 = vor.u32 1.1754944e-38, %v6316
      %v6318 = vsel %vm6315, %v6317, %v6313
      %v6319 = vmul.f32 1.0, %v6318
      %v6320 = vrcp.pop %v5976
      %v6321 = vmul.f32 %v5976, %v6320
      %v6322 = vsub.f32 1.0, %v6321
      %v6323 = vmul.f32 %v6320, %v6322
      %v6324 = vadd.f32 %v6320, %v6323
      %vm6325 = vweird.f32 %v5976
      %vm6326 = vweird.f32 %v6320
      %vm6327 = vmor %vm6325, %vm6326
      %v6328 = vsel %vm6327, %v6320, %v6324
      %v6329 = vand.u32 2147483647, %v5976
      %vm6330 = vcmp.eq.f32.partialorder %v6329, 8.507059e+37
      %v6331 = vand.u32 %v5976, 2147483648
      %v6332 = vor.u32 1.1754944e-38, %v6331
      %v6333 = vsel %vm6330, %v6332, %v6328
      %v6334 = vmul.f32 1.0, %v6333
      %v6335 = vrcp.pop %v5977
      %v6336 = vmul.f32 %v5977, %v6335
      %v6337 = vsub.f32 1.0, %v6336
      %v6338 = vmul.f32 %v6335, %v6337
      %v6339 = vadd.f32 %v6335, %v6338
      %vm6340 = vweird.f32 %v5977
      %vm6341 = vweird.f32 %v6335
      %vm6342 = vmor %vm6340, %vm6341
      %v6343 = vsel %vm6342, %v6335, %v6339
      %v6344 = vand.u32 2147483647, %v5977
      %vm6345 = vcmp.eq.f32.partialorder %v6344, 8.507059e+37
      %v6346 = vand.u32 %v5977, 2147483648
      %v6347 = vor.u32 1.1754944e-38, %v6346
      %v6348 = vsel %vm6345, %v6347, %v6343
      %v6349 = vmul.f32 1.0, %v6348
      %v6350 = vrcp.pop %v5978
      %v6351 = vmul.f32 %v5978, %v6350
      %v6352 = vsub.f32 1.0, %v6351
      %v6353 = vmul.f32 %v6350, %v6352
      %v6354 = vadd.f32 %v6350, %v6353
      %vm6355 = vweird.f32 %v5978
      %vm6356 = vweird.f32 %v6350
      %vm6357 = vmor %vm6355, %vm6356
      %v6358 = vsel %vm6357, %v6350, %v6354
      %v6359 = vand.u32 2147483647, %v5978
      %vm6360 = vcmp.eq.f32.partialorder %v6359, 8.507059e+37
      %v6361 = vand.u32 %v5978, 2147483648
      %v6362 = vor.u32 1.1754944e-38, %v6361
      %v6363 = vsel %vm6360, %v6362, %v6358
      %v6364 = vmul.f32 1.0, %v6363
      %v6365 = vrcp.pop %v5979
      %v6366 = vmul.f32 %v5979, %v6365
      %v6367 = vsub.f32 1.0, %v6366
      %v6368 = vmul.f32 %v6365, %v6367
      %v6369 = vadd.f32 %v6365, %v6368
      %vm6370 = vweird.f32 %v5979
      %vm6371 = vweird.f32 %v6365
      %vm6372 = vmor %vm6370, %vm6371
      %v6373 = vsel %vm6372, %v6365, %v6369
      %v6374 = vand.u32 2147483647, %v5979
      %vm6375 = vcmp.eq.f32.partialorder %v6374, 8.507059e+37
      %v6376 = vand.u32 %v5979, 2147483648
      %v6377 = vor.u32 1.1754944e-38, %v6376
      %v6378 = vsel %vm6375, %v6377, %v6373
      %v6379 = vmul.f32 1.0, %v6378
      %v6380 = vrcp.pop %v5980
      %v6381 = vmul.f32 %v5980, %v6380
      %v6382 = vsub.f32 1.0, %v6381
      %v6383 = vmul.f32 %v6380, %v6382
      %v6384 = vadd.f32 %v6380, %v6383
      %vm6385 = vweird.f32 %v5980
      %vm6386 = vweird.f32 %v6380
      %vm6387 = vmor %vm6385, %vm6386
      %v6388 = vsel %vm6387, %v6380, %v6384
      %v6389 = vand.u32 2147483647, %v5980
      %vm6390 = vcmp.eq.f32.partialorder %v6389, 8.507059e+37
      %v6391 = vand.u32 %v5980, 2147483648
      %v6392 = vor.u32 1.1754944e-38, %v6391
      %v6393 = vsel %vm6390, %v6392, %v6388
      %v6394 = vmul.f32 1.0, %v6393
      %v6395 = vrcp.pop %v5981
      %v6396 = vmul.f32 %v5981, %v6395
      %v6397 = vsub.f32 1.0, %v6396
      %v6398 = vmul.f32 %v6395, %v6397
      %v6399 = vadd.f32 %v6395, %v6398
      %vm6400 = vweird.f32 %v5981
      %vm6401 = vweird.f32 %v6395
      %vm6402 = vmor %vm6400, %vm6401
      %v6403 = vsel %vm6402, %v6395, %v6399
      %v6404 = vand.u32 2147483647, %v5981
      %vm6405 = vcmp.eq.f32.partialorder %v6404, 8.507059e+37
      %v6406 = vand.u32 %v5981, 2147483648
      %v6407 = vor.u32 1.1754944e-38, %v6406
      %v6408 = vsel %vm6405, %v6407, %v6403
      %v6409 = vmul.f32 1.0, %v6408
      %v6410 = vrcp.pop %v5982
      %v6411 = vmul.f32 %v5982, %v6410
      %v6412 = vsub.f32 1.0, %v6411
      %v6413 = vmul.f32 %v6410, %v6412
      %v6414 = vadd.f32 %v6410, %v6413
      %vm6415 = vweird.f32 %v5982
      %vm6416 = vweird.f32 %v6410
      %vm6417 = vmor %vm6415, %vm6416
      %v6418 = vsel %vm6417, %v6410, %v6414
      %v6419 = vand.u32 2147483647, %v5982
      %vm6420 = vcmp.eq.f32.partialorder %v6419, 8.507059e+37
      %v6421 = vand.u32 %v5982, 2147483648
      %v6422 = vor.u32 1.1754944e-38, %v6421
      %v6423 = vsel %vm6420, %v6422, %v6418
      %v6424 = vmul.f32 1.0, %v6423
      %v6425 = vrcp.pop %v5983
      %v6426 = vmul.f32 %v5983, %v6425
      %v6427 = vsub.f32 1.0, %v6426
      %v6428 = vmul.f32 %v6425, %v6427
      %v6429 = vadd.f32 %v6425, %v6428
      %vm6430 = vweird.f32 %v5983
      %vm6431 = vweird.f32 %v6425
      %vm6432 = vmor %vm6430, %vm6431
      %v6433 = vsel %vm6432, %v6425, %v6429
      %v6434 = vand.u32 2147483647, %v5983
      %vm6435 = vcmp.eq.f32.partialorder %v6434, 8.507059e+37
      %v6436 = vand.u32 %v5983, 2147483648
      %v6437 = vor.u32 1.1754944e-38, %v6436
      %v6438 = vsel %vm6435, %v6437, %v6433
      %v6439 = vmul.f32 1.0, %v6438
      %v6440 = vrcp.pop %v5984
      %v6441 = vmul.f32 %v5984, %v6440
      %v6442 = vsub.f32 1.0, %v6441
      %v6443 = vmul.f32 %v6440, %v6442
      %v6444 = vadd.f32 %v6440, %v6443
      %vm6445 = vweird.f32 %v5984
      %vm6446 = vweird.f32 %v6440
      %vm6447 = vmor %vm6445, %vm6446
      %v6448 = vsel %vm6447, %v6440, %v6444
      %v6449 = vand.u32 2147483647, %v5984
      %vm6450 = vcmp.eq.f32.partialorder %v6449, 8.507059e+37
      %v6451 = vand.u32 %v5984, 2147483648
      %v6452 = vor.u32 1.1754944e-38, %v6451
      %v6453 = vsel %vm6450, %v6452, %v6448
      %v6454 = vmul.f32 1.0, %v6453
      %v6455 = vrcp.pop %v5985
      %v6456 = vmul.f32 %v5985, %v6455
      %v6457 = vsub.f32 1.0, %v6456
      %v6458 = vmul.f32 %v6455, %v6457
      %v6459 = vadd.f32 %v6455, %v6458
      %vm6460 = vweird.f32 %v5985
      %vm6461 = vweird.f32 %v6455
      %vm6462 = vmor %vm6460, %vm6461
      %v6463 = vsel %vm6462, %v6455, %v6459
      %v6464 = vand.u32 2147483647, %v5985
      %vm6465 = vcmp.eq.f32.partialorder %v6464, 8.507059e+37
      %v6466 = vand.u32 %v5985, 2147483648
      %v6467 = vor.u32 1.1754944e-38, %v6466
      %v6468 = vsel %vm6465, %v6467, %v6463
      %v6469 = vmul.f32 1.0, %v6468
      %v6470 = vrcp.pop %v5986
      %v6471 = vmul.f32 %v5986, %v6470
      %v6472 = vsub.f32 1.0, %v6471
      %v6473 = vmul.f32 %v6470, %v6472
      %v6474 = vadd.f32 %v6470, %v6473
      %vm6475 = vweird.f32 %v5986
      %vm6476 = vweird.f32 %v6470
      %vm6477 = vmor %vm6475, %vm6476
      %v6478 = vsel %vm6477, %v6470, %v6474
      %v6479 = vand.u32 2147483647, %v5986
      %vm6480 = vcmp.eq.f32.partialorder %v6479, 8.507059e+37
      %v6481 = vand.u32 %v5986, 2147483648
      %v6482 = vor.u32 1.1754944e-38, %v6481
      %v6483 = vsel %vm6480, %v6482, %v6478
      %v6484 = vmul.f32 1.0, %v6483
      %v6485 = vrcp.pop %v5987
      %v6486 = vmul.f32 %v5987, %v6485
      %v6487 = vsub.f32 1.0, %v6486
      %v6488 = vmul.f32 %v6485, %v6487
      %v6489 = vadd.f32 %v6485, %v6488
      %vm6490 = vweird.f32 %v5987
      %vm6491 = vweird.f32 %v6485
      %vm6492 = vmor %vm6490, %vm6491
      %v6493 = vsel %vm6492, %v6485, %v6489
      %v6494 = vand.u32 2147483647, %v5987
      %vm6495 = vcmp.eq.f32.partialorder %v6494, 8.507059e+37
      %v6496 = vand.u32 %v5987, 2147483648
      %v6497 = vor.u32 1.1754944e-38, %v6496
      %v6498 = vsel %vm6495, %v6497, %v6493
      %v6499 = vmul.f32 1.0, %v6498
      %v6500 = vrcp.pop %v5988
      %v6501 = vmul.f32 %v5988, %v6500
      %v6502 = vsub.f32 1.0, %v6501
      %v6503 = vmul.f32 %v6500, %v6502
      %v6504 = vadd.f32 %v6500, %v6503
      %vm6505 = vweird.f32 %v5988
      %vm6506 = vweird.f32 %v6500
      %vm6507 = vmor %vm6505, %vm6506
      %v6508 = vsel %vm6507, %v6500, %v6504
      %v6509 = vand.u32 2147483647, %v5988
      %vm6510 = vcmp.eq.f32.partialorder %v6509, 8.507059e+37
      %v6511 = vand.u32 %v5988, 2147483648
      %v6512 = vor.u32 1.1754944e-38, %v6511
      %v6513 = vsel %vm6510, %v6512, %v6508
      %v6514 = vmul.f32 1.0, %v6513
      %v6515 = vrcp.pop %v5989
      %v6516 = vmul.f32 %v5989, %v6515
      %v6517 = vsub.f32 1.0, %v6516
      %v6518 = vmul.f32 %v6515, %v6517
      %v6519 = vadd.f32 %v6515, %v6518
      %vm6520 = vweird.f32 %v5989
      %vm6521 = vweird.f32 %v6515
      %vm6522 = vmor %vm6520, %vm6521
      %v6523 = vsel %vm6522, %v6515, %v6519
      %v6524 = vand.u32 2147483647, %v5989
      %vm6525 = vcmp.eq.f32.partialorder %v6524, 8.507059e+37
      %v6526 = vand.u32 %v5989, 2147483648
      %v6527 = vor.u32 1.1754944e-38, %v6526
      %v6528 = vsel %vm6525, %v6527, %v6523
      %v6529 = vmul.f32 1.0, %v6528
      %v6530 = vrcp.pop %v5990
      %v6531 = vmul.f32 %v5990, %v6530
      %v6532 = vsub.f32 1.0, %v6531
      %v6533 = vmul.f32 %v6530, %v6532
      %v6534 = vadd.f32 %v6530, %v6533
      %vm6535 = vweird.f32 %v5990
      %vm6536 = vweird.f32 %v6530
      %vm6537 = vmor %vm6535, %vm6536
      %v6538 = vsel %vm6537, %v6530, %v6534
      %v6539 = vand.u32 2147483647, %v5990
      %vm6540 = vcmp.eq.f32.partialorder %v6539, 8.507059e+37
      %v6541 = vand.u32 %v5990, 2147483648
      %v6542 = vor.u32 1.1754944e-38, %v6541
      %v6543 = vsel %vm6540, %v6542, %v6538
      %v6544 = vmul.f32 1.0, %v6543
      %v6545 = vrcp.pop %v5991
      %v6546 = vmul.f32 %v5991, %v6545
      %v6547 = vsub.f32 1.0, %v6546
      %v6548 = vmul.f32 %v6545, %v6547
      %v6549 = vadd.f32 %v6545, %v6548
      %vm6550 = vweird.f32 %v5991
      %vm6551 = vweird.f32 %v6545
      %vm6552 = vmor %vm6550, %vm6551
      %v6553 = vsel %vm6552, %v6545, %v6549
      %v6554 = vand.u32 2147483647, %v5991
      %vm6555 = vcmp.eq.f32.partialorder %v6554, 8.507059e+37
      %v6556 = vand.u32 %v5991, 2147483648
      %v6557 = vor.u32 1.1754944e-38, %v6556
      %v6558 = vsel %vm6555, %v6557, %v6553
      %v6559 = vmul.f32 1.0, %v6558
      %v6560 = vrcp.pop %v5992
      %v6561 = vmul.f32 %v5992, %v6560
      %v6562 = vsub.f32 1.0, %v6561
      %v6563 = vmul.f32 %v6560, %v6562
      %v6564 = vadd.f32 %v6560, %v6563
      %vm6565 = vweird.f32 %v5992
      %vm6566 = vweird.f32 %v6560
      %vm6567 = vmor %vm6565, %vm6566
      %v6568 = vsel %vm6567, %v6560, %v6564
      %v6569 = vand.u32 2147483647, %v5992
      %vm6570 = vcmp.eq.f32.partialorder %v6569, 8.507059e+37
      %v6571 = vand.u32 %v5992, 2147483648
      %v6572 = vor.u32 1.1754944e-38, %v6571
      %v6573 = vsel %vm6570, %v6572, %v6568
      %v6574 = vmul.f32 1.0, %v6573
      %v6575 = vrcp.pop %v5993
      %v6576 = vmul.f32 %v5993, %v6575
      %v6577 = vsub.f32 1.0, %v6576
      %v6578 = vmul.f32 %v6575, %v6577
      %v6579 = vadd.f32 %v6575, %v6578
      %vm6580 = vweird.f32 %v5993
      %vm6581 = vweird.f32 %v6575
      %vm6582 = vmor %vm6580, %vm6581
      %v6583 = vsel %vm6582, %v6575, %v6579
      %v6584 = vand.u32 2147483647, %v5993
      %vm6585 = vcmp.eq.f32.partialorder %v6584, 8.507059e+37
      %v6586 = vand.u32 %v5993, 2147483648
      %v6587 = vor.u32 1.1754944e-38, %v6586
      %v6588 = vsel %vm6585, %v6587, %v6583
      %v6589 = vmul.f32 1.0, %v6588
      %v6590 = vrcp.pop %v5994
      %v6591 = vmul.f32 %v5994, %v6590
      %v6592 = vsub.f32 1.0, %v6591
      %v6593 = vmul.f32 %v6590, %v6592
      %v6594 = vadd.f32 %v6590, %v6593
      %vm6595 = vweird.f32 %v5994
      %vm6596 = vweird.f32 %v6590
      %vm6597 = vmor %vm6595, %vm6596
      %v6598 = vsel %vm6597, %v6590, %v6594
      %v6599 = vand.u32 2147483647, %v5994
      %vm6600 = vcmp.eq.f32.partialorder %v6599, 8.507059e+37
      %v6601 = vand.u32 %v5994, 2147483648
      %v6602 = vor.u32 1.1754944e-38, %v6601
      %v6603 = vsel %vm6600, %v6602, %v6598
      %v6604 = vmul.f32 1.0, %v6603
      %v6605 = vrcp.pop %v5995
      %v6606 = vmul.f32 %v5995, %v6605
      %v6607 = vsub.f32 1.0, %v6606
      %v6608 = vmul.f32 %v6605, %v6607
      %v6609 = vadd.f32 %v6605, %v6608
      %vm6610 = vweird.f32 %v5995
      %vm6611 = vweird.f32 %v6605
      %vm6612 = vmor %vm6610, %vm6611
      %v6613 = vsel %vm6612, %v6605, %v6609
      %v6614 = vand.u32 2147483647, %v5995
      %vm6615 = vcmp.eq.f32.partialorder %v6614, 8.507059e+37
      %v6616 = vand.u32 %v5995, 2147483648
      %v6617 = vor.u32 1.1754944e-38, %v6616
      %v6618 = vsel %vm6615, %v6617, %v6613
      %v6619 = vmul.f32 1.0, %v6618
      %v6620 = vrcp.pop %v5996
      %v6621 = vmul.f32 %v5996, %v6620
      %v6622 = vsub.f32 1.0, %v6621
      %v6623 = vmul.f32 %v6620, %v6622
      %v6624 = vadd.f32 %v6620, %v6623
      %vm6625 = vweird.f32 %v5996
      %vm6626 = vweird.f32 %v6620
      %vm6627 = vmor %vm6625, %vm6626
      %v6628 = vsel %vm6627, %v6620, %v6624
      %v6629 = vand.u32 2147483647, %v5996
      %vm6630 = vcmp.eq.f32.partialorder %v6629, 8.507059e+37
      %v6631 = vand.u32 %v5996, 2147483648
      %v6632 = vor.u32 1.1754944e-38, %v6631
      %v6633 = vsel %vm6630, %v6632, %v6628
      %v6634 = vmul.f32 1.0, %v6633
      %v6635 = vrcp.pop %v5997
      %v6636 = vmul.f32 %v5997, %v6635
      %v6637 = vsub.f32 1.0, %v6636
      %v6638 = vmul.f32 %v6635, %v6637
      %v6639 = vadd.f32 %v6635, %v6638
      %vm6640 = vweird.f32 %v5997
      %vm6641 = vweird.f32 %v6635
      %vm6642 = vmor %vm6640, %vm6641
      %v6643 = vsel %vm6642, %v6635, %v6639
      %v6644 = vand.u32 2147483647, %v5997
      %vm6645 = vcmp.eq.f32.partialorder %v6644, 8.507059e+37
      %v6646 = vand.u32 %v5997, 2147483648
      %v6647 = vor.u32 1.1754944e-38, %v6646
      %v6648 = vsel %vm6645, %v6647, %v6643
      %v6649 = vmul.f32 1.0, %v6648
      %v6650 = vrcp.pop %v5998
      %v6651 = vmul.f32 %v5998, %v6650
      %v6652 = vsub.f32 1.0, %v6651
      %v6653 = vmul.f32 %v6650, %v6652
      %v6654 = vadd.f32 %v6650, %v6653
      %vm6655 = vweird.f32 %v5998
      %vm6656 = vweird.f32 %v6650
      %vm6657 = vmor %vm6655, %vm6656
      %v6658 = vsel %vm6657, %v6650, %v6654
      %v6659 = vand.u32 2147483647, %v5998
      %vm6660 = vcmp.eq.f32.partialorder %v6659, 8.507059e+37
      %v6661 = vand.u32 %v5998, 2147483648
      %v6662 = vor.u32 1.1754944e-38, %v6661
      %v6663 = vsel %vm6660, %v6662, %v6658
      %v6664 = vmul.f32 1.0, %v6663
      %v6665 = vrcp.pop %v5999
      %v6666 = vmul.f32 %v5999, %v6665
      %v6667 = vsub.f32 1.0, %v6666
      %v6668 = vmul.f32 %v6665, %v6667
      %v6669 = vadd.f32 %v6665, %v6668
      %vm6670 = vweird.f32 %v5999
      %vm6671 = vweird.f32 %v6665
      %vm6672 = vmor %vm6670, %vm6671
      %v6673 = vsel %vm6672, %v6665, %v6669
      %v6674 = vand.u32 2147483647, %v5999
      %vm6675 = vcmp.eq.f32.partialorder %v6674, 8.507059e+37
      %v6676 = vand.u32 %v5999, 2147483648
      %v6677 = vor.u32 1.1754944e-38, %v6676
      %v6678 = vsel %vm6675, %v6677, %v6673
      %v6679 = vmul.f32 1.0, %v6678
      %v6680 = vrcp.pop %v6000
      %v6681 = vmul.f32 %v6000, %v6680
      %v6682 = vsub.f32 1.0, %v6681
      %v6683 = vmul.f32 %v6680, %v6682
      %v6684 = vadd.f32 %v6680, %v6683
      %vm6685 = vweird.f32 %v6000
      %vm6686 = vweird.f32 %v6680
      %vm6687 = vmor %vm6685, %vm6686
      %v6688 = vsel %vm6687, %v6680, %v6684
      %v6689 = vand.u32 2147483647, %v6000
      %vm6690 = vcmp.eq.f32.partialorder %v6689, 8.507059e+37
      %v6691 = vand.u32 %v6000, 2147483648
      %v6692 = vor.u32 1.1754944e-38, %v6691
      %v6693 = vsel %vm6690, %v6692, %v6688
      %v6694 = vmul.f32 1.0, %v6693
      %v6695 = vrcp.pop %v6001
      %v6696 = vmul.f32 %v6001, %v6695
      %v6697 = vsub.f32 1.0, %v6696
      %v6698 = vmul.f32 %v6695, %v6697
      %v6699 = vadd.f32 %v6695, %v6698
      %vm6700 = vweird.f32 %v6001
      %vm6701 = vweird.f32 %v6695
      %vm6702 = vmor %vm6700, %vm6701
      %v6703 = vsel %vm6702, %v6695, %v6699
      %v6704 = vand.u32 2147483647, %v6001
      %vm6705 = vcmp.eq.f32.partialorder %v6704, 8.507059e+37
      %v6706 = vand.u32 %v6001, 2147483648
      %v6707 = vor.u32 1.1754944e-38, %v6706
      %v6708 = vsel %vm6705, %v6707, %v6703
      %v6709 = vmul.f32 1.0, %v6708
      %v6710 = vrcp.pop %v6002
      %v6711 = vmul.f32 %v6002, %v6710
      %v6712 = vsub.f32 1.0, %v6711
      %v6713 = vmul.f32 %v6710, %v6712
      %v6714 = vadd.f32 %v6710, %v6713
      %vm6715 = vweird.f32 %v6002
      %vm6716 = vweird.f32 %v6710
      %vm6717 = vmor %vm6715, %vm6716
      %v6718 = vsel %vm6717, %v6710, %v6714
      %v6719 = vand.u32 2147483647, %v6002
      %vm6720 = vcmp.eq.f32.partialorder %v6719, 8.507059e+37
      %v6721 = vand.u32 %v6002, 2147483648
      %v6722 = vor.u32 1.1754944e-38, %v6721
      %v6723 = vsel %vm6720, %v6722, %v6718
      %v6724 = vmul.f32 1.0, %v6723
      %v6725 = vrcp.pop %v6003
      %v6726 = vmul.f32 %v6003, %v6725
      %v6727 = vsub.f32 1.0, %v6726
      %v6728 = vmul.f32 %v6725, %v6727
      %v6729 = vadd.f32 %v6725, %v6728
      %vm6730 = vweird.f32 %v6003
      %vm6731 = vweird.f32 %v6725
      %vm6732 = vmor %vm6730, %vm6731
      %v6733 = vsel %vm6732, %v6725, %v6729
      %v6734 = vand.u32 2147483647, %v6003
      %vm6735 = vcmp.eq.f32.partialorder %v6734, 8.507059e+37
      %v6736 = vand.u32 %v6003, 2147483648
      %v6737 = vor.u32 1.1754944e-38, %v6736
      %v6738 = vsel %vm6735, %v6737, %v6733
      %v6739 = vmul.f32 1.0, %v6738
      %v6740 = vrcp.pop %v6004
      %v6741 = vmul.f32 %v6004, %v6740
      %v6742 = vsub.f32 1.0, %v6741
      %v6743 = vmul.f32 %v6740, %v6742
      %v6744 = vadd.f32 %v6740, %v6743
      %vm6745 = vweird.f32 %v6004
      %vm6746 = vweird.f32 %v6740
      %vm6747 = vmor %vm6745, %vm6746
      %v6748 = vsel %vm6747, %v6740, %v6744
      %v6749 = vand.u32 2147483647, %v6004
      %vm6750 = vcmp.eq.f32.partialorder %v6749, 8.507059e+37
      %v6751 = vand.u32 %v6004, 2147483648
      %v6752 = vor.u32 1.1754944e-38, %v6751
      %v6753 = vsel %vm6750, %v6752, %v6748
      %v6754 = vmul.f32 1.0, %v6753
      %v6755 = vrcp.pop %v6005
      %v6756 = vmul.f32 %v6005, %v6755
      %v6757 = vsub.f32 1.0, %v6756
      %v6758 = vmul.f32 %v6755, %v6757
      %v6759 = vadd.f32 %v6755, %v6758
      %vm6760 = vweird.f32 %v6005
      %vm6761 = vweird.f32 %v6755
      %vm6762 = vmor %vm6760, %vm6761
      %v6763 = vsel %vm6762, %v6755, %v6759
      %v6764 = vand.u32 2147483647, %v6005
      %vm6765 = vcmp.eq.f32.partialorder %v6764, 8.507059e+37
      %v6766 = vand.u32 %v6005, 2147483648
      %v6767 = vor.u32 1.1754944e-38, %v6766
      %v6768 = vsel %vm6765, %v6767, %v6763
      %v6769 = vmul.f32 1.0, %v6768
      %v6770 = vrcp.pop %v6006
      %v6771 = vmul.f32 %v6006, %v6770
      %v6772 = vsub.f32 1.0, %v6771
      %v6773 = vmul.f32 %v6770, %v6772
      %v6774 = vadd.f32 %v6770, %v6773
      %vm6775 = vweird.f32 %v6006
      %vm6776 = vweird.f32 %v6770
      %vm6777 = vmor %vm6775, %vm6776
      %v6778 = vsel %vm6777, %v6770, %v6774
      %v6779 = vand.u32 2147483647, %v6006
      %vm6780 = vcmp.eq.f32.partialorder %v6779, 8.507059e+37
      %v6781 = vand.u32 %v6006, 2147483648
      %v6782 = vor.u32 1.1754944e-38, %v6781
      %v6783 = vsel %vm6780, %v6782, %v6778
      %v6784 = vmul.f32 1.0, %v6783
      %v6785 = vrcp.pop %v6007
      %v6786 = vmul.f32 %v6007, %v6785
      %v6787 = vsub.f32 1.0, %v6786
      %v6788 = vmul.f32 %v6785, %v6787
      %v6789 = vadd.f32 %v6785, %v6788
      %vm6790 = vweird.f32 %v6007
      %vm6791 = vweird.f32 %v6785
      %vm6792 = vmor %vm6790, %vm6791
      %v6793 = vsel %vm6792, %v6785, %v6789
      %v6794 = vand.u32 2147483647, %v6007
      %vm6795 = vcmp.eq.f32.partialorder %v6794, 8.507059e+37
      %v6796 = vand.u32 %v6007, 2147483648
      %v6797 = vor.u32 1.1754944e-38, %v6796
      %v6798 = vsel %vm6795, %v6797, %v6793
      %v6799 = vmul.f32 1.0, %v6798
      %v6800 = vrcp.pop %v6008
      %v6801 = vmul.f32 %v6008, %v6800
      %v6802 = vsub.f32 1.0, %v6801
      %v6803 = vmul.f32 %v6800, %v6802
      %v6804 = vadd.f32 %v6800, %v6803
      %vm6805 = vweird.f32 %v6008
      %vm6806 = vweird.f32 %v6800
      %vm6807 = vmor %vm6805, %vm6806
      %v6808 = vsel %vm6807, %v6800, %v6804
      %v6809 = vand.u32 2147483647, %v6008
      %vm6810 = vcmp.eq.f32.partialorder %v6809, 8.507059e+37
      %v6811 = vand.u32 %v6008, 2147483648
      %v6812 = vor.u32 1.1754944e-38, %v6811
      %v6813 = vsel %vm6810, %v6812, %v6808
      %v6814 = vmul.f32 1.0, %v6813
      %v6815 = vrcp.pop %v6009
      %v6816 = vmul.f32 %v6009, %v6815
      %v6817 = vsub.f32 1.0, %v6816
      %v6818 = vmul.f32 %v6815, %v6817
      %v6819 = vadd.f32 %v6815, %v6818
      %vm6820 = vweird.f32 %v6009
      %vm6821 = vweird.f32 %v6815
      %vm6822 = vmor %vm6820, %vm6821
      %v6823 = vsel %vm6822, %v6815, %v6819
      %v6824 = vand.u32 2147483647, %v6009
      %vm6825 = vcmp.eq.f32.partialorder %v6824, 8.507059e+37
      %v6826 = vand.u32 %v6009, 2147483648
      %v6827 = vor.u32 1.1754944e-38, %v6826
      %v6828 = vsel %vm6825, %v6827, %v6823
      %v6829 = vmul.f32 1.0, %v6828
      %v6830 = vrcp.pop %v6010
      %v6831 = vmul.f32 %v6010, %v6830
      %v6832 = vsub.f32 1.0, %v6831
      %v6833 = vmul.f32 %v6830, %v6832
      %v6834 = vadd.f32 %v6830, %v6833
      %vm6835 = vweird.f32 %v6010
      %vm6836 = vweird.f32 %v6830
      %vm6837 = vmor %vm6835, %vm6836
      %v6838 = vsel %vm6837, %v6830, %v6834
      %v6839 = vand.u32 2147483647, %v6010
      %vm6840 = vcmp.eq.f32.partialorder %v6839, 8.507059e+37
      %v6841 = vand.u32 %v6010, 2147483648
      %v6842 = vor.u32 1.1754944e-38, %v6841
      %v6843 = vsel %vm6840, %v6842, %v6838
      %v6844 = vmul.f32 1.0, %v6843
      %v6845 = vrcp.pop %v6011
      %v6846 = vmul.f32 %v6011, %v6845
      %v6847 = vsub.f32 1.0, %v6846
      %v6848 = vmul.f32 %v6845, %v6847
      %v6849 = vadd.f32 %v6845, %v6848
      %vm6850 = vweird.f32 %v6011
      %vm6851 = vweird.f32 %v6845
      %vm6852 = vmor %vm6850, %vm6851
      %v6853 = vsel %vm6852, %v6845, %v6849
      %v6854 = vand.u32 2147483647, %v6011
      %vm6855 = vcmp.eq.f32.partialorder %v6854, 8.507059e+37
      %v6856 = vand.u32 %v6011, 2147483648
      %v6857 = vor.u32 1.1754944e-38, %v6856
      %v6858 = vsel %vm6855, %v6857, %v6853
      %v6859 = vmul.f32 1.0, %v6858
      %v6860 = vrcp.pop %v6012
      %v6861 = vmul.f32 %v6012, %v6860
      %v6862 = vsub.f32 1.0, %v6861
      %v6863 = vmul.f32 %v6860, %v6862
      %v6864 = vadd.f32 %v6860, %v6863
      %vm6865 = vweird.f32 %v6012
      %vm6866 = vweird.f32 %v6860
      %vm6867 = vmor %vm6865, %vm6866
      %v6868 = vsel %vm6867, %v6860, %v6864
      %v6869 = vand.u32 2147483647, %v6012
      %vm6870 = vcmp.eq.f32.partialorder %v6869, 8.507059e+37
      %v6871 = vand.u32 %v6012, 2147483648
      %v6872 = vor.u32 1.1754944e-38, %v6871
      %v6873 = vsel %vm6870, %v6872, %v6868
      %v6874 = vmul.f32 1.0, %v6873
      %v6875 = vrcp.pop %v6013
      %v6876 = vmul.f32 %v6013, %v6875
      %v6877 = vsub.f32 1.0, %v6876
      %v6878 = vmul.f32 %v6875, %v6877
      %v6879 = vadd.f32 %v6875, %v6878
      %vm6880 = vweird.f32 %v6013
      %vm6881 = vweird.f32 %v6875
      %vm6882 = vmor %vm6880, %vm6881
      %v6883 = vsel %vm6882, %v6875, %v6879
      %v6884 = vand.u32 2147483647, %v6013
      %vm6885 = vcmp.eq.f32.partialorder %v6884, 8.507059e+37
      %v6886 = vand.u32 %v6013, 2147483648
      %v6887 = vor.u32 1.1754944e-38, %v6886
      %v6888 = vsel %vm6885, %v6887, %v6883
      %v6889 = vmul.f32 1.0, %v6888
      %v6890 = vrcp.pop %v6014
      %v6891 = vmul.f32 %v6014, %v6890
      %v6892 = vsub.f32 1.0, %v6891
      %v6893 = vmul.f32 %v6890, %v6892
      %v6894 = vadd.f32 %v6890, %v6893
      %vm6895 = vweird.f32 %v6014
      %vm6896 = vweird.f32 %v6890
      %vm6897 = vmor %vm6895, %vm6896
      %v6898 = vsel %vm6897, %v6890, %v6894
      %v6899 = vand.u32 2147483647, %v6014
      %vm6900 = vcmp.eq.f32.partialorder %v6899, 8.507059e+37
      %v6901 = vand.u32 %v6014, 2147483648
      %v6902 = vor.u32 1.1754944e-38, %v6901
      %v6903 = vsel %vm6900, %v6902, %v6898
      %v6904 = vmul.f32 1.0, %v6903
      %v6905 = vrcp.pop %v6015
      %v6906 = vmul.f32 %v6015, %v6905
      %v6907 = vsub.f32 1.0, %v6906
      %v6908 = vmul.f32 %v6905, %v6907
      %v6909 = vadd.f32 %v6905, %v6908
      %vm6910 = vweird.f32 %v6015
      %vm6911 = vweird.f32 %v6905
      %vm6912 = vmor %vm6910, %vm6911
      %v6913 = vsel %vm6912, %v6905, %v6909
      %v6914 = vand.u32 2147483647, %v6015
      %vm6915 = vcmp.eq.f32.partialorder %v6914, 8.507059e+37
      %v6916 = vand.u32 %v6015, 2147483648
      %v6917 = vor.u32 1.1754944e-38, %v6916
      %v6918 = vsel %vm6915, %v6917, %v6913
      %v6919 = vmul.f32 1.0, %v6918
      %v6920 = vrcp.pop %v6016
      %v6921 = vmul.f32 %v6016, %v6920
      %v6922 = vsub.f32 1.0, %v6921
      %v6923 = vmul.f32 %v6920, %v6922
      %v6924 = vadd.f32 %v6920, %v6923
      %vm6925 = vweird.f32 %v6016
      %vm6926 = vweird.f32 %v6920
      %vm6927 = vmor %vm6925, %vm6926
      %v6928 = vsel %vm6927, %v6920, %v6924
      %v6929 = vand.u32 2147483647, %v6016
      %vm6930 = vcmp.eq.f32.partialorder %v6929, 8.507059e+37
      %v6931 = vand.u32 %v6016, 2147483648
      %v6932 = vor.u32 1.1754944e-38, %v6931
      %v6933 = vsel %vm6930, %v6932, %v6928
      %v6934 = vmul.f32 1.0, %v6933
      %v6935 = vrcp.pop %v6017
      %v6936 = vmul.f32 %v6017, %v6935
      %v6937 = vsub.f32 1.0, %v6936
      %v6938 = vmul.f32 %v6935, %v6937
      %v6939 = vadd.f32 %v6935, %v6938
      %vm6940 = vweird.f32 %v6017
      %vm6941 = vweird.f32 %v6935
      %vm6942 = vmor %vm6940, %vm6941
      %v6943 = vsel %vm6942, %v6935, %v6939
      %v6944 = vand.u32 2147483647, %v6017
      %vm6945 = vcmp.eq.f32.partialorder %v6944, 8.507059e+37
      %v6946 = vand.u32 %v6017, 2147483648
      %v6947 = vor.u32 1.1754944e-38, %v6946
      %v6948 = vsel %vm6945, %v6947, %v6943
      %v6949 = vmul.f32 1.0, %v6948
      %v6950 = vrcp.pop %v6018
      %v6951 = vmul.f32 %v6018, %v6950
      %v6952 = vsub.f32 1.0, %v6951
      %v6953 = vmul.f32 %v6950, %v6952
      %v6954 = vadd.f32 %v6950, %v6953
      %vm6955 = vweird.f32 %v6018
      %vm6956 = vweird.f32 %v6950
      %vm6957 = vmor %vm6955, %vm6956
      %v6958 = vsel %vm6957, %v6950, %v6954
      %v6959 = vand.u32 2147483647, %v6018
      %vm6960 = vcmp.eq.f32.partialorder %v6959, 8.507059e+37
      %v6961 = vand.u32 %v6018, 2147483648
      %v6962 = vor.u32 1.1754944e-38, %v6961
      %v6963 = vsel %vm6960, %v6962, %v6958
      %v6964 = vmul.f32 1.0, %v6963
      %v6965 = vrcp.pop %v6019
      %v6966 = vmul.f32 %v6019, %v6965
      %v6967 = vsub.f32 1.0, %v6966
      %v6968 = vmul.f32 %v6965, %v6967
      %v6969 = vadd.f32 %v6965, %v6968
      %vm6970 = vweird.f32 %v6019
      %vm6971 = vweird.f32 %v6965
      %vm6972 = vmor %vm6970, %vm6971
      %v6973 = vsel %vm6972, %v6965, %v6969
      %v6974 = vand.u32 2147483647, %v6019
      %vm6975 = vcmp.eq.f32.partialorder %v6974, 8.507059e+37
      %v6976 = vand.u32 %v6019, 2147483648
      %v6977 = vor.u32 1.1754944e-38, %v6976
      %v6978 = vsel %vm6975, %v6977, %v6973
      %v6979 = vmul.f32 1.0, %v6978
      %v6980 = vmul.f32 %v5573, 0.09531018
      %v6981 = vmul.f32 %v5576, 0.09531018
      %v6982 = vmul.f32 %v5579, 0.09531018
      %v6983 = vmul.f32 %v5582, 0.09531018
      %v6984 = vmul.f32 %v5585, 0.09531018
      %v6985 = vmul.f32 %v5588, 0.09531018
      %v6986 = vmul.f32 %v5591, 0.09531018
      %v6987 = vmul.f32 %v5594, 0.09531018
      %v6988 = vmul.f32 %v5597, 0.09531018
      %v6989 = vmul.f32 %v5600, 0.09531018
      %v6990 = vmul.f32 %v5603, 0.09531018
      %v6991 = vmul.f32 %v5606, 0.09531018
      %v6992 = vmul.f32 %v5609, 0.09531018
      %v6993 = vmul.f32 %v5612, 0.09531018
      %v6994 = vmul.f32 %v5615, 0.09531018
      %v6995 = vmul.f32 %v5618, 0.09531018
      %v6996 = vmul.f32 %v5621, 0.09531018
      %v6997 = vmul.f32 %v5624, 0.09531018
      %v6998 = vmul.f32 %v5627, 0.09531018
      %v6999 = vmul.f32 %v5630, 0.09531018
      %v7000 = vmul.f32 %v5633, 0.09531018
      %v7001 = vmul.f32 %v5636, 0.09531018
      %v7002 = vmul.f32 %v5639, 0.09531018
      %v7003 = vmul.f32 %v5642, 0.09531018
      %v7004 = vmul.f32 %v5645, 0.09531018
      %v7005 = vmul.f32 %v5648, 0.09531018
      %v7006 = vmul.f32 %v5651, 0.09531018
      %v7007 = vmul.f32 %v5654, 0.09531018
      %v7008 = vmul.f32 %v5657, 0.09531018
      %v7009 = vmul.f32 %v5660, 0.09531018
      %v7010 = vmul.f32 %v5663, 0.09531018
      %v7011 = vmul.f32 %v5666, 0.09531018
      %v7012 = vmul.f32 %v5669, 0.09531018
      %v7013 = vmul.f32 %v5672, 0.09531018
      %v7014 = vmul.f32 %v5675, 0.09531018
      %v7015 = vmul.f32 %v5678, 0.09531018
      %v7016 = vmul.f32 %v5681, 0.09531018
      %v7017 = vmul.f32 %v5684, 0.09531018
      %v7018 = vmul.f32 %v5687, 0.09531018
      %v7019 = vmul.f32 %v5690, 0.09531018
      %v7020 = vmul.f32 %v5693, 0.09531018
      %v7021 = vmul.f32 %v5696, 0.09531018
      %v7022 = vmul.f32 %v5699, 0.09531018
      %v7023 = vmul.f32 %v5702, 0.09531018
      %v7024 = vmul.f32 %v5705, 0.09531018
      %v7025 = vmul.f32 %v5708, 0.09531018
      %v7026 = vmul.f32 %v5711, 0.09531018
      %v7027 = vmul.f32 %v5714, 0.09531018
      %v7028 = vmul.f32 %v5717, 0.09531018
      %v7029 = vmul.f32 %v5720, 0.09531018
      %v7030 = vmul.f32 %v5723, 0.09531018
      %v7031 = vmul.f32 %v5726, 0.09531018
      %v7032 = vmul.f32 %v5729, 0.09531018
      %v7033 = vmul.f32 %v5732, 0.09531018
      %v7034 = vmul.f32 %v5735, 0.09531018
      %v7035 = vmul.f32 %v5738, 0.09531018
      %v7036 = vmul.f32 %v5741, 0.09531018
      %v7037 = vmul.f32 %v5744, 0.09531018
      %v7038 = vmul.f32 %v5747, 0.09531018
      %v7039 = vmul.f32 %v5750, 0.09531018
      %v7040 = vmul.f32 %v5753, 0.09531018
      %v7041 = vmul.f32 %v5756, 0.09531018
      %v7042 = vmul.f32 %v5759, 0.09531018
      %v7043 = vmul.f32 %v5762, 0.09531018
      %v7044 = vmul.f32 %v6980, 1.442695
      %v7045 = vpow.pop %v7044
      %v7046 = vmul.f32 %v6981, 1.442695
      %v7047 = vpow.pop %v7046
      %v7048 = vmul.f32 %v6982, 1.442695
      %v7049 = vpow.pop %v7048
      %v7050 = vmul.f32 %v6983, 1.442695
      %v7051 = vpow.pop %v7050
      %v7052 = vmul.f32 %v6984, 1.442695
      %v7053 = vpow.pop %v7052
      %v7054 = vmul.f32 %v6985, 1.442695
      %v7055 = vpow.pop %v7054
      %v7056 = vmul.f32 %v6986, 1.442695
      %v7057 = vpow.pop %v7056
      %v7058 = vmul.f32 %v6987, 1.442695
      %v7059 = vpow.pop %v7058
      %v7060 = vmul.f32 %v6988, 1.442695
      %v7061 = vpow.pop %v7060
      %v7062 = vmul.f32 %v6989, 1.442695
      %v7063 = vpow.pop %v7062
      %v7064 = vmul.f32 %v6990, 1.442695
      %v7065 = vpow.pop %v7064
      %v7066 = vmul.f32 %v6991, 1.442695
      %v7067 = vpow.pop %v7066
      %v7068 = vmul.f32 %v6992, 1.442695
      %v7069 = vpow.pop %v7068
      %v7070 = vmul.f32 %v6993, 1.442695
      %v7071 = vpow.pop %v7070
      %v7072 = vmul.f32 %v6994, 1.442695
      %v7073 = vpow.pop %v7072
      %v7074 = vmul.f32 %v6995, 1.442695
      %v7075 = vpow.pop %v7074
      %v7076 = vmul.f32 %v6996, 1.442695
      %v7077 = vpow.pop %v7076
      %v7078 = vmul.f32 %v6997, 1.442695
      %v7079 = vpow.pop %v7078
      %v7080 = vmul.f32 %v6998, 1.442695
      %v7081 = vpow.pop %v7080
      %v7082 = vmul.f32 %v6999, 1.442695
      %v7083 = vpow.pop %v7082
      %v7084 = vmul.f32 %v7000, 1.442695
      %v7085 = vpow.pop %v7084
      %v7086 = vmul.f32 %v7001, 1.442695
      %v7087 = vpow.pop %v7086
      %v7088 = vmul.f32 %v7002, 1.442695
      %v7089 = vpow.pop %v7088
      %v7090 = vmul.f32 %v7003, 1.442695
      %v7091 = vpow.pop %v7090
      %v7092 = vmul.f32 %v7004, 1.442695
      %v7093 = vpow.pop %v7092
      %v7094 = vmul.f32 %v7005, 1.442695
      %v7095 = vpow.pop %v7094
      %v7096 = vmul.f32 %v7006, 1.442695
      %v7097 = vpow.pop %v7096
      %v7098 = vmul.f32 %v7007, 1.442695
      %v7099 = vpow.pop %v7098
      %v7100 = vmul.f32 %v7008, 1.442695
      %v7101 = vpow.pop %v7100
      %v7102 = vmul.f32 %v7009, 1.442695
      %v7103 = vpow.pop %v7102
      %v7104 = vmul.f32 %v7010, 1.442695
      %v7105 = vpow.pop %v7104
      %v7106 = vmul.f32 %v7011, 1.442695
      %v7107 = vpow.pop %v7106
      %v7108 = vmul.f32 %v7012, 1.442695
      %v7109 = vpow.pop %v7108
      %v7110 = vmul.f32 %v7013, 1.442695
      %v7111 = vpow.pop %v7110
      %v7112 = vmul.f32 %v7014, 1.442695
      %v7113 = vpow.pop %v7112
      %v7114 = vmul.f32 %v7015, 1.442695
      %v7115 = vpow.pop %v7114
      %v7116 = vmul.f32 %v7016, 1.442695
      %v7117 = vpow.pop %v7116
      %v7118 = vmul.f32 %v7017, 1.442695
      %v7119 = vpow.pop %v7118
      %v7120 = vmul.f32 %v7018, 1.442695
      %v7121 = vpow.pop %v7120
      %v7122 = vmul.f32 %v7019, 1.442695
      %v7123 = vpow.pop %v7122
      %v7124 = vmul.f32 %v7020, 1.442695
      %v7125 = vpow.pop %v7124
      %v7126 = vmul.f32 %v7021, 1.442695
      %v7127 = vpow.pop %v7126
      %v7128 = vmul.f32 %v7022, 1.442695
      %v7129 = vpow.pop %v7128
      %v7130 = vmul.f32 %v7023, 1.442695
      %v7131 = vpow.pop %v7130
      %v7132 = vmul.f32 %v7024, 1.442695
      %v7133 = vpow.pop %v7132
      %v7134 = vmul.f32 %v7025, 1.442695
      %v7135 = vpow.pop %v7134
      %v7136 = vmul.f32 %v7026, 1.442695
      %v7137 = vpow.pop %v7136
      %v7138 = vmul.f32 %v7027, 1.442695
      %v7139 = vpow.pop %v7138
      %v7140 = vmul.f32 %v7028, 1.442695
      %v7141 = vpow.pop %v7140
      %v7142 = vmul.f32 %v7029, 1.442695
      %v7143 = vpow.pop %v7142
      %v7144 = vmul.f32 %v7030, 1.442695
      %v7145 = vpow.pop %v7144
      %v7146 = vmul.f32 %v7031, 1.442695
      %v7147 = vpow.pop %v7146
      %v7148 = vmul.f32 %v7032, 1.442695
      %v7149 = vpow.pop %v7148
      %v7150 = vmul.f32 %v7033, 1.442695
      %v7151 = vpow.pop %v7150
      %v7152 = vmul.f32 %v7034, 1.442695
      %v7153 = vpow.pop %v7152
      %v7154 = vmul.f32 %v7035, 1.442695
      %v7155 = vpow.pop %v7154
      %v7156 = vmul.f32 %v7036, 1.442695
      %v7157 = vpow.pop %v7156
      %v7158 = vmul.f32 %v7037, 1.442695
      %v7159 = vpow.pop %v7158
      %v7160 = vmul.f32 %v7038, 1.442695
      %v7161 = vpow.pop %v7160
      %v7162 = vmul.f32 %v7039, 1.442695
      %v7163 = vpow.pop %v7162
      %v7164 = vmul.f32 %v7040, 1.442695
      %v7165 = vpow.pop %v7164
      %v7166 = vmul.f32 %v7041, 1.442695
      %v7167 = vpow.pop %v7166
      %v7168 = vmul.f32 %v7042, 1.442695
      %v7169 = vpow.pop %v7168
      %v7170 = vmul.f32 %v7043, 1.442695
      %v7171 = vpow.pop %v7170
      %v7172 = vlaneseq
      %v7173 = vand.u32 %v7172, 127
      %vm7174 = vcmp.eq.s32.totalorder %v7173, 0
      %vm7175 = vcmp.eq.s32.totalorder %v7173, 1
      %7177 = vset.pattern.permute.xlu0 1
      %7178 = vperm.xlu0 %7177, %v7045
      %v7179 = vpop.permute.xlu0 %7178
      %7182 = vset.pattern.permute.xlu0 1
      %7183 = vperm.xlu0 %7182, %v7047
      %v7184 = vpop.permute.xlu0 %7183
      %7187 = vset.pattern.permute.xlu0 1
      %7188 = vperm.xlu0 %7187, %v7049
      %v7189 = vpop.permute.xlu0 %7188
      %7192 = vset.pattern.permute.xlu0 1
      %7193 = vperm.xlu0 %7192, %v7051
      %v7194 = vpop.permute.xlu0 %7193
      %7197 = vset.pattern.permute.xlu0 1
      %7198 = vperm.xlu0 %7197, %v7053
      %v7199 = vpop.permute.xlu0 %7198
      %7202 = vset.pattern.permute.xlu0 1
      %7203 = vperm.xlu0 %7202, %v7055
      %v7204 = vpop.permute.xlu0 %7203
      %7207 = vset.pattern.permute.xlu0 1
      %7208 = vperm.xlu0 %7207, %v7057
      %v7209 = vpop.permute.xlu0 %7208
      %7212 = vset.pattern.permute.xlu0 1
      %7213 = vperm.xlu0 %7212, %v7059
      %v7214 = vpop.permute.xlu0 %7213
      %7217 = vset.pattern.permute.xlu0 1
      %7218 = vperm.xlu0 %7217, %v7061
      %v7219 = vpop.permute.xlu0 %7218
      %7222 = vset.pattern.permute.xlu0 1
      %7223 = vperm.xlu0 %7222, %v7063
      %v7224 = vpop.permute.xlu0 %7223
      %7227 = vset.pattern.permute.xlu0 1
      %7228 = vperm.xlu0 %7227, %v7065
      %v7229 = vpop.permute.xlu0 %7228
      %7232 = vset.pattern.permute.xlu0 1
      %7233 = vperm.xlu0 %7232, %v7067
      %v7234 = vpop.permute.xlu0 %7233
      %7237 = vset.pattern.permute.xlu0 1
      %7238 = vperm.xlu0 %7237, %v7069
      %v7239 = vpop.permute.xlu0 %7238
      %7242 = vset.pattern.permute.xlu0 1
      %7243 = vperm.xlu0 %7242, %v7071
      %v7244 = vpop.permute.xlu0 %7243
      %7247 = vset.pattern.permute.xlu0 1
      %7248 = vperm.xlu0 %7247, %v7073
      %v7249 = vpop.permute.xlu0 %7248
      %7252 = vset.pattern.permute.xlu0 1
      %7253 = vperm.xlu0 %7252, %v7075
      %v7254 = vpop.permute.xlu0 %7253
      %7257 = vset.pattern.permute.xlu0 1
      %7258 = vperm.xlu0 %7257, %v7077
      %v7259 = vpop.permute.xlu0 %7258
      %7262 = vset.pattern.permute.xlu0 1
      %7263 = vperm.xlu0 %7262, %v7079
      %v7264 = vpop.permute.xlu0 %7263
      %7267 = vset.pattern.permute.xlu0 1
      %7268 = vperm.xlu0 %7267, %v7081
      %v7269 = vpop.permute.xlu0 %7268
      %7272 = vset.pattern.permute.xlu0 1
      %7273 = vperm.xlu0 %7272, %v7083
      %v7274 = vpop.permute.xlu0 %7273
      %7277 = vset.pattern.permute.xlu0 1
      %7278 = vperm.xlu0 %7277, %v7085
      %v7279 = vpop.permute.xlu0 %7278
      %7282 = vset.pattern.permute.xlu0 1
      %7283 = vperm.xlu0 %7282, %v7087
      %v7284 = vpop.permute.xlu0 %7283
      %7287 = vset.pattern.permute.xlu0 1
      %7288 = vperm.xlu0 %7287, %v7089
      %v7289 = vpop.permute.xlu0 %7288
      %7292 = vset.pattern.permute.xlu0 1
      %7293 = vperm.xlu0 %7292, %v7091
      %v7294 = vpop.permute.xlu0 %7293
      %7297 = vset.pattern.permute.xlu0 1
      %7298 = vperm.xlu0 %7297, %v7093
      %v7299 = vpop.permute.xlu0 %7298
      %7302 = vset.pattern.permute.xlu0 1
      %7303 = vperm.xlu0 %7302, %v7095
      %v7304 = vpop.permute.xlu0 %7303
      %7307 = vset.pattern.permute.xlu0 1
      %7308 = vperm.xlu0 %7307, %v7097
      %v7309 = vpop.permute.xlu0 %7308
      %7312 = vset.pattern.permute.xlu0 1
      %7313 = vperm.xlu0 %7312, %v7099
      %v7314 = vpop.permute.xlu0 %7313
      %7317 = vset.pattern.permute.xlu0 1
      %7318 = vperm.xlu0 %7317, %v7101
      %v7319 = vpop.permute.xlu0 %7318
      %7322 = vset.pattern.permute.xlu0 1
      %7323 = vperm.xlu0 %7322, %v7103
      %v7324 = vpop.permute.xlu0 %7323
      %7327 = vset.pattern.permute.xlu0 1
      %7328 = vperm.xlu0 %7327, %v7105
      %v7329 = vpop.permute.xlu0 %7328
      %7332 = vset.pattern.permute.xlu0 1
      %7333 = vperm.xlu0 %7332, %v7107
      %v7334 = vpop.permute.xlu0 %7333
      %7337 = vset.pattern.permute.xlu0 1
      %7338 = vperm.xlu0 %7337, %v7109
      %v7339 = vpop.permute.xlu0 %7338
      %7342 = vset.pattern.permute.xlu0 1
      %7343 = vperm.xlu0 %7342, %v7111
      %v7344 = vpop.permute.xlu0 %7343
      %7347 = vset.pattern.permute.xlu0 1
      %7348 = vperm.xlu0 %7347, %v7113
      %v7349 = vpop.permute.xlu0 %7348
      %7352 = vset.pattern.permute.xlu0 1
      %7353 = vperm.xlu0 %7352, %v7115
      %v7354 = vpop.permute.xlu0 %7353
      %7357 = vset.pattern.permute.xlu0 1
      %7358 = vperm.xlu0 %7357, %v7117
      %v7359 = vpop.permute.xlu0 %7358
      %7362 = vset.pattern.permute.xlu0 1
      %7363 = vperm.xlu0 %7362, %v7119
      %v7364 = vpop.permute.xlu0 %7363
      %7367 = vset.pattern.permute.xlu0 1
      %7368 = vperm.xlu0 %7367, %v7121
      %v7369 = vpop.permute.xlu0 %7368
      %7372 = vset.pattern.permute.xlu0 1
      %7373 = vperm.xlu0 %7372, %v7123
      %v7374 = vpop.permute.xlu0 %7373
      %7377 = vset.pattern.permute.xlu0 1
      %7378 = vperm.xlu0 %7377, %v7125
      %v7379 = vpop.permute.xlu0 %7378
      %7382 = vset.pattern.permute.xlu0 1
      %7383 = vperm.xlu0 %7382, %v7127
      %v7384 = vpop.permute.xlu0 %7383
      %7387 = vset.pattern.permute.xlu0 1
      %7388 = vperm.xlu0 %7387, %v7129
      %v7389 = vpop.permute.xlu0 %7388
      %7392 = vset.pattern.permute.xlu0 1
      %7393 = vperm.xlu0 %7392, %v7131
      %v7394 = vpop.permute.xlu0 %7393
      %7397 = vset.pattern.permute.xlu0 1
      %7398 = vperm.xlu0 %7397, %v7133
      %v7399 = vpop.permute.xlu0 %7398
      %7402 = vset.pattern.permute.xlu0 1
      %7403 = vperm.xlu0 %7402, %v7135
      %v7404 = vpop.permute.xlu0 %7403
      %7407 = vset.pattern.permute.xlu0 1
      %7408 = vperm.xlu0 %7407, %v7137
      %v7409 = vpop.permute.xlu0 %7408
      %7412 = vset.pattern.permute.xlu0 1
      %7413 = vperm.xlu0 %7412, %v7139
      %v7414 = vpop.permute.xlu0 %7413
      %7417 = vset.pattern.permute.xlu0 1
      %7418 = vperm.xlu0 %7417, %v7141
      %v7419 = vpop.permute.xlu0 %7418
      %7422 = vset.pattern.permute.xlu0 1
      %7423 = vperm.xlu0 %7422, %v7143
      %v7424 = vpop.permute.xlu0 %7423
      %7427 = vset.pattern.permute.xlu0 1
      %7428 = vperm.xlu0 %7427, %v7145
      %v7429 = vpop.permute.xlu0 %7428
      %7432 = vset.pattern.permute.xlu0 1
      %7433 = vperm.xlu0 %7432, %v7147
      %v7434 = vpop.permute.xlu0 %7433
      %7437 = vset.pattern.permute.xlu0 1
      %7438 = vperm.xlu0 %7437, %v7149
      %v7439 = vpop.permute.xlu0 %7438
      %7442 = vset.pattern.permute.xlu0 1
      %7443 = vperm.xlu0 %7442, %v7151
      %v7444 = vpop.permute.xlu0 %7443
      %7447 = vset.pattern.permute.xlu0 1
      %7448 = vperm.xlu0 %7447, %v7153
      %v7449 = vpop.permute.xlu0 %7448
      %7452 = vset.pattern.permute.xlu0 1
      %7453 = vperm.xlu0 %7452, %v7155
      %v7454 = vpop.permute.xlu0 %7453
      %7457 = vset.pattern.permute.xlu0 1
      %7458 = vperm.xlu0 %7457, %v7157
      %v7459 = vpop.permute.xlu0 %7458
      %7462 = vset.pattern.permute.xlu0 1
      %7463 = vperm.xlu0 %7462, %v7159
      %v7464 = vpop.permute.xlu0 %7463
      %7467 = vset.pattern.permute.xlu0 1
      %7468 = vperm.xlu0 %7467, %v7161
      %v7469 = vpop.permute.xlu0 %7468
      %7472 = vset.pattern.permute.xlu0 1
      %7473 = vperm.xlu0 %7472, %v7163
      %v7474 = vpop.permute.xlu0 %7473
      %7477 = vset.pattern.permute.xlu0 1
      %7478 = vperm.xlu0 %7477, %v7165
      %v7479 = vpop.permute.xlu0 %7478
      %7482 = vset.pattern.permute.xlu0 1
      %7483 = vperm.xlu0 %7482, %v7167
      %v7484 = vpop.permute.xlu0 %7483
      %7487 = vset.pattern.permute.xlu0 1
      %7488 = vperm.xlu0 %7487, %v7169
      %v7489 = vpop.permute.xlu0 %7488
      %7492 = vset.pattern.permute.xlu0 1
      %7493 = vperm.xlu0 %7492, %v7171
      %v7494 = vpop.permute.xlu0 %7493
      %v7496 = vsel %vm7175, %v7179, %v5573
      %v7497 = vsel %vm7175, %v7184, %v5576
      %v7498 = vsel %vm7175, %v7189, %v5579
      %v7499 = vsel %vm7175, %v7194, %v5582
      %v7500 = vsel %vm7175, %v7199, %v5585
      %v7501 = vsel %vm7175, %v7204, %v5588
      %v7502 = vsel %vm7175, %v7209, %v5591
      %v7503 = vsel %vm7175, %v7214, %v5594
      %v7504 = vsel %vm7175, %v7219, %v5597
      %v7505 = vsel %vm7175, %v7224, %v5600
      %v7506 = vsel %vm7175, %v7229, %v5603
      %v7507 = vsel %vm7175, %v7234, %v5606
      %v7508 = vsel %vm7175, %v7239, %v5609
      %v7509 = vsel %vm7175, %v7244, %v5612
      %v7510 = vsel %vm7175, %v7249, %v5615
      %v7511 = vsel %vm7175, %v7254, %v5618
      %v7512 = vsel %vm7175, %v7259, %v5621
      %v7513 = vsel %vm7175, %v7264, %v5624
      %v7514 = vsel %vm7175, %v7269, %v5627
      %v7515 = vsel %vm7175, %v7274, %v5630
      %v7516 = vsel %vm7175, %v7279, %v5633
      %v7517 = vsel %vm7175, %v7284, %v5636
      %v7518 = vsel %vm7175, %v7289, %v5639
      %v7519 = vsel %vm7175, %v7294, %v5642
      %v7520 = vsel %vm7175, %v7299, %v5645
      %v7521 = vsel %vm7175, %v7304, %v5648
      %v7522 = vsel %vm7175, %v7309, %v5651
      %v7523 = vsel %vm7175, %v7314, %v5654
      %v7524 = vsel %vm7175, %v7319, %v5657
      %v7525 = vsel %vm7175, %v7324, %v5660
      %v7526 = vsel %vm7175, %v7329, %v5663
      %v7527 = vsel %vm7175, %v7334, %v5666
      %v7528 = vsel %vm7175, %v7339, %v5669
      %v7529 = vsel %vm7175, %v7344, %v5672
      %v7530 = vsel %vm7175, %v7349, %v5675
      %v7531 = vsel %vm7175, %v7354, %v5678
      %v7532 = vsel %vm7175, %v7359, %v5681
      %v7533 = vsel %vm7175, %v7364, %v5684
      %v7534 = vsel %vm7175, %v7369, %v5687
      %v7535 = vsel %vm7175, %v7374, %v5690
      %v7536 = vsel %vm7175, %v7379, %v5693
      %v7537 = vsel %vm7175, %v7384, %v5696
      %v7538 = vsel %vm7175, %v7389, %v5699
      %v7539 = vsel %vm7175, %v7394, %v5702
      %v7540 = vsel %vm7175, %v7399, %v5705
      %v7541 = vsel %vm7175, %v7404, %v5708
      %v7542 = vsel %vm7175, %v7409, %v5711
      %v7543 = vsel %vm7175, %v7414, %v5714
      %v7544 = vsel %vm7175, %v7419, %v5717
      %v7545 = vsel %vm7175, %v7424, %v5720
      %v7546 = vsel %vm7175, %v7429, %v5723
      %v7547 = vsel %vm7175, %v7434, %v5726
      %v7548 = vsel %vm7175, %v7439, %v5729
      %v7549 = vsel %vm7175, %v7444, %v5732
      %v7550 = vsel %vm7175, %v7449, %v5735
      %v7551 = vsel %vm7175, %v7454, %v5738
      %v7552 = vsel %vm7175, %v7459, %v5741
      %v7553 = vsel %vm7175, %v7464, %v5744
      %v7554 = vsel %vm7175, %v7469, %v5747
      %v7555 = vsel %vm7175, %v7474, %v5750
      %v7556 = vsel %vm7175, %v7479, %v5753
      %v7557 = vsel %vm7175, %v7484, %v5756
      %v7558 = vsel %vm7175, %v7489, %v5759
      %v7559 = vsel %vm7175, %v7494, %v5762
      %7561 = vset.pattern.permute.xlu0 0
      %7562 = vperm.xlu0 %7561, %v6034
      %v7563 = vpop.permute.xlu0 %7562
      %7566 = vset.pattern.permute.xlu0 0
      %7567 = vperm.xlu0 %7566, %v6049
      %v7568 = vpop.permute.xlu0 %7567
      %7571 = vset.pattern.permute.xlu0 0
      %7572 = vperm.xlu0 %7571, %v6064
      %v7573 = vpop.permute.xlu0 %7572
      %7576 = vset.pattern.permute.xlu0 0
      %7577 = vperm.xlu0 %7576, %v6079
      %v7578 = vpop.permute.xlu0 %7577
      %7581 = vset.pattern.permute.xlu0 0
      %7582 = vperm.xlu0 %7581, %v6094
      %v7583 = vpop.permute.xlu0 %7582
      %7586 = vset.pattern.permute.xlu0 0
      %7587 = vperm.xlu0 %7586, %v6109
      %v7588 = vpop.permute.xlu0 %7587
      %7591 = vset.pattern.permute.xlu0 0
      %7592 = vperm.xlu0 %7591, %v6124
      %v7593 = vpop.permute.xlu0 %7592
      %7596 = vset.pattern.permute.xlu0 0
      %7597 = vperm.xlu0 %7596, %v6139
      %v7598 = vpop.permute.xlu0 %7597
      %7601 = vset.pattern.permute.xlu0 0
      %7602 = vperm.xlu0 %7601, %v6154
      %v7603 = vpop.permute.xlu0 %7602
      %7606 = vset.pattern.permute.xlu0 0
      %7607 = vperm.xlu0 %7606, %v6169
      %v7608 = vpop.permute.xlu0 %7607
      %7611 = vset.pattern.permute.xlu0 0
      %7612 = vperm.xlu0 %7611, %v6184
      %v7613 = vpop.permute.xlu0 %7612
      %7616 = vset.pattern.permute.xlu0 0
      %7617 = vperm.xlu0 %7616, %v6199
      %v7618 = vpop.permute.xlu0 %7617
      %7621 = vset.pattern.permute.xlu0 0
      %7622 = vperm.xlu0 %7621, %v6214
      %v7623 = vpop.permute.xlu0 %7622
      %7626 = vset.pattern.permute.xlu0 0
      %7627 = vperm.xlu0 %7626, %v6229
      %v7628 = vpop.permute.xlu0 %7627
      %7631 = vset.pattern.permute.xlu0 0
      %7632 = vperm.xlu0 %7631, %v6244
      %v7633 = vpop.permute.xlu0 %7632
      %7636 = vset.pattern.permute.xlu0 0
      %7637 = vperm.xlu0 %7636, %v6259
      %v7638 = vpop.permute.xlu0 %7637
      %7641 = vset.pattern.permute.xlu0 0
      %7642 = vperm.xlu0 %7641, %v6274
      %v7643 = vpop.permute.xlu0 %7642
      %7646 = vset.pattern.permute.xlu0 0
      %7647 = vperm.xlu0 %7646, %v6289
      %v7648 = vpop.permute.xlu0 %7647
      %7651 = vset.pattern.permute.xlu0 0
      %7652 = vperm.xlu0 %7651, %v6304
      %v7653 = vpop.permute.xlu0 %7652
      %7656 = vset.pattern.permute.xlu0 0
      %7657 = vperm.xlu0 %7656, %v6319
      %v7658 = vpop.permute.xlu0 %7657
      %7661 = vset.pattern.permute.xlu0 0
      %7662 = vperm.xlu0 %7661, %v6334
      %v7663 = vpop.permute.xlu0 %7662
      %7666 = vset.pattern.permute.xlu0 0
      %7667 = vperm.xlu0 %7666, %v6349
      %v7668 = vpop.permute.xlu0 %7667
      %7671 = vset.pattern.permute.xlu0 0
      %7672 = vperm.xlu0 %7671, %v6364
      %v7673 = vpop.permute.xlu0 %7672
      %7676 = vset.pattern.permute.xlu0 0
      %7677 = vperm.xlu0 %7676, %v6379
      %v7678 = vpop.permute.xlu0 %7677
      %7681 = vset.pattern.permute.xlu0 0
      %7682 = vperm.xlu0 %7681, %v6394
      %v7683 = vpop.permute.xlu0 %7682
      %7686 = vset.pattern.permute.xlu0 0
      %7687 = vperm.xlu0 %7686, %v6409
      %v7688 = vpop.permute.xlu0 %7687
      %7691 = vset.pattern.permute.xlu0 0
      %7692 = vperm.xlu0 %7691, %v6424
      %v7693 = vpop.permute.xlu0 %7692
      %7696 = vset.pattern.permute.xlu0 0
      %7697 = vperm.xlu0 %7696, %v6439
      %v7698 = vpop.permute.xlu0 %7697
      %7701 = vset.pattern.permute.xlu0 0
      %7702 = vperm.xlu0 %7701, %v6454
      %v7703 = vpop.permute.xlu0 %7702
      %7706 = vset.pattern.permute.xlu0 0
      %7707 = vperm.xlu0 %7706, %v6469
      %v7708 = vpop.permute.xlu0 %7707
      %7711 = vset.pattern.permute.xlu0 0
      %7712 = vperm.xlu0 %7711, %v6484
      %v7713 = vpop.permute.xlu0 %7712
      %7716 = vset.pattern.permute.xlu0 0
      %7717 = vperm.xlu0 %7716, %v6499
      %v7718 = vpop.permute.xlu0 %7717
      %7721 = vset.pattern.permute.xlu0 0
      %7722 = vperm.xlu0 %7721, %v6514
      %v7723 = vpop.permute.xlu0 %7722
      %7726 = vset.pattern.permute.xlu0 0
      %7727 = vperm.xlu0 %7726, %v6529
      %v7728 = vpop.permute.xlu0 %7727
      %7731 = vset.pattern.permute.xlu0 0
      %7732 = vperm.xlu0 %7731, %v6544
      %v7733 = vpop.permute.xlu0 %7732
      %7736 = vset.pattern.permute.xlu0 0
      %7737 = vperm.xlu0 %7736, %v6559
      %v7738 = vpop.permute.xlu0 %7737
      %7741 = vset.pattern.permute.xlu0 0
      %7742 = vperm.xlu0 %7741, %v6574
      %v7743 = vpop.permute.xlu0 %7742
      %7746 = vset.pattern.permute.xlu0 0
      %7747 = vperm.xlu0 %7746, %v6589
      %v7748 = vpop.permute.xlu0 %7747
      %7751 = vset.pattern.permute.xlu0 0
      %7752 = vperm.xlu0 %7751, %v6604
      %v7753 = vpop.permute.xlu0 %7752
      %7756 = vset.pattern.permute.xlu0 0
      %7757 = vperm.xlu0 %7756, %v6619
      %v7758 = vpop.permute.xlu0 %7757
      %7761 = vset.pattern.permute.xlu0 0
      %7762 = vperm.xlu0 %7761, %v6634
      %v7763 = vpop.permute.xlu0 %7762
      %7766 = vset.pattern.permute.xlu0 0
      %7767 = vperm.xlu0 %7766, %v6649
      %v7768 = vpop.permute.xlu0 %7767
      %7771 = vset.pattern.permute.xlu0 0
      %7772 = vperm.xlu0 %7771, %v6664
      %v7773 = vpop.permute.xlu0 %7772
      %7776 = vset.pattern.permute.xlu0 0
      %7777 = vperm.xlu0 %7776, %v6679
      %v7778 = vpop.permute.xlu0 %7777
      %7781 = vset.pattern.permute.xlu0 0
      %7782 = vperm.xlu0 %7781, %v6694
      %v7783 = vpop.permute.xlu0 %7782
      %7786 = vset.pattern.permute.xlu0 0
      %7787 = vperm.xlu0 %7786, %v6709
      %v7788 = vpop.permute.xlu0 %7787
      %7791 = vset.pattern.permute.xlu0 0
      %7792 = vperm.xlu0 %7791, %v6724
      %v7793 = vpop.permute.xlu0 %7792
      %7796 = vset.pattern.permute.xlu0 0
      %7797 = vperm.xlu0 %7796, %v6739
      %v7798 = vpop.permute.xlu0 %7797
      %7801 = vset.pattern.permute.xlu0 0
      %7802 = vperm.xlu0 %7801, %v6754
      %v7803 = vpop.permute.xlu0 %7802
      %7806 = vset.pattern.permute.xlu0 0
      %7807 = vperm.xlu0 %7806, %v6769
      %v7808 = vpop.permute.xlu0 %7807
      %7811 = vset.pattern.permute.xlu0 0
      %7812 = vperm.xlu0 %7811, %v6784
      %v7813 = vpop.permute.xlu0 %7812
      %7816 = vset.pattern.permute.xlu0 0
      %7817 = vperm.xlu0 %7816, %v6799
      %v7818 = vpop.permute.xlu0 %7817
      %7821 = vset.pattern.permute.xlu0 0
      %7822 = vperm.xlu0 %7821, %v6814
      %v7823 = vpop.permute.xlu0 %7822
      %7826 = vset.pattern.permute.xlu0 0
      %7827 = vperm.xlu0 %7826, %v6829
      %v7828 = vpop.permute.xlu0 %7827
      %7831 = vset.pattern.permute.xlu0 0
      %7832 = vperm.xlu0 %7831, %v6844
      %v7833 = vpop.permute.xlu0 %7832
      %7836 = vset.pattern.permute.xlu0 0
      %7837 = vperm.xlu0 %7836, %v6859
      %v7838 = vpop.permute.xlu0 %7837
      %7841 = vset.pattern.permute.xlu0 0
      %7842 = vperm.xlu0 %7841, %v6874
      %v7843 = vpop.permute.xlu0 %7842
      %7846 = vset.pattern.permute.xlu0 0
      %7847 = vperm.xlu0 %7846, %v6889
      %v7848 = vpop.permute.xlu0 %7847
      %7851 = vset.pattern.permute.xlu0 0
      %7852 = vperm.xlu0 %7851, %v6904
      %v7853 = vpop.permute.xlu0 %7852
      %7856 = vset.pattern.permute.xlu0 0
      %7857 = vperm.xlu0 %7856, %v6919
      %v7858 = vpop.permute.xlu0 %7857
      %7861 = vset.pattern.permute.xlu0 0
      %7862 = vperm.xlu0 %7861, %v6934
      %v7863 = vpop.permute.xlu0 %7862
      %7866 = vset.pattern.permute.xlu0 0
      %7867 = vperm.xlu0 %7866, %v6949
      %v7868 = vpop.permute.xlu0 %7867
      %7871 = vset.pattern.permute.xlu0 0
      %7872 = vperm.xlu0 %7871, %v6964
      %v7873 = vpop.permute.xlu0 %7872
      %7876 = vset.pattern.permute.xlu0 0
      %7877 = vperm.xlu0 %7876, %v6979
      %v7878 = vpop.permute.xlu0 %7877
      %v7880 = vsel %vm7174, %v7563, %v7496
      %v7881 = vsel %vm7174, %v7568, %v7497
      %v7882 = vsel %vm7174, %v7573, %v7498
      %v7883 = vsel %vm7174, %v7578, %v7499
      %v7884 = vsel %vm7174, %v7583, %v7500
      %v7885 = vsel %vm7174, %v7588, %v7501
      %v7886 = vsel %vm7174, %v7593, %v7502
      %v7887 = vsel %vm7174, %v7598, %v7503
      %v7888 = vsel %vm7174, %v7603, %v7504
      %v7889 = vsel %vm7174, %v7608, %v7505
      %v7890 = vsel %vm7174, %v7613, %v7506
      %v7891 = vsel %vm7174, %v7618, %v7507
      %v7892 = vsel %vm7174, %v7623, %v7508
      %v7893 = vsel %vm7174, %v7628, %v7509
      %v7894 = vsel %vm7174, %v7633, %v7510
      %v7895 = vsel %vm7174, %v7638, %v7511
      %v7896 = vsel %vm7174, %v7643, %v7512
      %v7897 = vsel %vm7174, %v7648, %v7513
      %v7898 = vsel %vm7174, %v7653, %v7514
      %v7899 = vsel %vm7174, %v7658, %v7515
      %v7900 = vsel %vm7174, %v7663, %v7516
      %v7901 = vsel %vm7174, %v7668, %v7517
      %v7902 = vsel %vm7174, %v7673, %v7518
      %v7903 = vsel %vm7174, %v7678, %v7519
      %v7904 = vsel %vm7174, %v7683, %v7520
      %v7905 = vsel %vm7174, %v7688, %v7521
      %v7906 = vsel %vm7174, %v7693, %v7522
      %v7907 = vsel %vm7174, %v7698, %v7523
      %v7908 = vsel %vm7174, %v7703, %v7524
      %v7909 = vsel %vm7174, %v7708, %v7525
      %v7910 = vsel %vm7174, %v7713, %v7526
      %v7911 = vsel %vm7174, %v7718, %v7527
      %v7912 = vsel %vm7174, %v7723, %v7528
      %v7913 = vsel %vm7174, %v7728, %v7529
      %v7914 = vsel %vm7174, %v7733, %v7530
      %v7915 = vsel %vm7174, %v7738, %v7531
      %v7916 = vsel %vm7174, %v7743, %v7532
      %v7917 = vsel %vm7174, %v7748, %v7533
      %v7918 = vsel %vm7174, %v7753, %v7534
      %v7919 = vsel %vm7174, %v7758, %v7535
      %v7920 = vsel %vm7174, %v7763, %v7536
      %v7921 = vsel %vm7174, %v7768, %v7537
      %v7922 = vsel %vm7174, %v7773, %v7538
      %v7923 = vsel %vm7174, %v7778, %v7539
      %v7924 = vsel %vm7174, %v7783, %v7540
      %v7925 = vsel %vm7174, %v7788, %v7541
      %v7926 = vsel %vm7174, %v7793, %v7542
      %v7927 = vsel %vm7174, %v7798, %v7543
      %v7928 = vsel %vm7174, %v7803, %v7544
      %v7929 = vsel %vm7174, %v7808, %v7545
      %v7930 = vsel %vm7174, %v7813, %v7546
      %v7931 = vsel %vm7174, %v7818, %v7547
      %v7932 = vsel %vm7174, %v7823, %v7548
      %v7933 = vsel %vm7174, %v7828, %v7549
      %v7934 = vsel %vm7174, %v7833, %v7550
      %v7935 = vsel %vm7174, %v7838, %v7551
      %v7936 = vsel %vm7174, %v7843, %v7552
      %v7937 = vsel %vm7174, %v7848, %v7553
      %v7938 = vsel %vm7174, %v7853, %v7554
      %v7939 = vsel %vm7174, %v7858, %v7555
      %v7940 = vsel %vm7174, %v7863, %v7556
      %v7941 = vsel %vm7174, %v7868, %v7557
      %v7942 = vsel %vm7174, %v7873, %v7558
      %v7943 = vsel %vm7174, %v7878, %v7559
      %vm7944 = vcmask 72704
      %7945 = vst.msk [vmem:[%s178] sm:$0xff] %vm7944, %v7880
      %7946 = vst.msk [vmem:[%s178 + $0x8] sm:$0xff] %vm7944, %v7881
      %7947 = vst.msk [vmem:[%s178 + $0x10] sm:$0xff] %vm7944, %v7882
      %7948 = vst.msk [vmem:[%s178 + $0x18] sm:$0xff] %vm7944, %v7883
      %7949 = vst.msk [vmem:[%s178 + $0x20] sm:$0xff] %vm7944, %v7884
      %7950 = vst.msk [vmem:[%s178 + $0x28] sm:$0xff] %vm7944, %v7885
      %7951 = vst.msk [vmem:[%s178 + $0x30] sm:$0xff] %vm7944, %v7886
      %7952 = vst.msk [vmem:[%s178 + $0x38] sm:$0xff] %vm7944, %v7887
      %7953 = vst.msk [vmem:[%s178 + $0x40] sm:$0xff] %vm7944, %v7888
      %7954 = vst.msk [vmem:[%s178 + $0x48] sm:$0xff] %vm7944, %v7889
      %7955 = vst.msk [vmem:[%s178 + $0x50] sm:$0xff] %vm7944, %v7890
      %7956 = vst.msk [vmem:[%s178 + $0x58] sm:$0xff] %vm7944, %v7891
      %7957 = vst.msk [vmem:[%s178 + $0x60] sm:$0xff] %vm7944, %v7892
      %7958 = vst.msk [vmem:[%s178 + $0x68] sm:$0xff] %vm7944, %v7893
      %7959 = vst.msk [vmem:[%s178 + $0x70] sm:$0xff] %vm7944, %v7894
      %7960 = vst.msk [vmem:[%s178 + $0x78] sm:$0xff] %vm7944, %v7895
      %7961 = vst.msk [vmem:[%s178 + $0x80] sm:$0xff] %vm7944, %v7896
      %7962 = vst.msk [vmem:[%s178 + $0x88] sm:$0xff] %vm7944, %v7897
      %7963 = vst.msk [vmem:[%s178 + $0x90] sm:$0xff] %vm7944, %v7898
      %7964 = vst.msk [vmem:[%s178 + $0x98] sm:$0xff] %vm7944, %v7899
      %7965 = vst.msk [vmem:[%s178 + $0xa0] sm:$0xff] %vm7944, %v7900
      %7966 = vst.msk [vmem:[%s178 + $0xa8] sm:$0xff] %vm7944, %v7901
      %7967 = vst.msk [vmem:[%s178 + $0xb0] sm:$0xff] %vm7944, %v7902
      %7968 = vst.msk [vmem:[%s178 + $0xb8] sm:$0xff] %vm7944, %v7903
      %7969 = vst.msk [vmem:[%s178 + $0xc0] sm:$0xff] %vm7944, %v7904
      %7970 = vst.msk [vmem:[%s178 + $0xc8] sm:$0xff] %vm7944, %v7905
      %7971 = vst.msk [vmem:[%s178 + $0xd0] sm:$0xff] %vm7944, %v7906
      %7972 = vst.msk [vmem:[%s178 + $0xd8] sm:$0xff] %vm7944, %v7907
      %7973 = vst.msk [vmem:[%s178 + $0xe0] sm:$0xff] %vm7944, %v7908
      %7974 = vst.msk [vmem:[%s178 + $0xe8] sm:$0xff] %vm7944, %v7909
      %7975 = vst.msk [vmem:[%s178 + $0xf0] sm:$0xff] %vm7944, %v7910
      %7976 = vst.msk [vmem:[%s178 + $0xf8] sm:$0xff] %vm7944, %v7911
      %7977 = vst.msk [vmem:[%s178 + $0x100] sm:$0xff] %vm7944, %v7912
      %7978 = vst.msk [vmem:[%s178 + $0x108] sm:$0xff] %vm7944, %v7913
      %7979 = vst.msk [vmem:[%s178 + $0x110] sm:$0xff] %vm7944, %v7914
      %7980 = vst.msk [vmem:[%s178 + $0x118] sm:$0xff] %vm7944, %v7915
      %7981 = vst.msk [vmem:[%s178 + $0x120] sm:$0xff] %vm7944, %v7916
      %7982 = vst.msk [vmem:[%s178 + $0x128] sm:$0xff] %vm7944, %v7917
      %7983 = vst.msk [vmem:[%s178 + $0x130] sm:$0xff] %vm7944, %v7918
      %7984 = vst.msk [vmem:[%s178 + $0x138] sm:$0xff] %vm7944, %v7919
      %7985 = vst.msk [vmem:[%s178 + $0x140] sm:$0xff] %vm7944, %v7920
      %7986 = vst.msk [vmem:[%s178 + $0x148] sm:$0xff] %vm7944, %v7921
      %7987 = vst.msk [vmem:[%s178 + $0x150] sm:$0xff] %vm7944, %v7922
      %7988 = vst.msk [vmem:[%s178 + $0x158] sm:$0xff] %vm7944, %v7923
      %7989 = vst.msk [vmem:[%s178 + $0x160] sm:$0xff] %vm7944, %v7924
      %7990 = vst.msk [vmem:[%s178 + $0x168] sm:$0xff] %vm7944, %v7925
      %7991 = vst.msk [vmem:[%s178 + $0x170] sm:$0xff] %vm7944, %v7926
      %7992 = vst.msk [vmem:[%s178 + $0x178] sm:$0xff] %vm7944, %v7927
      %7993 = vst.msk [vmem:[%s178 + $0x180] sm:$0xff] %vm7944, %v7928
      %7994 = vst.msk [vmem:[%s178 + $0x188] sm:$0xff] %vm7944, %v7929
      %7995 = vst.msk [vmem:[%s178 + $0x190] sm:$0xff] %vm7944, %v7930
      %7996 = vst.msk [vmem:[%s178 + $0x198] sm:$0xff] %vm7944, %v7931
      %7997 = vst.msk [vmem:[%s178 + $0x1a0] sm:$0xff] %vm7944, %v7932
      %7998 = vst.msk [vmem:[%s178 + $0x1a8] sm:$0xff] %vm7944, %v7933
      %7999 = vst.msk [vmem:[%s178 + $0x1b0] sm:$0xff] %vm7944, %v7934
      %8000 = vst.msk [vmem:[%s178 + $0x1b8] sm:$0xff] %vm7944, %v7935
      %8001 = vst.msk [vmem:[%s178 + $0x1c0] sm:$0xff] %vm7944, %v7936
      %8002 = vst.msk [vmem:[%s178 + $0x1c8] sm:$0xff] %vm7944, %v7937
      %8003 = vst.msk [vmem:[%s178 + $0x1d0] sm:$0xff] %vm7944, %v7938
      %8004 = vst.msk [vmem:[%s178 + $0x1d8] sm:$0xff] %vm7944, %v7939
      %8005 = vst.msk [vmem:[%s178 + $0x1e0] sm:$0xff] %vm7944, %v7940
      %8006 = vst.msk [vmem:[%s178 + $0x1e8] sm:$0xff] %vm7944, %v7941
      %8007 = vst.msk [vmem:[%s178 + $0x1f0] sm:$0xff] %vm7944, %v7942
      %8008 = vst.msk [vmem:[%s178 + $0x1f8] sm:$0xff] %vm7944, %v7943
      %s8009 = smul.u32 64, %s16
      %p8010 = scmp.lt.s32.totalorder %s8009, 127
      %s8011 = scalar_select %p8010, %s8009, 127
      %s8012 = smul.addr %s8011, 8
      %s8013 = scalar_lea.vmem %s5, %s8012
      // Predicated region
      $region83: #{romp_forward.1} parent=35 // pred_check
        %p8014 = pneg %p118
      $region84: #{romp_forward.1} parent=35 // pred_check_branch
        %8016 = sbr.rel (%p8014) target = $region86
      $region85: #{romp_forward.1} parent=35 // pred_region
        %s8017 = smul.u32 64, %s16
      $region86: #{romp_forward.1} parent=35 // pred_fallthru
        _
    $region36: #{romp_forward.1} parent=5 // pred_fallthru
      _
    %p8018 = scmp.le.s32.totalorder 2, %s11
    // Predicated region
    $region87: #{romp_forward.1} parent=5 // pred_check
      %p8019 = pneg %p8018
    $region88: #{romp_forward.1} parent=5 // pred_check_branch
      %8021 = sbr.rel (%p8019) target = $region90
    $region89: #{romp_forward.1} parent=5 // pred_region
      %s8022 = ssub.s32 %s11, 2
      // Predicated region
      $region91: #{romp_forward.1} parent=89 // pred_check
        %p8023 = pneg %p124
      $region92: #{romp_forward.1} parent=89 // pred_check_branch
        %8025 = sbr.rel (%p8023) target = $region94
      $region93: #{romp_forward.1} parent=89 // pred_region
        %s8026 = smul.u32 64, %s17
        %p8027 = scmp.lt.s32.totalorder %s8026, 127
        %s8028 = scalar_select %p8027, %s8026, 127
        %s8029 = smul.addr %s8028, 8
        %s8030 = scalar_lea.vmem %s5, %s8029
      $region94: #{romp_forward.1} parent=89 // pred_fallthru
        _
    $region90: #{romp_forward.1} parent=5 // pred_fallthru
      _
  $region6: #{romp_forward.1} parent=0 // loop_footer
    %s15 = sadd.s32 1, %s11
  $region7: #{romp_forward.1} parent=0 // loop_footer_branch
    %10 = sbr.rel target = $region3
  $region8: #{romp_forward.1} parent=0 // loop_exit
    _
  %8031 = vsyncmov [#allocation3]
  %s8032 = vpop.sfrf %8031
  %p8033 = scmp.eq.s32.totalorder %s8032, 0
  %p8034 = pneg %p8033
  %8036 = shalt.err (%p8034)
  %s8037 = scalar_lea.sflag [#allocation3], 1
  %8038 = vsyncmov %s8037
  %s8039 = vpop.sfrf %8038
  %p8040 = scmp.eq.s32.totalorder %s8039, 0
  %p8041 = pneg %p8040
  %8043 = shalt.err (%p8041)

</llo_original>
